<compile_context>
chip_gen: v6e
topology: v6e:2x2x1
jax: 0.10.0
libtpu: 0.0.40
codegen_flags: <defaults>
</compile_context>

<pallas_src>
import functools

import jax
import jax.numpy as jnp
from jax import lax
from jax.experimental import pallas as pl
from jax.experimental.pallas import tpu as pltpu

GN_EPS = 1e-5                 # PyTorch GroupNorm default
GROUPS = 32                   # GroupNorm(32, C) everywhere in the model


def _round_up(x, m):
    return (x + m - 1) // m * m


def _vmem_limit_bytes():
    cap = None
    try:
        info = pltpu.get_tpu_info()
        for name in ("vmem_capacity_bytes", "vmem_bytes", "vmem_size_bytes"):
            v = getattr(info, name, None)
            if v:
                cap = int(v)
                break
    except Exception:
        cap = None
    if cap is None:
        cap = 64 * 1024 * 1024      # v7x per-TensorCore VMEM (smallest gen)
    return min(cap * 3 // 4, 96 * 1024 * 1024)


VMEM_LIMIT_BYTES = _vmem_limit_bytes()


def _cparams(*sem):
    return pltpu.CompilerParams(dimension_semantics=sem,
                                vmem_limit_bytes=VMEM_LIMIT_BYTES)


def _group_onehot(c):
    cg = c // GROUPS
    ch = jnp.arange(c)
    return (ch[:, None] // cg == jnp.arange(GROUPS)[None, :]).astype(jnp.float32)


# ---------------------------------------------------------------------------
# Shared in-kernel GroupNorm helper (f32, matches torch semantics).  `oh` is a
# (C, G) group one-hot, `oht` its transpose; the tiny (1,C)x(C,G)/(1,G)x(G,C)
# dots do the grouped reduce / broadcast while keeping C lane-dense.
# `mask` (rows, 1) selects rows contributing to the statistics.
# ---------------------------------------------------------------------------
def _gn_normalize(y, oh, oht, gamma, beta, inv_count, mask):
    ys = y if mask is None else y * mask
    csum = jnp.sum(ys, axis=0, keepdims=True)                      # (1, C)
    gmean = jnp.dot(csum, oh, preferred_element_type=jnp.float32) * inv_count
    cmean = jnp.dot(gmean, oht, preferred_element_type=jnp.float32)
    xc = y - cmean
    sq = xc * xc if mask is None else xc * xc * mask
    gvar = jnp.dot(jnp.sum(sq, axis=0, keepdims=True), oh,
                   preferred_element_type=jnp.float32) * inv_count
    cinv = jnp.dot(lax.rsqrt(gvar + GN_EPS), oht,
                   preferred_element_type=jnp.float32)
    return xc * cinv * gamma + beta


# ---------------------------------------------------------------------------
# Conv geometry: valid pixel (h, w) lives at flattened padded row
# (h+2)*Wp + (w+2);  Wp is rounded to a multiple of 8 so 2*ky*Wp tap offsets
# stay sublane aligned; Hp = H + 5 keeps every tap window in range.
# ---------------------------------------------------------------------------
def _conv_geom(h, w):
    wp = _round_up(w + 4, 8)
    hp = h + 5
    return wp, hp


def _conv3x3_vmem_est(h, w, cin, cout, out_padded):
    wp, hp = _conv_geom(h, w)
    hwp, hpwp = h * wp, hp * wp
    out_rows = hpwp if out_padded else hwp
    if 9 * cin <= 64:
        in_b = hwp * 9 * cin * 2
        acc_b = 2 * hwp * cout * 4
    else:
        in_b = hpwp * cin * 2
        acc_b = 3 * hwp * cout * 4
    return 2 * in_b + 2 * out_rows * cout * 2 + acc_b + 4 * 9 * cin * cout


def _fits_fused(h, w, cin, cout, out_padded):
    return _conv3x3_vmem_est(h, w, cin, cout, out_padded) <= VMEM_LIMIT_BYTES * 4 // 5


def _pad_flat(x, wp, hp):
    """NHWC -> flattened zero-padded (N, hp*wp, C) bf16 layout."""
    n, h, w, c = x.shape
    xp = jnp.pad(x.astype(jnp.bfloat16),
                 ((0, 0), (2, hp - h - 2), (2, wp - w - 2), (0, 0)))
    return xp.reshape(n, hp * wp, c)


# ---------------------------------------------------------------------------
# Fused dilated 3x3 conv (+bias +GroupNorm +optional ReLU) kernels, one grid
# step per sample.  The epilogue can either store the (H, Wp) row-flattened
# layout (wrap columns garbage, sliced off by the wrapper) or store directly
# into the next conv's zero-padded flat layout (out_padded=True).
# ---------------------------------------------------------------------------
def _conv_gn_epilogue(y, gm, bt, oh, oht, o_ref, *, wp, w_valid, inv_count,
                      relu, out_padded):
    hwp = y.shape[0]
    col = lax.broadcasted_iota(jnp.int32, (hwp, 1), 0) % wp
    mask = (col < w_valid).astype(jnp.float32)
    out = _gn_normalize(y, oh, oht, gm, bt, inv_count, mask)
    if relu:
        out = jnp.maximum(out, 0.0)
    if out_padded:
        cout = o_ref.shape[1]
        shift = 2 * wp + 2
        tail = o_ref.shape[0] - shift - hwp
        o_ref[0:shift, :] = jnp.zeros((shift, cout), o_ref.dtype)
        o_ref[shift:shift + hwp, :] = (out * mask).astype(o_ref.dtype)
        o_ref[shift + hwp:shift + hwp + tail, :] = jnp.zeros((tail, cout),
                                                             o_ref.dtype)
    else:
        o_ref[...] = out.astype(o_ref.dtype)


def _conv3x3_taps_gn_kernel(x_ref, w_ref, b_ref, gm_ref, bt_ref, oh_ref,
                            oht_ref, o_ref, acc_ref, *, hwp, wp, w_valid,
                            inv_count, relu, out_padded):
    acc_ref[...] = jnp.dot(x_ref[0:hwp, :], w_ref[0],
                           preferred_element_type=jnp.float32)
    for t in range(1, 9):
        ky, kx = divmod(t, 3)
        d = 2 * ky * wp + 2 * kx
        acc_ref[...] += jnp.dot(x_ref[d:d + hwp, :], w_ref[t],
                                preferred_element_type=jnp.float32)
    y = acc_ref[...] + b_ref[...]
    _conv_gn_epilogue(y, gm_ref[...], bt_ref[...], oh_ref[...], oht_ref[...],
                      o_ref, wp=wp, w_valid=w_valid, inv_count=inv_count,
                      relu=relu, out_padded=out_padded)


def _conv3x3_stacked_gn_kernel(x_ref, w_ref, b_ref, gm_ref, bt_ref, oh_ref,
                               oht_ref, o_ref, *, wp, w_valid, inv_count,
                               relu, out_padded):
    # Single K = 9*Cin matmul (used only when Cin is tiny, e.g. the RGB input).
    y = jnp.dot(x_ref[...], w_ref[...],
                preferred_element_type=jnp.float32) + b_ref[...]
    _conv_gn_epilogue(y, gm_ref[...], bt_ref[...], oh_ref[...], oht_ref[...],
                      o_ref, wp=wp, w_valid=w_valid, inv_count=inv_count,
                      relu=relu, out_padded=out_padded)


# ---------------------------------------------------------------------------
# Row-tiled fallback for large feature maps: pass 1 computes conv+bias per row
# tile (manual DMA with halo) and accumulates per-group sums/sq-sums across
# tiles; pass 2 applies the GroupNorm affine (+ReLU).
# ---------------------------------------------------------------------------
def _conv3x3_tiled_kernel(x_hbm, w_ref, b_ref, oh_ref, y_ref, stats_ref,
                          xbuf, sem, *, rows, halo, wp, w_valid):
    n = pl.program_id(0)
    t = pl.program_id(1)
    # TODO(synk): double-buffer this copy (prefetch tile t+1) to overlap DMA.
    cp = pltpu.make_async_copy(
        x_hbm.at[n, pl.ds(t * rows, rows + halo), :], xbuf, sem.at[0])
    cp.start()
    cp.wait()
    acc = jnp.dot(xbuf[0:rows, :], w_ref[0], preferred_element_type=jnp.float32)
    for tp in range(1, 9):
        ky, kx = divmod(tp, 3)
        d = 2 * ky * wp + 2 * kx
        acc = acc + jnp.dot(xbuf[d:d + rows, :], w_ref[tp],
                            preferred_element_type=jnp.float32)
    y = acc + b_ref[...]
    y_ref[...] = y.astype(y_ref.dtype)

    col = lax.broadcasted_iota(jnp.int32, (rows, 1), 0) % wp
    m = (col < w_valid).astype(jnp.float32)
    ym = y * m
    s1 = jnp.dot(jnp.sum(ym, axis=0, keepdims=True), oh_ref[...],
                 preferred_element_type=jnp.float32)
    s2 = jnp.dot(jnp.sum(ym * y, axis=0, keepdims=True), oh_ref[...],
                 preferred_element_type=jnp.float32)

    @pl.when(t == 0)
    def _():
        stats_ref[...] = jnp.zeros_like(stats_ref)

    stats_ref[...] += jnp.concatenate([s1, s2], axis=0)


def _gn_apply_kernel(y_ref, stats_ref, gm_ref, bt_ref, oht_ref, o_ref, *,
                     inv_count, relu):
    y = y_ref[...].astype(jnp.float32)
    mean_g = stats_ref[0:1, :] * inv_count
    var_g = stats_ref[1:2, :] * inv_count - mean_g * mean_g
    rstd_g = lax.rsqrt(var_g + GN_EPS)
    mean_c = jnp.dot(mean_g, oht_ref[...], preferred_element_type=jnp.float32)
    rstd_c = jnp.dot(rstd_g, oht_ref[...], preferred_element_type=jnp.float32)
    out = (y - mean_c) * rstd_c * gm_ref[...] + bt_ref[...]
    if relu:
        out = jnp.maximum(out, 0.0)
    o_ref[...] = out.astype(o_ref.dtype)


# ---------------------------------------------------------------------------
# conv3x3_gn wrapper
# ---------------------------------------------------------------------------
def conv3x3_gn(x, w, b, gamma, beta, *, relu, out_padded=False,
               in_padded=False, hw=None, force_tiled_th=None):
    """Conv2d(Cin, Cout, 3, padding=2, dilation=2) + bias + GroupNorm(32) (+ReLU).

    Input is NHWC (in_padded=False) or the flattened zero-padded
    (N, Hp*Wp, Cin) bf16 layout written by a previous out_padded=True call.
    Output is NHWC bf16, or that padded flat layout when out_padded=True.
    """
    if in_padded:
        assert hw is not None
        H, W = hw
        N, rows_in, Cin = x.shape
    else:
        N, H, W, Cin = x.shape
    Wp, Hp = _conv_geom(H, W)
    hwp, hpwp = H * Wp, Hp * Wp
    if in_padded:
        assert rows_in == hpwp
    Cout = w.shape[0]
    Cg = Cout // GROUPS
    inv_count = 1.0 / float(H * W * Cg)

    xflat = x if in_padded else _pad_flat(x, Wp, Hp)
    wt = jnp.transpose(w, (2, 3, 1, 0)).reshape(9, Cin, Cout).astype(jnp.bfloat16)
    b2 = b.reshape(1, Cout).astype(jnp.float32)
    gm = gamma.reshape(1, Cout).astype(jnp.float32)
    bt = beta.reshape(1, Cout).astype(jnp.float32)
    oh = _group_onehot(Cout)
    oht = oh.T

    fused = force_tiled_th is None and _fits_fused(H, W, Cin, Cout, out_padded)
    flops = int(2 * N * H * W * 9 * Cin * Cout)

    if fused:
        out_rows = hpwp if out_padded else hwp
        stacked = 9 * Cin <= 64
        if stacked:
            patches = jnp.concatenate(
                [xflat[:, 2 * ky * Wp + 2 * kx:2 * ky * Wp + 2 * kx + hwp, :]
                 for ky in range(3) for kx in range(3)], axis=-1)
            kernel = functools.partial(
                _conv3x3_stacked_gn_kernel, wp=Wp, w_valid=W,
                inv_count=inv_count, relu=relu, out_padded=out_padded)
            x_arg, w_arg = patches, wt.reshape(9 * Cin, Cout)
            x_spec = pl.BlockSpec((None, hwp, 9 * Cin), lambda n: (n, 0, 0))
            w_spec = pl.BlockSpec((9 * Cin, Cout), lambda n: (0, 0))
            scratch = []
        else:
            kernel = functools.partial(
                _conv3x3_taps_gn_kernel, hwp=hwp, wp=Wp, w_valid=W,
                inv_count=inv_count, relu=relu, out_padded=out_padded)
            x_arg, w_arg = xflat, wt
            x_spec = pl.BlockSpec((None, hpwp, Cin), lambda n: (n, 0, 0))
            w_spec = pl.BlockSpec((9, Cin, Cout), lambda n: (0, 0, 0))
            scratch = [pltpu.VMEM((hwp, Cout), jnp.float32)]
        bytes_acc = int(N * (x_arg.shape[1] * x_arg.shape[2] * 2
                             + out_rows * Cout * 2) + w_arg.size * 2)
        out = pl.pallas_call(
            kernel,
            out_shape=jax.ShapeDtypeStruct((N, out_rows, Cout), jnp.bfloat16),
            grid_spec=pltpu.PrefetchScalarGridSpec(
                num_scalar_prefetch=0,
                grid=(N,),
                in_specs=[
                    x_spec, w_spec,
                    pl.BlockSpec((1, Cout), lambda n: (0, 0)),
                    pl.BlockSpec((1, Cout), lambda n: (0, 0)),
                    pl.BlockSpec((1, Cout), lambda n: (0, 0)),
                    pl.BlockSpec((Cout, GROUPS), lambda n: (0, 0)),
                    pl.BlockSpec((GROUPS, Cout), lambda n: (0, 0)),
                ],
                out_specs=pl.BlockSpec((None, out_rows, Cout),
                                       lambda n: (n, 0, 0)),
                scratch_shapes=scratch),
            compiler_params=_cparams("parallel"),
            cost_estimate=pl.CostEstimate(flops=flops,
                                          transcendentals=int(N * GROUPS),
                                          bytes_accessed=bytes_acc),
        )(x_arg, w_arg, b2, gm, bt, oh, oht)
        if out_padded:
            return out
        return out.reshape(N, H, Wp, Cout)[:, :, :W, :]

    # ---- row-tiled fallback (large feature maps / forced in self-test) ----
    if force_tiled_th is not None:
        th = int(force_tiled_th)
    else:
        per_row = Wp * (Cin * 2 + Cout * 12)
        th = max(1, (VMEM_LIMIT_BYTES // 3) // per_row)
    th = max(1, min(th, H))
    while H % th:
        th -= 1
    rows = th * Wp
    n_tiles = H // th
    halo = 4 * Wp + 4

    conv_kernel = functools.partial(_conv3x3_tiled_kernel, rows=rows,
                                    halo=halo, wp=Wp, w_valid=W)
    conv_bytes = int(N * (hpwp * Cin * 2 + hwp * Cout * 2) + wt.size * 2)
    y_flat, stats = pl.pallas_call(
        conv_kernel,
        out_shape=(jax.ShapeDtypeStruct((N, hwp, Cout), jnp.bfloat16),
                   jax.ShapeDtypeStruct((N, 2, GROUPS), jnp.float32)),
        grid_spec=pltpu.PrefetchScalarGridSpec(
            num_scalar_prefetch=0,
            grid=(N, n_tiles),
            in_specs=[
                pl.BlockSpec(memory_space=pl.ANY),
                pl.BlockSpec((9, Cin, Cout), lambda n, t: (0, 0, 0)),
                pl.BlockSpec((1, Cout), lambda n, t: (0, 0)),
                pl.BlockSpec((Cout, GROUPS), lambda n, t: (0, 0)),
            ],
            out_specs=(
                pl.BlockSpec((None, rows, Cout), lambda n, t: (n, t, 0)),
                pl.BlockSpec((None, 2, GROUPS), lambda n, t: (n, 0, 0)),
            ),
            scratch_shapes=[
                pltpu.VMEM((rows + halo, Cin), jnp.bfloat16),
                pltpu.SemaphoreType.DMA((1,)),
            ]),
        compiler_params=_cparams("parallel", "arbitrary"),
        cost_estimate=pl.CostEstimate(flops=flops, transcendentals=0,
                                      bytes_accessed=conv_bytes),
    )(xflat, wt, b2, oh)

    gn_kernel = functools.partial(_gn_apply_kernel, inv_count=inv_count,
                                  relu=relu)
    out = pl.pallas_call(
        gn_kernel,
        out_shape=jax.ShapeDtypeStruct((N, hwp, Cout), jnp.bfloat16),
        grid_spec=pltpu.PrefetchScalarGridSpec(
            num_scalar_prefetch=0,
            grid=(N, n_tiles),
            in_specs=[
                pl.BlockSpec((None, rows, Cout), lambda n, t: (n, t, 0)),
                pl.BlockSpec((None, 2, GROUPS), lambda n, t: (n, 0, 0)),
                pl.BlockSpec((1, Cout), lambda n, t: (0, 0)),
                pl.BlockSpec((1, Cout), lambda n, t: (0, 0)),
                pl.BlockSpec((GROUPS, Cout), lambda n, t: (0, 0)),
            ],
            out_specs=pl.BlockSpec((None, rows, Cout), lambda n, t: (n, t, 0))),
        compiler_params=_cparams("parallel", "parallel"),
        cost_estimate=pl.CostEstimate(flops=int(2 * N * hwp * Cout),
                                      transcendentals=int(N * GROUPS),
                                      bytes_accessed=int(4 * N * hwp * Cout)),
    )(y_flat, stats, gm, bt, oht)

    outv = out.reshape(N, H, Wp, Cout)[:, :, :W, :]
    if out_padded:
        return _pad_flat(outv, Wp, Hp)
    return outv


# ---------------------------------------------------------------------------
# Per-sample matmul + bias + GroupNorm (+optional residual / ReLU):  used for
# the ring residual 1x1 conv and the 2x2 transposed conv (via (HW, 4C) layout).
# ---------------------------------------------------------------------------
def _mm_gn_kernel(x_ref, w_ref, b_ref, gm_ref, bt_ref, oh_ref, oht_ref, o_ref,
                  *, inv_count, relu):
    y = jnp.dot(x_ref[...], w_ref[...],
                preferred_element_type=jnp.float32) + b_ref[...]
    out = _gn_normalize(y, oh_ref[...], oht_ref[...], gm_ref[...], bt_ref[...],
                        inv_count, None)
    if relu:
        out = jnp.maximum(out, 0.0)
    o_ref[...] = out.astype(o_ref.dtype)


def _mm_gn_res_kernel(x_ref, w_ref, b_ref, gm_ref, bt_ref, oh_ref, oht_ref,
                      res_ref, o_ref, *, inv_count, relu):
    y = jnp.dot(x_ref[...], w_ref[...],
                preferred_element_type=jnp.float32) + b_ref[...]
    out = _gn_normalize(y, oh_ref[...], oht_ref[...], gm_ref[...], bt_ref[...],
                        inv_count, None) + res_ref[...].astype(jnp.float32)
    if relu:
        out = jnp.maximum(out, 0.0)
    o_ref[...] = out.astype(o_ref.dtype)


def _mm_gn_call(x2, wmat, bias, gamma, beta, onehot, inv_count, residual, relu):
    # TODO(synk): tile M (with a two-pass GN) for very large H*W, as done for
    # the 3x3 convs; these per-sample blocks are much smaller than the convs.
    N, M, Cin = x2.shape
    Kn = wmat.shape[1]
    G = onehot.shape[1]
    onehot_t = onehot.T

    in_specs = [
        pl.BlockSpec((None, M, Cin), lambda n: (n, 0, 0)),
        pl.BlockSpec((Cin, Kn), lambda n: (0, 0)),
        pl.BlockSpec((1, Kn), lambda n: (0, 0)),
        pl.BlockSpec((1, Kn), lambda n: (0, 0)),
        pl.BlockSpec((1, Kn), lambda n: (0, 0)),
        pl.BlockSpec((Kn, G), lambda n: (0, 0)),
        pl.BlockSpec((G, Kn), lambda n: (0, 0)),
    ]
    args = [x2, wmat, bias, gamma, beta, onehot, onehot_t]
    if residual is not None:
        kernel = functools.partial(_mm_gn_res_kernel, inv_count=inv_count,
                                   relu=relu)
        in_specs.append(pl.BlockSpec((None, M, Kn), lambda n: (n, 0, 0)))
        args.append(residual)
    else:
        kernel = functools.partial(_mm_gn_kernel, inv_count=inv_count,
                                   relu=relu)

    flops = int(2 * N * M * Cin * Kn)
    bytes_acc = int(N * M * Cin * 2 + Cin * Kn * 2
                    + N * M * Kn * 2 * (2 if residual is not None else 1))
    return pl.pallas_call(
        kernel,
        out_shape=jax.ShapeDtypeStruct((N, M, Kn), jnp.bfloat16),
        grid_spec=pltpu.PrefetchScalarGridSpec(
            num_scalar_prefetch=0,
            grid=(N,),
            in_specs=in_specs,
            out_specs=pl.BlockSpec((None, M, Kn), lambda n: (n, 0, 0)),
        ),
        compiler_params=_cparams("parallel"),
        cost_estimate=pl.CostEstimate(flops=flops, transcendentals=int(N * G),
                                      bytes_accessed=bytes_acc),
    )(*args)


def conv1x1_gn_res_relu(x, w, gamma, beta, residual):
    """relu( GroupNorm(Conv2d(Cin, Cout, 1, bias=False)(x)) + residual )."""
    N, H, W, Cin = x.shape
    Cout = w.shape[0]
    Cg = Cout // GROUPS
    x2 = x.astype(jnp.bfloat16).reshape(N, H * W, Cin)
    wmat = w.reshape(Cout, Cin).T.astype(jnp.bfloat16)
    zeros_b = jnp.zeros((1, Cout), jnp.float32)
    gm = gamma.reshape(1, Cout).astype(jnp.float32)
    bt = beta.reshape(1, Cout).astype(jnp.float32)
    res = residual.astype(jnp.bfloat16).reshape(N, H * W, Cout)
    out = _mm_gn_call(x2, wmat, zeros_b, gm, bt, _group_onehot(Cout),
                      1.0 / float(H * W * Cg), res, True)
    return out.reshape(N, H, W, Cout)


def conv_transpose2x2_gn(x, w, b, gamma, beta):
    """ConvTranspose2d(Cin, Cout, 2, stride=2) + GroupNorm(32, Cout)."""
    N, H, W, Cin = x.shape
    Cout = w.shape[1]
    Cg = Cout // GROUPS
    x2 = x.astype(jnp.bfloat16).reshape(N, H * W, Cin)
    wmat = jnp.transpose(w, (0, 2, 3, 1)).reshape(Cin, 4 * Cout).astype(jnp.bfloat16)
    b4 = jnp.tile(b, 4).reshape(1, 4 * Cout).astype(jnp.float32)
    gm4 = jnp.tile(gamma, 4).reshape(1, 4 * Cout).astype(jnp.float32)
    bt4 = jnp.tile(beta, 4).reshape(1, 4 * Cout).astype(jnp.float32)
    oh4 = jnp.tile(_group_onehot(Cout), (4, 1))
    y = _mm_gn_call(x2, wmat, b4, gm4, bt4, oh4,
                    1.0 / float(H * W * 4 * Cg), None, False)
    # TODO(synk): emit the pixel-shuffled layout straight from the kernel
    # (strided per-row stores) to drop this XLA transpose copy.
    y = y.reshape(N, H, W, 2, 2, Cout).transpose(0, 1, 3, 2, 4, 5)
    return y.reshape(N, 2 * H, 2 * W, Cout)


# ---------------------------------------------------------------------------
# Plain matmul + bias (final 1x1 out conv) and the fused feedback gate.
# ---------------------------------------------------------------------------
def _mm_bias_kernel(x_ref, w_ref, b_ref, o_ref):
    o_ref[...] = (jnp.dot(x_ref[...], w_ref[...],
                          preferred_element_type=jnp.float32)
                  + b_ref[...]).astype(o_ref.dtype)


def conv1x1(x, w, b=None, *, tm=1024, out_dtype=jnp.float32):
    """Conv2d(Cin, Cout, 1). w is torch-layout (Cout, Cin, 1, 1)."""
    # TODO(synk): n_classes < 128 makes the final store lane-sparse; emit a
    # lane-dense (N*H, W) layout if the out conv ever becomes a bottleneck.
    N, H, W, Cin = x.shape
    Cout = w.shape[0]
    M = N * H * W
    x2 = x.astype(jnp.bfloat16).reshape(M, Cin)
    wmat = w.reshape(Cout, Cin).T.astype(jnp.bfloat16)
    b2 = (jnp.zeros((1, Cout), jnp.float32) if b is None
          else b.reshape(1, Cout).astype(jnp.float32))
    tm = min(tm, M)
    out = pl.pallas_call(
        _mm_bias_kernel,
        out_shape=jax.ShapeDtypeStruct((M, Cout), out_dtype),
        grid_spec=pltpu.PrefetchScalarGridSpec(
            num_scalar_prefetch=0,
            grid=(pl.cdiv(M, tm),),
            in_specs=[
                pl.BlockSpec((tm, Cin), lambda i: (i, 0)),
                pl.BlockSpec((Cin, Cout), lambda i: (0, 0)),
                pl.BlockSpec((1, Cout), lambda i: (0, 0)),
            ],
            out_specs=pl.BlockSpec((tm, Cout), lambda i: (i, 0)),
        ),
        compiler_params=_cparams("parallel"),
        cost_estimate=pl.CostEstimate(
            flops=int(2 * M * Cin * Cout), transcendentals=0,
            bytes_accessed=int(M * Cin * 2 + Cin * Cout * 2 + M * Cout * 4)),
    )(x2, wmat, b2)
    return out.reshape(N, H, W, Cout)


def _gate_kernel(r_ref, w_ref, x_ref, o_ref):
    g = jnp.dot(r_ref[...], w_ref[...], preferred_element_type=jnp.float32)
    gate = 1.0 + jax.nn.sigmoid(g)
    o_ref[...] = (gate * x_ref[...].astype(jnp.float32)).astype(o_ref.dtype)


def feedback_gate(r1, w_back, x, *, tm=1024):
    """x * (1 + sigmoid(Conv2d(Cout, Cin, 1, bias=False)(r1))), one HBM pass."""
    N, H, W, Cout = r1.shape
    Cin = w_back.shape[0]
    M = N * H * W
    r2 = r1.astype(jnp.bfloat16).reshape(M, Cout)
    x2 = x.astype(jnp.bfloat16).reshape(M, Cin)
    wmat = w_back.reshape(Cin, Cout).T.astype(jnp.bfloat16)
    tm = min(tm, M)
    out = pl.pallas_call(
        _gate_kernel,
        out_shape=jax.ShapeDtypeStruct((M, Cin), jnp.bfloat16),
        grid_spec=pltpu.PrefetchScalarGridSpec(
            num_scalar_prefetch=0,
            grid=(pl.cdiv(M, tm),),
            in_specs=[
                pl.BlockSpec((tm, Cout), lambda i: (i, 0)),
                pl.BlockSpec((Cout, Cin), lambda i: (0, 0)),
                pl.BlockSpec((tm, Cin), lambda i: (i, 0)),
            ],
            out_specs=pl.BlockSpec((tm, Cin), lambda i: (i, 0)),
        ),
        compiler_params=_cparams("parallel"),
        cost_estimate=pl.CostEstimate(
            flops=int(2 * M * Cin * Cout), transcendentals=int(M * Cin),
            bytes_accessed=int(M * (Cout + 2 * Cin) * 2 + Cin * Cout * 2)),
    )(r2, wmat, x2)
    return out.reshape(N, H, W, Cin)


def maxpool2(x):
    N, H, W, C = x.shape
    return x.reshape(N, H // 2, 2, W // 2, 2, C).max(axis=(2, 4))


# ---------------------------------------------------------------------------
# RRU-Net building blocks (forward semantics of RRU_first_down/RRU_down/RRU_up)
# ---------------------------------------------------------------------------
def rru_double_conv(x, p):
    N, H, W, Cin = x.shape
    Cout = p['w1'].shape[0]
    chain = (_fits_fused(H, W, Cin, Cout, True)
             and _fits_fused(H, W, Cout, Cout, False))
    y = conv3x3_gn(x, p['w1'], p['b1'], p['gn1_g'], p['gn1_b'],
                   relu=True, out_padded=chain)
    y = conv3x3_gn(y, p['w2'], p['b2'], p['gn2_g'], p['gn2_b'],
                   relu=False, in_padded=chain, hw=(H, W))
    return y


def rru_ring(x, p):
    ft1 = rru_double_conv(x, p['dc'])
    r1 = conv1x1_gn_res_relu(x, p['res_w'], p['res_gn_g'], p['res_gn_b'], ft1)
    x = feedback_gate(r1, p['back_w'], x)
    ft3 = rru_double_conv(x, p['dc'])
    r3 = conv1x1_gn_res_relu(x, p['res_w'], p['res_gn_g'], p['res_gn_b'], ft3)
    return r3


def rru_first_down(x, p):
    return rru_ring(x, p)


def rru_down(x, p):
    return rru_ring(maxpool2(x), p)


def rru_up(x1, x2, p):
    x1 = conv_transpose2x2_gn(x1, p['up_w'], p['up_b'], p['up_gn_g'], p['up_gn_b'])
    dH = x2.shape[1] - x1.shape[1]
    dW = x2.shape[2] - x1.shape[2]
    x1 = jnp.pad(x1, ((0, 0), (dH // 2, dH - dH // 2),
                      (dW // 2, dW - dW // 2), (0, 0)))
    x = jnp.maximum(jnp.concatenate([x2, x1], axis=-1), 0.0)
    return rru_ring(x, p)


def ringed_res_unet(params, x_nchw):
    x = jnp.transpose(x_nchw, (0, 2, 3, 1)).astype(jnp.bfloat16)   # NCHW -> NHWC
    x1 = rru_first_down(x, params['down'])
    x2 = rru_down(x1, params['down1'])
    x3 = rru_down(x2, params['down2'])
    x4 = rru_down(x3, params['down3'])
    x5 = rru_down(x4, params['down4'])
    x = rru_up(x5, x4, params['up1'])
    x = rru_up(x, x3, params['up2'])
    x = rru_up(x, x2, params['up3'])
    x = rru_up(x, x1, params['up4'])
    y = conv1x1(x, params['out_w'], params['out_b'], out_dtype=jnp.float32)
    return jnp.transpose(y, (0, 3, 1, 2))                          # NHWC -> NCHW


# ---------------------------------------------------------------------------
# Deterministic parameter initialization (shapes from the module's __init__)
# ---------------------------------------------------------------------------
def _conv_w(key, cout, cin, kh, kw):
    fan_in = cin * kh * kw
    return (jax.random.normal(key, (cout, cin, kh, kw), jnp.float32)
            / jnp.sqrt(float(fan_in)))


def _init_double_conv(key, cin, cout):
    k = jax.random.split(key, 2)
    return dict(
        w1=_conv_w(k[0], cout, cin, 3, 3), b1=jnp.zeros((cout,), jnp.float32),
        gn1_g=jnp.ones((cout,), jnp.float32), gn1_b=jnp.zeros((cout,), jnp.float32),
        w2=_conv_w(k[1], cout, cout, 3, 3), b2=jnp.zeros((cout,), jnp.float32),
        gn2_g=jnp.ones((cout,), jnp.float32), gn2_b=jnp.zeros((cout,), jnp.float32),
    )


def _init_block(key, cin, cout, with_up=False):
    ks = jax.random.split(key, 4)
    p = dict(
        dc=_init_double_conv(ks[0], cin, cout),
        res_w=_conv_w(ks[1], cout, cin, 1, 1),       # Conv2d(cin, cout, 1, bias=False)
        res_gn_g=jnp.ones((cout,), jnp.float32),
        res_gn_b=jnp.zeros((cout,), jnp.float32),
        back_w=_conv_w(ks[2], cin, cout, 1, 1),      # Conv2d(cout, cin, 1, bias=False)
    )
    if with_up:
        c = cin // 2
        p['up_w'] = (jax.random.normal(ks[3], (c, c, 2, 2), jnp.float32)
                     / jnp.sqrt(float(c * 4)))       # ConvTranspose2d(c, c, 2, 2)
        p['up_b'] = jnp.zeros((c,), jnp.float32)
        p['up_gn_g'] = jnp.ones((c,), jnp.float32)
        p['up_gn_b'] = jnp.zeros((c,), jnp.float32)
    return p


def init_params(key, n_channels=3, n_classes=1):
    ks = jax.random.split(key, 10)
    return dict(
        down=_init_block(ks[0], n_channels, 32),
        down1=_init_block(ks[1], 32, 64),
        down2=_init_block(ks[2], 64, 128),
        down3=_init_block(ks[3], 128, 256),
        down4=_init_block(ks[4], 256, 256),
        up1=_init_block(ks[5], 512, 128, with_up=True),
        up2=_init_block(ks[6], 256, 64, with_up=True),
        up3=_init_block(ks[7], 128, 32, with_up=True),
        up4=_init_block(ks[8], 64, 32, with_up=True),
        out_w=_conv_w(ks[9], n_classes, 32, 1, 1),   # outconv = Conv2d(32, n_classes, 1)
        out_b=jnp.zeros((n_classes,), jnp.float32),
    )


# ---------------------------------------------------------------------------
if __name__ == "__main__":
    key = jax.random.PRNGKey(0)
    k_x, k_p, k_t, k_w = jax.random.split(key, 4)

    # Self-check: the row-tiled conv3x3 path (used when a whole sample does
    # not fit the VMEM budget) must agree with the fused single-pass path.
    xt = jax.random.normal(k_t, (1, 16, 16, 32), jnp.float32)
    wt = jax.random.normal(k_w, (32, 32, 3, 3), jnp.float32) * 0.1
    bt_ = jnp.zeros((32,), jnp.float32)
    g_ = jnp.ones((32,), jnp.float32)
    be_ = jnp.zeros((32,), jnp.float32)
    fused_fn = jax.jit(functools.partial(conv3x3_gn, relu=True))
    tiled_fn = jax.jit(functools.partial(conv3x3_gn, relu=True,
                                         force_tiled_th=4))
    a = jax.block_until_ready(fused_fn(xt, wt, bt_, g_, be_))
    t = jax.block_until_ready(tiled_fn(xt, wt, bt_, g_, be_))
    err = float(jnp.max(jnp.abs(a.astype(jnp.float32) - t.astype(jnp.float32))))
    assert err < 0.25, err

    # Full forward pass on small NCHW input: batch=2, channels=3, 16x16.
    x = jax.random.normal(k_x, (2, 3, 16, 16), jnp.float32)
    params = init_params(k_p, n_channels=3, n_classes=1)
    fwd = jax.jit(ringed_res_unet)
    y = jax.block_until_ready(fwd(params, x))

    assert y.shape == (2, 1, 16, 16), y.shape
    assert jnp.all(jnp.isfinite(y))
    print("KERNEL_OK")
</pallas_src>

<mosaic_0001>
module attributes {stable_mosaic.version = 11 : i64} {
  func.func @_conv3x3_taps_gn_kernel(%arg0: i32, %arg1: memref<1x504x32xbf16, #tpu.memory_space<vmem>>, %arg2: memref<9x32x32xbf16, #tpu.memory_space<vmem>>, %arg3: memref<1x32xf32, #tpu.memory_space<vmem>>, %arg4: memref<1x32xf32, #tpu.memory_space<vmem>>, %arg5: memref<1x32xf32, #tpu.memory_space<vmem>>, %arg6: memref<32x32xf32, #tpu.memory_space<vmem>>, %arg7: memref<32x32xf32, #tpu.memory_space<vmem>>, %arg8: memref<1x384x32xbf16, #tpu.memory_space<vmem>>, %arg9: memref<384x32xf32, #tpu.memory_space<vmem>>) attributes {dimension_semantics = [#tpu.dimension_semantics<parallel>], iteration_bounds = array<i64: 1>, scalar_prefetch = 0 : i64, scratch_operands = 1 : i64, tpu.core_type = #tpu.core_type<tc>, window_params = [{transform_indices = @transform_0, window_bounds = array<i64: 1, 504, 32>}, {pipeline_mode = #tpu.pipeline_mode<synchronous>, transform_indices = @transform_1, window_bounds = array<i64: 9, 32, 32>}, {pipeline_mode = #tpu.pipeline_mode<synchronous>, transform_indices = @transform_2, window_bounds = array<i64: 1, 32>}, {pipeline_mode = #tpu.pipeline_mode<synchronous>, transform_indices = @transform_3, window_bounds = array<i64: 1, 32>}, {pipeline_mode = #tpu.pipeline_mode<synchronous>, transform_indices = @transform_4, window_bounds = array<i64: 1, 32>}, {pipeline_mode = #tpu.pipeline_mode<synchronous>, transform_indices = @transform_5, window_bounds = array<i64: 32, 32>}, {pipeline_mode = #tpu.pipeline_mode<synchronous>, transform_indices = @transform_6, window_bounds = array<i64: 32, 32>}, {transform_indices = @transform_7, window_bounds = array<i64: 1, 384, 32>}]} {
    %c0 = arith.constant 0 : index
    %c0_0 = arith.constant 0 : index
    %c0_1 = arith.constant 0 : index
    %0 = vector.load %arg1[%c0, %c0_0, %c0_1] : memref<1x504x32xbf16, #tpu.memory_space<vmem>>, vector<1x384x32xbf16>
    %1 = vector.shape_cast %0 : vector<1x384x32xbf16> to vector<384x32xbf16>
    %c0_2 = arith.constant 0 : index
    %c0_3 = arith.constant 0 : index
    %c0_4 = arith.constant 0 : index
    %2 = vector.load %arg2[%c0_2, %c0_3, %c0_4] : memref<9x32x32xbf16, #tpu.memory_space<vmem>>, vector<1x32x32xbf16>
    %3 = vector.shape_cast %2 : vector<1x32x32xbf16> to vector<32x32xbf16>
    %cst = arith.constant dense<0.000000e+00> : vector<384x32xf32>
    %4 = tpu.matmul %1, %3, %cst {dimension_numbers = #tpu.dot_dimension_numbers<[1], [0], [0], [1], [0, 0, 1, 1], [], []>} : vector<384x32xbf16>, vector<32x32xbf16>, vector<384x32xf32> -> vector<384x32xf32>
    %c0_5 = arith.constant 0 : index
    %c0_6 = arith.constant 0 : index
    %5 = vector.load %arg9[%c0_5, %c0_6] : memref<384x32xf32, #tpu.memory_space<vmem>>, vector<384x32xf32>
    tpu.vector_store %arg9[%c0_5, %c0_6], %4 {strides = array<i32>} : memref<384x32xf32, #tpu.memory_space<vmem>>, vector<384x32xf32>,
    %c0_7 = arith.constant 0 : index
    %c0_8 = arith.constant 0 : index
    %6 = vector.load %arg9[%c0_7, %c0_8] : memref<384x32xf32, #tpu.memory_space<vmem>>, vector<384x32xf32>
    %c0_9 = arith.constant 0 : index
    %c2 = arith.constant 2 : index
    %c0_10 = arith.constant 0 : index
    %7 = vector.load %arg1[%c0_9, %c2, %c0_10] : memref<1x504x32xbf16, #tpu.memory_space<vmem>>, vector<1x384x32xbf16>
    %8 = vector.shape_cast %7 : vector<1x384x32xbf16> to vector<384x32xbf16>
    %c1 = arith.constant 1 : index
    %c0_11 = arith.constant 0 : index
    %c0_12 = arith.constant 0 : index
    %9 = vector.load %arg2[%c1, %c0_11, %c0_12] : memref<9x32x32xbf16, #tpu.memory_space<vmem>>, vector<1x32x32xbf16>
    %10 = vector.shape_cast %9 : vector<1x32x32xbf16> to vector<32x32xbf16>
    %cst_13 = arith.constant dense<0.000000e+00> : vector<384x32xf32>
    %11 = tpu.matmul %8, %10, %cst_13 {dimension_numbers = #tpu.dot_dimension_numbers<[1], [0], [0], [1], [0, 0, 1, 1], [], []>} : vector<384x32xbf16>, vector<32x32xbf16>, vector<384x32xf32> -> vector<384x32xf32>
    %12 = arith.addf %6, %11 : vector<384x32xf32>
    %c0_14 = arith.constant 0 : index
    %c0_15 = arith.constant 0 : index
    %13 = vector.load %arg9[%c0_14, %c0_15] : memref<384x32xf32, #tpu.memory_space<vmem>>, vector<384x32xf32>
    tpu.vector_store %arg9[%c0_14, %c0_15], %12 {strides = array<i32>} : memref<384x32xf32, #tpu.memory_space<vmem>>, vector<384x32xf32>,
    %c0_16 = arith.constant 0 : index
    %c0_17 = arith.constant 0 : index
    %14 = vector.load %arg9[%c0_16, %c0_17] : memref<384x32xf32, #tpu.memory_space<vmem>>, vector<384x32xf32>
    %c0_18 = arith.constant 0 : index
    %c4 = arith.constant 4 : index
    %c0_19 = arith.constant 0 : index
    %15 = vector.load %arg1[%c0_18, %c4, %c0_19] : memref<1x504x32xbf16, #tpu.memory_space<vmem>>, vector<1x384x32xbf16>
    %16 = vector.shape_cast %15 : vector<1x384x32xbf16> to vector<384x32xbf16>
    %c2_20 = arith.constant 2 : index
    %c0_21 = arith.constant 0 : index
    %c0_22 = arith.constant 0 : index
    %17 = vector.load %arg2[%c2_20, %c0_21, %c0_22] : memref<9x32x32xbf16, #tpu.memory_space<vmem>>, vector<1x32x32xbf16>
    %18 = vector.shape_cast %17 : vector<1x32x32xbf16> to vector<32x32xbf16>
    %cst_23 = arith.constant dense<0.000000e+00> : vector<384x32xf32>
    %19 = tpu.matmul %16, %18, %cst_23 {dimension_numbers = #tpu.dot_dimension_numbers<[1], [0], [0], [1], [0, 0, 1, 1], [], []>} : vector<384x32xbf16>, vector<32x32xbf16>, vector<384x32xf32> -> vector<384x32xf32>
    %20 = arith.addf %14, %19 : vector<384x32xf32>
    %c0_24 = arith.constant 0 : index
    %c0_25 = arith.constant 0 : index
    %21 = vector.load %arg9[%c0_24, %c0_25] : memref<384x32xf32, #tpu.memory_space<vmem>>, vector<384x32xf32>
    tpu.vector_store %arg9[%c0_24, %c0_25], %20 {strides = array<i32>} : memref<384x32xf32, #tpu.memory_space<vmem>>, vector<384x32xf32>,
    %c0_26 = arith.constant 0 : index
    %c0_27 = arith.constant 0 : index
    %22 = vector.load %arg9[%c0_26, %c0_27] : memref<384x32xf32, #tpu.memory_space<vmem>>, vector<384x32xf32>
    %c0_28 = arith.constant 0 : index
    %c48 = arith.constant 48 : index
    %c0_29 = arith.constant 0 : index
    %23 = vector.load %arg1[%c0_28, %c48, %c0_29] : memref<1x504x32xbf16, #tpu.memory_space<vmem>>, vector<1x384x32xbf16>
    %24 = vector.shape_cast %23 : vector<1x384x32xbf16> to vector<384x32xbf16>
    %c3 = arith.constant 3 : index
    %c0_30 = arith.constant 0 : index
    %c0_31 = arith.constant 0 : index
    %25 = vector.load %arg2[%c3, %c0_30, %c0_31] : memref<9x32x32xbf16, #tpu.memory_space<vmem>>, vector<1x32x32xbf16>
    %26 = vector.shape_cast %25 : vector<1x32x32xbf16> to vector<32x32xbf16>
    %cst_32 = arith.constant dense<0.000000e+00> : vector<384x32xf32>
    %27 = tpu.matmul %24, %26, %cst_32 {dimension_numbers = #tpu.dot_dimension_numbers<[1], [0], [0], [1], [0, 0, 1, 1], [], []>} : vector<384x32xbf16>, vector<32x32xbf16>, vector<384x32xf32> -> vector<384x32xf32>
    %28 = arith.addf %22, %27 : vector<384x32xf32>
    %c0_33 = arith.constant 0 : index
    %c0_34 = arith.constant 0 : index
    %29 = vector.load %arg9[%c0_33, %c0_34] : memref<384x32xf32, #tpu.memory_space<vmem>>, vector<384x32xf32>
    tpu.vector_store %arg9[%c0_33, %c0_34], %28 {strides = array<i32>} : memref<384x32xf32, #tpu.memory_space<vmem>>, vector<384x32xf32>,
    %c0_35 = arith.constant 0 : index
    %c0_36 = arith.constant 0 : index
    %30 = vector.load %arg9[%c0_35, %c0_36] : memref<384x32xf32, #tpu.memory_space<vmem>>, vector<384x32xf32>
    %c0_37 = arith.constant 0 : index
    %c50 = arith.constant 50 : index
    %c0_38 = arith.constant 0 : index
    %31 = vector.load %arg1[%c0_37, %c50, %c0_38] : memref<1x504x32xbf16, #tpu.memory_space<vmem>>, vector<1x384x32xbf16>
    %32 = vector.shape_cast %31 : vector<1x384x32xbf16> to vector<384x32xbf16>
    %c4_39 = arith.constant 4 : index
    %c0_40 = arith.constant 0 : index
    %c0_41 = arith.constant 0 : index
    %33 = vector.load %arg2[%c4_39, %c0_40, %c0_41] : memref<9x32x32xbf16, #tpu.memory_space<vmem>>, vector<1x32x32xbf16>
    %34 = vector.shape_cast %33 : vector<1x32x32xbf16> to vector<32x32xbf16>
    %cst_42 = arith.constant dense<0.000000e+00> : vector<384x32xf32>
    %35 = tpu.matmul %32, %34, %cst_42 {dimension_numbers = #tpu.dot_dimension_numbers<[1], [0], [0], [1], [0, 0, 1, 1], [], []>} : vector<384x32xbf16>, vector<32x32xbf16>, vector<384x32xf32> -> vector<384x32xf32>
    %36 = arith.addf %30, %35 : vector<384x32xf32>
    %c0_43 = arith.constant 0 : index
    %c0_44 = arith.constant 0 : index
    %37 = vector.load %arg9[%c0_43, %c0_44] : memref<384x32xf32, #tpu.memory_space<vmem>>, vector<384x32xf32>
    tpu.vector_store %arg9[%c0_43, %c0_44], %36 {strides = array<i32>} : memref<384x32xf32, #tpu.memory_space<vmem>>, vector<384x32xf32>,
    %c0_45 = arith.constant 0 : index
    %c0_46 = arith.constant 0 : index
    %38 = vector.load %arg9[%c0_45, %c0_46] : memref<384x32xf32, #tpu.memory_space<vmem>>, vector<384x32xf32>
    %c0_47 = arith.constant 0 : index
    %c52 = arith.constant 52 : index
    %c0_48 = arith.constant 0 : index
    %39 = vector.load %arg1[%c0_47, %c52, %c0_48] : memref<1x504x32xbf16, #tpu.memory_space<vmem>>, vector<1x384x32xbf16>
    %40 = vector.shape_cast %39 : vector<1x384x32xbf16> to vector<384x32xbf16>
    %c5 = arith.constant 5 : index
    %c0_49 = arith.constant 0 : index
    %c0_50 = arith.constant 0 : index
    %41 = vector.load %arg2[%c5, %c0_49, %c0_50] : memref<9x32x32xbf16, #tpu.memory_space<vmem>>, vector<1x32x32xbf16>
    %42 = vector.shape_cast %41 : vector<1x32x32xbf16> to vector<32x32xbf16>
    %cst_51 = arith.constant dense<0.000000e+00> : vector<384x32xf32>
    %43 = tpu.matmul %40, %42, %cst_51 {dimension_numbers = #tpu.dot_dimension_numbers<[1], [0], [0], [1], [0, 0, 1, 1], [], []>} : vector<384x32xbf16>, vector<32x32xbf16>, vector<384x32xf32> -> vector<384x32xf32>
    %44 = arith.addf %38, %43 : vector<384x32xf32>
    %c0_52 = arith.constant 0 : index
    %c0_53 = arith.constant 0 : index
    %45 = vector.load %arg9[%c0_52, %c0_53] : memref<384x32xf32, #tpu.memory_space<vmem>>, vector<384x32xf32>
    tpu.vector_store %arg9[%c0_52, %c0_53], %44 {strides = array<i32>} : memref<384x32xf32, #tpu.memory_space<vmem>>, vector<384x32xf32>,
    %c0_54 = arith.constant 0 : index
    %c0_55 = arith.constant 0 : index
    %46 = vector.load %arg9[%c0_54, %c0_55] : memref<384x32xf32, #tpu.memory_space<vmem>>, vector<384x32xf32>
    %c0_56 = arith.constant 0 : index
    %c96 = arith.constant 96 : index
    %c0_57 = arith.constant 0 : index
    %47 = vector.load %arg1[%c0_56, %c96, %c0_57] : memref<1x504x32xbf16, #tpu.memory_space<vmem>>, vector<1x384x32xbf16>
    %48 = vector.shape_cast %47 : vector<1x384x32xbf16> to vector<384x32xbf16>
    %c6 = arith.constant 6 : index
    %c0_58 = arith.constant 0 : index
    %c0_59 = arith.constant 0 : index
    %49 = vector.load %arg2[%c6, %c0_58, %c0_59] : memref<9x32x32xbf16, #tpu.memory_space<vmem>>, vector<1x32x32xbf16>
    %50 = vector.shape_cast %49 : vector<1x32x32xbf16> to vector<32x32xbf16>
    %cst_60 = arith.constant dense<0.000000e+00> : vector<384x32xf32>
    %51 = tpu.matmul %48, %50, %cst_60 {dimension_numbers = #tpu.dot_dimension_numbers<[1], [0], [0], [1], [0, 0, 1, 1], [], []>} : vector<384x32xbf16>, vector<32x32xbf16>, vector<384x32xf32> -> vector<384x32xf32>
    %52 = arith.addf %46, %51 : vector<384x32xf32>
    %c0_61 = arith.constant 0 : index
    %c0_62 = arith.constant 0 : index
    %53 = vector.load %arg9[%c0_61, %c0_62] : memref<384x32xf32, #tpu.memory_space<vmem>>, vector<384x32xf32>
    tpu.vector_store %arg9[%c0_61, %c0_62], %52 {strides = array<i32>} : memref<384x32xf32, #tpu.memory_space<vmem>>, vector<384x32xf32>,
    %c0_63 = arith.constant 0 : index
    %c0_64 = arith.constant 0 : index
    %54 = vector.load %arg9[%c0_63, %c0_64] : memref<384x32xf32, #tpu.memory_space<vmem>>, vector<384x32xf32>
    %c0_65 = arith.constant 0 : index
    %c98 = arith.constant 98 : index
    %c0_66 = arith.constant 0 : index
    %55 = vector.load %arg1[%c0_65, %c98, %c0_66] : memref<1x504x32xbf16, #tpu.memory_space<vmem>>, vector<1x384x32xbf16>
    %56 = vector.shape_cast %55 : vector<1x384x32xbf16> to vector<384x32xbf16>
    %c7 = arith.constant 7 : index
    %c0_67 = arith.constant 0 : index
    %c0_68 = arith.constant 0 : index
    %57 = vector.load %arg2[%c7, %c0_67, %c0_68] : memref<9x32x32xbf16, #tpu.memory_space<vmem>>, vector<1x32x32xbf16>
    %58 = vector.shape_cast %57 : vector<1x32x32xbf16> to vector<32x32xbf16>
    %cst_69 = arith.constant dense<0.000000e+00> : vector<384x32xf32>
    %59 = tpu.matmul %56, %58, %cst_69 {dimension_numbers = #tpu.dot_dimension_numbers<[1], [0], [0], [1], [0, 0, 1, 1], [], []>} : vector<384x32xbf16>, vector<32x32xbf16>, vector<384x32xf32> -> vector<384x32xf32>
    %60 = arith.addf %54, %59 : vector<384x32xf32>
    %c0_70 = arith.constant 0 : index
    %c0_71 = arith.constant 0 : index
    %61 = vector.load %arg9[%c0_70, %c0_71] : memref<384x32xf32, #tpu.memory_space<vmem>>, vector<384x32xf32>
    tpu.vector_store %arg9[%c0_70, %c0_71], %60 {strides = array<i32>} : memref<384x32xf32, #tpu.memory_space<vmem>>, vector<384x32xf32>,
    %c0_72 = arith.constant 0 : index
    %c0_73 = arith.constant 0 : index
    %62 = vector.load %arg9[%c0_72, %c0_73] : memref<384x32xf32, #tpu.memory_space<vmem>>, vector<384x32xf32>
    %c0_74 = arith.constant 0 : index
    %c100 = arith.constant 100 : index
    %c0_75 = arith.constant 0 : index
    %63 = vector.load %arg1[%c0_74, %c100, %c0_75] : memref<1x504x32xbf16, #tpu.memory_space<vmem>>, vector<1x384x32xbf16>
    %64 = vector.shape_cast %63 : vector<1x384x32xbf16> to vector<384x32xbf16>
    %c8 = arith.constant 8 : index
    %c0_76 = arith.constant 0 : index
    %c0_77 = arith.constant 0 : index
    %65 = vector.load %arg2[%c8, %c0_76, %c0_77] : memref<9x32x32xbf16, #tpu.memory_space<vmem>>, vector<1x32x32xbf16>
    %66 = vector.shape_cast %65 : vector<1x32x32xbf16> to vector<32x32xbf16>
    %cst_78 = arith.constant dense<0.000000e+00> : vector<384x32xf32>
    %67 = tpu.matmul %64, %66, %cst_78 {dimension_numbers = #tpu.dot_dimension_numbers<[1], [0], [0], [1], [0, 0, 1, 1], [], []>} : vector<384x32xbf16>, vector<32x32xbf16>, vector<384x32xf32> -> vector<384x32xf32>
    %68 = arith.addf %62, %67 : vector<384x32xf32>
    %c0_79 = arith.constant 0 : index
    %c0_80 = arith.constant 0 : index
    %69 = vector.load %arg9[%c0_79, %c0_80] : memref<384x32xf32, #tpu.memory_space<vmem>>, vector<384x32xf32>
    tpu.vector_store %arg9[%c0_79, %c0_80], %68 {strides = array<i32>} : memref<384x32xf32, #tpu.memory_space<vmem>>, vector<384x32xf32>,
    %c0_81 = arith.constant 0 : index
    %c0_82 = arith.constant 0 : index
    %70 = vector.load %arg9[%c0_81, %c0_82] : memref<384x32xf32, #tpu.memory_space<vmem>>, vector<384x32xf32>
    %c0_83 = arith.constant 0 : index
    %c0_84 = arith.constant 0 : index
    %71 = vector.load %arg3[%c0_83, %c0_84] : memref<1x32xf32, #tpu.memory_space<vmem>>, vector<1x32xf32>
    %72 = vector.broadcast %71 : vector<1x32xf32> to vector<384x32xf32>
    %73 = arith.addf %70, %72 : vector<384x32xf32>
    %c0_85 = arith.constant 0 : index
    %c0_86 = arith.constant 0 : index
    %74 = vector.load %arg4[%c0_85, %c0_86] : memref<1x32xf32, #tpu.memory_space<vmem>>, vector<1x32xf32>
    %c0_87 = arith.constant 0 : index
    %c0_88 = arith.constant 0 : index
    %75 = vector.load %arg5[%c0_87, %c0_88] : memref<1x32xf32, #tpu.memory_space<vmem>>, vector<1x32xf32>
    %c0_89 = arith.constant 0 : index
    %c0_90 = arith.constant 0 : index
    %76 = vector.load %arg6[%c0_89, %c0_90] : memref<32x32xf32, #tpu.memory_space<vmem>>, vector<32x32xf32>
    %c0_91 = arith.constant 0 : index
    %c0_92 = arith.constant 0 : index
    %77 = vector.load %arg7[%c0_91, %c0_92] : memref<32x32xf32, #tpu.memory_space<vmem>>, vector<32x32xf32>
    %78 = tpu.iota {dimensions = array<i32: 0>} : vector<384x1xi32>
    %c24_i32 = arith.constant 24 : i32
    %c0_i32 = arith.constant 0 : i32
    %79 = arith.cmpi eq, %c24_i32, %c0_i32 : i32
    %c1_i32 = arith.constant 1 : i32
    %80 = arith.select %79, %c1_i32, %c24_i32 : i32
    %81 = vector.broadcast %80 : i32 to vector<384x1xi32>
    %82 = arith.remsi %78, %81 : vector<384x1xi32>
    %c0_i32_93 = arith.constant 0 : i32
    %83 = vector.broadcast %c0_i32_93 : i32 to vector<384x1xi32>
    %84 = arith.cmpi ne, %82, %83 : vector<384x1xi32>
    %c0_i32_94 = arith.constant 0 : i32
    %85 = vector.broadcast %c0_i32_94 : i32 to vector<384x1xi32>
    %86 = arith.cmpi slt, %82, %85 : vector<384x1xi32>
    %c0_i32_95 = arith.constant 0 : i32
    %87 = arith.cmpi slt, %80, %c0_i32_95 : i32
    %88 = vector.broadcast %87 : i1 to vector<384x1xi1>
    %89 = vector.broadcast %88 : vector<384x1xi1> to vector<384x1xi1>
    %90 = arith.xori %86, %89 : vector<384x1xi1>
    %91 = arith.andi %90, %84 : vector<384x1xi1>
    %92 = vector.broadcast %80 : i32 to vector<384x1xi32>
    %93 = arith.addi %82, %92 : vector<384x1xi32>
    %94 = arith.select %91, %93, %82 : vector<384x1xi1>, vector<384x1xi32>
    %c16_i32 = arith.constant 16 : i32
    %95 = vector.broadcast %c16_i32 : i32 to vector<384x1xi32>
    %96 = arith.cmpi slt, %94, %95 : vector<384x1xi32>
    %97 = arith.extui %96 : vector<384x1xi1> to vector<384x1xi32>
    %98 = arith.sitofp %97 : vector<384x1xi32> to vector<384x1xf32>
    %99 = vector.broadcast %98 : vector<384x1xf32> to vector<384x32xf32>
    %100 = arith.mulf %73, %99 : vector<384x32xf32>
    %cst_96 = arith.constant dense<0.000000e+00> : vector<32xf32>
    %101 = vector.multi_reduction <add>, %100, %cst_96 [0] : vector<384x32xf32> to vector<32xf32>
    %102 = vector.shape_cast %101 : vector<32xf32> to vector<1x32xf32>
    %cst_97 = arith.constant dense<0.000000e+00> : vector<1x32xf32>
    %103 = tpu.matmul %102, %76, %cst_97 {dimension_numbers = #tpu.dot_dimension_numbers<[1], [0], [0], [1], [0, 0, 1, 1], [], []>} : vector<1x32xf32>, vector<32x32xf32>, vector<1x32xf32> -> vector<1x32xf32>
    %cst_98 = arith.constant 3.906250e-03 : f32
    %104 = vector.broadcast %cst_98 : f32 to vector<1x32xf32>
    %105 = arith.mulf %103, %104 : vector<1x32xf32>
    %cst_99 = arith.constant dense<0.000000e+00> : vector<1x32xf32>
    %106 = tpu.matmul %105, %77, %cst_99 {dimension_numbers = #tpu.dot_dimension_numbers<[1], [0], [0], [1], [0, 0, 1, 1], [], []>} : vector<1x32xf32>, vector<32x32xf32>, vector<1x32xf32> -> vector<1x32xf32>
    %107 = vector.broadcast %106 : vector<1x32xf32> to vector<384x32xf32>
    %108 = arith.subf %73, %107 : vector<384x32xf32>
    %109 = arith.mulf %108, %108 : vector<384x32xf32>
    %110 = vector.broadcast %98 : vector<384x1xf32> to vector<384x32xf32>
    %111 = arith.mulf %109, %110 : vector<384x32xf32>
    %cst_100 = arith.constant dense<0.000000e+00> : vector<32xf32>
    %112 = vector.multi_reduction <add>, %111, %cst_100 [0] : vector<384x32xf32> to vector<32xf32>
    %113 = vector.shape_cast %112 : vector<32xf32> to vector<1x32xf32>
    %cst_101 = arith.constant dense<0.000000e+00> : vector<1x32xf32>
    %114 = tpu.matmul %113, %76, %cst_101 {dimension_numbers = #tpu.dot_dimension_numbers<[1], [0], [0], [1], [0, 0, 1, 1], [], []>} : vector<1x32xf32>, vector<32x32xf32>, vector<1x32xf32> -> vector<1x32xf32>
    %cst_102 = arith.constant 3.906250e-03 : f32
    %115 = vector.broadcast %cst_102 : f32 to vector<1x32xf32>
    %116 = arith.mulf %114, %115 : vector<1x32xf32>
    %cst_103 = arith.constant 9.99999974E-6 : f32
    %117 = vector.broadcast %cst_103 : f32 to vector<1x32xf32>
    %118 = arith.addf %116, %117 : vector<1x32xf32>
    %119 = math.rsqrt %118 : vector<1x32xf32>
    %cst_104 = arith.constant dense<0.000000e+00> : vector<1x32xf32>
    %120 = tpu.matmul %119, %77, %cst_104 {dimension_numbers = #tpu.dot_dimension_numbers<[1], [0], [0], [1], [0, 0, 1, 1], [], []>} : vector<1x32xf32>, vector<32x32xf32>, vector<1x32xf32> -> vector<1x32xf32>
    %121 = vector.broadcast %120 : vector<1x32xf32> to vector<384x32xf32>
    %122 = arith.mulf %108, %121 : vector<384x32xf32>
    %123 = vector.broadcast %74 : vector<1x32xf32> to vector<384x32xf32>
    %124 = arith.mulf %122, %123 : vector<384x32xf32>
    %125 = vector.broadcast %75 : vector<1x32xf32> to vector<384x32xf32>
    %126 = arith.addf %124, %125 : vector<384x32xf32>
    %cst_105 = arith.constant 0.000000e+00 : f32
    %127 = vector.broadcast %cst_105 : f32 to vector<384x32xf32>
    %128 = arith.maximumf %126, %127 : vector<384x32xf32>
    %129 = arith.truncf %128 : vector<384x32xf32> to vector<384x32xbf16>
    %c0_106 = arith.constant 0 : index
    %c0_107 = arith.constant 0 : index
    %c0_108 = arith.constant 0 : index
    %130 = vector.load %arg8[%c0_106, %c0_107, %c0_108] : memref<1x384x32xbf16, #tpu.memory_space<vmem>>, vector<1x384x32xbf16>
    %131 = vector.shape_cast %130 : vector<1x384x32xbf16> to vector<384x32xbf16>
    %132 = vector.shape_cast %129 : vector<384x32xbf16> to vector<1x384x32xbf16>
    tpu.vector_store %arg8[%c0_106, %c0_107, %c0_108], %132 {strides = array<i32>} : memref<1x384x32xbf16, #tpu.memory_space<vmem>>, vector<1x384x32xbf16>,
    return
  }
  func.func @transform_0(%arg0: i32) -> (i32, i32, i32) {
    %c0_i32 = arith.constant 0 : i32
    %c0_i32_0 = arith.constant 0 : i32
    %c0_i32_1 = arith.constant 0 : i32
    return %arg0, %c0_i32, %c0_i32_0 : i32, i32, i32
  }
  func.func @transform_1(%arg0: i32) -> (i32, i32, i32) {
    %c0_i32 = arith.constant 0 : i32
    %c0_i32_0 = arith.constant 0 : i32
    %c0_i32_1 = arith.constant 0 : i32
    %c0_i32_2 = arith.constant 0 : i32
    return %c0_i32, %c0_i32_0, %c0_i32_1 : i32, i32, i32
  }
  func.func @transform_2(%arg0: i32) -> (i32, i32) {
    %c0_i32 = arith.constant 0 : i32
    %c0_i32_0 = arith.constant 0 : i32
    %c0_i32_1 = arith.constant 0 : i32
    return %c0_i32, %c0_i32_0 : i32, i32
  }
  func.func @transform_3(%arg0: i32) -> (i32, i32) {
    %c0_i32 = arith.constant 0 : i32
    %c0_i32_0 = arith.constant 0 : i32
    %c0_i32_1 = arith.constant 0 : i32
    return %c0_i32, %c0_i32_0 : i32, i32
  }
  func.func @transform_4(%arg0: i32) -> (i32, i32) {
    %c0_i32 = arith.constant 0 : i32
    %c0_i32_0 = arith.constant 0 : i32
    %c0_i32_1 = arith.constant 0 : i32
    return %c0_i32, %c0_i32_0 : i32, i32
  }
  func.func @transform_5(%arg0: i32) -> (i32, i32) {
    %c0_i32 = arith.constant 0 : i32
    %c0_i32_0 = arith.constant 0 : i32
    %c0_i32_1 = arith.constant 0 : i32
    return %c0_i32, %c0_i32_0 : i32, i32
  }
  func.func @transform_6(%arg0: i32) -> (i32, i32) {
    %c0_i32 = arith.constant 0 : i32
    %c0_i32_0 = arith.constant 0 : i32
    %c0_i32_1 = arith.constant 0 : i32
    return %c0_i32, %c0_i32_0 : i32, i32
  }
  func.func @transform_7(%arg0: i32) -> (i32, i32, i32) {
    %c0_i32 = arith.constant 0 : i32
    %c0_i32_0 = arith.constant 0 : i32
    %c0_i32_1 = arith.constant 0 : i32
    return %arg0, %c0_i32, %c0_i32_0 : i32, i32, i32
  }
}

</mosaic_0001>

<llo_original>
// kernel: conv3x3_gn.1
$region0: #{conv3x3_gn.1}
  #allocation0 [shape = 'u32[]', space=smem, size = 0x4, offset = 0x4, fixed_abs, tag = 'smem constant byte address 0x4 - core index']
  #allocation1 [shape = 'u32[144,128]{1,0:T(1,128)}', space=vmem, size = 0x12000, scoped, tag = 'internal scratch']
  #allocation2 [shape = 'f32[384,32]{1,0:T(8,128)}', space=vmem, size = 0x30000, scoped, tag = 'scratch operand']
  %s0 = inlined_call_operand.vmem [shape: bf16[1,504,32], index: 0, kind: input, shape index: {}]
  %s1 = inlined_call_operand.vmem [shape: bf16[9,32,32], index: 1, kind: input, shape index: {}]
  %s2 = inlined_call_operand.vmem [shape: f32[1,32], index: 2, kind: input, shape index: {}]
  %s3 = inlined_call_operand.vmem [shape: f32[1,32], index: 3, kind: input, shape index: {}]
  %s4 = inlined_call_operand.vmem [shape: f32[1,32], index: 4, kind: input, shape index: {}]
  %s5 = inlined_call_operand.vmem [shape: f32[32,32], index: 5, kind: input, shape index: {}]
  %s6 = inlined_call_operand.vmem [shape: f32[32,32], index: 6, kind: input, shape index: {}]
  %s7 = inlined_call_operand.vmem [shape: bf16[1,384,32], index: 7, kind: output, shape index: {}]
  %s8 = sld [smem:[#allocation0]]
  $region38: #{conv3x3_gn.1} parent=0
    _
  %s10 = ssub.s32 1, %s8
  %s11 = scalar_select 0, %s10, %s8
  // Predicated region
  $region2: #{conv3x3_gn.1} parent=0 // pred_check
    _
  $region3: #{conv3x3_gn.1} parent=0 // pred_check_branch
    %13 = sbr.rel (0) target = $region5
  $region4: #{conv3x3_gn.1} parent=0 // pred_region
    _
  $region5: #{conv3x3_gn.1} parent=0 // pred_fallthru
    _
  // Predicated region
  $region6: #{conv3x3_gn.1} parent=0 // pred_check
    _
  $region7: #{conv3x3_gn.1} parent=0 // pred_check_branch
    %15 = sbr.rel (0) target = $region9
  $region8: #{conv3x3_gn.1} parent=0 // pred_region
    _
  $region9: #{conv3x3_gn.1} parent=0 // pred_fallthru
    _
  // Predicated region
  $region10: #{conv3x3_gn.1} parent=0 // pred_check
    _
  $region11: #{conv3x3_gn.1} parent=0 // pred_check_branch
    %17 = sbr.rel (0) target = $region13
  $region12: #{conv3x3_gn.1} parent=0 // pred_region
    _
  $region13: #{conv3x3_gn.1} parent=0 // pred_fallthru
    _
  // Predicated region
  $region14: #{conv3x3_gn.1} parent=0 // pred_check
    _
  $region15: #{conv3x3_gn.1} parent=0 // pred_check_branch
    %19 = sbr.rel (0) target = $region17
  $region16: #{conv3x3_gn.1} parent=0 // pred_region
    _
  $region17: #{conv3x3_gn.1} parent=0 // pred_fallthru
    _
  // Predicated region
  $region18: #{conv3x3_gn.1} parent=0 // pred_check
    _
  $region19: #{conv3x3_gn.1} parent=0 // pred_check_branch
    %21 = sbr.rel (0) target = $region21
  $region20: #{conv3x3_gn.1} parent=0 // pred_region
    _
  $region21: #{conv3x3_gn.1} parent=0 // pred_fallthru
    _
  // Predicated region
  $region22: #{conv3x3_gn.1} parent=0 // pred_check
    _
  $region23: #{conv3x3_gn.1} parent=0 // pred_check_branch
    %23 = sbr.rel (0) target = $region25
  $region24: #{conv3x3_gn.1} parent=0 // pred_region
    _
  $region25: #{conv3x3_gn.1} parent=0 // pred_fallthru
    _
  // Predicated region
  $region26: #{conv3x3_gn.1} parent=0 // pred_check
    _
  $region27: #{conv3x3_gn.1} parent=0 // pred_check_branch
    %25 = sbr.rel (0) target = $region29
  $region28: #{conv3x3_gn.1} parent=0 // pred_region
    _
  $region29: #{conv3x3_gn.1} parent=0 // pred_fallthru
    _
  %v27 = vld [vmem:[%s0] sm:$0xf]
  %v28 = vld [vmem:[%s0 + $0x4] sm:$0xf]
  %v29 = vld [vmem:[%s0 + $0x8] sm:$0xf]
  %v30 = vld [vmem:[%s0 + $0xc] sm:$0xf]
  %v31 = vld [vmem:[%s0 + $0x10] sm:$0xf]
  %v32 = vld [vmem:[%s0 + $0x14] sm:$0xf]
  %v33 = vld [vmem:[%s0 + $0x18] sm:$0xf]
  %v34 = vld [vmem:[%s0 + $0x1c] sm:$0xf]
  %v35 = vld [vmem:[%s0 + $0x20] sm:$0xf]
  %v36 = vld [vmem:[%s0 + $0x24] sm:$0xf]
  %v37 = vld [vmem:[%s0 + $0x28] sm:$0xf]
  %v38 = vld [vmem:[%s0 + $0x2c] sm:$0xf]
  %v39 = vld [vmem:[%s0 + $0x30] sm:$0xf]
  %v40 = vld [vmem:[%s0 + $0x34] sm:$0xf]
  %v41 = vld [vmem:[%s0 + $0x38] sm:$0xf]
  %v42 = vld [vmem:[%s0 + $0x3c] sm:$0xf]
  %v43 = vld [vmem:[%s0 + $0x40] sm:$0xf]
  %v44 = vld [vmem:[%s0 + $0x44] sm:$0xf]
  %v45 = vld [vmem:[%s0 + $0x48] sm:$0xf]
  %v46 = vld [vmem:[%s0 + $0x4c] sm:$0xf]
  %v47 = vld [vmem:[%s0 + $0x50] sm:$0xf]
  %v48 = vld [vmem:[%s0 + $0x54] sm:$0xf]
  %v49 = vld [vmem:[%s0 + $0x58] sm:$0xf]
  %v50 = vld [vmem:[%s0 + $0x5c] sm:$0xf]
  %v51 = vld [vmem:[%s0 + $0x60] sm:$0xf]
  %v52 = vld [vmem:[%s0 + $0x64] sm:$0xf]
  %v53 = vld [vmem:[%s0 + $0x68] sm:$0xf]
  %v54 = vld [vmem:[%s0 + $0x6c] sm:$0xf]
  %v55 = vld [vmem:[%s0 + $0x70] sm:$0xf]
  %v56 = vld [vmem:[%s0 + $0x74] sm:$0xf]
  %v57 = vld [vmem:[%s0 + $0x78] sm:$0xf]
  %v58 = vld [vmem:[%s0 + $0x7c] sm:$0xf]
  %v59 = vld [vmem:[%s0 + $0x80] sm:$0xf]
  %v60 = vld [vmem:[%s0 + $0x84] sm:$0xf]
  %v61 = vld [vmem:[%s0 + $0x88] sm:$0xf]
  %v62 = vld [vmem:[%s0 + $0x8c] sm:$0xf]
  %v63 = vld [vmem:[%s0 + $0x90] sm:$0xf]
  %v64 = vld [vmem:[%s0 + $0x94] sm:$0xf]
  %v65 = vld [vmem:[%s0 + $0x98] sm:$0xf]
  %v66 = vld [vmem:[%s0 + $0x9c] sm:$0xf]
  %v67 = vld [vmem:[%s0 + $0xa0] sm:$0xf]
  %v68 = vld [vmem:[%s0 + $0xa4] sm:$0xf]
  %v69 = vld [vmem:[%s0 + $0xa8] sm:$0xf]
  %v70 = vld [vmem:[%s0 + $0xac] sm:$0xf]
  %v71 = vld [vmem:[%s0 + $0xb0] sm:$0xf]
  %v72 = vld [vmem:[%s0 + $0xb4] sm:$0xf]
  %v73 = vld [vmem:[%s0 + $0xb8] sm:$0xf]
  %v74 = vld [vmem:[%s0 + $0xbc] sm:$0xf]
  %v75 = vld [vmem:[%s1] sm:$0xf]
  %v76 = vld [vmem:[%s1 + $0x4] sm:$0xf]
  %v77 = vld [vmem:[%s1 + $0x8] sm:$0xf]
  %v78 = vld [vmem:[%s1 + $0xc] sm:$0xf]
  %v127 = vunpack.c.l.b16 %v27
  %v128 = vunpack.c.l.b16 %v28
  %v129 = vunpack.c.l.b16 %v29
  %v130 = vunpack.c.l.b16 %v30
  %v131 = vunpack.c.l.b16 %v31
  %v132 = vunpack.c.l.b16 %v32
  %v133 = vunpack.c.l.b16 %v33
  %v134 = vunpack.c.l.b16 %v34
  %v135 = vunpack.c.l.b16 %v35
  %v136 = vunpack.c.l.b16 %v36
  %v137 = vunpack.c.l.b16 %v37
  %v138 = vunpack.c.l.b16 %v38
  %v139 = vunpack.c.l.b16 %v39
  %v140 = vunpack.c.l.b16 %v40
  %v141 = vunpack.c.l.b16 %v41
  %v142 = vunpack.c.l.b16 %v42
  %v143 = vunpack.c.l.b16 %v43
  %v144 = vunpack.c.l.b16 %v44
  %v145 = vunpack.c.l.b16 %v45
  %v146 = vunpack.c.l.b16 %v46
  %v147 = vunpack.c.l.b16 %v47
  %v148 = vunpack.c.l.b16 %v48
  %v149 = vunpack.c.l.b16 %v49
  %v150 = vunpack.c.l.b16 %v50
  %v151 = vunpack.c.l.b16 %v51
  %v152 = vunpack.c.l.b16 %v52
  %v153 = vunpack.c.l.b16 %v53
  %v154 = vunpack.c.l.b16 %v54
  %v155 = vunpack.c.l.b16 %v55
  %v156 = vunpack.c.l.b16 %v56
  %v157 = vunpack.c.l.b16 %v57
  %v158 = vunpack.c.l.b16 %v58
  %v159 = vunpack.c.l.b16 %v59
  %v160 = vunpack.c.l.b16 %v60
  %v161 = vunpack.c.l.b16 %v61
  %v162 = vunpack.c.l.b16 %v62
  %v163 = vunpack.c.l.b16 %v63
  %v164 = vunpack.c.l.b16 %v64
  %v165 = vunpack.c.l.b16 %v65
  %v166 = vunpack.c.l.b16 %v66
  %v167 = vunpack.c.l.b16 %v67
  %v168 = vunpack.c.l.b16 %v68
  %v169 = vunpack.c.l.b16 %v69
  %v170 = vunpack.c.l.b16 %v70
  %v171 = vunpack.c.l.b16 %v71
  %v172 = vunpack.c.l.b16 %v72
  %v173 = vunpack.c.l.b16 %v73
  %v174 = vunpack.c.l.b16 %v74
  %v175 = vpack.c.b16 %v128, %v127
  %v176 = vpack.c.b16 %v130, %v129
  %v177 = vpack.c.b16 %v132, %v131
  %v178 = vpack.c.b16 %v134, %v133
  %v179 = vpack.c.b16 %v136, %v135
  %v180 = vpack.c.b16 %v138, %v137
  %v181 = vpack.c.b16 %v140, %v139
  %v182 = vpack.c.b16 %v142, %v141
  %v183 = vpack.c.b16 %v144, %v143
  %v184 = vpack.c.b16 %v146, %v145
  %v185 = vpack.c.b16 %v148, %v147
  %v186 = vpack.c.b16 %v150, %v149
  %v187 = vpack.c.b16 %v152, %v151
  %v188 = vpack.c.b16 %v154, %v153
  %v189 = vpack.c.b16 %v156, %v155
  %v190 = vpack.c.b16 %v158, %v157
  %v191 = vpack.c.b16 %v160, %v159
  %v192 = vpack.c.b16 %v162, %v161
  %v193 = vpack.c.b16 %v164, %v163
  %v194 = vpack.c.b16 %v166, %v165
  %v195 = vpack.c.b16 %v168, %v167
  %v196 = vpack.c.b16 %v170, %v169
  %v197 = vpack.c.b16 %v172, %v171
  %v198 = vpack.c.b16 %v174, %v173
  %v203 = vunpack.c.l.b16 %v75
  %v204 = vunpack.c.l.b16 %v76
  %v205 = vunpack.c.l.b16 %v77
  %v206 = vunpack.c.l.b16 %v78
  %v207 = vpack.c.b16 %v204, %v203
  %v208 = vpack.c.b16 %v206, %v205
  %vm211 = vcmask 261120
  %v213 = vsel %vm211, %v175, 0
  %v216 = vsel %vm211, %v176, 0
  %v219 = vsel %vm211, %v177, 0
  %v222 = vsel %vm211, %v178, 0
  %v225 = vsel %vm211, %v179, 0
  %v228 = vsel %vm211, %v180, 0
  %v231 = vsel %vm211, %v181, 0
  %v234 = vsel %vm211, %v182, 0
  %v237 = vsel %vm211, %v183, 0
  %v240 = vsel %vm211, %v184, 0
  %v243 = vsel %vm211, %v185, 0
  %v246 = vsel %vm211, %v186, 0
  %v249 = vsel %vm211, %v187, 0
  %v252 = vsel %vm211, %v188, 0
  %v255 = vsel %vm211, %v189, 0
  %v258 = vsel %vm211, %v190, 0
  %v261 = vsel %vm211, %v191, 0
  %v264 = vsel %vm211, %v192, 0
  %v267 = vsel %vm211, %v193, 0
  %v270 = vsel %vm211, %v194, 0
  %v273 = vsel %vm211, %v195, 0
  %v276 = vsel %vm211, %v196, 0
  %v279 = vsel %vm211, %v197, 0
  %v282 = vsel %vm211, %v198, 0
  %284 = vmatprep.subr.bf16.mxu0 0
  %285 = vmatpush1.bf16.msra.mxu0 0
  %286 = vmatprep.subr.bf16.mxu0 0
  %287 = vmatpush1.bf16.msra.mxu0 0
  %288 = vmatprep.subr.bf16.mxu0 0
  %289 = vmatpush1.bf16.msra.mxu0 0
  %290 = vmatprep.subr.bf16.mxu0 0
  %291 = vmatpush1.bf16.msra.mxu0 0
  %292 = vmatprep.subr.bf16.mxu0 0
  %293 = vmatpush1.bf16.msra.mxu0 0
  %294 = vmatprep.subr.bf16.mxu0 0
  %295 = vmatpush1.bf16.msra.mxu0 0
  %296 = vmatprep.subr.bf16.mxu0 0
  %297 = vmatpush1.bf16.msra.mxu0 %v208
  %298 = vmatprep.subr.bf16.mxu0 0
  %299 = vmatpush1.bf16.msra.mxu0 %v207
  %300 = vmatprep.subr.bf16.mxu0 0
  %301 = vmatpush2.bf16.msra.mxu0 0
  %302 = vmatprep.subr.bf16.mxu0 0
  %303 = vmatpush2.bf16.msra.mxu0 0
  %304 = vmatprep.subr.bf16.mxu0 0
  %305 = vmatpush2.bf16.msra.mxu0 0
  %306 = vmatprep.subr.bf16.mxu0 0
  %307 = vmatpush2.bf16.msra.mxu0 0
  %308 = vmatprep.subr.bf16.mxu0 0
  %309 = vmatpush2.bf16.msra.mxu0 0
  %310 = vmatprep.subr.bf16.mxu0 0
  %311 = vmatpush2.bf16.msra.mxu0 0
  %312 = vmatprep.subr.bf16.mxu0 0
  %313 = vmatpush2.bf16.msra.mxu0 0
  %314 = vmatprep.subr.bf16.mxu0 0
  %315 = vmatpush2.bf16.msra.mxu0 0
  %316 = vmatprep.mubr.bf16.mxu0 0
  %317 = vmatmul.mubr.bf16.gmra.mxu0 %v213
  %v318 = vpop.f32.mrf.mxu0
  %v319 = vadd.f32 0.0, %v318
  %v320 = vpop.f32.mrf.mxu0
  %v321 = vpop.f32.mrf.mxu0
  %v322 = vadd.f32 0.0, %v321
  %v323 = vpop.f32.mrf.mxu0
  %324 = vmatprep.mubr.bf16.mxu0 0
  %325 = vmatmul.mubr.bf16.gmra.mxu0 %v216
  %v326 = vpop.f32.mrf.mxu0
  %v327 = vadd.f32 0.0, %v326
  %v328 = vpop.f32.mrf.mxu0
  %v329 = vpop.f32.mrf.mxu0
  %v330 = vadd.f32 0.0, %v329
  %v331 = vpop.f32.mrf.mxu0
  %332 = vmatprep.mubr.bf16.mxu0 0
  %333 = vmatmul.mubr.bf16.gmra.mxu0 %v219
  %v334 = vpop.f32.mrf.mxu0
  %v335 = vadd.f32 0.0, %v334
  %v336 = vpop.f32.mrf.mxu0
  %v337 = vpop.f32.mrf.mxu0
  %v338 = vadd.f32 0.0, %v337
  %v339 = vpop.f32.mrf.mxu0
  %340 = vmatprep.mubr.bf16.mxu0 0
  %341 = vmatmul.mubr.bf16.gmra.mxu0 %v222
  %v342 = vpop.f32.mrf.mxu0
  %v343 = vadd.f32 0.0, %v342
  %v344 = vpop.f32.mrf.mxu0
  %v345 = vpop.f32.mrf.mxu0
  %v346 = vadd.f32 0.0, %v345
  %v347 = vpop.f32.mrf.mxu0
  %348 = vmatprep.mubr.bf16.mxu0 0
  %349 = vmatmul.mubr.bf16.gmra.mxu0 %v225
  %v350 = vpop.f32.mrf.mxu0
  %v351 = vadd.f32 0.0, %v350
  %v352 = vpop.f32.mrf.mxu0
  %v353 = vpop.f32.mrf.mxu0
  %v354 = vadd.f32 0.0, %v353
  %v355 = vpop.f32.mrf.mxu0
  %356 = vmatprep.mubr.bf16.mxu0 0
  %357 = vmatmul.mubr.bf16.gmra.mxu0 %v228
  %v358 = vpop.f32.mrf.mxu0
  %v359 = vadd.f32 0.0, %v358
  %v360 = vpop.f32.mrf.mxu0
  %v361 = vpop.f32.mrf.mxu0
  %v362 = vadd.f32 0.0, %v361
  %v363 = vpop.f32.mrf.mxu0
  %364 = vmatprep.mubr.bf16.mxu0 0
  %365 = vmatmul.mubr.bf16.gmra.mxu0 %v231
  %v366 = vpop.f32.mrf.mxu0
  %v367 = vadd.f32 0.0, %v366
  %v368 = vpop.f32.mrf.mxu0
  %v369 = vpop.f32.mrf.mxu0
  %v370 = vadd.f32 0.0, %v369
  %v371 = vpop.f32.mrf.mxu0
  %372 = vmatprep.mubr.bf16.mxu0 0
  %373 = vmatmul.mubr.bf16.gmra.mxu0 %v234
  %v374 = vpop.f32.mrf.mxu0
  %v375 = vadd.f32 0.0, %v374
  %v376 = vpop.f32.mrf.mxu0
  %v377 = vpop.f32.mrf.mxu0
  %v378 = vadd.f32 0.0, %v377
  %v379 = vpop.f32.mrf.mxu0
  %380 = vmatprep.mubr.bf16.mxu0 0
  %381 = vmatmul.mubr.bf16.gmra.mxu0 %v237
  %v382 = vpop.f32.mrf.mxu0
  %v383 = vadd.f32 0.0, %v382
  %v384 = vpop.f32.mrf.mxu0
  %v385 = vpop.f32.mrf.mxu0
  %v386 = vadd.f32 0.0, %v385
  %v387 = vpop.f32.mrf.mxu0
  %388 = vmatprep.mubr.bf16.mxu0 0
  %389 = vmatmul.mubr.bf16.gmra.mxu0 %v240
  %v390 = vpop.f32.mrf.mxu0
  %v391 = vadd.f32 0.0, %v390
  %v392 = vpop.f32.mrf.mxu0
  %v393 = vpop.f32.mrf.mxu0
  %v394 = vadd.f32 0.0, %v393
  %v395 = vpop.f32.mrf.mxu0
  %396 = vmatprep.mubr.bf16.mxu0 0
  %397 = vmatmul.mubr.bf16.gmra.mxu0 %v243
  %v398 = vpop.f32.mrf.mxu0
  %v399 = vadd.f32 0.0, %v398
  %v400 = vpop.f32.mrf.mxu0
  %v401 = vpop.f32.mrf.mxu0
  %v402 = vadd.f32 0.0, %v401
  %v403 = vpop.f32.mrf.mxu0
  %404 = vmatprep.mubr.bf16.mxu0 0
  %405 = vmatmul.mubr.bf16.gmra.mxu0 %v246
  %v406 = vpop.f32.mrf.mxu0
  %v407 = vadd.f32 0.0, %v406
  %v408 = vpop.f32.mrf.mxu0
  %v409 = vpop.f32.mrf.mxu0
  %v410 = vadd.f32 0.0, %v409
  %v411 = vpop.f32.mrf.mxu0
  %412 = vmatprep.mubr.bf16.mxu0 0
  %413 = vmatmul.mubr.bf16.gmra.mxu0 %v249
  %v414 = vpop.f32.mrf.mxu0
  %v415 = vadd.f32 0.0, %v414
  %v416 = vpop.f32.mrf.mxu0
  %v417 = vpop.f32.mrf.mxu0
  %v418 = vadd.f32 0.0, %v417
  %v419 = vpop.f32.mrf.mxu0
  %420 = vmatprep.mubr.bf16.mxu0 0
  %421 = vmatmul.mubr.bf16.gmra.mxu0 %v252
  %v422 = vpop.f32.mrf.mxu0
  %v423 = vadd.f32 0.0, %v422
  %v424 = vpop.f32.mrf.mxu0
  %v425 = vpop.f32.mrf.mxu0
  %v426 = vadd.f32 0.0, %v425
  %v427 = vpop.f32.mrf.mxu0
  %428 = vmatprep.mubr.bf16.mxu0 0
  %429 = vmatmul.mubr.bf16.gmra.mxu0 %v255
  %v430 = vpop.f32.mrf.mxu0
  %v431 = vadd.f32 0.0, %v430
  %v432 = vpop.f32.mrf.mxu0
  %v433 = vpop.f32.mrf.mxu0
  %v434 = vadd.f32 0.0, %v433
  %v435 = vpop.f32.mrf.mxu0
  %436 = vmatprep.mubr.bf16.mxu0 0
  %437 = vmatmul.mubr.bf16.gmra.mxu0 %v258
  %v438 = vpop.f32.mrf.mxu0
  %v439 = vadd.f32 0.0, %v438
  %v440 = vpop.f32.mrf.mxu0
  %v441 = vpop.f32.mrf.mxu0
  %v442 = vadd.f32 0.0, %v441
  %v443 = vpop.f32.mrf.mxu0
  %444 = vmatprep.mubr.bf16.mxu0 0
  %445 = vmatmul.mubr.bf16.gmra.mxu0 %v261
  %v446 = vpop.f32.mrf.mxu0
  %v447 = vadd.f32 0.0, %v446
  %v448 = vpop.f32.mrf.mxu0
  %v449 = vpop.f32.mrf.mxu0
  %v450 = vadd.f32 0.0, %v449
  %v451 = vpop.f32.mrf.mxu0
  %452 = vmatprep.mubr.bf16.mxu0 0
  %453 = vmatmul.mubr.bf16.gmra.mxu0 %v264
  %v454 = vpop.f32.mrf.mxu0
  %v455 = vadd.f32 0.0, %v454
  %v456 = vpop.f32.mrf.mxu0
  %v457 = vpop.f32.mrf.mxu0
  %v458 = vadd.f32 0.0, %v457
  %v459 = vpop.f32.mrf.mxu0
  %460 = vmatprep.mubr.bf16.mxu0 0
  %461 = vmatmul.mubr.bf16.gmra.mxu0 %v267
  %v462 = vpop.f32.mrf.mxu0
  %v463 = vadd.f32 0.0, %v462
  %v464 = vpop.f32.mrf.mxu0
  %v465 = vpop.f32.mrf.mxu0
  %v466 = vadd.f32 0.0, %v465
  %v467 = vpop.f32.mrf.mxu0
  %468 = vmatprep.mubr.bf16.mxu0 0
  %469 = vmatmul.mubr.bf16.gmra.mxu0 %v270
  %v470 = vpop.f32.mrf.mxu0
  %v471 = vadd.f32 0.0, %v470
  %v472 = vpop.f32.mrf.mxu0
  %v473 = vpop.f32.mrf.mxu0
  %v474 = vadd.f32 0.0, %v473
  %v475 = vpop.f32.mrf.mxu0
  %476 = vmatprep.mubr.bf16.mxu0 0
  %477 = vmatmul.mubr.bf16.gmra.mxu0 %v273
  %v478 = vpop.f32.mrf.mxu0
  %v479 = vadd.f32 0.0, %v478
  %v480 = vpop.f32.mrf.mxu0
  %v481 = vpop.f32.mrf.mxu0
  %v482 = vadd.f32 0.0, %v481
  %v483 = vpop.f32.mrf.mxu0
  %484 = vmatprep.mubr.bf16.mxu0 0
  %485 = vmatmul.mubr.bf16.gmra.mxu0 %v276
  %v486 = vpop.f32.mrf.mxu0
  %v487 = vadd.f32 0.0, %v486
  %v488 = vpop.f32.mrf.mxu0
  %v489 = vpop.f32.mrf.mxu0
  %v490 = vadd.f32 0.0, %v489
  %v491 = vpop.f32.mrf.mxu0
  %492 = vmatprep.mubr.bf16.mxu0 0
  %493 = vmatmul.mubr.bf16.gmra.mxu0 %v279
  %v494 = vpop.f32.mrf.mxu0
  %v495 = vadd.f32 0.0, %v494
  %v496 = vpop.f32.mrf.mxu0
  %v497 = vpop.f32.mrf.mxu0
  %v498 = vadd.f32 0.0, %v497
  %v499 = vpop.f32.mrf.mxu0
  %500 = vmatprep.mubr.bf16.mxu0 0
  %501 = vmatmul.mubr.bf16.gmra.mxu0 %v282
  %v502 = vpop.f32.mrf.mxu0
  %v503 = vadd.f32 0.0, %v502
  %v504 = vpop.f32.mrf.mxu0
  %v505 = vpop.f32.mrf.mxu0
  %v506 = vadd.f32 0.0, %v505
  %v507 = vpop.f32.mrf.mxu0
  %508 = vdwg.mxu0
  %509 = vst.msk [vmem:[#allocation2] sm:$0xff] %vm211, %v319
  %510 = vst.msk [vmem:[#allocation2 + $0x8] sm:$0xff] %vm211, %v322
  %511 = vst.msk [vmem:[#allocation2 + $0x10] sm:$0xff] %vm211, %v327
  %512 = vst.msk [vmem:[#allocation2 + $0x18] sm:$0xff] %vm211, %v330
  %513 = vst.msk [vmem:[#allocation2 + $0x20] sm:$0xff] %vm211, %v335
  %514 = vst.msk [vmem:[#allocation2 + $0x28] sm:$0xff] %vm211, %v338
  %515 = vst.msk [vmem:[#allocation2 + $0x30] sm:$0xff] %vm211, %v343
  %516 = vst.msk [vmem:[#allocation2 + $0x38] sm:$0xff] %vm211, %v346
  %517 = vst.msk [vmem:[#allocation2 + $0x40] sm:$0xff] %vm211, %v351
  %518 = vst.msk [vmem:[#allocation2 + $0x48] sm:$0xff] %vm211, %v354
  %519 = vst.msk [vmem:[#allocation2 + $0x50] sm:$0xff] %vm211, %v359
  %520 = vst.msk [vmem:[#allocation2 + $0x58] sm:$0xff] %vm211, %v362
  %521 = vst.msk [vmem:[#allocation2 + $0x60] sm:$0xff] %vm211, %v367
  %522 = vst.msk [vmem:[#allocation2 + $0x68] sm:$0xff] %vm211, %v370
  %523 = vst.msk [vmem:[#allocation2 + $0x70] sm:$0xff] %vm211, %v375
  %524 = vst.msk [vmem:[#allocation2 + $0x78] sm:$0xff] %vm211, %v378
  %525 = vst.msk [vmem:[#allocation2 + $0x80] sm:$0xff] %vm211, %v383
  %526 = vst.msk [vmem:[#allocation2 + $0x88] sm:$0xff] %vm211, %v386
  %527 = vst.msk [vmem:[#allocation2 + $0x90] sm:$0xff] %vm211, %v391
  %528 = vst.msk [vmem:[#allocation2 + $0x98] sm:$0xff] %vm211, %v394
  %529 = vst.msk [vmem:[#allocation2 + $0xa0] sm:$0xff] %vm211, %v399
  %530 = vst.msk [vmem:[#allocation2 + $0xa8] sm:$0xff] %vm211, %v402
  %531 = vst.msk [vmem:[#allocation2 + $0xb0] sm:$0xff] %vm211, %v407
  %532 = vst.msk [vmem:[#allocation2 + $0xb8] sm:$0xff] %vm211, %v410
  %533 = vst.msk [vmem:[#allocation2 + $0xc0] sm:$0xff] %vm211, %v415
  %534 = vst.msk [vmem:[#allocation2 + $0xc8] sm:$0xff] %vm211, %v418
  %535 = vst.msk [vmem:[#allocation2 + $0xd0] sm:$0xff] %vm211, %v423
  %536 = vst.msk [vmem:[#allocation2 + $0xd8] sm:$0xff] %vm211, %v426
  %537 = vst.msk [vmem:[#allocation2 + $0xe0] sm:$0xff] %vm211, %v431
  %538 = vst.msk [vmem:[#allocation2 + $0xe8] sm:$0xff] %vm211, %v434
  %539 = vst.msk [vmem:[#allocation2 + $0xf0] sm:$0xff] %vm211, %v439
  %540 = vst.msk [vmem:[#allocation2 + $0xf8] sm:$0xff] %vm211, %v442
  %541 = vst.msk [vmem:[#allocation2 + $0x100] sm:$0xff] %vm211, %v447
  %542 = vst.msk [vmem:[#allocation2 + $0x108] sm:$0xff] %vm211, %v450
  %543 = vst.msk [vmem:[#allocation2 + $0x110] sm:$0xff] %vm211, %v455
  %544 = vst.msk [vmem:[#allocation2 + $0x118] sm:$0xff] %vm211, %v458
  %545 = vst.msk [vmem:[#allocation2 + $0x120] sm:$0xff] %vm211, %v463
  %546 = vst.msk [vmem:[#allocation2 + $0x128] sm:$0xff] %vm211, %v466
  %547 = vst.msk [vmem:[#allocation2 + $0x130] sm:$0xff] %vm211, %v471
  %548 = vst.msk [vmem:[#allocation2 + $0x138] sm:$0xff] %vm211, %v474
  %549 = vst.msk [vmem:[#allocation2 + $0x140] sm:$0xff] %vm211, %v479
  %550 = vst.msk [vmem:[#allocation2 + $0x148] sm:$0xff] %vm211, %v482
  %551 = vst.msk [vmem:[#allocation2 + $0x150] sm:$0xff] %vm211, %v487
  %552 = vst.msk [vmem:[#allocation2 + $0x158] sm:$0xff] %vm211, %v490
  %553 = vst.msk [vmem:[#allocation2 + $0x160] sm:$0xff] %vm211, %v495
  %554 = vst.msk [vmem:[#allocation2 + $0x168] sm:$0xff] %vm211, %v498
  %555 = vst.msk [vmem:[#allocation2 + $0x170] sm:$0xff] %vm211, %v503
  %556 = vst.msk [vmem:[#allocation2 + $0x178] sm:$0xff] %vm211, %v506
  %v557 = vld [vmem:[#allocation2] sm:$0xff]
  %v558 = vld [vmem:[#allocation2 + $0x8] sm:$0xff]
  %v559 = vld [vmem:[#allocation2 + $0x10] sm:$0xff]
  %v560 = vld [vmem:[#allocation2 + $0x18] sm:$0xff]
  %v561 = vld [vmem:[#allocation2 + $0x20] sm:$0xff]
  %v562 = vld [vmem:[#allocation2 + $0x28] sm:$0xff]
  %v563 = vld [vmem:[#allocation2 + $0x30] sm:$0xff]
  %v564 = vld [vmem:[#allocation2 + $0x38] sm:$0xff]
  %v565 = vld [vmem:[#allocation2 + $0x40] sm:$0xff]
  %v566 = vld [vmem:[#allocation2 + $0x48] sm:$0xff]
  %v567 = vld [vmem:[#allocation2 + $0x50] sm:$0xff]
  %v568 = vld [vmem:[#allocation2 + $0x58] sm:$0xff]
  %v569 = vld [vmem:[#allocation2 + $0x60] sm:$0xff]
  %v570 = vld [vmem:[#allocation2 + $0x68] sm:$0xff]
  %v571 = vld [vmem:[#allocation2 + $0x70] sm:$0xff]
  %v572 = vld [vmem:[#allocation2 + $0x78] sm:$0xff]
  %v573 = vld [vmem:[#allocation2 + $0x80] sm:$0xff]
  %v574 = vld [vmem:[#allocation2 + $0x88] sm:$0xff]
  %v575 = vld [vmem:[#allocation2 + $0x90] sm:$0xff]
  %v576 = vld [vmem:[#allocation2 + $0x98] sm:$0xff]
  %v577 = vld [vmem:[#allocation2 + $0xa0] sm:$0xff]
  %v578 = vld [vmem:[#allocation2 + $0xa8] sm:$0xff]
  %v579 = vld [vmem:[#allocation2 + $0xb0] sm:$0xff]
  %v580 = vld [vmem:[#allocation2 + $0xb8] sm:$0xff]
  %v581 = vld [vmem:[#allocation2 + $0xc0] sm:$0xff]
  %v582 = vld [vmem:[#allocation2 + $0xc8] sm:$0xff]
  %v583 = vld [vmem:[#allocation2 + $0xd0] sm:$0xff]
  %v584 = vld [vmem:[#allocation2 + $0xd8] sm:$0xff]
  %v585 = vld [vmem:[#allocation2 + $0xe0] sm:$0xff]
  %v586 = vld [vmem:[#allocation2 + $0xe8] sm:$0xff]
  %v587 = vld [vmem:[#allocation2 + $0xf0] sm:$0xff]
  %v588 = vld [vmem:[#allocation2 + $0xf8] sm:$0xff]
  %v589 = vld [vmem:[#allocation2 + $0x100] sm:$0xff]
  %v590 = vld [vmem:[#allocation2 + $0x108] sm:$0xff]
  %v591 = vld [vmem:[#allocation2 + $0x110] sm:$0xff]
  %v592 = vld [vmem:[#allocation2 + $0x118] sm:$0xff]
  %v593 = vld [vmem:[#allocation2 + $0x120] sm:$0xff]
  %v594 = vld [vmem:[#allocation2 + $0x128] sm:$0xff]
  %v595 = vld [vmem:[#allocation2 + $0x130] sm:$0xff]
  %v596 = vld [vmem:[#allocation2 + $0x138] sm:$0xff]
  %v597 = vld [vmem:[#allocation2 + $0x140] sm:$0xff]
  %v598 = vld [vmem:[#allocation2 + $0x148] sm:$0xff]
  %v599 = vld [vmem:[#allocation2 + $0x150] sm:$0xff]
  %v600 = vld [vmem:[#allocation2 + $0x158] sm:$0xff]
  %v601 = vld [vmem:[#allocation2 + $0x160] sm:$0xff]
  %v602 = vld [vmem:[#allocation2 + $0x168] sm:$0xff]
  %v603 = vld [vmem:[#allocation2 + $0x170] sm:$0xff]
  %v604 = vld [vmem:[#allocation2 + $0x178] sm:$0xff]
  %v605 = vld [vmem:[%s0] sm:$0xe]
  %v606 = vld [vmem:[%s0 + $0x4] sm:$0xf]
  %v607 = vld [vmem:[%s0 + $0x8] sm:$0xf]
  %v608 = vld [vmem:[%s0 + $0xc] sm:$0xf]
  %v609 = vld [vmem:[%s0 + $0x10] sm:$0xf]
  %v610 = vld [vmem:[%s0 + $0x14] sm:$0xf]
  %v611 = vld [vmem:[%s0 + $0x18] sm:$0xf]
  %v612 = vld [vmem:[%s0 + $0x1c] sm:$0xf]
  %v613 = vld [vmem:[%s0 + $0x20] sm:$0xf]
  %v614 = vld [vmem:[%s0 + $0x24] sm:$0xf]
  %v615 = vld [vmem:[%s0 + $0x28] sm:$0xf]
  %v616 = vld [vmem:[%s0 + $0x2c] sm:$0xf]
  %v617 = vld [vmem:[%s0 + $0x30] sm:$0xf]
  %v618 = vld [vmem:[%s0 + $0x34] sm:$0xf]
  %v619 = vld [vmem:[%s0 + $0x38] sm:$0xf]
  %v620 = vld [vmem:[%s0 + $0x3c] sm:$0xf]
  %v621 = vld [vmem:[%s0 + $0x40] sm:$0xf]
  %v622 = vld [vmem:[%s0 + $0x44] sm:$0xf]
  %v623 = vld [vmem:[%s0 + $0x48] sm:$0xf]
  %v624 = vld [vmem:[%s0 + $0x4c] sm:$0xf]
  %v625 = vld [vmem:[%s0 + $0x50] sm:$0xf]
  %v626 = vld [vmem:[%s0 + $0x54] sm:$0xf]
  %v627 = vld [vmem:[%s0 + $0x58] sm:$0xf]
  %v628 = vld [vmem:[%s0 + $0x5c] sm:$0xf]
  %v629 = vld [vmem:[%s0 + $0x60] sm:$0xf]
  %v630 = vld [vmem:[%s0 + $0x64] sm:$0xf]
  %v631 = vld [vmem:[%s0 + $0x68] sm:$0xf]
  %v632 = vld [vmem:[%s0 + $0x6c] sm:$0xf]
  %v633 = vld [vmem:[%s0 + $0x70] sm:$0xf]
  %v634 = vld [vmem:[%s0 + $0x74] sm:$0xf]
  %v635 = vld [vmem:[%s0 + $0x78] sm:$0xf]
  %v636 = vld [vmem:[%s0 + $0x7c] sm:$0xf]
  %v637 = vld [vmem:[%s0 + $0x80] sm:$0xf]
  %v638 = vld [vmem:[%s0 + $0x84] sm:$0xf]
  %v639 = vld [vmem:[%s0 + $0x88] sm:$0xf]
  %v640 = vld [vmem:[%s0 + $0x8c] sm:$0xf]
  %v641 = vld [vmem:[%s0 + $0x90] sm:$0xf]
  %v642 = vld [vmem:[%s0 + $0x94] sm:$0xf]
  %v643 = vld [vmem:[%s0 + $0x98] sm:$0xf]
  %v644 = vld [vmem:[%s0 + $0x9c] sm:$0xf]
  %v645 = vld [vmem:[%s0 + $0xa0] sm:$0xf]
  %v646 = vld [vmem:[%s0 + $0xa4] sm:$0xf]
  %v647 = vld [vmem:[%s0 + $0xa8] sm:$0xf]
  %v648 = vld [vmem:[%s0 + $0xac] sm:$0xf]
  %v649 = vld [vmem:[%s0 + $0xb0] sm:$0xf]
  %v650 = vld [vmem:[%s0 + $0xb4] sm:$0xf]
  %v651 = vld [vmem:[%s0 + $0xb8] sm:$0xf]
  %v652 = vld [vmem:[%s0 + $0xbc] sm:$0xf]
  %v653 = vld [vmem:[%s0 + $0xc0] sm:$0x1]
  %s654 = scalar_lea.vmem %s1, 16
  %v655 = vld [vmem:[%s654] sm:$0xf]
  %v656 = vld [vmem:[%s654 + $0x4] sm:$0xf]
  %v657 = vld [vmem:[%s654 + $0x8] sm:$0xf]
  %v658 = vld [vmem:[%s654 + $0xc] sm:$0xf]
  %v708 = vunpack.c.l.b16 %v605
  %v709 = vunpack.c.l.b16 %v606
  %v710 = vunpack.c.l.b16 %v607
  %v711 = vunpack.c.l.b16 %v608
  %v712 = vunpack.c.l.b16 %v609
  %v713 = vunpack.c.l.b16 %v610
  %v714 = vunpack.c.l.b16 %v611
  %v715 = vunpack.c.l.b16 %v612
  %v716 = vunpack.c.l.b16 %v613
  %v717 = vunpack.c.l.b16 %v614
  %v718 = vunpack.c.l.b16 %v615
  %v719 = vunpack.c.l.b16 %v616
  %v720 = vunpack.c.l.b16 %v617
  %v721 = vunpack.c.l.b16 %v618
  %v722 = vunpack.c.l.b16 %v619
  %v723 = vunpack.c.l.b16 %v620
  %v724 = vunpack.c.l.b16 %v621
  %v725 = vunpack.c.l.b16 %v622
  %v726 = vunpack.c.l.b16 %v623
  %v727 = vunpack.c.l.b16 %v624
  %v728 = vunpack.c.l.b16 %v625
  %v729 = vunpack.c.l.b16 %v626
  %v730 = vunpack.c.l.b16 %v627
  %v731 = vunpack.c.l.b16 %v628
  %v732 = vunpack.c.l.b16 %v629
  %v733 = vunpack.c.l.b16 %v630
  %v734 = vunpack.c.l.b16 %v631
  %v735 = vunpack.c.l.b16 %v632
  %v736 = vunpack.c.l.b16 %v633
  %v737 = vunpack.c.l.b16 %v634
  %v738 = vunpack.c.l.b16 %v635
  %v739 = vunpack.c.l.b16 %v636
  %v740 = vunpack.c.l.b16 %v637
  %v741 = vunpack.c.l.b16 %v638
  %v742 = vunpack.c.l.b16 %v639
  %v743 = vunpack.c.l.b16 %v640
  %v744 = vunpack.c.l.b16 %v641
  %v745 = vunpack.c.l.b16 %v642
  %v746 = vunpack.c.l.b16 %v643
  %v747 = vunpack.c.l.b16 %v644
  %v748 = vunpack.c.l.b16 %v645
  %v749 = vunpack.c.l.b16 %v646
  %v750 = vunpack.c.l.b16 %v647
  %v751 = vunpack.c.l.b16 %v648
  %v752 = vunpack.c.l.b16 %v649
  %v753 = vunpack.c.l.b16 %v650
  %v754 = vunpack.c.l.b16 %v651
  %v755 = vunpack.c.l.b16 %v652
  %v756 = vunpack.c.l.b16 %v653
  %v757 = vpack.c.b16 %v709, %v708
  %v758 = vpack.c.b16 %v711, %v710
  %v759 = vpack.c.b16 %v713, %v712
  %v760 = vpack.c.b16 %v715, %v714
  %v761 = vpack.c.b16 %v717, %v716
  %v762 = vpack.c.b16 %v719, %v718
  %v763 = vpack.c.b16 %v721, %v720
  %v764 = vpack.c.b16 %v723, %v722
  %v765 = vpack.c.b16 %v725, %v724
  %v766 = vpack.c.b16 %v727, %v726
  %v767 = vpack.c.b16 %v729, %v728
  %v768 = vpack.c.b16 %v731, %v730
  %v769 = vpack.c.b16 %v733, %v732
  %v770 = vpack.c.b16 %v735, %v734
  %v771 = vpack.c.b16 %v737, %v736
  %v772 = vpack.c.b16 %v739, %v738
  %v773 = vpack.c.b16 %v741, %v740
  %v774 = vpack.c.b16 %v743, %v742
  %v775 = vpack.c.b16 %v745, %v744
  %v776 = vpack.c.b16 %v747, %v746
  %v777 = vpack.c.b16 %v749, %v748
  %v778 = vpack.c.b16 %v751, %v750
  %v779 = vpack.c.b16 %v753, %v752
  %v780 = vpack.c.b16 %v755, %v754
  %v781 = vpack.c.b16 %v756, %v756
  %vm782 = vcmask 1046528
  %v783 = vrot.slane %v757, 1
  %v784 = vrot.slane %v758, 1
  %v785 = vsel %vm782, %v783, %v784
  %v786 = vrot.slane %v759, 1
  %v787 = vsel %vm782, %v784, %v786
  %v788 = vrot.slane %v760, 1
  %v789 = vsel %vm782, %v786, %v788
  %v790 = vrot.slane %v761, 1
  %v791 = vsel %vm782, %v788, %v790
  %v792 = vrot.slane %v762, 1
  %v793 = vsel %vm782, %v790, %v792
  %v794 = vrot.slane %v763, 1
  %v795 = vsel %vm782, %v792, %v794
  %v796 = vrot.slane %v764, 1
  %v797 = vsel %vm782, %v794, %v796
  %v798 = vrot.slane %v765, 1
  %v799 = vsel %vm782, %v796, %v798
  %v800 = vrot.slane %v766, 1
  %v801 = vsel %vm782, %v798, %v800
  %v802 = vrot.slane %v767, 1
  %v803 = vsel %vm782, %v800, %v802
  %v804 = vrot.slane %v768, 1
  %v805 = vsel %vm782, %v802, %v804
  %v806 = vrot.slane %v769, 1
  %v807 = vsel %vm782, %v804, %v806
  %v808 = vrot.slane %v770, 1
  %v809 = vsel %vm782, %v806, %v808
  %v810 = vrot.slane %v771, 1
  %v811 = vsel %vm782, %v808, %v810
  %v812 = vrot.slane %v772, 1
  %v813 = vsel %vm782, %v810, %v812
  %v814 = vrot.slane %v773, 1
  %v815 = vsel %vm782, %v812, %v814
  %v816 = vrot.slane %v774, 1
  %v817 = vsel %vm782, %v814, %v816
  %v818 = vrot.slane %v775, 1
  %v819 = vsel %vm782, %v816, %v818
  %v820 = vrot.slane %v776, 1
  %v821 = vsel %vm782, %v818, %v820
  %v822 = vrot.slane %v777, 1
  %v823 = vsel %vm782, %v820, %v822
  %v824 = vrot.slane %v778, 1
  %v825 = vsel %vm782, %v822, %v824
  %v826 = vrot.slane %v779, 1
  %v827 = vsel %vm782, %v824, %v826
  %v828 = vrot.slane %v780, 1
  %v829 = vsel %vm782, %v826, %v828
  %v830 = vrot.slane %v781, 1
  %v831 = vsel %vm782, %v828, %v830
  %v836 = vunpack.c.l.b16 %v655
  %v837 = vunpack.c.l.b16 %v656
  %v838 = vunpack.c.l.b16 %v657
  %v839 = vunpack.c.l.b16 %v658
  %v840 = vpack.c.b16 %v837, %v836
  %v841 = vpack.c.b16 %v839, %v838
  %v845 = vsel %vm211, %v785, 0
  %v848 = vsel %vm211, %v787, 0
  %v851 = vsel %vm211, %v789, 0
  %v854 = vsel %vm211, %v791, 0
  %v857 = vsel %vm211, %v793, 0
  %v860 = vsel %vm211, %v795, 0
  %v863 = vsel %vm211, %v797, 0
  %v866 = vsel %vm211, %v799, 0
  %v869 = vsel %vm211, %v801, 0
  %v872 = vsel %vm211, %v803, 0
  %v875 = vsel %vm211, %v805, 0
  %v878 = vsel %vm211, %v807, 0
  %v881 = vsel %vm211, %v809, 0
  %v884 = vsel %vm211, %v811, 0
  %v887 = vsel %vm211, %v813, 0
  %v890 = vsel %vm211, %v815, 0
  %v893 = vsel %vm211, %v817, 0
  %v896 = vsel %vm211, %v819, 0
  %v899 = vsel %vm211, %v821, 0
  %v902 = vsel %vm211, %v823, 0
  %v905 = vsel %vm211, %v825, 0
  %v908 = vsel %vm211, %v827, 0
  %v911 = vsel %vm211, %v829, 0
  %v914 = vsel %vm211, %v831, 0
  %916 = vmatprep.subr.bf16.mxu0 0
  %917 = vmatpush1.bf16.msra.mxu0 0
  %918 = vmatprep.subr.bf16.mxu0 0
  %919 = vmatpush1.bf16.msra.mxu0 0
  %920 = vmatprep.subr.bf16.mxu0 0
  %921 = vmatpush1.bf16.msra.mxu0 0
  %922 = vmatprep.subr.bf16.mxu0 0
  %923 = vmatpush1.bf16.msra.mxu0 0
  %924 = vmatprep.subr.bf16.mxu0 0
  %925 = vmatpush1.bf16.msra.mxu0 0
  %926 = vmatprep.subr.bf16.mxu0 0
  %927 = vmatpush1.bf16.msra.mxu0 0
  %928 = vmatprep.subr.bf16.mxu0 0
  %929 = vmatpush1.bf16.msra.mxu0 %v841
  %930 = vmatprep.subr.bf16.mxu0 0
  %931 = vmatpush1.bf16.msra.mxu0 %v840
  %932 = vmatprep.subr.bf16.mxu0 0
  %933 = vmatpush2.bf16.msra.mxu0 0
  %934 = vmatprep.subr.bf16.mxu0 0
  %935 = vmatpush2.bf16.msra.mxu0 0
  %936 = vmatprep.subr.bf16.mxu0 0
  %937 = vmatpush2.bf16.msra.mxu0 0
  %938 = vmatprep.subr.bf16.mxu0 0
  %939 = vmatpush2.bf16.msra.mxu0 0
  %940 = vmatprep.subr.bf16.mxu0 0
  %941 = vmatpush2.bf16.msra.mxu0 0
  %942 = vmatprep.subr.bf16.mxu0 0
  %943 = vmatpush2.bf16.msra.mxu0 0
  %944 = vmatprep.subr.bf16.mxu0 0
  %945 = vmatpush2.bf16.msra.mxu0 0
  %946 = vmatprep.subr.bf16.mxu0 0
  %947 = vmatpush2.bf16.msra.mxu0 0
  %948 = vmatprep.mubr.bf16.mxu0 0
  %949 = vmatmul.mubr.bf16.gmra.mxu0 %v845
  %v950 = vpop.f32.mrf.mxu0
  %v951 = vadd.f32 0.0, %v950
  %v952 = vpop.f32.mrf.mxu0
  %v953 = vpop.f32.mrf.mxu0
  %v954 = vadd.f32 0.0, %v953
  %v955 = vpop.f32.mrf.mxu0
  %956 = vmatprep.mubr.bf16.mxu0 0
  %957 = vmatmul.mubr.bf16.gmra.mxu0 %v848
  %v958 = vpop.f32.mrf.mxu0
  %v959 = vadd.f32 0.0, %v958
  %v960 = vpop.f32.mrf.mxu0
  %v961 = vpop.f32.mrf.mxu0
  %v962 = vadd.f32 0.0, %v961
  %v963 = vpop.f32.mrf.mxu0
  %964 = vmatprep.mubr.bf16.mxu0 0
  %965 = vmatmul.mubr.bf16.gmra.mxu0 %v851
  %v966 = vpop.f32.mrf.mxu0
  %v967 = vadd.f32 0.0, %v966
  %v968 = vpop.f32.mrf.mxu0
  %v969 = vpop.f32.mrf.mxu0
  %v970 = vadd.f32 0.0, %v969
  %v971 = vpop.f32.mrf.mxu0
  %972 = vmatprep.mubr.bf16.mxu0 0
  %973 = vmatmul.mubr.bf16.gmra.mxu0 %v854
  %v974 = vpop.f32.mrf.mxu0
  %v975 = vadd.f32 0.0, %v974
  %v976 = vpop.f32.mrf.mxu0
  %v977 = vpop.f32.mrf.mxu0
  %v978 = vadd.f32 0.0, %v977
  %v979 = vpop.f32.mrf.mxu0
  %980 = vmatprep.mubr.bf16.mxu0 0
  %981 = vmatmul.mubr.bf16.gmra.mxu0 %v857
  %v982 = vpop.f32.mrf.mxu0
  %v983 = vadd.f32 0.0, %v982
  %v984 = vpop.f32.mrf.mxu0
  %v985 = vpop.f32.mrf.mxu0
  %v986 = vadd.f32 0.0, %v985
  %v987 = vpop.f32.mrf.mxu0
  %988 = vmatprep.mubr.bf16.mxu0 0
  %989 = vmatmul.mubr.bf16.gmra.mxu0 %v860
  %v990 = vpop.f32.mrf.mxu0
  %v991 = vadd.f32 0.0, %v990
  %v992 = vpop.f32.mrf.mxu0
  %v993 = vpop.f32.mrf.mxu0
  %v994 = vadd.f32 0.0, %v993
  %v995 = vpop.f32.mrf.mxu0
  %996 = vmatprep.mubr.bf16.mxu0 0
  %997 = vmatmul.mubr.bf16.gmra.mxu0 %v863
  %v998 = vpop.f32.mrf.mxu0
  %v999 = vadd.f32 0.0, %v998
  %v1000 = vpop.f32.mrf.mxu0
  %v1001 = vpop.f32.mrf.mxu0
  %v1002 = vadd.f32 0.0, %v1001
  %v1003 = vpop.f32.mrf.mxu0
  %1004 = vmatprep.mubr.bf16.mxu0 0
  %1005 = vmatmul.mubr.bf16.gmra.mxu0 %v866
  %v1006 = vpop.f32.mrf.mxu0
  %v1007 = vadd.f32 0.0, %v1006
  %v1008 = vpop.f32.mrf.mxu0
  %v1009 = vpop.f32.mrf.mxu0
  %v1010 = vadd.f32 0.0, %v1009
  %v1011 = vpop.f32.mrf.mxu0
  %1012 = vmatprep.mubr.bf16.mxu0 0
  %1013 = vmatmul.mubr.bf16.gmra.mxu0 %v869
  %v1014 = vpop.f32.mrf.mxu0
  %v1015 = vadd.f32 0.0, %v1014
  %v1016 = vpop.f32.mrf.mxu0
  %v1017 = vpop.f32.mrf.mxu0
  %v1018 = vadd.f32 0.0, %v1017
  %v1019 = vpop.f32.mrf.mxu0
  %1020 = vmatprep.mubr.bf16.mxu0 0
  %1021 = vmatmul.mubr.bf16.gmra.mxu0 %v872
  %v1022 = vpop.f32.mrf.mxu0
  %v1023 = vadd.f32 0.0, %v1022
  %v1024 = vpop.f32.mrf.mxu0
  %v1025 = vpop.f32.mrf.mxu0
  %v1026 = vadd.f32 0.0, %v1025
  %v1027 = vpop.f32.mrf.mxu0
  %1028 = vmatprep.mubr.bf16.mxu0 0
  %1029 = vmatmul.mubr.bf16.gmra.mxu0 %v875
  %v1030 = vpop.f32.mrf.mxu0
  %v1031 = vadd.f32 0.0, %v1030
  %v1032 = vpop.f32.mrf.mxu0
  %v1033 = vpop.f32.mrf.mxu0
  %v1034 = vadd.f32 0.0, %v1033
  %v1035 = vpop.f32.mrf.mxu0
  %1036 = vmatprep.mubr.bf16.mxu0 0
  %1037 = vmatmul.mubr.bf16.gmra.mxu0 %v878
  %v1038 = vpop.f32.mrf.mxu0
  %v1039 = vadd.f32 0.0, %v1038
  %v1040 = vpop.f32.mrf.mxu0
  %v1041 = vpop.f32.mrf.mxu0
  %v1042 = vadd.f32 0.0, %v1041
  %v1043 = vpop.f32.mrf.mxu0
  %1044 = vmatprep.mubr.bf16.mxu0 0
  %1045 = vmatmul.mubr.bf16.gmra.mxu0 %v881
  %v1046 = vpop.f32.mrf.mxu0
  %v1047 = vadd.f32 0.0, %v1046
  %v1048 = vpop.f32.mrf.mxu0
  %v1049 = vpop.f32.mrf.mxu0
  %v1050 = vadd.f32 0.0, %v1049
  %v1051 = vpop.f32.mrf.mxu0
  %1052 = vmatprep.mubr.bf16.mxu0 0
  %1053 = vmatmul.mubr.bf16.gmra.mxu0 %v884
  %v1054 = vpop.f32.mrf.mxu0
  %v1055 = vadd.f32 0.0, %v1054
  %v1056 = vpop.f32.mrf.mxu0
  %v1057 = vpop.f32.mrf.mxu0
  %v1058 = vadd.f32 0.0, %v1057
  %v1059 = vpop.f32.mrf.mxu0
  %1060 = vmatprep.mubr.bf16.mxu0 0
  %1061 = vmatmul.mubr.bf16.gmra.mxu0 %v887
  %v1062 = vpop.f32.mrf.mxu0
  %v1063 = vadd.f32 0.0, %v1062
  %v1064 = vpop.f32.mrf.mxu0
  %v1065 = vpop.f32.mrf.mxu0
  %v1066 = vadd.f32 0.0, %v1065
  %v1067 = vpop.f32.mrf.mxu0
  %1068 = vmatprep.mubr.bf16.mxu0 0
  %1069 = vmatmul.mubr.bf16.gmra.mxu0 %v890
  %v1070 = vpop.f32.mrf.mxu0
  %v1071 = vadd.f32 0.0, %v1070
  %v1072 = vpop.f32.mrf.mxu0
  %v1073 = vpop.f32.mrf.mxu0
  %v1074 = vadd.f32 0.0, %v1073
  %v1075 = vpop.f32.mrf.mxu0
  %1076 = vmatprep.mubr.bf16.mxu0 0
  %1077 = vmatmul.mubr.bf16.gmra.mxu0 %v893
  %v1078 = vpop.f32.mrf.mxu0
  %v1079 = vadd.f32 0.0, %v1078
  %v1080 = vpop.f32.mrf.mxu0
  %v1081 = vpop.f32.mrf.mxu0
  %v1082 = vadd.f32 0.0, %v1081
  %v1083 = vpop.f32.mrf.mxu0
  %1084 = vmatprep.mubr.bf16.mxu0 0
  %1085 = vmatmul.mubr.bf16.gmra.mxu0 %v896
  %v1086 = vpop.f32.mrf.mxu0
  %v1087 = vadd.f32 0.0, %v1086
  %v1088 = vpop.f32.mrf.mxu0
  %v1089 = vpop.f32.mrf.mxu0
  %v1090 = vadd.f32 0.0, %v1089
  %v1091 = vpop.f32.mrf.mxu0
  %1092 = vmatprep.mubr.bf16.mxu0 0
  %1093 = vmatmul.mubr.bf16.gmra.mxu0 %v899
  %v1094 = vpop.f32.mrf.mxu0
  %v1095 = vadd.f32 0.0, %v1094
  %v1096 = vpop.f32.mrf.mxu0
  %v1097 = vpop.f32.mrf.mxu0
  %v1098 = vadd.f32 0.0, %v1097
  %v1099 = vpop.f32.mrf.mxu0
  %1100 = vmatprep.mubr.bf16.mxu0 0
  %1101 = vmatmul.mubr.bf16.gmra.mxu0 %v902
  %v1102 = vpop.f32.mrf.mxu0
  %v1103 = vadd.f32 0.0, %v1102
  %v1104 = vpop.f32.mrf.mxu0
  %v1105 = vpop.f32.mrf.mxu0
  %v1106 = vadd.f32 0.0, %v1105
  %v1107 = vpop.f32.mrf.mxu0
  %1108 = vmatprep.mubr.bf16.mxu0 0
  %1109 = vmatmul.mubr.bf16.gmra.mxu0 %v905
  %v1110 = vpop.f32.mrf.mxu0
  %v1111 = vadd.f32 0.0, %v1110
  %v1112 = vpop.f32.mrf.mxu0
  %v1113 = vpop.f32.mrf.mxu0
  %v1114 = vadd.f32 0.0, %v1113
  %v1115 = vpop.f32.mrf.mxu0
  %1116 = vmatprep.mubr.bf16.mxu0 0
  %1117 = vmatmul.mubr.bf16.gmra.mxu0 %v908
  %v1118 = vpop.f32.mrf.mxu0
  %v1119 = vadd.f32 0.0, %v1118
  %v1120 = vpop.f32.mrf.mxu0
  %v1121 = vpop.f32.mrf.mxu0
  %v1122 = vadd.f32 0.0, %v1121
  %v1123 = vpop.f32.mrf.mxu0
  %1124 = vmatprep.mubr.bf16.mxu0 0
  %1125 = vmatmul.mubr.bf16.gmra.mxu0 %v911
  %v1126 = vpop.f32.mrf.mxu0
  %v1127 = vadd.f32 0.0, %v1126
  %v1128 = vpop.f32.mrf.mxu0
  %v1129 = vpop.f32.mrf.mxu0
  %v1130 = vadd.f32 0.0, %v1129
  %v1131 = vpop.f32.mrf.mxu0
  %1132 = vmatprep.mubr.bf16.mxu0 0
  %1133 = vmatmul.mubr.bf16.gmra.mxu0 %v914
  %v1134 = vpop.f32.mrf.mxu0
  %v1135 = vadd.f32 0.0, %v1134
  %v1136 = vpop.f32.mrf.mxu0
  %v1137 = vpop.f32.mrf.mxu0
  %v1138 = vadd.f32 0.0, %v1137
  %v1139 = vpop.f32.mrf.mxu0
  %1140 = vdwg.mxu0
  %v1141 = vadd.f32 %v557, %v951
  %v1142 = vadd.f32 %v558, %v954
  %v1143 = vadd.f32 %v559, %v959
  %v1144 = vadd.f32 %v560, %v962
  %v1145 = vadd.f32 %v561, %v967
  %v1146 = vadd.f32 %v562, %v970
  %v1147 = vadd.f32 %v563, %v975
  %v1148 = vadd.f32 %v564, %v978
  %v1149 = vadd.f32 %v565, %v983
  %v1150 = vadd.f32 %v566, %v986
  %v1151 = vadd.f32 %v567, %v991
  %v1152 = vadd.f32 %v568, %v994
  %v1153 = vadd.f32 %v569, %v999
  %v1154 = vadd.f32 %v570, %v1002
  %v1155 = vadd.f32 %v571, %v1007
  %v1156 = vadd.f32 %v572, %v1010
  %v1157 = vadd.f32 %v573, %v1015
  %v1158 = vadd.f32 %v574, %v1018
  %v1159 = vadd.f32 %v575, %v1023
  %v1160 = vadd.f32 %v576, %v1026
  %v1161 = vadd.f32 %v577, %v1031
  %v1162 = vadd.f32 %v578, %v1034
  %v1163 = vadd.f32 %v579, %v1039
  %v1164 = vadd.f32 %v580, %v1042
  %v1165 = vadd.f32 %v581, %v1047
  %v1166 = vadd.f32 %v582, %v1050
  %v1167 = vadd.f32 %v583, %v1055
  %v1168 = vadd.f32 %v584, %v1058
  %v1169 = vadd.f32 %v585, %v1063
  %v1170 = vadd.f32 %v586, %v1066
  %v1171 = vadd.f32 %v587, %v1071
  %v1172 = vadd.f32 %v588, %v1074
  %v1173 = vadd.f32 %v589, %v1079
  %v1174 = vadd.f32 %v590, %v1082
  %v1175 = vadd.f32 %v591, %v1087
  %v1176 = vadd.f32 %v592, %v1090
  %v1177 = vadd.f32 %v593, %v1095
  %v1178 = vadd.f32 %v594, %v1098
  %v1179 = vadd.f32 %v595, %v1103
  %v1180 = vadd.f32 %v596, %v1106
  %v1181 = vadd.f32 %v597, %v1111
  %v1182 = vadd.f32 %v598, %v1114
  %v1183 = vadd.f32 %v599, %v1119
  %v1184 = vadd.f32 %v600, %v1122
  %v1185 = vadd.f32 %v601, %v1127
  %v1186 = vadd.f32 %v602, %v1130
  %v1187 = vadd.f32 %v603, %v1135
  %v1188 = vadd.f32 %v604, %v1138
  %1189 = vst.msk [vmem:[#allocation2] sm:$0xff] %vm211, %v1141
  %1190 = vst.msk [vmem:[#allocation2 + $0x8] sm:$0xff] %vm211, %v1142
  %1191 = vst.msk [vmem:[#allocation2 + $0x10] sm:$0xff] %vm211, %v1143
  %1192 = vst.msk [vmem:[#allocation2 + $0x18] sm:$0xff] %vm211, %v1144
  %1193 = vst.msk [vmem:[#allocation2 + $0x20] sm:$0xff] %vm211, %v1145
  %1194 = vst.msk [vmem:[#allocation2 + $0x28] sm:$0xff] %vm211, %v1146
  %1195 = vst.msk [vmem:[#allocation2 + $0x30] sm:$0xff] %vm211, %v1147
  %1196 = vst.msk [vmem:[#allocation2 + $0x38] sm:$0xff] %vm211, %v1148
  %1197 = vst.msk [vmem:[#allocation2 + $0x40] sm:$0xff] %vm211, %v1149
  %1198 = vst.msk [vmem:[#allocation2 + $0x48] sm:$0xff] %vm211, %v1150
  %1199 = vst.msk [vmem:[#allocation2 + $0x50] sm:$0xff] %vm211, %v1151
  %1200 = vst.msk [vmem:[#allocation2 + $0x58] sm:$0xff] %vm211, %v1152
  %1201 = vst.msk [vmem:[#allocation2 + $0x60] sm:$0xff] %vm211, %v1153
  %1202 = vst.msk [vmem:[#allocation2 + $0x68] sm:$0xff] %vm211, %v1154
  %1203 = vst.msk [vmem:[#allocation2 + $0x70] sm:$0xff] %vm211, %v1155
  %1204 = vst.msk [vmem:[#allocation2 + $0x78] sm:$0xff] %vm211, %v1156
  %1205 = vst.msk [vmem:[#allocation2 + $0x80] sm:$0xff] %vm211, %v1157
  %1206 = vst.msk [vmem:[#allocation2 + $0x88] sm:$0xff] %vm211, %v1158
  %1207 = vst.msk [vmem:[#allocation2 + $0x90] sm:$0xff] %vm211, %v1159
  %1208 = vst.msk [vmem:[#allocation2 + $0x98] sm:$0xff] %vm211, %v1160
  %1209 = vst.msk [vmem:[#allocation2 + $0xa0] sm:$0xff] %vm211, %v1161
  %1210 = vst.msk [vmem:[#allocation2 + $0xa8] sm:$0xff] %vm211, %v1162
  %1211 = vst.msk [vmem:[#allocation2 + $0xb0] sm:$0xff] %vm211, %v1163
  %1212 = vst.msk [vmem:[#allocation2 + $0xb8] sm:$0xff] %vm211, %v1164
  %1213 = vst.msk [vmem:[#allocation2 + $0xc0] sm:$0xff] %vm211, %v1165
  %1214 = vst.msk [vmem:[#allocation2 + $0xc8] sm:$0xff] %vm211, %v1166
  %1215 = vst.msk [vmem:[#allocation2 + $0xd0] sm:$0xff] %vm211, %v1167
  %1216 = vst.msk [vmem:[#allocation2 + $0xd8] sm:$0xff] %vm211, %v1168
  %1217 = vst.msk [vmem:[#allocation2 + $0xe0] sm:$0xff] %vm211, %v1169
  %1218 = vst.msk [vmem:[#allocation2 + $0xe8] sm:$0xff] %vm211, %v1170
  %1219 = vst.msk [vmem:[#allocation2 + $0xf0] sm:$0xff] %vm211, %v1171
  %1220 = vst.msk [vmem:[#allocation2 + $0xf8] sm:$0xff] %vm211, %v1172
  %1221 = vst.msk [vmem:[#allocation2 + $0x100] sm:$0xff] %vm211, %v1173
  %1222 = vst.msk [vmem:[#allocation2 + $0x108] sm:$0xff] %vm211, %v1174
  %1223 = vst.msk [vmem:[#allocation2 + $0x110] sm:$0xff] %vm211, %v1175
  %1224 = vst.msk [vmem:[#allocation2 + $0x118] sm:$0xff] %vm211, %v1176
  %1225 = vst.msk [vmem:[#allocation2 + $0x120] sm:$0xff] %vm211, %v1177
  %1226 = vst.msk [vmem:[#allocation2 + $0x128] sm:$0xff] %vm211, %v1178
  %1227 = vst.msk [vmem:[#allocation2 + $0x130] sm:$0xff] %vm211, %v1179
  %1228 = vst.msk [vmem:[#allocation2 + $0x138] sm:$0xff] %vm211, %v1180
  %1229 = vst.msk [vmem:[#allocation2 + $0x140] sm:$0xff] %vm211, %v1181
  %1230 = vst.msk [vmem:[#allocation2 + $0x148] sm:$0xff] %vm211, %v1182
  %1231 = vst.msk [vmem:[#allocation2 + $0x150] sm:$0xff] %vm211, %v1183
  %1232 = vst.msk [vmem:[#allocation2 + $0x158] sm:$0xff] %vm211, %v1184
  %1233 = vst.msk [vmem:[#allocation2 + $0x160] sm:$0xff] %vm211, %v1185
  %1234 = vst.msk [vmem:[#allocation2 + $0x168] sm:$0xff] %vm211, %v1186
  %1235 = vst.msk [vmem:[#allocation2 + $0x170] sm:$0xff] %vm211, %v1187
  %1236 = vst.msk [vmem:[#allocation2 + $0x178] sm:$0xff] %vm211, %v1188
  %v1237 = vld [vmem:[#allocation2] sm:$0xff]
  %v1238 = vld [vmem:[#allocation2 + $0x8] sm:$0xff]
  %v1239 = vld [vmem:[#allocation2 + $0x10] sm:$0xff]
  %v1240 = vld [vmem:[#allocation2 + $0x18] sm:$0xff]
  %v1241 = vld [vmem:[#allocation2 + $0x20] sm:$0xff]
  %v1242 = vld [vmem:[#allocation2 + $0x28] sm:$0xff]
  %v1243 = vld [vmem:[#allocation2 + $0x30] sm:$0xff]
  %v1244 = vld [vmem:[#allocation2 + $0x38] sm:$0xff]
  %v1245 = vld [vmem:[#allocation2 + $0x40] sm:$0xff]
  %v1246 = vld [vmem:[#allocation2 + $0x48] sm:$0xff]
  %v1247 = vld [vmem:[#allocation2 + $0x50] sm:$0xff]
  %v1248 = vld [vmem:[#allocation2 + $0x58] sm:$0xff]
  %v1249 = vld [vmem:[#allocation2 + $0x60] sm:$0xff]
  %v1250 = vld [vmem:[#allocation2 + $0x68] sm:$0xff]
  %v1251 = vld [vmem:[#allocation2 + $0x70] sm:$0xff]
  %v1252 = vld [vmem:[#allocation2 + $0x78] sm:$0xff]
  %v1253 = vld [vmem:[#allocation2 + $0x80] sm:$0xff]
  %v1254 = vld [vmem:[#allocation2 + $0x88] sm:$0xff]
  %v1255 = vld [vmem:[#allocation2 + $0x90] sm:$0xff]
  %v1256 = vld [vmem:[#allocation2 + $0x98] sm:$0xff]
  %v1257 = vld [vmem:[#allocation2 + $0xa0] sm:$0xff]
  %v1258 = vld [vmem:[#allocation2 + $0xa8] sm:$0xff]
  %v1259 = vld [vmem:[#allocation2 + $0xb0] sm:$0xff]
  %v1260 = vld [vmem:[#allocation2 + $0xb8] sm:$0xff]
  %v1261 = vld [vmem:[#allocation2 + $0xc0] sm:$0xff]
  %v1262 = vld [vmem:[#allocation2 + $0xc8] sm:$0xff]
  %v1263 = vld [vmem:[#allocation2 + $0xd0] sm:$0xff]
  %v1264 = vld [vmem:[#allocation2 + $0xd8] sm:$0xff]
  %v1265 = vld [vmem:[#allocation2 + $0xe0] sm:$0xff]
  %v1266 = vld [vmem:[#allocation2 + $0xe8] sm:$0xff]
  %v1267 = vld [vmem:[#allocation2 + $0xf0] sm:$0xff]
  %v1268 = vld [vmem:[#allocation2 + $0xf8] sm:$0xff]
  %v1269 = vld [vmem:[#allocation2 + $0x100] sm:$0xff]
  %v1270 = vld [vmem:[#allocation2 + $0x108] sm:$0xff]
  %v1271 = vld [vmem:[#allocation2 + $0x110] sm:$0xff]
  %v1272 = vld [vmem:[#allocation2 + $0x118] sm:$0xff]
  %v1273 = vld [vmem:[#allocation2 + $0x120] sm:$0xff]
  %v1274 = vld [vmem:[#allocation2 + $0x128] sm:$0xff]
  %v1275 = vld [vmem:[#allocation2 + $0x130] sm:$0xff]
  %v1276 = vld [vmem:[#allocation2 + $0x138] sm:$0xff]
  %v1277 = vld [vmem:[#allocation2 + $0x140] sm:$0xff]
  %v1278 = vld [vmem:[#allocation2 + $0x148] sm:$0xff]
  %v1279 = vld [vmem:[#allocation2 + $0x150] sm:$0xff]
  %v1280 = vld [vmem:[#allocation2 + $0x158] sm:$0xff]
  %v1281 = vld [vmem:[#allocation2 + $0x160] sm:$0xff]
  %v1282 = vld [vmem:[#allocation2 + $0x168] sm:$0xff]
  %v1283 = vld [vmem:[#allocation2 + $0x170] sm:$0xff]
  %v1284 = vld [vmem:[#allocation2 + $0x178] sm:$0xff]
  %v1285 = vld [vmem:[%s0] sm:$0xc]
  %v1286 = vld [vmem:[%s0 + $0x4] sm:$0xf]
  %v1287 = vld [vmem:[%s0 + $0x8] sm:$0xf]
  %v1288 = vld [vmem:[%s0 + $0xc] sm:$0xf]
  %v1289 = vld [vmem:[%s0 + $0x10] sm:$0xf]
  %v1290 = vld [vmem:[%s0 + $0x14] sm:$0xf]
  %v1291 = vld [vmem:[%s0 + $0x18] sm:$0xf]
  %v1292 = vld [vmem:[%s0 + $0x1c] sm:$0xf]
  %v1293 = vld [vmem:[%s0 + $0x20] sm:$0xf]
  %v1294 = vld [vmem:[%s0 + $0x24] sm:$0xf]
  %v1295 = vld [vmem:[%s0 + $0x28] sm:$0xf]
  %v1296 = vld [vmem:[%s0 + $0x2c] sm:$0xf]
  %v1297 = vld [vmem:[%s0 + $0x30] sm:$0xf]
  %v1298 = vld [vmem:[%s0 + $0x34] sm:$0xf]
  %v1299 = vld [vmem:[%s0 + $0x38] sm:$0xf]
  %v1300 = vld [vmem:[%s0 + $0x3c] sm:$0xf]
  %v1301 = vld [vmem:[%s0 + $0x40] sm:$0xf]
  %v1302 = vld [vmem:[%s0 + $0x44] sm:$0xf]
  %v1303 = vld [vmem:[%s0 + $0x48] sm:$0xf]
  %v1304 = vld [vmem:[%s0 + $0x4c] sm:$0xf]
  %v1305 = vld [vmem:[%s0 + $0x50] sm:$0xf]
  %v1306 = vld [vmem:[%s0 + $0x54] sm:$0xf]
  %v1307 = vld [vmem:[%s0 + $0x58] sm:$0xf]
  %v1308 = vld [vmem:[%s0 + $0x5c] sm:$0xf]
  %v1309 = vld [vmem:[%s0 + $0x60] sm:$0xf]
  %v1310 = vld [vmem:[%s0 + $0x64] sm:$0xf]
  %v1311 = vld [vmem:[%s0 + $0x68] sm:$0xf]
  %v1312 = vld [vmem:[%s0 + $0x6c] sm:$0xf]
  %v1313 = vld [vmem:[%s0 + $0x70] sm:$0xf]
  %v1314 = vld [vmem:[%s0 + $0x74] sm:$0xf]
  %v1315 = vld [vmem:[%s0 + $0x78] sm:$0xf]
  %v1316 = vld [vmem:[%s0 + $0x7c] sm:$0xf]
  %v1317 = vld [vmem:[%s0 + $0x80] sm:$0xf]
  %v1318 = vld [vmem:[%s0 + $0x84] sm:$0xf]
  %v1319 = vld [vmem:[%s0 + $0x88] sm:$0xf]
  %v1320 = vld [vmem:[%s0 + $0x8c] sm:$0xf]
  %v1321 = vld [vmem:[%s0 + $0x90] sm:$0xf]
  %v1322 = vld [vmem:[%s0 + $0x94] sm:$0xf]
  %v1323 = vld [vmem:[%s0 + $0x98] sm:$0xf]
  %v1324 = vld [vmem:[%s0 + $0x9c] sm:$0xf]
  %v1325 = vld [vmem:[%s0 + $0xa0] sm:$0xf]
  %v1326 = vld [vmem:[%s0 + $0xa4] sm:$0xf]
  %v1327 = vld [vmem:[%s0 + $0xa8] sm:$0xf]
  %v1328 = vld [vmem:[%s0 + $0xac] sm:$0xf]
  %v1329 = vld [vmem:[%s0 + $0xb0] sm:$0xf]
  %v1330 = vld [vmem:[%s0 + $0xb4] sm:$0xf]
  %v1331 = vld [vmem:[%s0 + $0xb8] sm:$0xf]
  %v1332 = vld [vmem:[%s0 + $0xbc] sm:$0xf]
  %v1333 = vld [vmem:[%s0 + $0xc0] sm:$0x3]
  %s1334 = scalar_lea.vmem %s1, 32
  %v1335 = vld [vmem:[%s1334] sm:$0xf]
  %v1336 = vld [vmem:[%s1334 + $0x4] sm:$0xf]
  %v1337 = vld [vmem:[%s1334 + $0x8] sm:$0xf]
  %v1338 = vld [vmem:[%s1334 + $0xc] sm:$0xf]
  %v1388 = vunpack.c.l.b16 %v1285
  %v1389 = vunpack.c.l.b16 %v1286
  %v1390 = vunpack.c.l.b16 %v1287
  %v1391 = vunpack.c.l.b16 %v1288
  %v1392 = vunpack.c.l.b16 %v1289
  %v1393 = vunpack.c.l.b16 %v1290
  %v1394 = vunpack.c.l.b16 %v1291
  %v1395 = vunpack.c.l.b16 %v1292
  %v1396 = vunpack.c.l.b16 %v1293
  %v1397 = vunpack.c.l.b16 %v1294
  %v1398 = vunpack.c.l.b16 %v1295
  %v1399 = vunpack.c.l.b16 %v1296
  %v1400 = vunpack.c.l.b16 %v1297
  %v1401 = vunpack.c.l.b16 %v1298
  %v1402 = vunpack.c.l.b16 %v1299
  %v1403 = vunpack.c.l.b16 %v1300
  %v1404 = vunpack.c.l.b16 %v1301
  %v1405 = vunpack.c.l.b16 %v1302
  %v1406 = vunpack.c.l.b16 %v1303
  %v1407 = vunpack.c.l.b16 %v1304
  %v1408 = vunpack.c.l.b16 %v1305
  %v1409 = vunpack.c.l.b16 %v1306
  %v1410 = vunpack.c.l.b16 %v1307
  %v1411 = vunpack.c.l.b16 %v1308
  %v1412 = vunpack.c.l.b16 %v1309
  %v1413 = vunpack.c.l.b16 %v1310
  %v1414 = vunpack.c.l.b16 %v1311
  %v1415 = vunpack.c.l.b16 %v1312
  %v1416 = vunpack.c.l.b16 %v1313
  %v1417 = vunpack.c.l.b16 %v1314
  %v1418 = vunpack.c.l.b16 %v1315
  %v1419 = vunpack.c.l.b16 %v1316
  %v1420 = vunpack.c.l.b16 %v1317
  %v1421 = vunpack.c.l.b16 %v1318
  %v1422 = vunpack.c.l.b16 %v1319
  %v1423 = vunpack.c.l.b16 %v1320
  %v1424 = vunpack.c.l.b16 %v1321
  %v1425 = vunpack.c.l.b16 %v1322
  %v1426 = vunpack.c.l.b16 %v1323
  %v1427 = vunpack.c.l.b16 %v1324
  %v1428 = vunpack.c.l.b16 %v1325
  %v1429 = vunpack.c.l.b16 %v1326
  %v1430 = vunpack.c.l.b16 %v1327
  %v1431 = vunpack.c.l.b16 %v1328
  %v1432 = vunpack.c.l.b16 %v1329
  %v1433 = vunpack.c.l.b16 %v1330
  %v1434 = vunpack.c.l.b16 %v1331
  %v1435 = vunpack.c.l.b16 %v1332
  %v1436 = vunpack.c.l.b16 %v1333
  %v1437 = vpack.c.b16 %v1389, %v1388
  %v1438 = vpack.c.b16 %v1391, %v1390
  %v1439 = vpack.c.b16 %v1393, %v1392
  %v1440 = vpack.c.b16 %v1395, %v1394
  %v1441 = vpack.c.b16 %v1397, %v1396
  %v1442 = vpack.c.b16 %v1399, %v1398
  %v1443 = vpack.c.b16 %v1401, %v1400
  %v1444 = vpack.c.b16 %v1403, %v1402
  %v1445 = vpack.c.b16 %v1405, %v1404
  %v1446 = vpack.c.b16 %v1407, %v1406
  %v1447 = vpack.c.b16 %v1409, %v1408
  %v1448 = vpack.c.b16 %v1411, %v1410
  %v1449 = vpack.c.b16 %v1413, %v1412
  %v1450 = vpack.c.b16 %v1415, %v1414
  %v1451 = vpack.c.b16 %v1417, %v1416
  %v1452 = vpack.c.b16 %v1419, %v1418
  %v1453 = vpack.c.b16 %v1421, %v1420
  %v1454 = vpack.c.b16 %v1423, %v1422
  %v1455 = vpack.c.b16 %v1425, %v1424
  %v1456 = vpack.c.b16 %v1427, %v1426
  %v1457 = vpack.c.b16 %v1429, %v1428
  %v1458 = vpack.c.b16 %v1431, %v1430
  %v1459 = vpack.c.b16 %v1433, %v1432
  %v1460 = vpack.c.b16 %v1435, %v1434
  %v1461 = vpack.c.b16 %v1436, %v1436
  %vm1462 = vcmask 1045504
  %v1463 = vrot.slane %v1437, 2
  %v1464 = vrot.slane %v1438, 2
  %v1465 = vsel %vm1462, %v1463, %v1464
  %v1466 = vrot.slane %v1439, 2
  %v1467 = vsel %vm1462, %v1464, %v1466
  %v1468 = vrot.slane %v1440, 2
  %v1469 = vsel %vm1462, %v1466, %v1468
  %v1470 = vrot.slane %v1441, 2
  %v1471 = vsel %vm1462, %v1468, %v1470
  %v1472 = vrot.slane %v1442, 2
  %v1473 = vsel %vm1462, %v1470, %v1472
  %v1474 = vrot.slane %v1443, 2
  %v1475 = vsel %vm1462, %v1472, %v1474
  %v1476 = vrot.slane %v1444, 2
  %v1477 = vsel %vm1462, %v1474, %v1476
  %v1478 = vrot.slane %v1445, 2
  %v1479 = vsel %vm1462, %v1476, %v1478
  %v1480 = vrot.slane %v1446, 2
  %v1481 = vsel %vm1462, %v1478, %v1480
  %v1482 = vrot.slane %v1447, 2
  %v1483 = vsel %vm1462, %v1480, %v1482
  %v1484 = vrot.slane %v1448, 2
  %v1485 = vsel %vm1462, %v1482, %v1484
  %v1486 = vrot.slane %v1449, 2
  %v1487 = vsel %vm1462, %v1484, %v1486
  %v1488 = vrot.slane %v1450, 2
  %v1489 = vsel %vm1462, %v1486, %v1488
  %v1490 = vrot.slane %v1451, 2
  %v1491 = vsel %vm1462, %v1488, %v1490
  %v1492 = vrot.slane %v1452, 2
  %v1493 = vsel %vm1462, %v1490, %v1492
  %v1494 = vrot.slane %v1453, 2
  %v1495 = vsel %vm1462, %v1492, %v1494
  %v1496 = vrot.slane %v1454, 2
  %v1497 = vsel %vm1462, %v1494, %v1496
  %v1498 = vrot.slane %v1455, 2
  %v1499 = vsel %vm1462, %v1496, %v1498
  %v1500 = vrot.slane %v1456, 2
  %v1501 = vsel %vm1462, %v1498, %v1500
  %v1502 = vrot.slane %v1457, 2
  %v1503 = vsel %vm1462, %v1500, %v1502
  %v1504 = vrot.slane %v1458, 2
  %v1505 = vsel %vm1462, %v1502, %v1504
  %v1506 = vrot.slane %v1459, 2
  %v1507 = vsel %vm1462, %v1504, %v1506
  %v1508 = vrot.slane %v1460, 2
  %v1509 = vsel %vm1462, %v1506, %v1508
  %v1510 = vrot.slane %v1461, 2
  %v1511 = vsel %vm1462, %v1508, %v1510
  %v1516 = vunpack.c.l.b16 %v1335
  %v1517 = vunpack.c.l.b16 %v1336
  %v1518 = vunpack.c.l.b16 %v1337
  %v1519 = vunpack.c.l.b16 %v1338
  %v1520 = vpack.c.b16 %v1517, %v1516
  %v1521 = vpack.c.b16 %v1519, %v1518
  %v1525 = vsel %vm211, %v1465, 0
  %v1528 = vsel %vm211, %v1467, 0
  %v1531 = vsel %vm211, %v1469, 0
  %v1534 = vsel %vm211, %v1471, 0
  %v1537 = vsel %vm211, %v1473, 0
  %v1540 = vsel %vm211, %v1475, 0
  %v1543 = vsel %vm211, %v1477, 0
  %v1546 = vsel %vm211, %v1479, 0
  %v1549 = vsel %vm211, %v1481, 0
  %v1552 = vsel %vm211, %v1483, 0
  %v1555 = vsel %vm211, %v1485, 0
  %v1558 = vsel %vm211, %v1487, 0
  %v1561 = vsel %vm211, %v1489, 0
  %v1564 = vsel %vm211, %v1491, 0
  %v1567 = vsel %vm211, %v1493, 0
  %v1570 = vsel %vm211, %v1495, 0
  %v1573 = vsel %vm211, %v1497, 0
  %v1576 = vsel %vm211, %v1499, 0
  %v1579 = vsel %vm211, %v1501, 0
  %v1582 = vsel %vm211, %v1503, 0
  %v1585 = vsel %vm211, %v1505, 0
  %v1588 = vsel %vm211, %v1507, 0
  %v1591 = vsel %vm211, %v1509, 0
  %v1594 = vsel %vm211, %v1511, 0
  %1596 = vmatprep.subr.bf16.mxu0 0
  %1597 = vmatpush1.bf16.msra.mxu0 0
  %1598 = vmatprep.subr.bf16.mxu0 0
  %1599 = vmatpush1.bf16.msra.mxu0 0
  %1600 = vmatprep.subr.bf16.mxu0 0
  %1601 = vmatpush1.bf16.msra.mxu0 0
  %1602 = vmatprep.subr.bf16.mxu0 0
  %1603 = vmatpush1.bf16.msra.mxu0 0
  %1604 = vmatprep.subr.bf16.mxu0 0
  %1605 = vmatpush1.bf16.msra.mxu0 0
  %1606 = vmatprep.subr.bf16.mxu0 0
  %1607 = vmatpush1.bf16.msra.mxu0 0
  %1608 = vmatprep.subr.bf16.mxu0 0
  %1609 = vmatpush1.bf16.msra.mxu0 %v1521
  %1610 = vmatprep.subr.bf16.mxu0 0
  %1611 = vmatpush1.bf16.msra.mxu0 %v1520
  %1612 = vmatprep.subr.bf16.mxu0 0
  %1613 = vmatpush2.bf16.msra.mxu0 0
  %1614 = vmatprep.subr.bf16.mxu0 0
  %1615 = vmatpush2.bf16.msra.mxu0 0
  %1616 = vmatprep.subr.bf16.mxu0 0
  %1617 = vmatpush2.bf16.msra.mxu0 0
  %1618 = vmatprep.subr.bf16.mxu0 0
  %1619 = vmatpush2.bf16.msra.mxu0 0
  %1620 = vmatprep.subr.bf16.mxu0 0
  %1621 = vmatpush2.bf16.msra.mxu0 0
  %1622 = vmatprep.subr.bf16.mxu0 0
  %1623 = vmatpush2.bf16.msra.mxu0 0
  %1624 = vmatprep.subr.bf16.mxu0 0
  %1625 = vmatpush2.bf16.msra.mxu0 0
  %1626 = vmatprep.subr.bf16.mxu0 0
  %1627 = vmatpush2.bf16.msra.mxu0 0
  %1628 = vmatprep.mubr.bf16.mxu0 0
  %1629 = vmatmul.mubr.bf16.gmra.mxu0 %v1525
  %v1630 = vpop.f32.mrf.mxu0
  %v1631 = vadd.f32 0.0, %v1630
  %v1632 = vpop.f32.mrf.mxu0
  %v1633 = vpop.f32.mrf.mxu0
  %v1634 = vadd.f32 0.0, %v1633
  %v1635 = vpop.f32.mrf.mxu0
  %1636 = vmatprep.mubr.bf16.mxu0 0
  %1637 = vmatmul.mubr.bf16.gmra.mxu0 %v1528
  %v1638 = vpop.f32.mrf.mxu0
  %v1639 = vadd.f32 0.0, %v1638
  %v1640 = vpop.f32.mrf.mxu0
  %v1641 = vpop.f32.mrf.mxu0
  %v1642 = vadd.f32 0.0, %v1641
  %v1643 = vpop.f32.mrf.mxu0
  %1644 = vmatprep.mubr.bf16.mxu0 0
  %1645 = vmatmul.mubr.bf16.gmra.mxu0 %v1531
  %v1646 = vpop.f32.mrf.mxu0
  %v1647 = vadd.f32 0.0, %v1646
  %v1648 = vpop.f32.mrf.mxu0
  %v1649 = vpop.f32.mrf.mxu0
  %v1650 = vadd.f32 0.0, %v1649
  %v1651 = vpop.f32.mrf.mxu0
  %1652 = vmatprep.mubr.bf16.mxu0 0
  %1653 = vmatmul.mubr.bf16.gmra.mxu0 %v1534
  %v1654 = vpop.f32.mrf.mxu0
  %v1655 = vadd.f32 0.0, %v1654
  %v1656 = vpop.f32.mrf.mxu0
  %v1657 = vpop.f32.mrf.mxu0
  %v1658 = vadd.f32 0.0, %v1657
  %v1659 = vpop.f32.mrf.mxu0
  %1660 = vmatprep.mubr.bf16.mxu0 0
  %1661 = vmatmul.mubr.bf16.gmra.mxu0 %v1537
  %v1662 = vpop.f32.mrf.mxu0
  %v1663 = vadd.f32 0.0, %v1662
  %v1664 = vpop.f32.mrf.mxu0
  %v1665 = vpop.f32.mrf.mxu0
  %v1666 = vadd.f32 0.0, %v1665
  %v1667 = vpop.f32.mrf.mxu0
  %1668 = vmatprep.mubr.bf16.mxu0 0
  %1669 = vmatmul.mubr.bf16.gmra.mxu0 %v1540
  %v1670 = vpop.f32.mrf.mxu0
  %v1671 = vadd.f32 0.0, %v1670
  %v1672 = vpop.f32.mrf.mxu0
  %v1673 = vpop.f32.mrf.mxu0
  %v1674 = vadd.f32 0.0, %v1673
  %v1675 = vpop.f32.mrf.mxu0
  %1676 = vmatprep.mubr.bf16.mxu0 0
  %1677 = vmatmul.mubr.bf16.gmra.mxu0 %v1543
  %v1678 = vpop.f32.mrf.mxu0
  %v1679 = vadd.f32 0.0, %v1678
  %v1680 = vpop.f32.mrf.mxu0
  %v1681 = vpop.f32.mrf.mxu0
  %v1682 = vadd.f32 0.0, %v1681
  %v1683 = vpop.f32.mrf.mxu0
  %1684 = vmatprep.mubr.bf16.mxu0 0
  %1685 = vmatmul.mubr.bf16.gmra.mxu0 %v1546
  %v1686 = vpop.f32.mrf.mxu0
  %v1687 = vadd.f32 0.0, %v1686
  %v1688 = vpop.f32.mrf.mxu0
  %v1689 = vpop.f32.mrf.mxu0
  %v1690 = vadd.f32 0.0, %v1689
  %v1691 = vpop.f32.mrf.mxu0
  %1692 = vmatprep.mubr.bf16.mxu0 0
  %1693 = vmatmul.mubr.bf16.gmra.mxu0 %v1549
  %v1694 = vpop.f32.mrf.mxu0
  %v1695 = vadd.f32 0.0, %v1694
  %v1696 = vpop.f32.mrf.mxu0
  %v1697 = vpop.f32.mrf.mxu0
  %v1698 = vadd.f32 0.0, %v1697
  %v1699 = vpop.f32.mrf.mxu0
  %1700 = vmatprep.mubr.bf16.mxu0 0
  %1701 = vmatmul.mubr.bf16.gmra.mxu0 %v1552
  %v1702 = vpop.f32.mrf.mxu0
  %v1703 = vadd.f32 0.0, %v1702
  %v1704 = vpop.f32.mrf.mxu0
  %v1705 = vpop.f32.mrf.mxu0
  %v1706 = vadd.f32 0.0, %v1705
  %v1707 = vpop.f32.mrf.mxu0
  %1708 = vmatprep.mubr.bf16.mxu0 0
  %1709 = vmatmul.mubr.bf16.gmra.mxu0 %v1555
  %v1710 = vpop.f32.mrf.mxu0
  %v1711 = vadd.f32 0.0, %v1710
  %v1712 = vpop.f32.mrf.mxu0
  %v1713 = vpop.f32.mrf.mxu0
  %v1714 = vadd.f32 0.0, %v1713
  %v1715 = vpop.f32.mrf.mxu0
  %1716 = vmatprep.mubr.bf16.mxu0 0
  %1717 = vmatmul.mubr.bf16.gmra.mxu0 %v1558
  %v1718 = vpop.f32.mrf.mxu0
  %v1719 = vadd.f32 0.0, %v1718
  %v1720 = vpop.f32.mrf.mxu0
  %v1721 = vpop.f32.mrf.mxu0
  %v1722 = vadd.f32 0.0, %v1721
  %v1723 = vpop.f32.mrf.mxu0
  %1724 = vmatprep.mubr.bf16.mxu0 0
  %1725 = vmatmul.mubr.bf16.gmra.mxu0 %v1561
  %v1726 = vpop.f32.mrf.mxu0
  %v1727 = vadd.f32 0.0, %v1726
  %v1728 = vpop.f32.mrf.mxu0
  %v1729 = vpop.f32.mrf.mxu0
  %v1730 = vadd.f32 0.0, %v1729
  %v1731 = vpop.f32.mrf.mxu0
  %1732 = vmatprep.mubr.bf16.mxu0 0
  %1733 = vmatmul.mubr.bf16.gmra.mxu0 %v1564
  %v1734 = vpop.f32.mrf.mxu0
  %v1735 = vadd.f32 0.0, %v1734
  %v1736 = vpop.f32.mrf.mxu0
  %v1737 = vpop.f32.mrf.mxu0
  %v1738 = vadd.f32 0.0, %v1737
  %v1739 = vpop.f32.mrf.mxu0
  %1740 = vmatprep.mubr.bf16.mxu0 0
  %1741 = vmatmul.mubr.bf16.gmra.mxu0 %v1567
  %v1742 = vpop.f32.mrf.mxu0
  %v1743 = vadd.f32 0.0, %v1742
  %v1744 = vpop.f32.mrf.mxu0
  %v1745 = vpop.f32.mrf.mxu0
  %v1746 = vadd.f32 0.0, %v1745
  %v1747 = vpop.f32.mrf.mxu0
  %1748 = vmatprep.mubr.bf16.mxu0 0
  %1749 = vmatmul.mubr.bf16.gmra.mxu0 %v1570
  %v1750 = vpop.f32.mrf.mxu0
  %v1751 = vadd.f32 0.0, %v1750
  %v1752 = vpop.f32.mrf.mxu0
  %v1753 = vpop.f32.mrf.mxu0
  %v1754 = vadd.f32 0.0, %v1753
  %v1755 = vpop.f32.mrf.mxu0
  %1756 = vmatprep.mubr.bf16.mxu0 0
  %1757 = vmatmul.mubr.bf16.gmra.mxu0 %v1573
  %v1758 = vpop.f32.mrf.mxu0
  %v1759 = vadd.f32 0.0, %v1758
  %v1760 = vpop.f32.mrf.mxu0
  %v1761 = vpop.f32.mrf.mxu0
  %v1762 = vadd.f32 0.0, %v1761
  %v1763 = vpop.f32.mrf.mxu0
  %1764 = vmatprep.mubr.bf16.mxu0 0
  %1765 = vmatmul.mubr.bf16.gmra.mxu0 %v1576
  %v1766 = vpop.f32.mrf.mxu0
  %v1767 = vadd.f32 0.0, %v1766
  %v1768 = vpop.f32.mrf.mxu0
  %v1769 = vpop.f32.mrf.mxu0
  %v1770 = vadd.f32 0.0, %v1769
  %v1771 = vpop.f32.mrf.mxu0
  %1772 = vmatprep.mubr.bf16.mxu0 0
  %1773 = vmatmul.mubr.bf16.gmra.mxu0 %v1579
  %v1774 = vpop.f32.mrf.mxu0
  %v1775 = vadd.f32 0.0, %v1774
  %v1776 = vpop.f32.mrf.mxu0
  %v1777 = vpop.f32.mrf.mxu0
  %v1778 = vadd.f32 0.0, %v1777
  %v1779 = vpop.f32.mrf.mxu0
  %1780 = vmatprep.mubr.bf16.mxu0 0
  %1781 = vmatmul.mubr.bf16.gmra.mxu0 %v1582
  %v1782 = vpop.f32.mrf.mxu0
  %v1783 = vadd.f32 0.0, %v1782
  %v1784 = vpop.f32.mrf.mxu0
  %v1785 = vpop.f32.mrf.mxu0
  %v1786 = vadd.f32 0.0, %v1785
  %v1787 = vpop.f32.mrf.mxu0
  %1788 = vmatprep.mubr.bf16.mxu0 0
  %1789 = vmatmul.mubr.bf16.gmra.mxu0 %v1585
  %v1790 = vpop.f32.mrf.mxu0
  %v1791 = vadd.f32 0.0, %v1790
  %v1792 = vpop.f32.mrf.mxu0
  %v1793 = vpop.f32.mrf.mxu0
  %v1794 = vadd.f32 0.0, %v1793
  %v1795 = vpop.f32.mrf.mxu0
  %1796 = vmatprep.mubr.bf16.mxu0 0
  %1797 = vmatmul.mubr.bf16.gmra.mxu0 %v1588
  %v1798 = vpop.f32.mrf.mxu0
  %v1799 = vadd.f32 0.0, %v1798
  %v1800 = vpop.f32.mrf.mxu0
  %v1801 = vpop.f32.mrf.mxu0
  %v1802 = vadd.f32 0.0, %v1801
  %v1803 = vpop.f32.mrf.mxu0
  %1804 = vmatprep.mubr.bf16.mxu0 0
  %1805 = vmatmul.mubr.bf16.gmra.mxu0 %v1591
  %v1806 = vpop.f32.mrf.mxu0
  %v1807 = vadd.f32 0.0, %v1806
  %v1808 = vpop.f32.mrf.mxu0
  %v1809 = vpop.f32.mrf.mxu0
  %v1810 = vadd.f32 0.0, %v1809
  %v1811 = vpop.f32.mrf.mxu0
  %1812 = vmatprep.mubr.bf16.mxu0 0
  %1813 = vmatmul.mubr.bf16.gmra.mxu0 %v1594
  %v1814 = vpop.f32.mrf.mxu0
  %v1815 = vadd.f32 0.0, %v1814
  %v1816 = vpop.f32.mrf.mxu0
  %v1817 = vpop.f32.mrf.mxu0
  %v1818 = vadd.f32 0.0, %v1817
  %v1819 = vpop.f32.mrf.mxu0
  %1820 = vdwg.mxu0
  %v1821 = vadd.f32 %v1237, %v1631
  %v1822 = vadd.f32 %v1238, %v1634
  %v1823 = vadd.f32 %v1239, %v1639
  %v1824 = vadd.f32 %v1240, %v1642
  %v1825 = vadd.f32 %v1241, %v1647
  %v1826 = vadd.f32 %v1242, %v1650
  %v1827 = vadd.f32 %v1243, %v1655
  %v1828 = vadd.f32 %v1244, %v1658
  %v1829 = vadd.f32 %v1245, %v1663
  %v1830 = vadd.f32 %v1246, %v1666
  %v1831 = vadd.f32 %v1247, %v1671
  %v1832 = vadd.f32 %v1248, %v1674
  %v1833 = vadd.f32 %v1249, %v1679
  %v1834 = vadd.f32 %v1250, %v1682
  %v1835 = vadd.f32 %v1251, %v1687
  %v1836 = vadd.f32 %v1252, %v1690
  %v1837 = vadd.f32 %v1253, %v1695
  %v1838 = vadd.f32 %v1254, %v1698
  %v1839 = vadd.f32 %v1255, %v1703
  %v1840 = vadd.f32 %v1256, %v1706
  %v1841 = vadd.f32 %v1257, %v1711
  %v1842 = vadd.f32 %v1258, %v1714
  %v1843 = vadd.f32 %v1259, %v1719
  %v1844 = vadd.f32 %v1260, %v1722
  %v1845 = vadd.f32 %v1261, %v1727
  %v1846 = vadd.f32 %v1262, %v1730
  %v1847 = vadd.f32 %v1263, %v1735
  %v1848 = vadd.f32 %v1264, %v1738
  %v1849 = vadd.f32 %v1265, %v1743
  %v1850 = vadd.f32 %v1266, %v1746
  %v1851 = vadd.f32 %v1267, %v1751
  %v1852 = vadd.f32 %v1268, %v1754
  %v1853 = vadd.f32 %v1269, %v1759
  %v1854 = vadd.f32 %v1270, %v1762
  %v1855 = vadd.f32 %v1271, %v1767
  %v1856 = vadd.f32 %v1272, %v1770
  %v1857 = vadd.f32 %v1273, %v1775
  %v1858 = vadd.f32 %v1274, %v1778
  %v1859 = vadd.f32 %v1275, %v1783
  %v1860 = vadd.f32 %v1276, %v1786
  %v1861 = vadd.f32 %v1277, %v1791
  %v1862 = vadd.f32 %v1278, %v1794
  %v1863 = vadd.f32 %v1279, %v1799
  %v1864 = vadd.f32 %v1280, %v1802
  %v1865 = vadd.f32 %v1281, %v1807
  %v1866 = vadd.f32 %v1282, %v1810
  %v1867 = vadd.f32 %v1283, %v1815
  %v1868 = vadd.f32 %v1284, %v1818
  %1869 = vst.msk [vmem:[#allocation2] sm:$0xff] %vm211, %v1821
  %1870 = vst.msk [vmem:[#allocation2 + $0x8] sm:$0xff] %vm211, %v1822
  %1871 = vst.msk [vmem:[#allocation2 + $0x10] sm:$0xff] %vm211, %v1823
  %1872 = vst.msk [vmem:[#allocation2 + $0x18] sm:$0xff] %vm211, %v1824
  %1873 = vst.msk [vmem:[#allocation2 + $0x20] sm:$0xff] %vm211, %v1825
  %1874 = vst.msk [vmem:[#allocation2 + $0x28] sm:$0xff] %vm211, %v1826
  %1875 = vst.msk [vmem:[#allocation2 + $0x30] sm:$0xff] %vm211, %v1827
  %1876 = vst.msk [vmem:[#allocation2 + $0x38] sm:$0xff] %vm211, %v1828
  %1877 = vst.msk [vmem:[#allocation2 + $0x40] sm:$0xff] %vm211, %v1829
  %1878 = vst.msk [vmem:[#allocation2 + $0x48] sm:$0xff] %vm211, %v1830
  %1879 = vst.msk [vmem:[#allocation2 + $0x50] sm:$0xff] %vm211, %v1831
  %1880 = vst.msk [vmem:[#allocation2 + $0x58] sm:$0xff] %vm211, %v1832
  %1881 = vst.msk [vmem:[#allocation2 + $0x60] sm:$0xff] %vm211, %v1833
  %1882 = vst.msk [vmem:[#allocation2 + $0x68] sm:$0xff] %vm211, %v1834
  %1883 = vst.msk [vmem:[#allocation2 + $0x70] sm:$0xff] %vm211, %v1835
  %1884 = vst.msk [vmem:[#allocation2 + $0x78] sm:$0xff] %vm211, %v1836
  %1885 = vst.msk [vmem:[#allocation2 + $0x80] sm:$0xff] %vm211, %v1837
  %1886 = vst.msk [vmem:[#allocation2 + $0x88] sm:$0xff] %vm211, %v1838
  %1887 = vst.msk [vmem:[#allocation2 + $0x90] sm:$0xff] %vm211, %v1839
  %1888 = vst.msk [vmem:[#allocation2 + $0x98] sm:$0xff] %vm211, %v1840
  %1889 = vst.msk [vmem:[#allocation2 + $0xa0] sm:$0xff] %vm211, %v1841
  %1890 = vst.msk [vmem:[#allocation2 + $0xa8] sm:$0xff] %vm211, %v1842
  %1891 = vst.msk [vmem:[#allocation2 + $0xb0] sm:$0xff] %vm211, %v1843
  %1892 = vst.msk [vmem:[#allocation2 + $0xb8] sm:$0xff] %vm211, %v1844
  %1893 = vst.msk [vmem:[#allocation2 + $0xc0] sm:$0xff] %vm211, %v1845
  %1894 = vst.msk [vmem:[#allocation2 + $0xc8] sm:$0xff] %vm211, %v1846
  %1895 = vst.msk [vmem:[#allocation2 + $0xd0] sm:$0xff] %vm211, %v1847
  %1896 = vst.msk [vmem:[#allocation2 + $0xd8] sm:$0xff] %vm211, %v1848
  %1897 = vst.msk [vmem:[#allocation2 + $0xe0] sm:$0xff] %vm211, %v1849
  %1898 = vst.msk [vmem:[#allocation2 + $0xe8] sm:$0xff] %vm211, %v1850
  %1899 = vst.msk [vmem:[#allocation2 + $0xf0] sm:$0xff] %vm211, %v1851
  %1900 = vst.msk [vmem:[#allocation2 + $0xf8] sm:$0xff] %vm211, %v1852
  %1901 = vst.msk [vmem:[#allocation2 + $0x100] sm:$0xff] %vm211, %v1853
  %1902 = vst.msk [vmem:[#allocation2 + $0x108] sm:$0xff] %vm211, %v1854
  %1903 = vst.msk [vmem:[#allocation2 + $0x110] sm:$0xff] %vm211, %v1855
  %1904 = vst.msk [vmem:[#allocation2 + $0x118] sm:$0xff] %vm211, %v1856
  %1905 = vst.msk [vmem:[#allocation2 + $0x120] sm:$0xff] %vm211, %v1857
  %1906 = vst.msk [vmem:[#allocation2 + $0x128] sm:$0xff] %vm211, %v1858
  %1907 = vst.msk [vmem:[#allocation2 + $0x130] sm:$0xff] %vm211, %v1859
  %1908 = vst.msk [vmem:[#allocation2 + $0x138] sm:$0xff] %vm211, %v1860
  %1909 = vst.msk [vmem:[#allocation2 + $0x140] sm:$0xff] %vm211, %v1861
  %1910 = vst.msk [vmem:[#allocation2 + $0x148] sm:$0xff] %vm211, %v1862
  %1911 = vst.msk [vmem:[#allocation2 + $0x150] sm:$0xff] %vm211, %v1863
  %1912 = vst.msk [vmem:[#allocation2 + $0x158] sm:$0xff] %vm211, %v1864
  %1913 = vst.msk [vmem:[#allocation2 + $0x160] sm:$0xff] %vm211, %v1865
  %1914 = vst.msk [vmem:[#allocation2 + $0x168] sm:$0xff] %vm211, %v1866
  %1915 = vst.msk [vmem:[#allocation2 + $0x170] sm:$0xff] %vm211, %v1867
  %1916 = vst.msk [vmem:[#allocation2 + $0x178] sm:$0xff] %vm211, %v1868
  %v1917 = vld [vmem:[#allocation2] sm:$0xff]
  %v1918 = vld [vmem:[#allocation2 + $0x8] sm:$0xff]
  %v1919 = vld [vmem:[#allocation2 + $0x10] sm:$0xff]
  %v1920 = vld [vmem:[#allocation2 + $0x18] sm:$0xff]
  %v1921 = vld [vmem:[#allocation2 + $0x20] sm:$0xff]
  %v1922 = vld [vmem:[#allocation2 + $0x28] sm:$0xff]
  %v1923 = vld [vmem:[#allocation2 + $0x30] sm:$0xff]
  %v1924 = vld [vmem:[#allocation2 + $0x38] sm:$0xff]
  %v1925 = vld [vmem:[#allocation2 + $0x40] sm:$0xff]
  %v1926 = vld [vmem:[#allocation2 + $0x48] sm:$0xff]
  %v1927 = vld [vmem:[#allocation2 + $0x50] sm:$0xff]
  %v1928 = vld [vmem:[#allocation2 + $0x58] sm:$0xff]
  %v1929 = vld [vmem:[#allocation2 + $0x60] sm:$0xff]
  %v1930 = vld [vmem:[#allocation2 + $0x68] sm:$0xff]
  %v1931 = vld [vmem:[#allocation2 + $0x70] sm:$0xff]
  %v1932 = vld [vmem:[#allocation2 + $0x78] sm:$0xff]
  %v1933 = vld [vmem:[#allocation2 + $0x80] sm:$0xff]
  %v1934 = vld [vmem:[#allocation2 + $0x88] sm:$0xff]
  %v1935 = vld [vmem:[#allocation2 + $0x90] sm:$0xff]
  %v1936 = vld [vmem:[#allocation2 + $0x98] sm:$0xff]
  %v1937 = vld [vmem:[#allocation2 + $0xa0] sm:$0xff]
  %v1938 = vld [vmem:[#allocation2 + $0xa8] sm:$0xff]
  %v1939 = vld [vmem:[#allocation2 + $0xb0] sm:$0xff]
  %v1940 = vld [vmem:[#allocation2 + $0xb8] sm:$0xff]
  %v1941 = vld [vmem:[#allocation2 + $0xc0] sm:$0xff]
  %v1942 = vld [vmem:[#allocation2 + $0xc8] sm:$0xff]
  %v1943 = vld [vmem:[#allocation2 + $0xd0] sm:$0xff]
  %v1944 = vld [vmem:[#allocation2 + $0xd8] sm:$0xff]
  %v1945 = vld [vmem:[#allocation2 + $0xe0] sm:$0xff]
  %v1946 = vld [vmem:[#allocation2 + $0xe8] sm:$0xff]
  %v1947 = vld [vmem:[#allocation2 + $0xf0] sm:$0xff]
  %v1948 = vld [vmem:[#allocation2 + $0xf8] sm:$0xff]
  %v1949 = vld [vmem:[#allocation2 + $0x100] sm:$0xff]
  %v1950 = vld [vmem:[#allocation2 + $0x108] sm:$0xff]
  %v1951 = vld [vmem:[#allocation2 + $0x110] sm:$0xff]
  %v1952 = vld [vmem:[#allocation2 + $0x118] sm:$0xff]
  %v1953 = vld [vmem:[#allocation2 + $0x120] sm:$0xff]
  %v1954 = vld [vmem:[#allocation2 + $0x128] sm:$0xff]
  %v1955 = vld [vmem:[#allocation2 + $0x130] sm:$0xff]
  %v1956 = vld [vmem:[#allocation2 + $0x138] sm:$0xff]
  %v1957 = vld [vmem:[#allocation2 + $0x140] sm:$0xff]
  %v1958 = vld [vmem:[#allocation2 + $0x148] sm:$0xff]
  %v1959 = vld [vmem:[#allocation2 + $0x150] sm:$0xff]
  %v1960 = vld [vmem:[#allocation2 + $0x158] sm:$0xff]
  %v1961 = vld [vmem:[#allocation2 + $0x160] sm:$0xff]
  %v1962 = vld [vmem:[#allocation2 + $0x168] sm:$0xff]
  %v1963 = vld [vmem:[#allocation2 + $0x170] sm:$0xff]
  %v1964 = vld [vmem:[#allocation2 + $0x178] sm:$0xff]
  %v1965 = vld [vmem:[%s0 + $0x18] sm:$0xf]
  %v1966 = vld [vmem:[%s0 + $0x1c] sm:$0xf]
  %v1967 = vld [vmem:[%s0 + $0x20] sm:$0xf]
  %v1968 = vld [vmem:[%s0 + $0x24] sm:$0xf]
  %v1969 = vld [vmem:[%s0 + $0x28] sm:$0xf]
  %v1970 = vld [vmem:[%s0 + $0x2c] sm:$0xf]
  %v1971 = vld [vmem:[%s0 + $0x30] sm:$0xf]
  %v1972 = vld [vmem:[%s0 + $0x34] sm:$0xf]
  %v1973 = vld [vmem:[%s0 + $0x38] sm:$0xf]
  %v1974 = vld [vmem:[%s0 + $0x3c] sm:$0xf]
  %v1975 = vld [vmem:[%s0 + $0x40] sm:$0xf]
  %v1976 = vld [vmem:[%s0 + $0x44] sm:$0xf]
  %v1977 = vld [vmem:[%s0 + $0x48] sm:$0xf]
  %v1978 = vld [vmem:[%s0 + $0x4c] sm:$0xf]
  %v1979 = vld [vmem:[%s0 + $0x50] sm:$0xf]
  %v1980 = vld [vmem:[%s0 + $0x54] sm:$0xf]
  %v1981 = vld [vmem:[%s0 + $0x58] sm:$0xf]
  %v1982 = vld [vmem:[%s0 + $0x5c] sm:$0xf]
  %v1983 = vld [vmem:[%s0 + $0x60] sm:$0xf]
  %v1984 = vld [vmem:[%s0 + $0x64] sm:$0xf]
  %v1985 = vld [vmem:[%s0 + $0x68] sm:$0xf]
  %v1986 = vld [vmem:[%s0 + $0x6c] sm:$0xf]
  %v1987 = vld [vmem:[%s0 + $0x70] sm:$0xf]
  %v1988 = vld [vmem:[%s0 + $0x74] sm:$0xf]
  %v1989 = vld [vmem:[%s0 + $0x78] sm:$0xf]
  %v1990 = vld [vmem:[%s0 + $0x7c] sm:$0xf]
  %v1991 = vld [vmem:[%s0 + $0x80] sm:$0xf]
  %v1992 = vld [vmem:[%s0 + $0x84] sm:$0xf]
  %v1993 = vld [vmem:[%s0 + $0x88] sm:$0xf]
  %v1994 = vld [vmem:[%s0 + $0x8c] sm:$0xf]
  %v1995 = vld [vmem:[%s0 + $0x90] sm:$0xf]
  %v1996 = vld [vmem:[%s0 + $0x94] sm:$0xf]
  %v1997 = vld [vmem:[%s0 + $0x98] sm:$0xf]
  %v1998 = vld [vmem:[%s0 + $0x9c] sm:$0xf]
  %v1999 = vld [vmem:[%s0 + $0xa0] sm:$0xf]
  %v2000 = vld [vmem:[%s0 + $0xa4] sm:$0xf]
  %v2001 = vld [vmem:[%s0 + $0xa8] sm:$0xf]
  %v2002 = vld [vmem:[%s0 + $0xac] sm:$0xf]
  %v2003 = vld [vmem:[%s0 + $0xb0] sm:$0xf]
  %v2004 = vld [vmem:[%s0 + $0xb4] sm:$0xf]
  %v2005 = vld [vmem:[%s0 + $0xb8] sm:$0xf]
  %v2006 = vld [vmem:[%s0 + $0xbc] sm:$0xf]
  %v2007 = vld [vmem:[%s0 + $0xc0] sm:$0xf]
  %v2008 = vld [vmem:[%s0 + $0xc4] sm:$0xf]
  %v2009 = vld [vmem:[%s0 + $0xc8] sm:$0xf]
  %v2010 = vld [vmem:[%s0 + $0xcc] sm:$0xf]
  %v2011 = vld [vmem:[%s0 + $0xd0] sm:$0xf]
  %v2012 = vld [vmem:[%s0 + $0xd4] sm:$0xf]
  %s2013 = scalar_lea.vmem %s1, 48
  %v2014 = vld [vmem:[%s2013] sm:$0xf]
  %v2015 = vld [vmem:[%s2013 + $0x4] sm:$0xf]
  %v2016 = vld [vmem:[%s2013 + $0x8] sm:$0xf]
  %v2017 = vld [vmem:[%s2013 + $0xc] sm:$0xf]
  %v2066 = vunpack.c.l.b16 %v1965
  %v2067 = vunpack.c.l.b16 %v1966
  %v2068 = vunpack.c.l.b16 %v1967
  %v2069 = vunpack.c.l.b16 %v1968
  %v2070 = vunpack.c.l.b16 %v1969
  %v2071 = vunpack.c.l.b16 %v1970
  %v2072 = vunpack.c.l.b16 %v1971
  %v2073 = vunpack.c.l.b16 %v1972
  %v2074 = vunpack.c.l.b16 %v1973
  %v2075 = vunpack.c.l.b16 %v1974
  %v2076 = vunpack.c.l.b16 %v1975
  %v2077 = vunpack.c.l.b16 %v1976
  %v2078 = vunpack.c.l.b16 %v1977
  %v2079 = vunpack.c.l.b16 %v1978
  %v2080 = vunpack.c.l.b16 %v1979
  %v2081 = vunpack.c.l.b16 %v1980
  %v2082 = vunpack.c.l.b16 %v1981
  %v2083 = vunpack.c.l.b16 %v1982
  %v2084 = vunpack.c.l.b16 %v1983
  %v2085 = vunpack.c.l.b16 %v1984
  %v2086 = vunpack.c.l.b16 %v1985
  %v2087 = vunpack.c.l.b16 %v1986
  %v2088 = vunpack.c.l.b16 %v1987
  %v2089 = vunpack.c.l.b16 %v1988
  %v2090 = vunpack.c.l.b16 %v1989
  %v2091 = vunpack.c.l.b16 %v1990
  %v2092 = vunpack.c.l.b16 %v1991
  %v2093 = vunpack.c.l.b16 %v1992
  %v2094 = vunpack.c.l.b16 %v1993
  %v2095 = vunpack.c.l.b16 %v1994
  %v2096 = vunpack.c.l.b16 %v1995
  %v2097 = vunpack.c.l.b16 %v1996
  %v2098 = vunpack.c.l.b16 %v1997
  %v2099 = vunpack.c.l.b16 %v1998
  %v2100 = vunpack.c.l.b16 %v1999
  %v2101 = vunpack.c.l.b16 %v2000
  %v2102 = vunpack.c.l.b16 %v2001
  %v2103 = vunpack.c.l.b16 %v2002
  %v2104 = vunpack.c.l.b16 %v2003
  %v2105 = vunpack.c.l.b16 %v2004
  %v2106 = vunpack.c.l.b16 %v2005
  %v2107 = vunpack.c.l.b16 %v2006
  %v2108 = vunpack.c.l.b16 %v2007
  %v2109 = vunpack.c.l.b16 %v2008
  %v2110 = vunpack.c.l.b16 %v2009
  %v2111 = vunpack.c.l.b16 %v2010
  %v2112 = vunpack.c.l.b16 %v2011
  %v2113 = vunpack.c.l.b16 %v2012
  %v2114 = vpack.c.b16 %v2067, %v2066
  %v2115 = vpack.c.b16 %v2069, %v2068
  %v2116 = vpack.c.b16 %v2071, %v2070
  %v2117 = vpack.c.b16 %v2073, %v2072
  %v2118 = vpack.c.b16 %v2075, %v2074
  %v2119 = vpack.c.b16 %v2077, %v2076
  %v2120 = vpack.c.b16 %v2079, %v2078
  %v2121 = vpack.c.b16 %v2081, %v2080
  %v2122 = vpack.c.b16 %v2083, %v2082
  %v2123 = vpack.c.b16 %v2085, %v2084
  %v2124 = vpack.c.b16 %v2087, %v2086
  %v2125 = vpack.c.b16 %v2089, %v2088
  %v2126 = vpack.c.b16 %v2091, %v2090
  %v2127 = vpack.c.b16 %v2093, %v2092
  %v2128 = vpack.c.b16 %v2095, %v2094
  %v2129 = vpack.c.b16 %v2097, %v2096
  %v2130 = vpack.c.b16 %v2099, %v2098
  %v2131 = vpack.c.b16 %v2101, %v2100
  %v2132 = vpack.c.b16 %v2103, %v2102
  %v2133 = vpack.c.b16 %v2105, %v2104
  %v2134 = vpack.c.b16 %v2107, %v2106
  %v2135 = vpack.c.b16 %v2109, %v2108
  %v2136 = vpack.c.b16 %v2111, %v2110
  %v2137 = vpack.c.b16 %v2113, %v2112
  %v2142 = vunpack.c.l.b16 %v2014
  %v2143 = vunpack.c.l.b16 %v2015
  %v2144 = vunpack.c.l.b16 %v2016
  %v2145 = vunpack.c.l.b16 %v2017
  %v2146 = vpack.c.b16 %v2143, %v2142
  %v2147 = vpack.c.b16 %v2145, %v2144
  %v2151 = vsel %vm211, %v2114, 0
  %v2154 = vsel %vm211, %v2115, 0
  %v2157 = vsel %vm211, %v2116, 0
  %v2160 = vsel %vm211, %v2117, 0
  %v2163 = vsel %vm211, %v2118, 0
  %v2166 = vsel %vm211, %v2119, 0
  %v2169 = vsel %vm211, %v2120, 0
  %v2172 = vsel %vm211, %v2121, 0
  %v2175 = vsel %vm211, %v2122, 0
  %v2178 = vsel %vm211, %v2123, 0
  %v2181 = vsel %vm211, %v2124, 0
  %v2184 = vsel %vm211, %v2125, 0
  %v2187 = vsel %vm211, %v2126, 0
  %v2190 = vsel %vm211, %v2127, 0
  %v2193 = vsel %vm211, %v2128, 0
  %v2196 = vsel %vm211, %v2129, 0
  %v2199 = vsel %vm211, %v2130, 0
  %v2202 = vsel %vm211, %v2131, 0
  %v2205 = vsel %vm211, %v2132, 0
  %v2208 = vsel %vm211, %v2133, 0
  %v2211 = vsel %vm211, %v2134, 0
  %v2214 = vsel %vm211, %v2135, 0
  %v2217 = vsel %vm211, %v2136, 0
  %v2220 = vsel %vm211, %v2137, 0
  %2222 = vmatprep.subr.bf16.mxu0 0
  %2223 = vmatpush1.bf16.msra.mxu0 0
  %2224 = vmatprep.subr.bf16.mxu0 0
  %2225 = vmatpush1.bf16.msra.mxu0 0
  %2226 = vmatprep.subr.bf16.mxu0 0
  %2227 = vmatpush1.bf16.msra.mxu0 0
  %2228 = vmatprep.subr.bf16.mxu0 0
  %2229 = vmatpush1.bf16.msra.mxu0 0
  %2230 = vmatprep.subr.bf16.mxu0 0
  %2231 = vmatpush1.bf16.msra.mxu0 0
  %2232 = vmatprep.subr.bf16.mxu0 0
  %2233 = vmatpush1.bf16.msra.mxu0 0
  %2234 = vmatprep.subr.bf16.mxu0 0
  %2235 = vmatpush1.bf16.msra.mxu0 %v2147
  %2236 = vmatprep.subr.bf16.mxu0 0
  %2237 = vmatpush1.bf16.msra.mxu0 %v2146
  %2238 = vmatprep.subr.bf16.mxu0 0
  %2239 = vmatpush2.bf16.msra.mxu0 0
  %2240 = vmatprep.subr.bf16.mxu0 0
  %2241 = vmatpush2.bf16.msra.mxu0 0
  %2242 = vmatprep.subr.bf16.mxu0 0
  %2243 = vmatpush2.bf16.msra.mxu0 0
  %2244 = vmatprep.subr.bf16.mxu0 0
  %2245 = vmatpush2.bf16.msra.mxu0 0
  %2246 = vmatprep.subr.bf16.mxu0 0
  %2247 = vmatpush2.bf16.msra.mxu0 0
  %2248 = vmatprep.subr.bf16.mxu0 0
  %2249 = vmatpush2.bf16.msra.mxu0 0
  %2250 = vmatprep.subr.bf16.mxu0 0
  %2251 = vmatpush2.bf16.msra.mxu0 0
  %2252 = vmatprep.subr.bf16.mxu0 0
  %2253 = vmatpush2.bf16.msra.mxu0 0
  %2254 = vmatprep.mubr.bf16.mxu0 0
  %2255 = vmatmul.mubr.bf16.gmra.mxu0 %v2151
  %v2256 = vpop.f32.mrf.mxu0
  %v2257 = vadd.f32 0.0, %v2256
  %v2258 = vpop.f32.mrf.mxu0
  %v2259 = vpop.f32.mrf.mxu0
  %v2260 = vadd.f32 0.0, %v2259
  %v2261 = vpop.f32.mrf.mxu0
  %2262 = vmatprep.mubr.bf16.mxu0 0
  %2263 = vmatmul.mubr.bf16.gmra.mxu0 %v2154
  %v2264 = vpop.f32.mrf.mxu0
  %v2265 = vadd.f32 0.0, %v2264
  %v2266 = vpop.f32.mrf.mxu0
  %v2267 = vpop.f32.mrf.mxu0
  %v2268 = vadd.f32 0.0, %v2267
  %v2269 = vpop.f32.mrf.mxu0
  %2270 = vmatprep.mubr.bf16.mxu0 0
  %2271 = vmatmul.mubr.bf16.gmra.mxu0 %v2157
  %v2272 = vpop.f32.mrf.mxu0
  %v2273 = vadd.f32 0.0, %v2272
  %v2274 = vpop.f32.mrf.mxu0
  %v2275 = vpop.f32.mrf.mxu0
  %v2276 = vadd.f32 0.0, %v2275
  %v2277 = vpop.f32.mrf.mxu0
  %2278 = vmatprep.mubr.bf16.mxu0 0
  %2279 = vmatmul.mubr.bf16.gmra.mxu0 %v2160
  %v2280 = vpop.f32.mrf.mxu0
  %v2281 = vadd.f32 0.0, %v2280
  %v2282 = vpop.f32.mrf.mxu0
  %v2283 = vpop.f32.mrf.mxu0
  %v2284 = vadd.f32 0.0, %v2283
  %v2285 = vpop.f32.mrf.mxu0
  %2286 = vmatprep.mubr.bf16.mxu0 0
  %2287 = vmatmul.mubr.bf16.gmra.mxu0 %v2163
  %v2288 = vpop.f32.mrf.mxu0
  %v2289 = vadd.f32 0.0, %v2288
  %v2290 = vpop.f32.mrf.mxu0
  %v2291 = vpop.f32.mrf.mxu0
  %v2292 = vadd.f32 0.0, %v2291
  %v2293 = vpop.f32.mrf.mxu0
  %2294 = vmatprep.mubr.bf16.mxu0 0
  %2295 = vmatmul.mubr.bf16.gmra.mxu0 %v2166
  %v2296 = vpop.f32.mrf.mxu0
  %v2297 = vadd.f32 0.0, %v2296
  %v2298 = vpop.f32.mrf.mxu0
  %v2299 = vpop.f32.mrf.mxu0
  %v2300 = vadd.f32 0.0, %v2299
  %v2301 = vpop.f32.mrf.mxu0
  %2302 = vmatprep.mubr.bf16.mxu0 0
  %2303 = vmatmul.mubr.bf16.gmra.mxu0 %v2169
  %v2304 = vpop.f32.mrf.mxu0
  %v2305 = vadd.f32 0.0, %v2304
  %v2306 = vpop.f32.mrf.mxu0
  %v2307 = vpop.f32.mrf.mxu0
  %v2308 = vadd.f32 0.0, %v2307
  %v2309 = vpop.f32.mrf.mxu0
  %2310 = vmatprep.mubr.bf16.mxu0 0
  %2311 = vmatmul.mubr.bf16.gmra.mxu0 %v2172
  %v2312 = vpop.f32.mrf.mxu0
  %v2313 = vadd.f32 0.0, %v2312
  %v2314 = vpop.f32.mrf.mxu0
  %v2315 = vpop.f32.mrf.mxu0
  %v2316 = vadd.f32 0.0, %v2315
  %v2317 = vpop.f32.mrf.mxu0
  %2318 = vmatprep.mubr.bf16.mxu0 0
  %2319 = vmatmul.mubr.bf16.gmra.mxu0 %v2175
  %v2320 = vpop.f32.mrf.mxu0
  %v2321 = vadd.f32 0.0, %v2320
  %v2322 = vpop.f32.mrf.mxu0
  %v2323 = vpop.f32.mrf.mxu0
  %v2324 = vadd.f32 0.0, %v2323
  %v2325 = vpop.f32.mrf.mxu0
  %2326 = vmatprep.mubr.bf16.mxu0 0
  %2327 = vmatmul.mubr.bf16.gmra.mxu0 %v2178
  %v2328 = vpop.f32.mrf.mxu0
  %v2329 = vadd.f32 0.0, %v2328
  %v2330 = vpop.f32.mrf.mxu0
  %v2331 = vpop.f32.mrf.mxu0
  %v2332 = vadd.f32 0.0, %v2331
  %v2333 = vpop.f32.mrf.mxu0
  %2334 = vmatprep.mubr.bf16.mxu0 0
  %2335 = vmatmul.mubr.bf16.gmra.mxu0 %v2181
  %v2336 = vpop.f32.mrf.mxu0
  %v2337 = vadd.f32 0.0, %v2336
  %v2338 = vpop.f32.mrf.mxu0
  %v2339 = vpop.f32.mrf.mxu0
  %v2340 = vadd.f32 0.0, %v2339
  %v2341 = vpop.f32.mrf.mxu0
  %2342 = vmatprep.mubr.bf16.mxu0 0
  %2343 = vmatmul.mubr.bf16.gmra.mxu0 %v2184
  %v2344 = vpop.f32.mrf.mxu0
  %v2345 = vadd.f32 0.0, %v2344
  %v2346 = vpop.f32.mrf.mxu0
  %v2347 = vpop.f32.mrf.mxu0
  %v2348 = vadd.f32 0.0, %v2347
  %v2349 = vpop.f32.mrf.mxu0
  %2350 = vmatprep.mubr.bf16.mxu0 0
  %2351 = vmatmul.mubr.bf16.gmra.mxu0 %v2187
  %v2352 = vpop.f32.mrf.mxu0
  %v2353 = vadd.f32 0.0, %v2352
  %v2354 = vpop.f32.mrf.mxu0
  %v2355 = vpop.f32.mrf.mxu0
  %v2356 = vadd.f32 0.0, %v2355
  %v2357 = vpop.f32.mrf.mxu0
  %2358 = vmatprep.mubr.bf16.mxu0 0
  %2359 = vmatmul.mubr.bf16.gmra.mxu0 %v2190
  %v2360 = vpop.f32.mrf.mxu0
  %v2361 = vadd.f32 0.0, %v2360
  %v2362 = vpop.f32.mrf.mxu0
  %v2363 = vpop.f32.mrf.mxu0
  %v2364 = vadd.f32 0.0, %v2363
  %v2365 = vpop.f32.mrf.mxu0
  %2366 = vmatprep.mubr.bf16.mxu0 0
  %2367 = vmatmul.mubr.bf16.gmra.mxu0 %v2193
  %v2368 = vpop.f32.mrf.mxu0
  %v2369 = vadd.f32 0.0, %v2368
  %v2370 = vpop.f32.mrf.mxu0
  %v2371 = vpop.f32.mrf.mxu0
  %v2372 = vadd.f32 0.0, %v2371
  %v2373 = vpop.f32.mrf.mxu0
  %2374 = vmatprep.mubr.bf16.mxu0 0
  %2375 = vmatmul.mubr.bf16.gmra.mxu0 %v2196
  %v2376 = vpop.f32.mrf.mxu0
  %v2377 = vadd.f32 0.0, %v2376
  %v2378 = vpop.f32.mrf.mxu0
  %v2379 = vpop.f32.mrf.mxu0
  %v2380 = vadd.f32 0.0, %v2379
  %v2381 = vpop.f32.mrf.mxu0
  %2382 = vmatprep.mubr.bf16.mxu0 0
  %2383 = vmatmul.mubr.bf16.gmra.mxu0 %v2199
  %v2384 = vpop.f32.mrf.mxu0
  %v2385 = vadd.f32 0.0, %v2384
  %v2386 = vpop.f32.mrf.mxu0
  %v2387 = vpop.f32.mrf.mxu0
  %v2388 = vadd.f32 0.0, %v2387
  %v2389 = vpop.f32.mrf.mxu0
  %2390 = vmatprep.mubr.bf16.mxu0 0
  %2391 = vmatmul.mubr.bf16.gmra.mxu0 %v2202
  %v2392 = vpop.f32.mrf.mxu0
  %v2393 = vadd.f32 0.0, %v2392
  %v2394 = vpop.f32.mrf.mxu0
  %v2395 = vpop.f32.mrf.mxu0
  %v2396 = vadd.f32 0.0, %v2395
  %v2397 = vpop.f32.mrf.mxu0
  %2398 = vmatprep.mubr.bf16.mxu0 0
  %2399 = vmatmul.mubr.bf16.gmra.mxu0 %v2205
  %v2400 = vpop.f32.mrf.mxu0
  %v2401 = vadd.f32 0.0, %v2400
  %v2402 = vpop.f32.mrf.mxu0
  %v2403 = vpop.f32.mrf.mxu0
  %v2404 = vadd.f32 0.0, %v2403
  %v2405 = vpop.f32.mrf.mxu0
  %2406 = vmatprep.mubr.bf16.mxu0 0
  %2407 = vmatmul.mubr.bf16.gmra.mxu0 %v2208
  %v2408 = vpop.f32.mrf.mxu0
  %v2409 = vadd.f32 0.0, %v2408
  %v2410 = vpop.f32.mrf.mxu0
  %v2411 = vpop.f32.mrf.mxu0
  %v2412 = vadd.f32 0.0, %v2411
  %v2413 = vpop.f32.mrf.mxu0
  %2414 = vmatprep.mubr.bf16.mxu0 0
  %2415 = vmatmul.mubr.bf16.gmra.mxu0 %v2211
  %v2416 = vpop.f32.mrf.mxu0
  %v2417 = vadd.f32 0.0, %v2416
  %v2418 = vpop.f32.mrf.mxu0
  %v2419 = vpop.f32.mrf.mxu0
  %v2420 = vadd.f32 0.0, %v2419
  %v2421 = vpop.f32.mrf.mxu0
  %2422 = vmatprep.mubr.bf16.mxu0 0
  %2423 = vmatmul.mubr.bf16.gmra.mxu0 %v2214
  %v2424 = vpop.f32.mrf.mxu0
  %v2425 = vadd.f32 0.0, %v2424
  %v2426 = vpop.f32.mrf.mxu0
  %v2427 = vpop.f32.mrf.mxu0
  %v2428 = vadd.f32 0.0, %v2427
  %v2429 = vpop.f32.mrf.mxu0
  %2430 = vmatprep.mubr.bf16.mxu0 0
  %2431 = vmatmul.mubr.bf16.gmra.mxu0 %v2217
  %v2432 = vpop.f32.mrf.mxu0
  %v2433 = vadd.f32 0.0, %v2432
  %v2434 = vpop.f32.mrf.mxu0
  %v2435 = vpop.f32.mrf.mxu0
  %v2436 = vadd.f32 0.0, %v2435
  %v2437 = vpop.f32.mrf.mxu0
  %2438 = vmatprep.mubr.bf16.mxu0 0
  %2439 = vmatmul.mubr.bf16.gmra.mxu0 %v2220
  %v2440 = vpop.f32.mrf.mxu0
  %v2441 = vadd.f32 0.0, %v2440
  %v2442 = vpop.f32.mrf.mxu0
  %v2443 = vpop.f32.mrf.mxu0
  %v2444 = vadd.f32 0.0, %v2443
  %v2445 = vpop.f32.mrf.mxu0
  %2446 = vdwg.mxu0
  %v2447 = vadd.f32 %v1917, %v2257
  %v2448 = vadd.f32 %v1918, %v2260
  %v2449 = vadd.f32 %v1919, %v2265
  %v2450 = vadd.f32 %v1920, %v2268
  %v2451 = vadd.f32 %v1921, %v2273
  %v2452 = vadd.f32 %v1922, %v2276
  %v2453 = vadd.f32 %v1923, %v2281
  %v2454 = vadd.f32 %v1924, %v2284
  %v2455 = vadd.f32 %v1925, %v2289
  %v2456 = vadd.f32 %v1926, %v2292
  %v2457 = vadd.f32 %v1927, %v2297
  %v2458 = vadd.f32 %v1928, %v2300
  %v2459 = vadd.f32 %v1929, %v2305
  %v2460 = vadd.f32 %v1930, %v2308
  %v2461 = vadd.f32 %v1931, %v2313
  %v2462 = vadd.f32 %v1932, %v2316
  %v2463 = vadd.f32 %v1933, %v2321
  %v2464 = vadd.f32 %v1934, %v2324
  %v2465 = vadd.f32 %v1935, %v2329
  %v2466 = vadd.f32 %v1936, %v2332
  %v2467 = vadd.f32 %v1937, %v2337
  %v2468 = vadd.f32 %v1938, %v2340
  %v2469 = vadd.f32 %v1939, %v2345
  %v2470 = vadd.f32 %v1940, %v2348
  %v2471 = vadd.f32 %v1941, %v2353
  %v2472 = vadd.f32 %v1942, %v2356
  %v2473 = vadd.f32 %v1943, %v2361
  %v2474 = vadd.f32 %v1944, %v2364
  %v2475 = vadd.f32 %v1945, %v2369
  %v2476 = vadd.f32 %v1946, %v2372
  %v2477 = vadd.f32 %v1947, %v2377
  %v2478 = vadd.f32 %v1948, %v2380
  %v2479 = vadd.f32 %v1949, %v2385
  %v2480 = vadd.f32 %v1950, %v2388
  %v2481 = vadd.f32 %v1951, %v2393
  %v2482 = vadd.f32 %v1952, %v2396
  %v2483 = vadd.f32 %v1953, %v2401
  %v2484 = vadd.f32 %v1954, %v2404
  %v2485 = vadd.f32 %v1955, %v2409
  %v2486 = vadd.f32 %v1956, %v2412
  %v2487 = vadd.f32 %v1957, %v2417
  %v2488 = vadd.f32 %v1958, %v2420
  %v2489 = vadd.f32 %v1959, %v2425
  %v2490 = vadd.f32 %v1960, %v2428
  %v2491 = vadd.f32 %v1961, %v2433
  %v2492 = vadd.f32 %v1962, %v2436
  %v2493 = vadd.f32 %v1963, %v2441
  %v2494 = vadd.f32 %v1964, %v2444
  %2495 = vst.msk [vmem:[#allocation2] sm:$0xff] %vm211, %v2447
  %2496 = vst.msk [vmem:[#allocation2 + $0x8] sm:$0xff] %vm211, %v2448
  %2497 = vst.msk [vmem:[#allocation2 + $0x10] sm:$0xff] %vm211, %v2449
  %2498 = vst.msk [vmem:[#allocation2 + $0x18] sm:$0xff] %vm211, %v2450
  %2499 = vst.msk [vmem:[#allocation2 + $0x20] sm:$0xff] %vm211, %v2451
  %2500 = vst.msk [vmem:[#allocation2 + $0x28] sm:$0xff] %vm211, %v2452
  %2501 = vst.msk [vmem:[#allocation2 + $0x30] sm:$0xff] %vm211, %v2453
  %2502 = vst.msk [vmem:[#allocation2 + $0x38] sm:$0xff] %vm211, %v2454
  %2503 = vst.msk [vmem:[#allocation2 + $0x40] sm:$0xff] %vm211, %v2455
  %2504 = vst.msk [vmem:[#allocation2 + $0x48] sm:$0xff] %vm211, %v2456
  %2505 = vst.msk [vmem:[#allocation2 + $0x50] sm:$0xff] %vm211, %v2457
  %2506 = vst.msk [vmem:[#allocation2 + $0x58] sm:$0xff] %vm211, %v2458
  %2507 = vst.msk [vmem:[#allocation2 + $0x60] sm:$0xff] %vm211, %v2459
  %2508 = vst.msk [vmem:[#allocation2 + $0x68] sm:$0xff] %vm211, %v2460
  %2509 = vst.msk [vmem:[#allocation2 + $0x70] sm:$0xff] %vm211, %v2461
  %2510 = vst.msk [vmem:[#allocation2 + $0x78] sm:$0xff] %vm211, %v2462
  %2511 = vst.msk [vmem:[#allocation2 + $0x80] sm:$0xff] %vm211, %v2463
  %2512 = vst.msk [vmem:[#allocation2 + $0x88] sm:$0xff] %vm211, %v2464
  %2513 = vst.msk [vmem:[#allocation2 + $0x90] sm:$0xff] %vm211, %v2465
  %2514 = vst.msk [vmem:[#allocation2 + $0x98] sm:$0xff] %vm211, %v2466
  %2515 = vst.msk [vmem:[#allocation2 + $0xa0] sm:$0xff] %vm211, %v2467
  %2516 = vst.msk [vmem:[#allocation2 + $0xa8] sm:$0xff] %vm211, %v2468
  %2517 = vst.msk [vmem:[#allocation2 + $0xb0] sm:$0xff] %vm211, %v2469
  %2518 = vst.msk [vmem:[#allocation2 + $0xb8] sm:$0xff] %vm211, %v2470
  %2519 = vst.msk [vmem:[#allocation2 + $0xc0] sm:$0xff] %vm211, %v2471
  %2520 = vst.msk [vmem:[#allocation2 + $0xc8] sm:$0xff] %vm211, %v2472
  %2521 = vst.msk [vmem:[#allocation2 + $0xd0] sm:$0xff] %vm211, %v2473
  %2522 = vst.msk [vmem:[#allocation2 + $0xd8] sm:$0xff] %vm211, %v2474
  %2523 = vst.msk [vmem:[#allocation2 + $0xe0] sm:$0xff] %vm211, %v2475
  %2524 = vst.msk [vmem:[#allocation2 + $0xe8] sm:$0xff] %vm211, %v2476
  %2525 = vst.msk [vmem:[#allocation2 + $0xf0] sm:$0xff] %vm211, %v2477
  %2526 = vst.msk [vmem:[#allocation2 + $0xf8] sm:$0xff] %vm211, %v2478
  %2527 = vst.msk [vmem:[#allocation2 + $0x100] sm:$0xff] %vm211, %v2479
  %2528 = vst.msk [vmem:[#allocation2 + $0x108] sm:$0xff] %vm211, %v2480
  %2529 = vst.msk [vmem:[#allocation2 + $0x110] sm:$0xff] %vm211, %v2481
  %2530 = vst.msk [vmem:[#allocation2 + $0x118] sm:$0xff] %vm211, %v2482
  %2531 = vst.msk [vmem:[#allocation2 + $0x120] sm:$0xff] %vm211, %v2483
  %2532 = vst.msk [vmem:[#allocation2 + $0x128] sm:$0xff] %vm211, %v2484
  %2533 = vst.msk [vmem:[#allocation2 + $0x130] sm:$0xff] %vm211, %v2485
  %2534 = vst.msk [vmem:[#allocation2 + $0x138] sm:$0xff] %vm211, %v2486
  %2535 = vst.msk [vmem:[#allocation2 + $0x140] sm:$0xff] %vm211, %v2487
  %2536 = vst.msk [vmem:[#allocation2 + $0x148] sm:$0xff] %vm211, %v2488
  %2537 = vst.msk [vmem:[#allocation2 + $0x150] sm:$0xff] %vm211, %v2489
  %2538 = vst.msk [vmem:[#allocation2 + $0x158] sm:$0xff] %vm211, %v2490
  %2539 = vst.msk [vmem:[#allocation2 + $0x160] sm:$0xff] %vm211, %v2491
  %2540 = vst.msk [vmem:[#allocation2 + $0x168] sm:$0xff] %vm211, %v2492
  %2541 = vst.msk [vmem:[#allocation2 + $0x170] sm:$0xff] %vm211, %v2493
  %2542 = vst.msk [vmem:[#allocation2 + $0x178] sm:$0xff] %vm211, %v2494
  %v2543 = vld [vmem:[#allocation2] sm:$0xff]
  %v2544 = vld [vmem:[#allocation2 + $0x8] sm:$0xff]
  %v2545 = vld [vmem:[#allocation2 + $0x10] sm:$0xff]
  %v2546 = vld [vmem:[#allocation2 + $0x18] sm:$0xff]
  %v2547 = vld [vmem:[#allocation2 + $0x20] sm:$0xff]
  %v2548 = vld [vmem:[#allocation2 + $0x28] sm:$0xff]
  %v2549 = vld [vmem:[#allocation2 + $0x30] sm:$0xff]
  %v2550 = vld [vmem:[#allocation2 + $0x38] sm:$0xff]
  %v2551 = vld [vmem:[#allocation2 + $0x40] sm:$0xff]
  %v2552 = vld [vmem:[#allocation2 + $0x48] sm:$0xff]
  %v2553 = vld [vmem:[#allocation2 + $0x50] sm:$0xff]
  %v2554 = vld [vmem:[#allocation2 + $0x58] sm:$0xff]
  %v2555 = vld [vmem:[#allocation2 + $0x60] sm:$0xff]
  %v2556 = vld [vmem:[#allocation2 + $0x68] sm:$0xff]
  %v2557 = vld [vmem:[#allocation2 + $0x70] sm:$0xff]
  %v2558 = vld [vmem:[#allocation2 + $0x78] sm:$0xff]
  %v2559 = vld [vmem:[#allocation2 + $0x80] sm:$0xff]
  %v2560 = vld [vmem:[#allocation2 + $0x88] sm:$0xff]
  %v2561 = vld [vmem:[#allocation2 + $0x90] sm:$0xff]
  %v2562 = vld [vmem:[#allocation2 + $0x98] sm:$0xff]
  %v2563 = vld [vmem:[#allocation2 + $0xa0] sm:$0xff]
  %v2564 = vld [vmem:[#allocation2 + $0xa8] sm:$0xff]
  %v2565 = vld [vmem:[#allocation2 + $0xb0] sm:$0xff]
  %v2566 = vld [vmem:[#allocation2 + $0xb8] sm:$0xff]
  %v2567 = vld [vmem:[#allocation2 + $0xc0] sm:$0xff]
  %v2568 = vld [vmem:[#allocation2 + $0xc8] sm:$0xff]
  %v2569 = vld [vmem:[#allocation2 + $0xd0] sm:$0xff]
  %v2570 = vld [vmem:[#allocation2 + $0xd8] sm:$0xff]
  %v2571 = vld [vmem:[#allocation2 + $0xe0] sm:$0xff]
  %v2572 = vld [vmem:[#allocation2 + $0xe8] sm:$0xff]
  %v2573 = vld [vmem:[#allocation2 + $0xf0] sm:$0xff]
  %v2574 = vld [vmem:[#allocation2 + $0xf8] sm:$0xff]
  %v2575 = vld [vmem:[#allocation2 + $0x100] sm:$0xff]
  %v2576 = vld [vmem:[#allocation2 + $0x108] sm:$0xff]
  %v2577 = vld [vmem:[#allocation2 + $0x110] sm:$0xff]
  %v2578 = vld [vmem:[#allocation2 + $0x118] sm:$0xff]
  %v2579 = vld [vmem:[#allocation2 + $0x120] sm:$0xff]
  %v2580 = vld [vmem:[#allocation2 + $0x128] sm:$0xff]
  %v2581 = vld [vmem:[#allocation2 + $0x130] sm:$0xff]
  %v2582 = vld [vmem:[#allocation2 + $0x138] sm:$0xff]
  %v2583 = vld [vmem:[#allocation2 + $0x140] sm:$0xff]
  %v2584 = vld [vmem:[#allocation2 + $0x148] sm:$0xff]
  %v2585 = vld [vmem:[#allocation2 + $0x150] sm:$0xff]
  %v2586 = vld [vmem:[#allocation2 + $0x158] sm:$0xff]
  %v2587 = vld [vmem:[#allocation2 + $0x160] sm:$0xff]
  %v2588 = vld [vmem:[#allocation2 + $0x168] sm:$0xff]
  %v2589 = vld [vmem:[#allocation2 + $0x170] sm:$0xff]
  %v2590 = vld [vmem:[#allocation2 + $0x178] sm:$0xff]
  %v2591 = vld [vmem:[%s0 + $0x18] sm:$0xe]
  %v2592 = vld [vmem:[%s0 + $0x1c] sm:$0xf]
  %v2593 = vld [vmem:[%s0 + $0x20] sm:$0xf]
  %v2594 = vld [vmem:[%s0 + $0x24] sm:$0xf]
  %v2595 = vld [vmem:[%s0 + $0x28] sm:$0xf]
  %v2596 = vld [vmem:[%s0 + $0x2c] sm:$0xf]
  %v2597 = vld [vmem:[%s0 + $0x30] sm:$0xf]
  %v2598 = vld [vmem:[%s0 + $0x34] sm:$0xf]
  %v2599 = vld [vmem:[%s0 + $0x38] sm:$0xf]
  %v2600 = vld [vmem:[%s0 + $0x3c] sm:$0xf]
  %v2601 = vld [vmem:[%s0 + $0x40] sm:$0xf]
  %v2602 = vld [vmem:[%s0 + $0x44] sm:$0xf]
  %v2603 = vld [vmem:[%s0 + $0x48] sm:$0xf]
  %v2604 = vld [vmem:[%s0 + $0x4c] sm:$0xf]
  %v2605 = vld [vmem:[%s0 + $0x50] sm:$0xf]
  %v2606 = vld [vmem:[%s0 + $0x54] sm:$0xf]
  %v2607 = vld [vmem:[%s0 + $0x58] sm:$0xf]
  %v2608 = vld [vmem:[%s0 + $0x5c] sm:$0xf]
  %v2609 = vld [vmem:[%s0 + $0x60] sm:$0xf]
  %v2610 = vld [vmem:[%s0 + $0x64] sm:$0xf]
  %v2611 = vld [vmem:[%s0 + $0x68] sm:$0xf]
  %v2612 = vld [vmem:[%s0 + $0x6c] sm:$0xf]
  %v2613 = vld [vmem:[%s0 + $0x70] sm:$0xf]
  %v2614 = vld [vmem:[%s0 + $0x74] sm:$0xf]
  %v2615 = vld [vmem:[%s0 + $0x78] sm:$0xf]
  %v2616 = vld [vmem:[%s0 + $0x7c] sm:$0xf]
  %v2617 = vld [vmem:[%s0 + $0x80] sm:$0xf]
  %v2618 = vld [vmem:[%s0 + $0x84] sm:$0xf]
  %v2619 = vld [vmem:[%s0 + $0x88] sm:$0xf]
  %v2620 = vld [vmem:[%s0 + $0x8c] sm:$0xf]
  %v2621 = vld [vmem:[%s0 + $0x90] sm:$0xf]
  %v2622 = vld [vmem:[%s0 + $0x94] sm:$0xf]
  %v2623 = vld [vmem:[%s0 + $0x98] sm:$0xf]
  %v2624 = vld [vmem:[%s0 + $0x9c] sm:$0xf]
  %v2625 = vld [vmem:[%s0 + $0xa0] sm:$0xf]
  %v2626 = vld [vmem:[%s0 + $0xa4] sm:$0xf]
  %v2627 = vld [vmem:[%s0 + $0xa8] sm:$0xf]
  %v2628 = vld [vmem:[%s0 + $0xac] sm:$0xf]
  %v2629 = vld [vmem:[%s0 + $0xb0] sm:$0xf]
  %v2630 = vld [vmem:[%s0 + $0xb4] sm:$0xf]
  %v2631 = vld [vmem:[%s0 + $0xb8] sm:$0xf]
  %v2632 = vld [vmem:[%s0 + $0xbc] sm:$0xf]
  %v2633 = vld [vmem:[%s0 + $0xc0] sm:$0xf]
  %v2634 = vld [vmem:[%s0 + $0xc4] sm:$0xf]
  %v2635 = vld [vmem:[%s0 + $0xc8] sm:$0xf]
  %v2636 = vld [vmem:[%s0 + $0xcc] sm:$0xf]
  %v2637 = vld [vmem:[%s0 + $0xd0] sm:$0xf]
  %v2638 = vld [vmem:[%s0 + $0xd4] sm:$0xf]
  %v2639 = vld [vmem:[%s0 + $0xd8] sm:$0x1]
  %s2640 = scalar_lea.vmem %s1, 64
  %v2641 = vld [vmem:[%s2640] sm:$0xf]
  %v2642 = vld [vmem:[%s2640 + $0x4] sm:$0xf]
  %v2643 = vld [vmem:[%s2640 + $0x8] sm:$0xf]
  %v2644 = vld [vmem:[%s2640 + $0xc] sm:$0xf]
  %v2694 = vunpack.c.l.b16 %v2591
  %v2695 = vunpack.c.l.b16 %v2592
  %v2696 = vunpack.c.l.b16 %v2593
  %v2697 = vunpack.c.l.b16 %v2594
  %v2698 = vunpack.c.l.b16 %v2595
  %v2699 = vunpack.c.l.b16 %v2596
  %v2700 = vunpack.c.l.b16 %v2597
  %v2701 = vunpack.c.l.b16 %v2598
  %v2702 = vunpack.c.l.b16 %v2599
  %v2703 = vunpack.c.l.b16 %v2600
  %v2704 = vunpack.c.l.b16 %v2601
  %v2705 = vunpack.c.l.b16 %v2602
  %v2706 = vunpack.c.l.b16 %v2603
  %v2707 = vunpack.c.l.b16 %v2604
  %v2708 = vunpack.c.l.b16 %v2605
  %v2709 = vunpack.c.l.b16 %v2606
  %v2710 = vunpack.c.l.b16 %v2607
  %v2711 = vunpack.c.l.b16 %v2608
  %v2712 = vunpack.c.l.b16 %v2609
  %v2713 = vunpack.c.l.b16 %v2610
  %v2714 = vunpack.c.l.b16 %v2611
  %v2715 = vunpack.c.l.b16 %v2612
  %v2716 = vunpack.c.l.b16 %v2613
  %v2717 = vunpack.c.l.b16 %v2614
  %v2718 = vunpack.c.l.b16 %v2615
  %v2719 = vunpack.c.l.b16 %v2616
  %v2720 = vunpack.c.l.b16 %v2617
  %v2721 = vunpack.c.l.b16 %v2618
  %v2722 = vunpack.c.l.b16 %v2619
  %v2723 = vunpack.c.l.b16 %v2620
  %v2724 = vunpack.c.l.b16 %v2621
  %v2725 = vunpack.c.l.b16 %v2622
  %v2726 = vunpack.c.l.b16 %v2623
  %v2727 = vunpack.c.l.b16 %v2624
  %v2728 = vunpack.c.l.b16 %v2625
  %v2729 = vunpack.c.l.b16 %v2626
  %v2730 = vunpack.c.l.b16 %v2627
  %v2731 = vunpack.c.l.b16 %v2628
  %v2732 = vunpack.c.l.b16 %v2629
  %v2733 = vunpack.c.l.b16 %v2630
  %v2734 = vunpack.c.l.b16 %v2631
  %v2735 = vunpack.c.l.b16 %v2632
  %v2736 = vunpack.c.l.b16 %v2633
  %v2737 = vunpack.c.l.b16 %v2634
  %v2738 = vunpack.c.l.b16 %v2635
  %v2739 = vunpack.c.l.b16 %v2636
  %v2740 = vunpack.c.l.b16 %v2637
  %v2741 = vunpack.c.l.b16 %v2638
  %v2742 = vunpack.c.l.b16 %v2639
  %v2743 = vpack.c.b16 %v2695, %v2694
  %v2744 = vpack.c.b16 %v2697, %v2696
  %v2745 = vpack.c.b16 %v2699, %v2698
  %v2746 = vpack.c.b16 %v2701, %v2700
  %v2747 = vpack.c.b16 %v2703, %v2702
  %v2748 = vpack.c.b16 %v2705, %v2704
  %v2749 = vpack.c.b16 %v2707, %v2706
  %v2750 = vpack.c.b16 %v2709, %v2708
  %v2751 = vpack.c.b16 %v2711, %v2710
  %v2752 = vpack.c.b16 %v2713, %v2712
  %v2753 = vpack.c.b16 %v2715, %v2714
  %v2754 = vpack.c.b16 %v2717, %v2716
  %v2755 = vpack.c.b16 %v2719, %v2718
  %v2756 = vpack.c.b16 %v2721, %v2720
  %v2757 = vpack.c.b16 %v2723, %v2722
  %v2758 = vpack.c.b16 %v2725, %v2724
  %v2759 = vpack.c.b16 %v2727, %v2726
  %v2760 = vpack.c.b16 %v2729, %v2728
  %v2761 = vpack.c.b16 %v2731, %v2730
  %v2762 = vpack.c.b16 %v2733, %v2732
  %v2763 = vpack.c.b16 %v2735, %v2734
  %v2764 = vpack.c.b16 %v2737, %v2736
  %v2765 = vpack.c.b16 %v2739, %v2738
  %v2766 = vpack.c.b16 %v2741, %v2740
  %v2767 = vpack.c.b16 %v2742, %v2742
  %v2768 = vrot.slane %v2743, 1
  %v2769 = vrot.slane %v2744, 1
  %v2770 = vsel %vm782, %v2768, %v2769
  %v2771 = vrot.slane %v2745, 1
  %v2772 = vsel %vm782, %v2769, %v2771
  %v2773 = vrot.slane %v2746, 1
  %v2774 = vsel %vm782, %v2771, %v2773
  %v2775 = vrot.slane %v2747, 1
  %v2776 = vsel %vm782, %v2773, %v2775
  %v2777 = vrot.slane %v2748, 1
  %v2778 = vsel %vm782, %v2775, %v2777
  %v2779 = vrot.slane %v2749, 1
  %v2780 = vsel %vm782, %v2777, %v2779
  %v2781 = vrot.slane %v2750, 1
  %v2782 = vsel %vm782, %v2779, %v2781
  %v2783 = vrot.slane %v2751, 1
  %v2784 = vsel %vm782, %v2781, %v2783
  %v2785 = vrot.slane %v2752, 1
  %v2786 = vsel %vm782, %v2783, %v2785
  %v2787 = vrot.slane %v2753, 1
  %v2788 = vsel %vm782, %v2785, %v2787
  %v2789 = vrot.slane %v2754, 1
  %v2790 = vsel %vm782, %v2787, %v2789
  %v2791 = vrot.slane %v2755, 1
  %v2792 = vsel %vm782, %v2789, %v2791
  %v2793 = vrot.slane %v2756, 1
  %v2794 = vsel %vm782, %v2791, %v2793
  %v2795 = vrot.slane %v2757, 1
  %v2796 = vsel %vm782, %v2793, %v2795
  %v2797 = vrot.slane %v2758, 1
  %v2798 = vsel %vm782, %v2795, %v2797
  %v2799 = vrot.slane %v2759, 1
  %v2800 = vsel %vm782, %v2797, %v2799
  %v2801 = vrot.slane %v2760, 1
  %v2802 = vsel %vm782, %v2799, %v2801
  %v2803 = vrot.slane %v2761, 1
  %v2804 = vsel %vm782, %v2801, %v2803
  %v2805 = vrot.slane %v2762, 1
  %v2806 = vsel %vm782, %v2803, %v2805
  %v2807 = vrot.slane %v2763, 1
  %v2808 = vsel %vm782, %v2805, %v2807
  %v2809 = vrot.slane %v2764, 1
  %v2810 = vsel %vm782, %v2807, %v2809
  %v2811 = vrot.slane %v2765, 1
  %v2812 = vsel %vm782, %v2809, %v2811
  %v2813 = vrot.slane %v2766, 1
  %v2814 = vsel %vm782, %v2811, %v2813
  %v2815 = vrot.slane %v2767, 1
  %v2816 = vsel %vm782, %v2813, %v2815
  %v2821 = vunpack.c.l.b16 %v2641
  %v2822 = vunpack.c.l.b16 %v2642
  %v2823 = vunpack.c.l.b16 %v2643
  %v2824 = vunpack.c.l.b16 %v2644
  %v2825 = vpack.c.b16 %v2822, %v2821
  %v2826 = vpack.c.b16 %v2824, %v2823
  %v2830 = vsel %vm211, %v2770, 0
  %v2833 = vsel %vm211, %v2772, 0
  %v2836 = vsel %vm211, %v2774, 0
  %v2839 = vsel %vm211, %v2776, 0
  %v2842 = vsel %vm211, %v2778, 0
  %v2845 = vsel %vm211, %v2780, 0
  %v2848 = vsel %vm211, %v2782, 0
  %v2851 = vsel %vm211, %v2784, 0
  %v2854 = vsel %vm211, %v2786, 0
  %v2857 = vsel %vm211, %v2788, 0
  %v2860 = vsel %vm211, %v2790, 0
  %v2863 = vsel %vm211, %v2792, 0
  %v2866 = vsel %vm211, %v2794, 0
  %v2869 = vsel %vm211, %v2796, 0
  %v2872 = vsel %vm211, %v2798, 0
  %v2875 = vsel %vm211, %v2800, 0
  %v2878 = vsel %vm211, %v2802, 0
  %v2881 = vsel %vm211, %v2804, 0
  %v2884 = vsel %vm211, %v2806, 0
  %v2887 = vsel %vm211, %v2808, 0
  %v2890 = vsel %vm211, %v2810, 0
  %v2893 = vsel %vm211, %v2812, 0
  %v2896 = vsel %vm211, %v2814, 0
  %v2899 = vsel %vm211, %v2816, 0
  %2901 = vmatprep.subr.bf16.mxu0 0
  %2902 = vmatpush1.bf16.msra.mxu0 0
  %2903 = vmatprep.subr.bf16.mxu0 0
  %2904 = vmatpush1.bf16.msra.mxu0 0
  %2905 = vmatprep.subr.bf16.mxu0 0
  %2906 = vmatpush1.bf16.msra.mxu0 0
  %2907 = vmatprep.subr.bf16.mxu0 0
  %2908 = vmatpush1.bf16.msra.mxu0 0
  %2909 = vmatprep.subr.bf16.mxu0 0
  %2910 = vmatpush1.bf16.msra.mxu0 0
  %2911 = vmatprep.subr.bf16.mxu0 0
  %2912 = vmatpush1.bf16.msra.mxu0 0
  %2913 = vmatprep.subr.bf16.mxu0 0
  %2914 = vmatpush1.bf16.msra.mxu0 %v2826
  %2915 = vmatprep.subr.bf16.mxu0 0
  %2916 = vmatpush1.bf16.msra.mxu0 %v2825
  %2917 = vmatprep.subr.bf16.mxu0 0
  %2918 = vmatpush2.bf16.msra.mxu0 0
  %2919 = vmatprep.subr.bf16.mxu0 0
  %2920 = vmatpush2.bf16.msra.mxu0 0
  %2921 = vmatprep.subr.bf16.mxu0 0
  %2922 = vmatpush2.bf16.msra.mxu0 0
  %2923 = vmatprep.subr.bf16.mxu0 0
  %2924 = vmatpush2.bf16.msra.mxu0 0
  %2925 = vmatprep.subr.bf16.mxu0 0
  %2926 = vmatpush2.bf16.msra.mxu0 0
  %2927 = vmatprep.subr.bf16.mxu0 0
  %2928 = vmatpush2.bf16.msra.mxu0 0
  %2929 = vmatprep.subr.bf16.mxu0 0
  %2930 = vmatpush2.bf16.msra.mxu0 0
  %2931 = vmatprep.subr.bf16.mxu0 0
  %2932 = vmatpush2.bf16.msra.mxu0 0
  %2933 = vmatprep.mubr.bf16.mxu0 0
  %2934 = vmatmul.mubr.bf16.gmra.mxu0 %v2830
  %v2935 = vpop.f32.mrf.mxu0
  %v2936 = vadd.f32 0.0, %v2935
  %v2937 = vpop.f32.mrf.mxu0
  %v2938 = vpop.f32.mrf.mxu0
  %v2939 = vadd.f32 0.0, %v2938
  %v2940 = vpop.f32.mrf.mxu0
  %2941 = vmatprep.mubr.bf16.mxu0 0
  %2942 = vmatmul.mubr.bf16.gmra.mxu0 %v2833
  %v2943 = vpop.f32.mrf.mxu0
  %v2944 = vadd.f32 0.0, %v2943
  %v2945 = vpop.f32.mrf.mxu0
  %v2946 = vpop.f32.mrf.mxu0
  %v2947 = vadd.f32 0.0, %v2946
  %v2948 = vpop.f32.mrf.mxu0
  %2949 = vmatprep.mubr.bf16.mxu0 0
  %2950 = vmatmul.mubr.bf16.gmra.mxu0 %v2836
  %v2951 = vpop.f32.mrf.mxu0
  %v2952 = vadd.f32 0.0, %v2951
  %v2953 = vpop.f32.mrf.mxu0
  %v2954 = vpop.f32.mrf.mxu0
  %v2955 = vadd.f32 0.0, %v2954
  %v2956 = vpop.f32.mrf.mxu0
  %2957 = vmatprep.mubr.bf16.mxu0 0
  %2958 = vmatmul.mubr.bf16.gmra.mxu0 %v2839
  %v2959 = vpop.f32.mrf.mxu0
  %v2960 = vadd.f32 0.0, %v2959
  %v2961 = vpop.f32.mrf.mxu0
  %v2962 = vpop.f32.mrf.mxu0
  %v2963 = vadd.f32 0.0, %v2962
  %v2964 = vpop.f32.mrf.mxu0
  %2965 = vmatprep.mubr.bf16.mxu0 0
  %2966 = vmatmul.mubr.bf16.gmra.mxu0 %v2842
  %v2967 = vpop.f32.mrf.mxu0
  %v2968 = vadd.f32 0.0, %v2967
  %v2969 = vpop.f32.mrf.mxu0
  %v2970 = vpop.f32.mrf.mxu0
  %v2971 = vadd.f32 0.0, %v2970
  %v2972 = vpop.f32.mrf.mxu0
  %2973 = vmatprep.mubr.bf16.mxu0 0
  %2974 = vmatmul.mubr.bf16.gmra.mxu0 %v2845
  %v2975 = vpop.f32.mrf.mxu0
  %v2976 = vadd.f32 0.0, %v2975
  %v2977 = vpop.f32.mrf.mxu0
  %v2978 = vpop.f32.mrf.mxu0
  %v2979 = vadd.f32 0.0, %v2978
  %v2980 = vpop.f32.mrf.mxu0
  %2981 = vmatprep.mubr.bf16.mxu0 0
  %2982 = vmatmul.mubr.bf16.gmra.mxu0 %v2848
  %v2983 = vpop.f32.mrf.mxu0
  %v2984 = vadd.f32 0.0, %v2983
  %v2985 = vpop.f32.mrf.mxu0
  %v2986 = vpop.f32.mrf.mxu0
  %v2987 = vadd.f32 0.0, %v2986
  %v2988 = vpop.f32.mrf.mxu0
  %2989 = vmatprep.mubr.bf16.mxu0 0
  %2990 = vmatmul.mubr.bf16.gmra.mxu0 %v2851
  %v2991 = vpop.f32.mrf.mxu0
  %v2992 = vadd.f32 0.0, %v2991
  %v2993 = vpop.f32.mrf.mxu0
  %v2994 = vpop.f32.mrf.mxu0
  %v2995 = vadd.f32 0.0, %v2994
  %v2996 = vpop.f32.mrf.mxu0
  %2997 = vmatprep.mubr.bf16.mxu0 0
  %2998 = vmatmul.mubr.bf16.gmra.mxu0 %v2854
  %v2999 = vpop.f32.mrf.mxu0
  %v3000 = vadd.f32 0.0, %v2999
  %v3001 = vpop.f32.mrf.mxu0
  %v3002 = vpop.f32.mrf.mxu0
  %v3003 = vadd.f32 0.0, %v3002
  %v3004 = vpop.f32.mrf.mxu0
  %3005 = vmatprep.mubr.bf16.mxu0 0
  %3006 = vmatmul.mubr.bf16.gmra.mxu0 %v2857
  %v3007 = vpop.f32.mrf.mxu0
  %v3008 = vadd.f32 0.0, %v3007
  %v3009 = vpop.f32.mrf.mxu0
  %v3010 = vpop.f32.mrf.mxu0
  %v3011 = vadd.f32 0.0, %v3010
  %v3012 = vpop.f32.mrf.mxu0
  %3013 = vmatprep.mubr.bf16.mxu0 0
  %3014 = vmatmul.mubr.bf16.gmra.mxu0 %v2860
  %v3015 = vpop.f32.mrf.mxu0
  %v3016 = vadd.f32 0.0, %v3015
  %v3017 = vpop.f32.mrf.mxu0
  %v3018 = vpop.f32.mrf.mxu0
  %v3019 = vadd.f32 0.0, %v3018
  %v3020 = vpop.f32.mrf.mxu0
  %3021 = vmatprep.mubr.bf16.mxu0 0
  %3022 = vmatmul.mubr.bf16.gmra.mxu0 %v2863
  %v3023 = vpop.f32.mrf.mxu0
  %v3024 = vadd.f32 0.0, %v3023
  %v3025 = vpop.f32.mrf.mxu0
  %v3026 = vpop.f32.mrf.mxu0
  %v3027 = vadd.f32 0.0, %v3026
  %v3028 = vpop.f32.mrf.mxu0
  %3029 = vmatprep.mubr.bf16.mxu0 0
  %3030 = vmatmul.mubr.bf16.gmra.mxu0 %v2866
  %v3031 = vpop.f32.mrf.mxu0
  %v3032 = vadd.f32 0.0, %v3031
  %v3033 = vpop.f32.mrf.mxu0
  %v3034 = vpop.f32.mrf.mxu0
  %v3035 = vadd.f32 0.0, %v3034
  %v3036 = vpop.f32.mrf.mxu0
  %3037 = vmatprep.mubr.bf16.mxu0 0
  %3038 = vmatmul.mubr.bf16.gmra.mxu0 %v2869
  %v3039 = vpop.f32.mrf.mxu0
  %v3040 = vadd.f32 0.0, %v3039
  %v3041 = vpop.f32.mrf.mxu0
  %v3042 = vpop.f32.mrf.mxu0
  %v3043 = vadd.f32 0.0, %v3042
  %v3044 = vpop.f32.mrf.mxu0
  %3045 = vmatprep.mubr.bf16.mxu0 0
  %3046 = vmatmul.mubr.bf16.gmra.mxu0 %v2872
  %v3047 = vpop.f32.mrf.mxu0
  %v3048 = vadd.f32 0.0, %v3047
  %v3049 = vpop.f32.mrf.mxu0
  %v3050 = vpop.f32.mrf.mxu0
  %v3051 = vadd.f32 0.0, %v3050
  %v3052 = vpop.f32.mrf.mxu0
  %3053 = vmatprep.mubr.bf16.mxu0 0
  %3054 = vmatmul.mubr.bf16.gmra.mxu0 %v2875
  %v3055 = vpop.f32.mrf.mxu0
  %v3056 = vadd.f32 0.0, %v3055
  %v3057 = vpop.f32.mrf.mxu0
  %v3058 = vpop.f32.mrf.mxu0
  %v3059 = vadd.f32 0.0, %v3058
  %v3060 = vpop.f32.mrf.mxu0
  %3061 = vmatprep.mubr.bf16.mxu0 0
  %3062 = vmatmul.mubr.bf16.gmra.mxu0 %v2878
  %v3063 = vpop.f32.mrf.mxu0
  %v3064 = vadd.f32 0.0, %v3063
  %v3065 = vpop.f32.mrf.mxu0
  %v3066 = vpop.f32.mrf.mxu0
  %v3067 = vadd.f32 0.0, %v3066
  %v3068 = vpop.f32.mrf.mxu0
  %3069 = vmatprep.mubr.bf16.mxu0 0
  %3070 = vmatmul.mubr.bf16.gmra.mxu0 %v2881
  %v3071 = vpop.f32.mrf.mxu0
  %v3072 = vadd.f32 0.0, %v3071
  %v3073 = vpop.f32.mrf.mxu0
  %v3074 = vpop.f32.mrf.mxu0
  %v3075 = vadd.f32 0.0, %v3074
  %v3076 = vpop.f32.mrf.mxu0
  %3077 = vmatprep.mubr.bf16.mxu0 0
  %3078 = vmatmul.mubr.bf16.gmra.mxu0 %v2884
  %v3079 = vpop.f32.mrf.mxu0
  %v3080 = vadd.f32 0.0, %v3079
  %v3081 = vpop.f32.mrf.mxu0
  %v3082 = vpop.f32.mrf.mxu0
  %v3083 = vadd.f32 0.0, %v3082
  %v3084 = vpop.f32.mrf.mxu0
  %3085 = vmatprep.mubr.bf16.mxu0 0
  %3086 = vmatmul.mubr.bf16.gmra.mxu0 %v2887
  %v3087 = vpop.f32.mrf.mxu0
  %v3088 = vadd.f32 0.0, %v3087
  %v3089 = vpop.f32.mrf.mxu0
  %v3090 = vpop.f32.mrf.mxu0
  %v3091 = vadd.f32 0.0, %v3090
  %v3092 = vpop.f32.mrf.mxu0
  %3093 = vmatprep.mubr.bf16.mxu0 0
  %3094 = vmatmul.mubr.bf16.gmra.mxu0 %v2890
  %v3095 = vpop.f32.mrf.mxu0
  %v3096 = vadd.f32 0.0, %v3095
  %v3097 = vpop.f32.mrf.mxu0
  %v3098 = vpop.f32.mrf.mxu0
  %v3099 = vadd.f32 0.0, %v3098
  %v3100 = vpop.f32.mrf.mxu0
  %3101 = vmatprep.mubr.bf16.mxu0 0
  %3102 = vmatmul.mubr.bf16.gmra.mxu0 %v2893
  %v3103 = vpop.f32.mrf.mxu0
  %v3104 = vadd.f32 0.0, %v3103
  %v3105 = vpop.f32.mrf.mxu0
  %v3106 = vpop.f32.mrf.mxu0
  %v3107 = vadd.f32 0.0, %v3106
  %v3108 = vpop.f32.mrf.mxu0
  %3109 = vmatprep.mubr.bf16.mxu0 0
  %3110 = vmatmul.mubr.bf16.gmra.mxu0 %v2896
  %v3111 = vpop.f32.mrf.mxu0
  %v3112 = vadd.f32 0.0, %v3111
  %v3113 = vpop.f32.mrf.mxu0
  %v3114 = vpop.f32.mrf.mxu0
  %v3115 = vadd.f32 0.0, %v3114
  %v3116 = vpop.f32.mrf.mxu0
  %3117 = vmatprep.mubr.bf16.mxu0 0
  %3118 = vmatmul.mubr.bf16.gmra.mxu0 %v2899
  %v3119 = vpop.f32.mrf.mxu0
  %v3120 = vadd.f32 0.0, %v3119
  %v3121 = vpop.f32.mrf.mxu0
  %v3122 = vpop.f32.mrf.mxu0
  %v3123 = vadd.f32 0.0, %v3122
  %v3124 = vpop.f32.mrf.mxu0
  %3125 = vdwg.mxu0
  %v3126 = vadd.f32 %v2543, %v2936
  %v3127 = vadd.f32 %v2544, %v2939
  %v3128 = vadd.f32 %v2545, %v2944
  %v3129 = vadd.f32 %v2546, %v2947
  %v3130 = vadd.f32 %v2547, %v2952
  %v3131 = vadd.f32 %v2548, %v2955
  %v3132 = vadd.f32 %v2549, %v2960
  %v3133 = vadd.f32 %v2550, %v2963
  %v3134 = vadd.f32 %v2551, %v2968
  %v3135 = vadd.f32 %v2552, %v2971
  %v3136 = vadd.f32 %v2553, %v2976
  %v3137 = vadd.f32 %v2554, %v2979
  %v3138 = vadd.f32 %v2555, %v2984
  %v3139 = vadd.f32 %v2556, %v2987
  %v3140 = vadd.f32 %v2557, %v2992
  %v3141 = vadd.f32 %v2558, %v2995
  %v3142 = vadd.f32 %v2559, %v3000
  %v3143 = vadd.f32 %v2560, %v3003
  %v3144 = vadd.f32 %v2561, %v3008
  %v3145 = vadd.f32 %v2562, %v3011
  %v3146 = vadd.f32 %v2563, %v3016
  %v3147 = vadd.f32 %v2564, %v3019
  %v3148 = vadd.f32 %v2565, %v3024
  %v3149 = vadd.f32 %v2566, %v3027
  %v3150 = vadd.f32 %v2567, %v3032
  %v3151 = vadd.f32 %v2568, %v3035
  %v3152 = vadd.f32 %v2569, %v3040
  %v3153 = vadd.f32 %v2570, %v3043
  %v3154 = vadd.f32 %v2571, %v3048
  %v3155 = vadd.f32 %v2572, %v3051
  %v3156 = vadd.f32 %v2573, %v3056
  %v3157 = vadd.f32 %v2574, %v3059
  %v3158 = vadd.f32 %v2575, %v3064
  %v3159 = vadd.f32 %v2576, %v3067
  %v3160 = vadd.f32 %v2577, %v3072
  %v3161 = vadd.f32 %v2578, %v3075
  %v3162 = vadd.f32 %v2579, %v3080
  %v3163 = vadd.f32 %v2580, %v3083
  %v3164 = vadd.f32 %v2581, %v3088
  %v3165 = vadd.f32 %v2582, %v3091
  %v3166 = vadd.f32 %v2583, %v3096
  %v3167 = vadd.f32 %v2584, %v3099
  %v3168 = vadd.f32 %v2585, %v3104
  %v3169 = vadd.f32 %v2586, %v3107
  %v3170 = vadd.f32 %v2587, %v3112
  %v3171 = vadd.f32 %v2588, %v3115
  %v3172 = vadd.f32 %v2589, %v3120
  %v3173 = vadd.f32 %v2590, %v3123
  %3174 = vst.msk [vmem:[#allocation2] sm:$0xff] %vm211, %v3126
  %3175 = vst.msk [vmem:[#allocation2 + $0x8] sm:$0xff] %vm211, %v3127
  %3176 = vst.msk [vmem:[#allocation2 + $0x10] sm:$0xff] %vm211, %v3128
  %3177 = vst.msk [vmem:[#allocation2 + $0x18] sm:$0xff] %vm211, %v3129
  %3178 = vst.msk [vmem:[#allocation2 + $0x20] sm:$0xff] %vm211, %v3130
  %3179 = vst.msk [vmem:[#allocation2 + $0x28] sm:$0xff] %vm211, %v3131
  %3180 = vst.msk [vmem:[#allocation2 + $0x30] sm:$0xff] %vm211, %v3132
  %3181 = vst.msk [vmem:[#allocation2 + $0x38] sm:$0xff] %vm211, %v3133
  %3182 = vst.msk [vmem:[#allocation2 + $0x40] sm:$0xff] %vm211, %v3134
  %3183 = vst.msk [vmem:[#allocation2 + $0x48] sm:$0xff] %vm211, %v3135
  %3184 = vst.msk [vmem:[#allocation2 + $0x50] sm:$0xff] %vm211, %v3136
  %3185 = vst.msk [vmem:[#allocation2 + $0x58] sm:$0xff] %vm211, %v3137
  %3186 = vst.msk [vmem:[#allocation2 + $0x60] sm:$0xff] %vm211, %v3138
  %3187 = vst.msk [vmem:[#allocation2 + $0x68] sm:$0xff] %vm211, %v3139
  %3188 = vst.msk [vmem:[#allocation2 + $0x70] sm:$0xff] %vm211, %v3140
  %3189 = vst.msk [vmem:[#allocation2 + $0x78] sm:$0xff] %vm211, %v3141
  %3190 = vst.msk [vmem:[#allocation2 + $0x80] sm:$0xff] %vm211, %v3142
  %3191 = vst.msk [vmem:[#allocation2 + $0x88] sm:$0xff] %vm211, %v3143
  %3192 = vst.msk [vmem:[#allocation2 + $0x90] sm:$0xff] %vm211, %v3144
  %3193 = vst.msk [vmem:[#allocation2 + $0x98] sm:$0xff] %vm211, %v3145
  %3194 = vst.msk [vmem:[#allocation2 + $0xa0] sm:$0xff] %vm211, %v3146
  %3195 = vst.msk [vmem:[#allocation2 + $0xa8] sm:$0xff] %vm211, %v3147
  %3196 = vst.msk [vmem:[#allocation2 + $0xb0] sm:$0xff] %vm211, %v3148
  %3197 = vst.msk [vmem:[#allocation2 + $0xb8] sm:$0xff] %vm211, %v3149
  %3198 = vst.msk [vmem:[#allocation2 + $0xc0] sm:$0xff] %vm211, %v3150
  %3199 = vst.msk [vmem:[#allocation2 + $0xc8] sm:$0xff] %vm211, %v3151
  %3200 = vst.msk [vmem:[#allocation2 + $0xd0] sm:$0xff] %vm211, %v3152
  %3201 = vst.msk [vmem:[#allocation2 + $0xd8] sm:$0xff] %vm211, %v3153
  %3202 = vst.msk [vmem:[#allocation2 + $0xe0] sm:$0xff] %vm211, %v3154
  %3203 = vst.msk [vmem:[#allocation2 + $0xe8] sm:$0xff] %vm211, %v3155
  %3204 = vst.msk [vmem:[#allocation2 + $0xf0] sm:$0xff] %vm211, %v3156
  %3205 = vst.msk [vmem:[#allocation2 + $0xf8] sm:$0xff] %vm211, %v3157
  %3206 = vst.msk [vmem:[#allocation2 + $0x100] sm:$0xff] %vm211, %v3158
  %3207 = vst.msk [vmem:[#allocation2 + $0x108] sm:$0xff] %vm211, %v3159
  %3208 = vst.msk [vmem:[#allocation2 + $0x110] sm:$0xff] %vm211, %v3160
  %3209 = vst.msk [vmem:[#allocation2 + $0x118] sm:$0xff] %vm211, %v3161
  %3210 = vst.msk [vmem:[#allocation2 + $0x120] sm:$0xff] %vm211, %v3162
  %3211 = vst.msk [vmem:[#allocation2 + $0x128] sm:$0xff] %vm211, %v3163
  %3212 = vst.msk [vmem:[#allocation2 + $0x130] sm:$0xff] %vm211, %v3164
  %3213 = vst.msk [vmem:[#allocation2 + $0x138] sm:$0xff] %vm211, %v3165
  %3214 = vst.msk [vmem:[#allocation2 + $0x140] sm:$0xff] %vm211, %v3166
  %3215 = vst.msk [vmem:[#allocation2 + $0x148] sm:$0xff] %vm211, %v3167
  %3216 = vst.msk [vmem:[#allocation2 + $0x150] sm:$0xff] %vm211, %v3168
  %3217 = vst.msk [vmem:[#allocation2 + $0x158] sm:$0xff] %vm211, %v3169
  %3218 = vst.msk [vmem:[#allocation2 + $0x160] sm:$0xff] %vm211, %v3170
  %3219 = vst.msk [vmem:[#allocation2 + $0x168] sm:$0xff] %vm211, %v3171
  %3220 = vst.msk [vmem:[#allocation2 + $0x170] sm:$0xff] %vm211, %v3172
  %3221 = vst.msk [vmem:[#allocation2 + $0x178] sm:$0xff] %vm211, %v3173
  %v3222 = vld [vmem:[#allocation2] sm:$0xff]
  %v3223 = vld [vmem:[#allocation2 + $0x8] sm:$0xff]
  %v3224 = vld [vmem:[#allocation2 + $0x10] sm:$0xff]
  %v3225 = vld [vmem:[#allocation2 + $0x18] sm:$0xff]
  %v3226 = vld [vmem:[#allocation2 + $0x20] sm:$0xff]
  %v3227 = vld [vmem:[#allocation2 + $0x28] sm:$0xff]
  %v3228 = vld [vmem:[#allocation2 + $0x30] sm:$0xff]
  %v3229 = vld [vmem:[#allocation2 + $0x38] sm:$0xff]
  %v3230 = vld [vmem:[#allocation2 + $0x40] sm:$0xff]
  %v3231 = vld [vmem:[#allocation2 + $0x48] sm:$0xff]
  %v3232 = vld [vmem:[#allocation2 + $0x50] sm:$0xff]
  %v3233 = vld [vmem:[#allocation2 + $0x58] sm:$0xff]
  %v3234 = vld [vmem:[#allocation2 + $0x60] sm:$0xff]
  %v3235 = vld [vmem:[#allocation2 + $0x68] sm:$0xff]
  %v3236 = vld [vmem:[#allocation2 + $0x70] sm:$0xff]
  %v3237 = vld [vmem:[#allocation2 + $0x78] sm:$0xff]
  %v3238 = vld [vmem:[#allocation2 + $0x80] sm:$0xff]
  %v3239 = vld [vmem:[#allocation2 + $0x88] sm:$0xff]
  %v3240 = vld [vmem:[#allocation2 + $0x90] sm:$0xff]
  %v3241 = vld [vmem:[#allocation2 + $0x98] sm:$0xff]
  %v3242 = vld [vmem:[#allocation2 + $0xa0] sm:$0xff]
  %v3243 = vld [vmem:[#allocation2 + $0xa8] sm:$0xff]
  %v3244 = vld [vmem:[#allocation2 + $0xb0] sm:$0xff]
  %v3245 = vld [vmem:[#allocation2 + $0xb8] sm:$0xff]
  %v3246 = vld [vmem:[#allocation2 + $0xc0] sm:$0xff]
  %v3247 = vld [vmem:[#allocation2 + $0xc8] sm:$0xff]
  %v3248 = vld [vmem:[#allocation2 + $0xd0] sm:$0xff]
  %v3249 = vld [vmem:[#allocation2 + $0xd8] sm:$0xff]
  %v3250 = vld [vmem:[#allocation2 + $0xe0] sm:$0xff]
  %v3251 = vld [vmem:[#allocation2 + $0xe8] sm:$0xff]
  %v3252 = vld [vmem:[#allocation2 + $0xf0] sm:$0xff]
  %v3253 = vld [vmem:[#allocation2 + $0xf8] sm:$0xff]
  %v3254 = vld [vmem:[#allocation2 + $0x100] sm:$0xff]
  %v3255 = vld [vmem:[#allocation2 + $0x108] sm:$0xff]
  %v3256 = vld [vmem:[#allocation2 + $0x110] sm:$0xff]
  %v3257 = vld [vmem:[#allocation2 + $0x118] sm:$0xff]
  %v3258 = vld [vmem:[#allocation2 + $0x120] sm:$0xff]
  %v3259 = vld [vmem:[#allocation2 + $0x128] sm:$0xff]
  %v3260 = vld [vmem:[#allocation2 + $0x130] sm:$0xff]
  %v3261 = vld [vmem:[#allocation2 + $0x138] sm:$0xff]
  %v3262 = vld [vmem:[#allocation2 + $0x140] sm:$0xff]
  %v3263 = vld [vmem:[#allocation2 + $0x148] sm:$0xff]
  %v3264 = vld [vmem:[#allocation2 + $0x150] sm:$0xff]
  %v3265 = vld [vmem:[#allocation2 + $0x158] sm:$0xff]
  %v3266 = vld [vmem:[#allocation2 + $0x160] sm:$0xff]
  %v3267 = vld [vmem:[#allocation2 + $0x168] sm:$0xff]
  %v3268 = vld [vmem:[#allocation2 + $0x170] sm:$0xff]
  %v3269 = vld [vmem:[#allocation2 + $0x178] sm:$0xff]
  %v3270 = vld [vmem:[%s0 + $0x18] sm:$0xc]
  %v3271 = vld [vmem:[%s0 + $0x1c] sm:$0xf]
  %v3272 = vld [vmem:[%s0 + $0x20] sm:$0xf]
  %v3273 = vld [vmem:[%s0 + $0x24] sm:$0xf]
  %v3274 = vld [vmem:[%s0 + $0x28] sm:$0xf]
  %v3275 = vld [vmem:[%s0 + $0x2c] sm:$0xf]
  %v3276 = vld [vmem:[%s0 + $0x30] sm:$0xf]
  %v3277 = vld [vmem:[%s0 + $0x34] sm:$0xf]
  %v3278 = vld [vmem:[%s0 + $0x38] sm:$0xf]
  %v3279 = vld [vmem:[%s0 + $0x3c] sm:$0xf]
  %v3280 = vld [vmem:[%s0 + $0x40] sm:$0xf]
  %v3281 = vld [vmem:[%s0 + $0x44] sm:$0xf]
  %v3282 = vld [vmem:[%s0 + $0x48] sm:$0xf]
  %v3283 = vld [vmem:[%s0 + $0x4c] sm:$0xf]
  %v3284 = vld [vmem:[%s0 + $0x50] sm:$0xf]
  %v3285 = vld [vmem:[%s0 + $0x54] sm:$0xf]
  %v3286 = vld [vmem:[%s0 + $0x58] sm:$0xf]
  %v3287 = vld [vmem:[%s0 + $0x5c] sm:$0xf]
  %v3288 = vld [vmem:[%s0 + $0x60] sm:$0xf]
  %v3289 = vld [vmem:[%s0 + $0x64] sm:$0xf]
  %v3290 = vld [vmem:[%s0 + $0x68] sm:$0xf]
  %v3291 = vld [vmem:[%s0 + $0x6c] sm:$0xf]
  %v3292 = vld [vmem:[%s0 + $0x70] sm:$0xf]
  %v3293 = vld [vmem:[%s0 + $0x74] sm:$0xf]
  %v3294 = vld [vmem:[%s0 + $0x78] sm:$0xf]
  %v3295 = vld [vmem:[%s0 + $0x7c] sm:$0xf]
  %v3296 = vld [vmem:[%s0 + $0x80] sm:$0xf]
  %v3297 = vld [vmem:[%s0 + $0x84] sm:$0xf]
  %v3298 = vld [vmem:[%s0 + $0x88] sm:$0xf]
  %v3299 = vld [vmem:[%s0 + $0x8c] sm:$0xf]
  %v3300 = vld [vmem:[%s0 + $0x90] sm:$0xf]
  %v3301 = vld [vmem:[%s0 + $0x94] sm:$0xf]
  %v3302 = vld [vmem:[%s0 + $0x98] sm:$0xf]
  %v3303 = vld [vmem:[%s0 + $0x9c] sm:$0xf]
  %v3304 = vld [vmem:[%s0 + $0xa0] sm:$0xf]
  %v3305 = vld [vmem:[%s0 + $0xa4] sm:$0xf]
  %v3306 = vld [vmem:[%s0 + $0xa8] sm:$0xf]
  %v3307 = vld [vmem:[%s0 + $0xac] sm:$0xf]
  %v3308 = vld [vmem:[%s0 + $0xb0] sm:$0xf]
  %v3309 = vld [vmem:[%s0 + $0xb4] sm:$0xf]
  %v3310 = vld [vmem:[%s0 + $0xb8] sm:$0xf]
  %v3311 = vld [vmem:[%s0 + $0xbc] sm:$0xf]
  %v3312 = vld [vmem:[%s0 + $0xc0] sm:$0xf]
  %v3313 = vld [vmem:[%s0 + $0xc4] sm:$0xf]
  %v3314 = vld [vmem:[%s0 + $0xc8] sm:$0xf]
  %v3315 = vld [vmem:[%s0 + $0xcc] sm:$0xf]
  %v3316 = vld [vmem:[%s0 + $0xd0] sm:$0xf]
  %v3317 = vld [vmem:[%s0 + $0xd4] sm:$0xf]
  %v3318 = vld [vmem:[%s0 + $0xd8] sm:$0x3]
  %s3319 = scalar_lea.vmem %s1, 80
  %v3320 = vld [vmem:[%s3319] sm:$0xf]
  %v3321 = vld [vmem:[%s3319 + $0x4] sm:$0xf]
  %v3322 = vld [vmem:[%s3319 + $0x8] sm:$0xf]
  %v3323 = vld [vmem:[%s3319 + $0xc] sm:$0xf]
  %v3373 = vunpack.c.l.b16 %v3270
  %v3374 = vunpack.c.l.b16 %v3271
  %v3375 = vunpack.c.l.b16 %v3272
  %v3376 = vunpack.c.l.b16 %v3273
  %v3377 = vunpack.c.l.b16 %v3274
  %v3378 = vunpack.c.l.b16 %v3275
  %v3379 = vunpack.c.l.b16 %v3276
  %v3380 = vunpack.c.l.b16 %v3277
  %v3381 = vunpack.c.l.b16 %v3278
  %v3382 = vunpack.c.l.b16 %v3279
  %v3383 = vunpack.c.l.b16 %v3280
  %v3384 = vunpack.c.l.b16 %v3281
  %v3385 = vunpack.c.l.b16 %v3282
  %v3386 = vunpack.c.l.b16 %v3283
  %v3387 = vunpack.c.l.b16 %v3284
  %v3388 = vunpack.c.l.b16 %v3285
  %v3389 = vunpack.c.l.b16 %v3286
  %v3390 = vunpack.c.l.b16 %v3287
  %v3391 = vunpack.c.l.b16 %v3288
  %v3392 = vunpack.c.l.b16 %v3289
  %v3393 = vunpack.c.l.b16 %v3290
  %v3394 = vunpack.c.l.b16 %v3291
  %v3395 = vunpack.c.l.b16 %v3292
  %v3396 = vunpack.c.l.b16 %v3293
  %v3397 = vunpack.c.l.b16 %v3294
  %v3398 = vunpack.c.l.b16 %v3295
  %v3399 = vunpack.c.l.b16 %v3296
  %v3400 = vunpack.c.l.b16 %v3297
  %v3401 = vunpack.c.l.b16 %v3298
  %v3402 = vunpack.c.l.b16 %v3299
  %v3403 = vunpack.c.l.b16 %v3300
  %v3404 = vunpack.c.l.b16 %v3301
  %v3405 = vunpack.c.l.b16 %v3302
  %v3406 = vunpack.c.l.b16 %v3303
  %v3407 = vunpack.c.l.b16 %v3304
  %v3408 = vunpack.c.l.b16 %v3305
  %v3409 = vunpack.c.l.b16 %v3306
  %v3410 = vunpack.c.l.b16 %v3307
  %v3411 = vunpack.c.l.b16 %v3308
  %v3412 = vunpack.c.l.b16 %v3309
  %v3413 = vunpack.c.l.b16 %v3310
  %v3414 = vunpack.c.l.b16 %v3311
  %v3415 = vunpack.c.l.b16 %v3312
  %v3416 = vunpack.c.l.b16 %v3313
  %v3417 = vunpack.c.l.b16 %v3314
  %v3418 = vunpack.c.l.b16 %v3315
  %v3419 = vunpack.c.l.b16 %v3316
  %v3420 = vunpack.c.l.b16 %v3317
  %v3421 = vunpack.c.l.b16 %v3318
  %v3422 = vpack.c.b16 %v3374, %v3373
  %v3423 = vpack.c.b16 %v3376, %v3375
  %v3424 = vpack.c.b16 %v3378, %v3377
  %v3425 = vpack.c.b16 %v3380, %v3379
  %v3426 = vpack.c.b16 %v3382, %v3381
  %v3427 = vpack.c.b16 %v3384, %v3383
  %v3428 = vpack.c.b16 %v3386, %v3385
  %v3429 = vpack.c.b16 %v3388, %v3387
  %v3430 = vpack.c.b16 %v3390, %v3389
  %v3431 = vpack.c.b16 %v3392, %v3391
  %v3432 = vpack.c.b16 %v3394, %v3393
  %v3433 = vpack.c.b16 %v3396, %v3395
  %v3434 = vpack.c.b16 %v3398, %v3397
  %v3435 = vpack.c.b16 %v3400, %v3399
  %v3436 = vpack.c.b16 %v3402, %v3401
  %v3437 = vpack.c.b16 %v3404, %v3403
  %v3438 = vpack.c.b16 %v3406, %v3405
  %v3439 = vpack.c.b16 %v3408, %v3407
  %v3440 = vpack.c.b16 %v3410, %v3409
  %v3441 = vpack.c.b16 %v3412, %v3411
  %v3442 = vpack.c.b16 %v3414, %v3413
  %v3443 = vpack.c.b16 %v3416, %v3415
  %v3444 = vpack.c.b16 %v3418, %v3417
  %v3445 = vpack.c.b16 %v3420, %v3419
  %v3446 = vpack.c.b16 %v3421, %v3421
  %v3447 = vrot.slane %v3422, 2
  %v3448 = vrot.slane %v3423, 2
  %v3449 = vsel %vm1462, %v3447, %v3448
  %v3450 = vrot.slane %v3424, 2
  %v3451 = vsel %vm1462, %v3448, %v3450
  %v3452 = vrot.slane %v3425, 2
  %v3453 = vsel %vm1462, %v3450, %v3452
  %v3454 = vrot.slane %v3426, 2
  %v3455 = vsel %vm1462, %v3452, %v3454
  %v3456 = vrot.slane %v3427, 2
  %v3457 = vsel %vm1462, %v3454, %v3456
  %v3458 = vrot.slane %v3428, 2
  %v3459 = vsel %vm1462, %v3456, %v3458
  %v3460 = vrot.slane %v3429, 2
  %v3461 = vsel %vm1462, %v3458, %v3460
  %v3462 = vrot.slane %v3430, 2
  %v3463 = vsel %vm1462, %v3460, %v3462
  %v3464 = vrot.slane %v3431, 2
  %v3465 = vsel %vm1462, %v3462, %v3464
  %v3466 = vrot.slane %v3432, 2
  %v3467 = vsel %vm1462, %v3464, %v3466
  %v3468 = vrot.slane %v3433, 2
  %v3469 = vsel %vm1462, %v3466, %v3468
  %v3470 = vrot.slane %v3434, 2
  %v3471 = vsel %vm1462, %v3468, %v3470
  %v3472 = vrot.slane %v3435, 2
  %v3473 = vsel %vm1462, %v3470, %v3472
  %v3474 = vrot.slane %v3436, 2
  %v3475 = vsel %vm1462, %v3472, %v3474
  %v3476 = vrot.slane %v3437, 2
  %v3477 = vsel %vm1462, %v3474, %v3476
  %v3478 = vrot.slane %v3438, 2
  %v3479 = vsel %vm1462, %v3476, %v3478
  %v3480 = vrot.slane %v3439, 2
  %v3481 = vsel %vm1462, %v3478, %v3480
  %v3482 = vrot.slane %v3440, 2
  %v3483 = vsel %vm1462, %v3480, %v3482
  %v3484 = vrot.slane %v3441, 2
  %v3485 = vsel %vm1462, %v3482, %v3484
  %v3486 = vrot.slane %v3442, 2
  %v3487 = vsel %vm1462, %v3484, %v3486
  %v3488 = vrot.slane %v3443, 2
  %v3489 = vsel %vm1462, %v3486, %v3488
  %v3490 = vrot.slane %v3444, 2
  %v3491 = vsel %vm1462, %v3488, %v3490
  %v3492 = vrot.slane %v3445, 2
  %v3493 = vsel %vm1462, %v3490, %v3492
  %v3494 = vrot.slane %v3446, 2
  %v3495 = vsel %vm1462, %v3492, %v3494
  %v3500 = vunpack.c.l.b16 %v3320
  %v3501 = vunpack.c.l.b16 %v3321
  %v3502 = vunpack.c.l.b16 %v3322
  %v3503 = vunpack.c.l.b16 %v3323
  %v3504 = vpack.c.b16 %v3501, %v3500
  %v3505 = vpack.c.b16 %v3503, %v3502
  %v3509 = vsel %vm211, %v3449, 0
  %v3512 = vsel %vm211, %v3451, 0
  %v3515 = vsel %vm211, %v3453, 0
  %v3518 = vsel %vm211, %v3455, 0
  %v3521 = vsel %vm211, %v3457, 0
  %v3524 = vsel %vm211, %v3459, 0
  %v3527 = vsel %vm211, %v3461, 0
  %v3530 = vsel %vm211, %v3463, 0
  %v3533 = vsel %vm211, %v3465, 0
  %v3536 = vsel %vm211, %v3467, 0
  %v3539 = vsel %vm211, %v3469, 0
  %v3542 = vsel %vm211, %v3471, 0
  %v3545 = vsel %vm211, %v3473, 0
  %v3548 = vsel %vm211, %v3475, 0
  %v3551 = vsel %vm211, %v3477, 0
  %v3554 = vsel %vm211, %v3479, 0
  %v3557 = vsel %vm211, %v3481, 0
  %v3560 = vsel %vm211, %v3483, 0
  %v3563 = vsel %vm211, %v3485, 0
  %v3566 = vsel %vm211, %v3487, 0
  %v3569 = vsel %vm211, %v3489, 0
  %v3572 = vsel %vm211, %v3491, 0
  %v3575 = vsel %vm211, %v3493, 0
  %v3578 = vsel %vm211, %v3495, 0
  %3580 = vmatprep.subr.bf16.mxu0 0
  %3581 = vmatpush1.bf16.msra.mxu0 0
  %3582 = vmatprep.subr.bf16.mxu0 0
  %3583 = vmatpush1.bf16.msra.mxu0 0
  %3584 = vmatprep.subr.bf16.mxu0 0
  %3585 = vmatpush1.bf16.msra.mxu0 0
  %3586 = vmatprep.subr.bf16.mxu0 0
  %3587 = vmatpush1.bf16.msra.mxu0 0
  %3588 = vmatprep.subr.bf16.mxu0 0
  %3589 = vmatpush1.bf16.msra.mxu0 0
  %3590 = vmatprep.subr.bf16.mxu0 0
  %3591 = vmatpush1.bf16.msra.mxu0 0
  %3592 = vmatprep.subr.bf16.mxu0 0
  %3593 = vmatpush1.bf16.msra.mxu0 %v3505
  %3594 = vmatprep.subr.bf16.mxu0 0
  %3595 = vmatpush1.bf16.msra.mxu0 %v3504
  %3596 = vmatprep.subr.bf16.mxu0 0
  %3597 = vmatpush2.bf16.msra.mxu0 0
  %3598 = vmatprep.subr.bf16.mxu0 0
  %3599 = vmatpush2.bf16.msra.mxu0 0
  %3600 = vmatprep.subr.bf16.mxu0 0
  %3601 = vmatpush2.bf16.msra.mxu0 0
  %3602 = vmatprep.subr.bf16.mxu0 0
  %3603 = vmatpush2.bf16.msra.mxu0 0
  %3604 = vmatprep.subr.bf16.mxu0 0
  %3605 = vmatpush2.bf16.msra.mxu0 0
  %3606 = vmatprep.subr.bf16.mxu0 0
  %3607 = vmatpush2.bf16.msra.mxu0 0
  %3608 = vmatprep.subr.bf16.mxu0 0
  %3609 = vmatpush2.bf16.msra.mxu0 0
  %3610 = vmatprep.subr.bf16.mxu0 0
  %3611 = vmatpush2.bf16.msra.mxu0 0
  %3612 = vmatprep.mubr.bf16.mxu0 0
  %3613 = vmatmul.mubr.bf16.gmra.mxu0 %v3509
  %v3614 = vpop.f32.mrf.mxu0
  %v3615 = vadd.f32 0.0, %v3614
  %v3616 = vpop.f32.mrf.mxu0
  %v3617 = vpop.f32.mrf.mxu0
  %v3618 = vadd.f32 0.0, %v3617
  %v3619 = vpop.f32.mrf.mxu0
  %3620 = vmatprep.mubr.bf16.mxu0 0
  %3621 = vmatmul.mubr.bf16.gmra.mxu0 %v3512
  %v3622 = vpop.f32.mrf.mxu0
  %v3623 = vadd.f32 0.0, %v3622
  %v3624 = vpop.f32.mrf.mxu0
  %v3625 = vpop.f32.mrf.mxu0
  %v3626 = vadd.f32 0.0, %v3625
  %v3627 = vpop.f32.mrf.mxu0
  %3628 = vmatprep.mubr.bf16.mxu0 0
  %3629 = vmatmul.mubr.bf16.gmra.mxu0 %v3515
  %v3630 = vpop.f32.mrf.mxu0
  %v3631 = vadd.f32 0.0, %v3630
  %v3632 = vpop.f32.mrf.mxu0
  %v3633 = vpop.f32.mrf.mxu0
  %v3634 = vadd.f32 0.0, %v3633
  %v3635 = vpop.f32.mrf.mxu0
  %3636 = vmatprep.mubr.bf16.mxu0 0
  %3637 = vmatmul.mubr.bf16.gmra.mxu0 %v3518
  %v3638 = vpop.f32.mrf.mxu0
  %v3639 = vadd.f32 0.0, %v3638
  %v3640 = vpop.f32.mrf.mxu0
  %v3641 = vpop.f32.mrf.mxu0
  %v3642 = vadd.f32 0.0, %v3641
  %v3643 = vpop.f32.mrf.mxu0
  %3644 = vmatprep.mubr.bf16.mxu0 0
  %3645 = vmatmul.mubr.bf16.gmra.mxu0 %v3521
  %v3646 = vpop.f32.mrf.mxu0
  %v3647 = vadd.f32 0.0, %v3646
  %v3648 = vpop.f32.mrf.mxu0
  %v3649 = vpop.f32.mrf.mxu0
  %v3650 = vadd.f32 0.0, %v3649
  %v3651 = vpop.f32.mrf.mxu0
  %3652 = vmatprep.mubr.bf16.mxu0 0
  %3653 = vmatmul.mubr.bf16.gmra.mxu0 %v3524
  %v3654 = vpop.f32.mrf.mxu0
  %v3655 = vadd.f32 0.0, %v3654
  %v3656 = vpop.f32.mrf.mxu0
  %v3657 = vpop.f32.mrf.mxu0
  %v3658 = vadd.f32 0.0, %v3657
  %v3659 = vpop.f32.mrf.mxu0
  %3660 = vmatprep.mubr.bf16.mxu0 0
  %3661 = vmatmul.mubr.bf16.gmra.mxu0 %v3527
  %v3662 = vpop.f32.mrf.mxu0
  %v3663 = vadd.f32 0.0, %v3662
  %v3664 = vpop.f32.mrf.mxu0
  %v3665 = vpop.f32.mrf.mxu0
  %v3666 = vadd.f32 0.0, %v3665
  %v3667 = vpop.f32.mrf.mxu0
  %3668 = vmatprep.mubr.bf16.mxu0 0
  %3669 = vmatmul.mubr.bf16.gmra.mxu0 %v3530
  %v3670 = vpop.f32.mrf.mxu0
  %v3671 = vadd.f32 0.0, %v3670
  %v3672 = vpop.f32.mrf.mxu0
  %v3673 = vpop.f32.mrf.mxu0
  %v3674 = vadd.f32 0.0, %v3673
  %v3675 = vpop.f32.mrf.mxu0
  %3676 = vmatprep.mubr.bf16.mxu0 0
  %3677 = vmatmul.mubr.bf16.gmra.mxu0 %v3533
  %v3678 = vpop.f32.mrf.mxu0
  %v3679 = vadd.f32 0.0, %v3678
  %v3680 = vpop.f32.mrf.mxu0
  %v3681 = vpop.f32.mrf.mxu0
  %v3682 = vadd.f32 0.0, %v3681
  %v3683 = vpop.f32.mrf.mxu0
  %3684 = vmatprep.mubr.bf16.mxu0 0
  %3685 = vmatmul.mubr.bf16.gmra.mxu0 %v3536
  %v3686 = vpop.f32.mrf.mxu0
  %v3687 = vadd.f32 0.0, %v3686
  %v3688 = vpop.f32.mrf.mxu0
  %v3689 = vpop.f32.mrf.mxu0
  %v3690 = vadd.f32 0.0, %v3689
  %v3691 = vpop.f32.mrf.mxu0
  %3692 = vmatprep.mubr.bf16.mxu0 0
  %3693 = vmatmul.mubr.bf16.gmra.mxu0 %v3539
  %v3694 = vpop.f32.mrf.mxu0
  %v3695 = vadd.f32 0.0, %v3694
  %v3696 = vpop.f32.mrf.mxu0
  %v3697 = vpop.f32.mrf.mxu0
  %v3698 = vadd.f32 0.0, %v3697
  %v3699 = vpop.f32.mrf.mxu0
  %3700 = vmatprep.mubr.bf16.mxu0 0
  %3701 = vmatmul.mubr.bf16.gmra.mxu0 %v3542
  %v3702 = vpop.f32.mrf.mxu0
  %v3703 = vadd.f32 0.0, %v3702
  %v3704 = vpop.f32.mrf.mxu0
  %v3705 = vpop.f32.mrf.mxu0
  %v3706 = vadd.f32 0.0, %v3705
  %v3707 = vpop.f32.mrf.mxu0
  %3708 = vmatprep.mubr.bf16.mxu0 0
  %3709 = vmatmul.mubr.bf16.gmra.mxu0 %v3545
  %v3710 = vpop.f32.mrf.mxu0
  %v3711 = vadd.f32 0.0, %v3710
  %v3712 = vpop.f32.mrf.mxu0
  %v3713 = vpop.f32.mrf.mxu0
  %v3714 = vadd.f32 0.0, %v3713
  %v3715 = vpop.f32.mrf.mxu0
  %3716 = vmatprep.mubr.bf16.mxu0 0
  %3717 = vmatmul.mubr.bf16.gmra.mxu0 %v3548
  %v3718 = vpop.f32.mrf.mxu0
  %v3719 = vadd.f32 0.0, %v3718
  %v3720 = vpop.f32.mrf.mxu0
  %v3721 = vpop.f32.mrf.mxu0
  %v3722 = vadd.f32 0.0, %v3721
  %v3723 = vpop.f32.mrf.mxu0
  %3724 = vmatprep.mubr.bf16.mxu0 0
  %3725 = vmatmul.mubr.bf16.gmra.mxu0 %v3551
  %v3726 = vpop.f32.mrf.mxu0
  %v3727 = vadd.f32 0.0, %v3726
  %v3728 = vpop.f32.mrf.mxu0
  %v3729 = vpop.f32.mrf.mxu0
  %v3730 = vadd.f32 0.0, %v3729
  %v3731 = vpop.f32.mrf.mxu0
  %3732 = vmatprep.mubr.bf16.mxu0 0
  %3733 = vmatmul.mubr.bf16.gmra.mxu0 %v3554
  %v3734 = vpop.f32.mrf.mxu0
  %v3735 = vadd.f32 0.0, %v3734
  %v3736 = vpop.f32.mrf.mxu0
  %v3737 = vpop.f32.mrf.mxu0
  %v3738 = vadd.f32 0.0, %v3737
  %v3739 = vpop.f32.mrf.mxu0
  %3740 = vmatprep.mubr.bf16.mxu0 0
  %3741 = vmatmul.mubr.bf16.gmra.mxu0 %v3557
  %v3742 = vpop.f32.mrf.mxu0
  %v3743 = vadd.f32 0.0, %v3742
  %v3744 = vpop.f32.mrf.mxu0
  %v3745 = vpop.f32.mrf.mxu0
  %v3746 = vadd.f32 0.0, %v3745
  %v3747 = vpop.f32.mrf.mxu0
  %3748 = vmatprep.mubr.bf16.mxu0 0
  %3749 = vmatmul.mubr.bf16.gmra.mxu0 %v3560
  %v3750 = vpop.f32.mrf.mxu0
  %v3751 = vadd.f32 0.0, %v3750
  %v3752 = vpop.f32.mrf.mxu0
  %v3753 = vpop.f32.mrf.mxu0
  %v3754 = vadd.f32 0.0, %v3753
  %v3755 = vpop.f32.mrf.mxu0
  %3756 = vmatprep.mubr.bf16.mxu0 0
  %3757 = vmatmul.mubr.bf16.gmra.mxu0 %v3563
  %v3758 = vpop.f32.mrf.mxu0
  %v3759 = vadd.f32 0.0, %v3758
  %v3760 = vpop.f32.mrf.mxu0
  %v3761 = vpop.f32.mrf.mxu0
  %v3762 = vadd.f32 0.0, %v3761
  %v3763 = vpop.f32.mrf.mxu0
  %3764 = vmatprep.mubr.bf16.mxu0 0
  %3765 = vmatmul.mubr.bf16.gmra.mxu0 %v3566
  %v3766 = vpop.f32.mrf.mxu0
  %v3767 = vadd.f32 0.0, %v3766
  %v3768 = vpop.f32.mrf.mxu0
  %v3769 = vpop.f32.mrf.mxu0
  %v3770 = vadd.f32 0.0, %v3769
  %v3771 = vpop.f32.mrf.mxu0
  %3772 = vmatprep.mubr.bf16.mxu0 0
  %3773 = vmatmul.mubr.bf16.gmra.mxu0 %v3569
  %v3774 = vpop.f32.mrf.mxu0
  %v3775 = vadd.f32 0.0, %v3774
  %v3776 = vpop.f32.mrf.mxu0
  %v3777 = vpop.f32.mrf.mxu0
  %v3778 = vadd.f32 0.0, %v3777
  %v3779 = vpop.f32.mrf.mxu0
  %3780 = vmatprep.mubr.bf16.mxu0 0
  %3781 = vmatmul.mubr.bf16.gmra.mxu0 %v3572
  %v3782 = vpop.f32.mrf.mxu0
  %v3783 = vadd.f32 0.0, %v3782
  %v3784 = vpop.f32.mrf.mxu0
  %v3785 = vpop.f32.mrf.mxu0
  %v3786 = vadd.f32 0.0, %v3785
  %v3787 = vpop.f32.mrf.mxu0
  %3788 = vmatprep.mubr.bf16.mxu0 0
  %3789 = vmatmul.mubr.bf16.gmra.mxu0 %v3575
  %v3790 = vpop.f32.mrf.mxu0
  %v3791 = vadd.f32 0.0, %v3790
  %v3792 = vpop.f32.mrf.mxu0
  %v3793 = vpop.f32.mrf.mxu0
  %v3794 = vadd.f32 0.0, %v3793
  %v3795 = vpop.f32.mrf.mxu0
  %3796 = vmatprep.mubr.bf16.mxu0 0
  %3797 = vmatmul.mubr.bf16.gmra.mxu0 %v3578
  %v3798 = vpop.f32.mrf.mxu0
  %v3799 = vadd.f32 0.0, %v3798
  %v3800 = vpop.f32.mrf.mxu0
  %v3801 = vpop.f32.mrf.mxu0
  %v3802 = vadd.f32 0.0, %v3801
  %v3803 = vpop.f32.mrf.mxu0
  %3804 = vdwg.mxu0
  %v3805 = vadd.f32 %v3222, %v3615
  %v3806 = vadd.f32 %v3223, %v3618
  %v3807 = vadd.f32 %v3224, %v3623
  %v3808 = vadd.f32 %v3225, %v3626
  %v3809 = vadd.f32 %v3226, %v3631
  %v3810 = vadd.f32 %v3227, %v3634
  %v3811 = vadd.f32 %v3228, %v3639
  %v3812 = vadd.f32 %v3229, %v3642
  %v3813 = vadd.f32 %v3230, %v3647
  %v3814 = vadd.f32 %v3231, %v3650
  %v3815 = vadd.f32 %v3232, %v3655
  %v3816 = vadd.f32 %v3233, %v3658
  %v3817 = vadd.f32 %v3234, %v3663
  %v3818 = vadd.f32 %v3235, %v3666
  %v3819 = vadd.f32 %v3236, %v3671
  %v3820 = vadd.f32 %v3237, %v3674
  %v3821 = vadd.f32 %v3238, %v3679
  %v3822 = vadd.f32 %v3239, %v3682
  %v3823 = vadd.f32 %v3240, %v3687
  %v3824 = vadd.f32 %v3241, %v3690
  %v3825 = vadd.f32 %v3242, %v3695
  %v3826 = vadd.f32 %v3243, %v3698
  %v3827 = vadd.f32 %v3244, %v3703
  %v3828 = vadd.f32 %v3245, %v3706
  %v3829 = vadd.f32 %v3246, %v3711
  %v3830 = vadd.f32 %v3247, %v3714
  %v3831 = vadd.f32 %v3248, %v3719
  %v3832 = vadd.f32 %v3249, %v3722
  %v3833 = vadd.f32 %v3250, %v3727
  %v3834 = vadd.f32 %v3251, %v3730
  %v3835 = vadd.f32 %v3252, %v3735
  %v3836 = vadd.f32 %v3253, %v3738
  %v3837 = vadd.f32 %v3254, %v3743
  %v3838 = vadd.f32 %v3255, %v3746
  %v3839 = vadd.f32 %v3256, %v3751
  %v3840 = vadd.f32 %v3257, %v3754
  %v3841 = vadd.f32 %v3258, %v3759
  %v3842 = vadd.f32 %v3259, %v3762
  %v3843 = vadd.f32 %v3260, %v3767
  %v3844 = vadd.f32 %v3261, %v3770
  %v3845 = vadd.f32 %v3262, %v3775
  %v3846 = vadd.f32 %v3263, %v3778
  %v3847 = vadd.f32 %v3264, %v3783
  %v3848 = vadd.f32 %v3265, %v3786
  %v3849 = vadd.f32 %v3266, %v3791
  %v3850 = vadd.f32 %v3267, %v3794
  %v3851 = vadd.f32 %v3268, %v3799
  %v3852 = vadd.f32 %v3269, %v3802
  %3853 = vst.msk [vmem:[#allocation2] sm:$0xff] %vm211, %v3805
  %3854 = vst.msk [vmem:[#allocation2 + $0x8] sm:$0xff] %vm211, %v3806
  %3855 = vst.msk [vmem:[#allocation2 + $0x10] sm:$0xff] %vm211, %v3807
  %3856 = vst.msk [vmem:[#allocation2 + $0x18] sm:$0xff] %vm211, %v3808
  %3857 = vst.msk [vmem:[#allocation2 + $0x20] sm:$0xff] %vm211, %v3809
  %3858 = vst.msk [vmem:[#allocation2 + $0x28] sm:$0xff] %vm211, %v3810
  %3859 = vst.msk [vmem:[#allocation2 + $0x30] sm:$0xff] %vm211, %v3811
  %3860 = vst.msk [vmem:[#allocation2 + $0x38] sm:$0xff] %vm211, %v3812
  %3861 = vst.msk [vmem:[#allocation2 + $0x40] sm:$0xff] %vm211, %v3813
  %3862 = vst.msk [vmem:[#allocation2 + $0x48] sm:$0xff] %vm211, %v3814
  %3863 = vst.msk [vmem:[#allocation2 + $0x50] sm:$0xff] %vm211, %v3815
  %3864 = vst.msk [vmem:[#allocation2 + $0x58] sm:$0xff] %vm211, %v3816
  %3865 = vst.msk [vmem:[#allocation2 + $0x60] sm:$0xff] %vm211, %v3817
  %3866 = vst.msk [vmem:[#allocation2 + $0x68] sm:$0xff] %vm211, %v3818
  %3867 = vst.msk [vmem:[#allocation2 + $0x70] sm:$0xff] %vm211, %v3819
  %3868 = vst.msk [vmem:[#allocation2 + $0x78] sm:$0xff] %vm211, %v3820
  %3869 = vst.msk [vmem:[#allocation2 + $0x80] sm:$0xff] %vm211, %v3821
  %3870 = vst.msk [vmem:[#allocation2 + $0x88] sm:$0xff] %vm211, %v3822
  %3871 = vst.msk [vmem:[#allocation2 + $0x90] sm:$0xff] %vm211, %v3823
  %3872 = vst.msk [vmem:[#allocation2 + $0x98] sm:$0xff] %vm211, %v3824
  %3873 = vst.msk [vmem:[#allocation2 + $0xa0] sm:$0xff] %vm211, %v3825
  %3874 = vst.msk [vmem:[#allocation2 + $0xa8] sm:$0xff] %vm211, %v3826
  %3875 = vst.msk [vmem:[#allocation2 + $0xb0] sm:$0xff] %vm211, %v3827
  %3876 = vst.msk [vmem:[#allocation2 + $0xb8] sm:$0xff] %vm211, %v3828
  %3877 = vst.msk [vmem:[#allocation2 + $0xc0] sm:$0xff] %vm211, %v3829
  %3878 = vst.msk [vmem:[#allocation2 + $0xc8] sm:$0xff] %vm211, %v3830
  %3879 = vst.msk [vmem:[#allocation2 + $0xd0] sm:$0xff] %vm211, %v3831
  %3880 = vst.msk [vmem:[#allocation2 + $0xd8] sm:$0xff] %vm211, %v3832
  %3881 = vst.msk [vmem:[#allocation2 + $0xe0] sm:$0xff] %vm211, %v3833
  %3882 = vst.msk [vmem:[#allocation2 + $0xe8] sm:$0xff] %vm211, %v3834
  %3883 = vst.msk [vmem:[#allocation2 + $0xf0] sm:$0xff] %vm211, %v3835
  %3884 = vst.msk [vmem:[#allocation2 + $0xf8] sm:$0xff] %vm211, %v3836
  %3885 = vst.msk [vmem:[#allocation2 + $0x100] sm:$0xff] %vm211, %v3837
  %3886 = vst.msk [vmem:[#allocation2 + $0x108] sm:$0xff] %vm211, %v3838
  %3887 = vst.msk [vmem:[#allocation2 + $0x110] sm:$0xff] %vm211, %v3839
  %3888 = vst.msk [vmem:[#allocation2 + $0x118] sm:$0xff] %vm211, %v3840
  %3889 = vst.msk [vmem:[#allocation2 + $0x120] sm:$0xff] %vm211, %v3841
  %3890 = vst.msk [vmem:[#allocation2 + $0x128] sm:$0xff] %vm211, %v3842
  %3891 = vst.msk [vmem:[#allocation2 + $0x130] sm:$0xff] %vm211, %v3843
  %3892 = vst.msk [vmem:[#allocation2 + $0x138] sm:$0xff] %vm211, %v3844
  %3893 = vst.msk [vmem:[#allocation2 + $0x140] sm:$0xff] %vm211, %v3845
  %3894 = vst.msk [vmem:[#allocation2 + $0x148] sm:$0xff] %vm211, %v3846
  %3895 = vst.msk [vmem:[#allocation2 + $0x150] sm:$0xff] %vm211, %v3847
  %3896 = vst.msk [vmem:[#allocation2 + $0x158] sm:$0xff] %vm211, %v3848
  %3897 = vst.msk [vmem:[#allocation2 + $0x160] sm:$0xff] %vm211, %v3849
  %3898 = vst.msk [vmem:[#allocation2 + $0x168] sm:$0xff] %vm211, %v3850
  %3899 = vst.msk [vmem:[#allocation2 + $0x170] sm:$0xff] %vm211, %v3851
  %3900 = vst.msk [vmem:[#allocation2 + $0x178] sm:$0xff] %vm211, %v3852
  %v3901 = vld [vmem:[#allocation2] sm:$0xff]
  %v3902 = vld [vmem:[#allocation2 + $0x8] sm:$0xff]
  %v3903 = vld [vmem:[#allocation2 + $0x10] sm:$0xff]
  %v3904 = vld [vmem:[#allocation2 + $0x18] sm:$0xff]
  %v3905 = vld [vmem:[#allocation2 + $0x20] sm:$0xff]
  %v3906 = vld [vmem:[#allocation2 + $0x28] sm:$0xff]
  %v3907 = vld [vmem:[#allocation2 + $0x30] sm:$0xff]
  %v3908 = vld [vmem:[#allocation2 + $0x38] sm:$0xff]
  %v3909 = vld [vmem:[#allocation2 + $0x40] sm:$0xff]
  %v3910 = vld [vmem:[#allocation2 + $0x48] sm:$0xff]
  %v3911 = vld [vmem:[#allocation2 + $0x50] sm:$0xff]
  %v3912 = vld [vmem:[#allocation2 + $0x58] sm:$0xff]
  %v3913 = vld [vmem:[#allocation2 + $0x60] sm:$0xff]
  %v3914 = vld [vmem:[#allocation2 + $0x68] sm:$0xff]
  %v3915 = vld [vmem:[#allocation2 + $0x70] sm:$0xff]
  %v3916 = vld [vmem:[#allocation2 + $0x78] sm:$0xff]
  %v3917 = vld [vmem:[#allocation2 + $0x80] sm:$0xff]
  %v3918 = vld [vmem:[#allocation2 + $0x88] sm:$0xff]
  %v3919 = vld [vmem:[#allocation2 + $0x90] sm:$0xff]
  %v3920 = vld [vmem:[#allocation2 + $0x98] sm:$0xff]
  %v3921 = vld [vmem:[#allocation2 + $0xa0] sm:$0xff]
  %v3922 = vld [vmem:[#allocation2 + $0xa8] sm:$0xff]
  %v3923 = vld [vmem:[#allocation2 + $0xb0] sm:$0xff]
  %v3924 = vld [vmem:[#allocation2 + $0xb8] sm:$0xff]
  %v3925 = vld [vmem:[#allocation2 + $0xc0] sm:$0xff]
  %v3926 = vld [vmem:[#allocation2 + $0xc8] sm:$0xff]
  %v3927 = vld [vmem:[#allocation2 + $0xd0] sm:$0xff]
  %v3928 = vld [vmem:[#allocation2 + $0xd8] sm:$0xff]
  %v3929 = vld [vmem:[#allocation2 + $0xe0] sm:$0xff]
  %v3930 = vld [vmem:[#allocation2 + $0xe8] sm:$0xff]
  %v3931 = vld [vmem:[#allocation2 + $0xf0] sm:$0xff]
  %v3932 = vld [vmem:[#allocation2 + $0xf8] sm:$0xff]
  %v3933 = vld [vmem:[#allocation2 + $0x100] sm:$0xff]
  %v3934 = vld [vmem:[#allocation2 + $0x108] sm:$0xff]
  %v3935 = vld [vmem:[#allocation2 + $0x110] sm:$0xff]
  %v3936 = vld [vmem:[#allocation2 + $0x118] sm:$0xff]
  %v3937 = vld [vmem:[#allocation2 + $0x120] sm:$0xff]
  %v3938 = vld [vmem:[#allocation2 + $0x128] sm:$0xff]
  %v3939 = vld [vmem:[#allocation2 + $0x130] sm:$0xff]
  %v3940 = vld [vmem:[#allocation2 + $0x138] sm:$0xff]
  %v3941 = vld [vmem:[#allocation2 + $0x140] sm:$0xff]
  %v3942 = vld [vmem:[#allocation2 + $0x148] sm:$0xff]
  %v3943 = vld [vmem:[#allocation2 + $0x150] sm:$0xff]
  %v3944 = vld [vmem:[#allocation2 + $0x158] sm:$0xff]
  %v3945 = vld [vmem:[#allocation2 + $0x160] sm:$0xff]
  %v3946 = vld [vmem:[#allocation2 + $0x168] sm:$0xff]
  %v3947 = vld [vmem:[#allocation2 + $0x170] sm:$0xff]
  %v3948 = vld [vmem:[#allocation2 + $0x178] sm:$0xff]
  %v3949 = vld [vmem:[%s0 + $0x30] sm:$0xf]
  %v3950 = vld [vmem:[%s0 + $0x34] sm:$0xf]
  %v3951 = vld [vmem:[%s0 + $0x38] sm:$0xf]
  %v3952 = vld [vmem:[%s0 + $0x3c] sm:$0xf]
  %v3953 = vld [vmem:[%s0 + $0x40] sm:$0xf]
  %v3954 = vld [vmem:[%s0 + $0x44] sm:$0xf]
  %v3955 = vld [vmem:[%s0 + $0x48] sm:$0xf]
  %v3956 = vld [vmem:[%s0 + $0x4c] sm:$0xf]
  %v3957 = vld [vmem:[%s0 + $0x50] sm:$0xf]
  %v3958 = vld [vmem:[%s0 + $0x54] sm:$0xf]
  %v3959 = vld [vmem:[%s0 + $0x58] sm:$0xf]
  %v3960 = vld [vmem:[%s0 + $0x5c] sm:$0xf]
  %v3961 = vld [vmem:[%s0 + $0x60] sm:$0xf]
  %v3962 = vld [vmem:[%s0 + $0x64] sm:$0xf]
  %v3963 = vld [vmem:[%s0 + $0x68] sm:$0xf]
  %v3964 = vld [vmem:[%s0 + $0x6c] sm:$0xf]
  %v3965 = vld [vmem:[%s0 + $0x70] sm:$0xf]
  %v3966 = vld [vmem:[%s0 + $0x74] sm:$0xf]
  %v3967 = vld [vmem:[%s0 + $0x78] sm:$0xf]
  %v3968 = vld [vmem:[%s0 + $0x7c] sm:$0xf]
  %v3969 = vld [vmem:[%s0 + $0x80] sm:$0xf]
  %v3970 = vld [vmem:[%s0 + $0x84] sm:$0xf]
  %v3971 = vld [vmem:[%s0 + $0x88] sm:$0xf]
  %v3972 = vld [vmem:[%s0 + $0x8c] sm:$0xf]
  %v3973 = vld [vmem:[%s0 + $0x90] sm:$0xf]
  %v3974 = vld [vmem:[%s0 + $0x94] sm:$0xf]
  %v3975 = vld [vmem:[%s0 + $0x98] sm:$0xf]
  %v3976 = vld [vmem:[%s0 + $0x9c] sm:$0xf]
  %v3977 = vld [vmem:[%s0 + $0xa0] sm:$0xf]
  %v3978 = vld [vmem:[%s0 + $0xa4] sm:$0xf]
  %v3979 = vld [vmem:[%s0 + $0xa8] sm:$0xf]
  %v3980 = vld [vmem:[%s0 + $0xac] sm:$0xf]
  %v3981 = vld [vmem:[%s0 + $0xb0] sm:$0xf]
  %v3982 = vld [vmem:[%s0 + $0xb4] sm:$0xf]
  %v3983 = vld [vmem:[%s0 + $0xb8] sm:$0xf]
  %v3984 = vld [vmem:[%s0 + $0xbc] sm:$0xf]
  %v3985 = vld [vmem:[%s0 + $0xc0] sm:$0xf]
  %v3986 = vld [vmem:[%s0 + $0xc4] sm:$0xf]
  %v3987 = vld [vmem:[%s0 + $0xc8] sm:$0xf]
  %v3988 = vld [vmem:[%s0 + $0xcc] sm:$0xf]
  %v3989 = vld [vmem:[%s0 + $0xd0] sm:$0xf]
  %v3990 = vld [vmem:[%s0 + $0xd4] sm:$0xf]
  %v3991 = vld [vmem:[%s0 + $0xd8] sm:$0xf]
  %v3992 = vld [vmem:[%s0 + $0xdc] sm:$0xf]
  %v3993 = vld [vmem:[%s0 + $0xe0] sm:$0xf]
  %v3994 = vld [vmem:[%s0 + $0xe4] sm:$0xf]
  %v3995 = vld [vmem:[%s0 + $0xe8] sm:$0xf]
  %v3996 = vld [vmem:[%s0 + $0xec] sm:$0xf]
  %s3997 = scalar_lea.vmem %s1, 96
  %v3998 = vld [vmem:[%s3997] sm:$0xf]
  %v3999 = vld [vmem:[%s3997 + $0x4] sm:$0xf]
  %v4000 = vld [vmem:[%s3997 + $0x8] sm:$0xf]
  %v4001 = vld [vmem:[%s3997 + $0xc] sm:$0xf]
  %v4050 = vunpack.c.l.b16 %v3949
  %v4051 = vunpack.c.l.b16 %v3950
  %v4052 = vunpack.c.l.b16 %v3951
  %v4053 = vunpack.c.l.b16 %v3952
  %v4054 = vunpack.c.l.b16 %v3953
  %v4055 = vunpack.c.l.b16 %v3954
  %v4056 = vunpack.c.l.b16 %v3955
  %v4057 = vunpack.c.l.b16 %v3956
  %v4058 = vunpack.c.l.b16 %v3957
  %v4059 = vunpack.c.l.b16 %v3958
  %v4060 = vunpack.c.l.b16 %v3959
  %v4061 = vunpack.c.l.b16 %v3960
  %v4062 = vunpack.c.l.b16 %v3961
  %v4063 = vunpack.c.l.b16 %v3962
  %v4064 = vunpack.c.l.b16 %v3963
  %v4065 = vunpack.c.l.b16 %v3964
  %v4066 = vunpack.c.l.b16 %v3965
  %v4067 = vunpack.c.l.b16 %v3966
  %v4068 = vunpack.c.l.b16 %v3967
  %v4069 = vunpack.c.l.b16 %v3968
  %v4070 = vunpack.c.l.b16 %v3969
  %v4071 = vunpack.c.l.b16 %v3970
  %v4072 = vunpack.c.l.b16 %v3971
  %v4073 = vunpack.c.l.b16 %v3972
  %v4074 = vunpack.c.l.b16 %v3973
  %v4075 = vunpack.c.l.b16 %v3974
  %v4076 = vunpack.c.l.b16 %v3975
  %v4077 = vunpack.c.l.b16 %v3976
  %v4078 = vunpack.c.l.b16 %v3977
  %v4079 = vunpack.c.l.b16 %v3978
  %v4080 = vunpack.c.l.b16 %v3979
  %v4081 = vunpack.c.l.b16 %v3980
  %v4082 = vunpack.c.l.b16 %v3981
  %v4083 = vunpack.c.l.b16 %v3982
  %v4084 = vunpack.c.l.b16 %v3983
  %v4085 = vunpack.c.l.b16 %v3984
  %v4086 = vunpack.c.l.b16 %v3985
  %v4087 = vunpack.c.l.b16 %v3986
  %v4088 = vunpack.c.l.b16 %v3987
  %v4089 = vunpack.c.l.b16 %v3988
  %v4090 = vunpack.c.l.b16 %v3989
  %v4091 = vunpack.c.l.b16 %v3990
  %v4092 = vunpack.c.l.b16 %v3991
  %v4093 = vunpack.c.l.b16 %v3992
  %v4094 = vunpack.c.l.b16 %v3993
  %v4095 = vunpack.c.l.b16 %v3994
  %v4096 = vunpack.c.l.b16 %v3995
  %v4097 = vunpack.c.l.b16 %v3996
  %v4098 = vpack.c.b16 %v4051, %v4050
  %v4099 = vpack.c.b16 %v4053, %v4052
  %v4100 = vpack.c.b16 %v4055, %v4054
  %v4101 = vpack.c.b16 %v4057, %v4056
  %v4102 = vpack.c.b16 %v4059, %v4058
  %v4103 = vpack.c.b16 %v4061, %v4060
  %v4104 = vpack.c.b16 %v4063, %v4062
  %v4105 = vpack.c.b16 %v4065, %v4064
  %v4106 = vpack.c.b16 %v4067, %v4066
  %v4107 = vpack.c.b16 %v4069, %v4068
  %v4108 = vpack.c.b16 %v4071, %v4070
  %v4109 = vpack.c.b16 %v4073, %v4072
  %v4110 = vpack.c.b16 %v4075, %v4074
  %v4111 = vpack.c.b16 %v4077, %v4076
  %v4112 = vpack.c.b16 %v4079, %v4078
  %v4113 = vpack.c.b16 %v4081, %v4080
  %v4114 = vpack.c.b16 %v4083, %v4082
  %v4115 = vpack.c.b16 %v4085, %v4084
  %v4116 = vpack.c.b16 %v4087, %v4086
  %v4117 = vpack.c.b16 %v4089, %v4088
  %v4118 = vpack.c.b16 %v4091, %v4090
  %v4119 = vpack.c.b16 %v4093, %v4092
  %v4120 = vpack.c.b16 %v4095, %v4094
  %v4121 = vpack.c.b16 %v4097, %v4096
  %v4126 = vunpack.c.l.b16 %v3998
  %v4127 = vunpack.c.l.b16 %v3999
  %v4128 = vunpack.c.l.b16 %v4000
  %v4129 = vunpack.c.l.b16 %v4001
  %v4130 = vpack.c.b16 %v4127, %v4126
  %v4131 = vpack.c.b16 %v4129, %v4128
  %v4135 = vsel %vm211, %v4098, 0
  %v4138 = vsel %vm211, %v4099, 0
  %v4141 = vsel %vm211, %v4100, 0
  %v4144 = vsel %vm211, %v4101, 0
  %v4147 = vsel %vm211, %v4102, 0
  %v4150 = vsel %vm211, %v4103, 0
  %v4153 = vsel %vm211, %v4104, 0
  %v4156 = vsel %vm211, %v4105, 0
  %v4159 = vsel %vm211, %v4106, 0
  %v4162 = vsel %vm211, %v4107, 0
  %v4165 = vsel %vm211, %v4108, 0
  %v4168 = vsel %vm211, %v4109, 0
  %v4171 = vsel %vm211, %v4110, 0
  %v4174 = vsel %vm211, %v4111, 0
  %v4177 = vsel %vm211, %v4112, 0
  %v4180 = vsel %vm211, %v4113, 0
  %v4183 = vsel %vm211, %v4114, 0
  %v4186 = vsel %vm211, %v4115, 0
  %v4189 = vsel %vm211, %v4116, 0
  %v4192 = vsel %vm211, %v4117, 0
  %v4195 = vsel %vm211, %v4118, 0
  %v4198 = vsel %vm211, %v4119, 0
  %v4201 = vsel %vm211, %v4120, 0
  %v4204 = vsel %vm211, %v4121, 0
  %4206 = vmatprep.subr.bf16.mxu0 0
  %4207 = vmatpush1.bf16.msra.mxu0 0
  %4208 = vmatprep.subr.bf16.mxu0 0
  %4209 = vmatpush1.bf16.msra.mxu0 0
  %4210 = vmatprep.subr.bf16.mxu0 0
  %4211 = vmatpush1.bf16.msra.mxu0 0
  %4212 = vmatprep.subr.bf16.mxu0 0
  %4213 = vmatpush1.bf16.msra.mxu0 0
  %4214 = vmatprep.subr.bf16.mxu0 0
  %4215 = vmatpush1.bf16.msra.mxu0 0
  %4216 = vmatprep.subr.bf16.mxu0 0
  %4217 = vmatpush1.bf16.msra.mxu0 0
  %4218 = vmatprep.subr.bf16.mxu0 0
  %4219 = vmatpush1.bf16.msra.mxu0 %v4131
  %4220 = vmatprep.subr.bf16.mxu0 0
  %4221 = vmatpush1.bf16.msra.mxu0 %v4130
  %4222 = vmatprep.subr.bf16.mxu0 0
  %4223 = vmatpush2.bf16.msra.mxu0 0
  %4224 = vmatprep.subr.bf16.mxu0 0
  %4225 = vmatpush2.bf16.msra.mxu0 0
  %4226 = vmatprep.subr.bf16.mxu0 0
  %4227 = vmatpush2.bf16.msra.mxu0 0
  %4228 = vmatprep.subr.bf16.mxu0 0
  %4229 = vmatpush2.bf16.msra.mxu0 0
  %4230 = vmatprep.subr.bf16.mxu0 0
  %4231 = vmatpush2.bf16.msra.mxu0 0
  %4232 = vmatprep.subr.bf16.mxu0 0
  %4233 = vmatpush2.bf16.msra.mxu0 0
  %4234 = vmatprep.subr.bf16.mxu0 0
  %4235 = vmatpush2.bf16.msra.mxu0 0
  %4236 = vmatprep.subr.bf16.mxu0 0
  %4237 = vmatpush2.bf16.msra.mxu0 0
  %4238 = vmatprep.mubr.bf16.mxu0 0
  %4239 = vmatmul.mubr.bf16.gmra.mxu0 %v4135
  %v4240 = vpop.f32.mrf.mxu0
  %v4241 = vadd.f32 0.0, %v4240
  %v4242 = vpop.f32.mrf.mxu0
  %v4243 = vpop.f32.mrf.mxu0
  %v4244 = vadd.f32 0.0, %v4243
  %v4245 = vpop.f32.mrf.mxu0
  %4246 = vmatprep.mubr.bf16.mxu0 0
  %4247 = vmatmul.mubr.bf16.gmra.mxu0 %v4138
  %v4248 = vpop.f32.mrf.mxu0
  %v4249 = vadd.f32 0.0, %v4248
  %v4250 = vpop.f32.mrf.mxu0
  %v4251 = vpop.f32.mrf.mxu0
  %v4252 = vadd.f32 0.0, %v4251
  %v4253 = vpop.f32.mrf.mxu0
  %4254 = vmatprep.mubr.bf16.mxu0 0
  %4255 = vmatmul.mubr.bf16.gmra.mxu0 %v4141
  %v4256 = vpop.f32.mrf.mxu0
  %v4257 = vadd.f32 0.0, %v4256
  %v4258 = vpop.f32.mrf.mxu0
  %v4259 = vpop.f32.mrf.mxu0
  %v4260 = vadd.f32 0.0, %v4259
  %v4261 = vpop.f32.mrf.mxu0
  %4262 = vmatprep.mubr.bf16.mxu0 0
  %4263 = vmatmul.mubr.bf16.gmra.mxu0 %v4144
  %v4264 = vpop.f32.mrf.mxu0
  %v4265 = vadd.f32 0.0, %v4264
  %v4266 = vpop.f32.mrf.mxu0
  %v4267 = vpop.f32.mrf.mxu0
  %v4268 = vadd.f32 0.0, %v4267
  %v4269 = vpop.f32.mrf.mxu0
  %4270 = vmatprep.mubr.bf16.mxu0 0
  %4271 = vmatmul.mubr.bf16.gmra.mxu0 %v4147
  %v4272 = vpop.f32.mrf.mxu0
  %v4273 = vadd.f32 0.0, %v4272
  %v4274 = vpop.f32.mrf.mxu0
  %v4275 = vpop.f32.mrf.mxu0
  %v4276 = vadd.f32 0.0, %v4275
  %v4277 = vpop.f32.mrf.mxu0
  %4278 = vmatprep.mubr.bf16.mxu0 0
  %4279 = vmatmul.mubr.bf16.gmra.mxu0 %v4150
  %v4280 = vpop.f32.mrf.mxu0
  %v4281 = vadd.f32 0.0, %v4280
  %v4282 = vpop.f32.mrf.mxu0
  %v4283 = vpop.f32.mrf.mxu0
  %v4284 = vadd.f32 0.0, %v4283
  %v4285 = vpop.f32.mrf.mxu0
  %4286 = vmatprep.mubr.bf16.mxu0 0
  %4287 = vmatmul.mubr.bf16.gmra.mxu0 %v4153
  %v4288 = vpop.f32.mrf.mxu0
  %v4289 = vadd.f32 0.0, %v4288
  %v4290 = vpop.f32.mrf.mxu0
  %v4291 = vpop.f32.mrf.mxu0
  %v4292 = vadd.f32 0.0, %v4291
  %v4293 = vpop.f32.mrf.mxu0
  %4294 = vmatprep.mubr.bf16.mxu0 0
  %4295 = vmatmul.mubr.bf16.gmra.mxu0 %v4156
  %v4296 = vpop.f32.mrf.mxu0
  %v4297 = vadd.f32 0.0, %v4296
  %v4298 = vpop.f32.mrf.mxu0
  %v4299 = vpop.f32.mrf.mxu0
  %v4300 = vadd.f32 0.0, %v4299
  %v4301 = vpop.f32.mrf.mxu0
  %4302 = vmatprep.mubr.bf16.mxu0 0
  %4303 = vmatmul.mubr.bf16.gmra.mxu0 %v4159
  %v4304 = vpop.f32.mrf.mxu0
  %v4305 = vadd.f32 0.0, %v4304
  %v4306 = vpop.f32.mrf.mxu0
  %v4307 = vpop.f32.mrf.mxu0
  %v4308 = vadd.f32 0.0, %v4307
  %v4309 = vpop.f32.mrf.mxu0
  %4310 = vmatprep.mubr.bf16.mxu0 0
  %4311 = vmatmul.mubr.bf16.gmra.mxu0 %v4162
  %v4312 = vpop.f32.mrf.mxu0
  %v4313 = vadd.f32 0.0, %v4312
  %v4314 = vpop.f32.mrf.mxu0
  %v4315 = vpop.f32.mrf.mxu0
  %v4316 = vadd.f32 0.0, %v4315
  %v4317 = vpop.f32.mrf.mxu0
  %4318 = vmatprep.mubr.bf16.mxu0 0
  %4319 = vmatmul.mubr.bf16.gmra.mxu0 %v4165
  %v4320 = vpop.f32.mrf.mxu0
  %v4321 = vadd.f32 0.0, %v4320
  %v4322 = vpop.f32.mrf.mxu0
  %v4323 = vpop.f32.mrf.mxu0
  %v4324 = vadd.f32 0.0, %v4323
  %v4325 = vpop.f32.mrf.mxu0
  %4326 = vmatprep.mubr.bf16.mxu0 0
  %4327 = vmatmul.mubr.bf16.gmra.mxu0 %v4168
  %v4328 = vpop.f32.mrf.mxu0
  %v4329 = vadd.f32 0.0, %v4328
  %v4330 = vpop.f32.mrf.mxu0
  %v4331 = vpop.f32.mrf.mxu0
  %v4332 = vadd.f32 0.0, %v4331
  %v4333 = vpop.f32.mrf.mxu0
  %4334 = vmatprep.mubr.bf16.mxu0 0
  %4335 = vmatmul.mubr.bf16.gmra.mxu0 %v4171
  %v4336 = vpop.f32.mrf.mxu0
  %v4337 = vadd.f32 0.0, %v4336
  %v4338 = vpop.f32.mrf.mxu0
  %v4339 = vpop.f32.mrf.mxu0
  %v4340 = vadd.f32 0.0, %v4339
  %v4341 = vpop.f32.mrf.mxu0
  %4342 = vmatprep.mubr.bf16.mxu0 0
  %4343 = vmatmul.mubr.bf16.gmra.mxu0 %v4174
  %v4344 = vpop.f32.mrf.mxu0
  %v4345 = vadd.f32 0.0, %v4344
  %v4346 = vpop.f32.mrf.mxu0
  %v4347 = vpop.f32.mrf.mxu0
  %v4348 = vadd.f32 0.0, %v4347
  %v4349 = vpop.f32.mrf.mxu0
  %4350 = vmatprep.mubr.bf16.mxu0 0
  %4351 = vmatmul.mubr.bf16.gmra.mxu0 %v4177
  %v4352 = vpop.f32.mrf.mxu0
  %v4353 = vadd.f32 0.0, %v4352
  %v4354 = vpop.f32.mrf.mxu0
  %v4355 = vpop.f32.mrf.mxu0
  %v4356 = vadd.f32 0.0, %v4355
  %v4357 = vpop.f32.mrf.mxu0
  %4358 = vmatprep.mubr.bf16.mxu0 0
  %4359 = vmatmul.mubr.bf16.gmra.mxu0 %v4180
  %v4360 = vpop.f32.mrf.mxu0
  %v4361 = vadd.f32 0.0, %v4360
  %v4362 = vpop.f32.mrf.mxu0
  %v4363 = vpop.f32.mrf.mxu0
  %v4364 = vadd.f32 0.0, %v4363
  %v4365 = vpop.f32.mrf.mxu0
  %4366 = vmatprep.mubr.bf16.mxu0 0
  %4367 = vmatmul.mubr.bf16.gmra.mxu0 %v4183
  %v4368 = vpop.f32.mrf.mxu0
  %v4369 = vadd.f32 0.0, %v4368
  %v4370 = vpop.f32.mrf.mxu0
  %v4371 = vpop.f32.mrf.mxu0
  %v4372 = vadd.f32 0.0, %v4371
  %v4373 = vpop.f32.mrf.mxu0
  %4374 = vmatprep.mubr.bf16.mxu0 0
  %4375 = vmatmul.mubr.bf16.gmra.mxu0 %v4186
  %v4376 = vpop.f32.mrf.mxu0
  %v4377 = vadd.f32 0.0, %v4376
  %v4378 = vpop.f32.mrf.mxu0
  %v4379 = vpop.f32.mrf.mxu0
  %v4380 = vadd.f32 0.0, %v4379
  %v4381 = vpop.f32.mrf.mxu0
  %4382 = vmatprep.mubr.bf16.mxu0 0
  %4383 = vmatmul.mubr.bf16.gmra.mxu0 %v4189
  %v4384 = vpop.f32.mrf.mxu0
  %v4385 = vadd.f32 0.0, %v4384
  %v4386 = vpop.f32.mrf.mxu0
  %v4387 = vpop.f32.mrf.mxu0
  %v4388 = vadd.f32 0.0, %v4387
  %v4389 = vpop.f32.mrf.mxu0
  %4390 = vmatprep.mubr.bf16.mxu0 0
  %4391 = vmatmul.mubr.bf16.gmra.mxu0 %v4192
  %v4392 = vpop.f32.mrf.mxu0
  %v4393 = vadd.f32 0.0, %v4392
  %v4394 = vpop.f32.mrf.mxu0
  %v4395 = vpop.f32.mrf.mxu0
  %v4396 = vadd.f32 0.0, %v4395
  %v4397 = vpop.f32.mrf.mxu0
  %4398 = vmatprep.mubr.bf16.mxu0 0
  %4399 = vmatmul.mubr.bf16.gmra.mxu0 %v4195
  %v4400 = vpop.f32.mrf.mxu0
  %v4401 = vadd.f32 0.0, %v4400
  %v4402 = vpop.f32.mrf.mxu0
  %v4403 = vpop.f32.mrf.mxu0
  %v4404 = vadd.f32 0.0, %v4403
  %v4405 = vpop.f32.mrf.mxu0
  %4406 = vmatprep.mubr.bf16.mxu0 0
  %4407 = vmatmul.mubr.bf16.gmra.mxu0 %v4198
  %v4408 = vpop.f32.mrf.mxu0
  %v4409 = vadd.f32 0.0, %v4408
  %v4410 = vpop.f32.mrf.mxu0
  %v4411 = vpop.f32.mrf.mxu0
  %v4412 = vadd.f32 0.0, %v4411
  %v4413 = vpop.f32.mrf.mxu0
  %4414 = vmatprep.mubr.bf16.mxu0 0
  %4415 = vmatmul.mubr.bf16.gmra.mxu0 %v4201
  %v4416 = vpop.f32.mrf.mxu0
  %v4417 = vadd.f32 0.0, %v4416
  %v4418 = vpop.f32.mrf.mxu0
  %v4419 = vpop.f32.mrf.mxu0
  %v4420 = vadd.f32 0.0, %v4419
  %v4421 = vpop.f32.mrf.mxu0
  %4422 = vmatprep.mubr.bf16.mxu0 0
  %4423 = vmatmul.mubr.bf16.gmra.mxu0 %v4204
  %v4424 = vpop.f32.mrf.mxu0
  %v4425 = vadd.f32 0.0, %v4424
  %v4426 = vpop.f32.mrf.mxu0
  %v4427 = vpop.f32.mrf.mxu0
  %v4428 = vadd.f32 0.0, %v4427
  %v4429 = vpop.f32.mrf.mxu0
  %4430 = vdwg.mxu0
  %v4431 = vadd.f32 %v3901, %v4241
  %v4432 = vadd.f32 %v3902, %v4244
  %v4433 = vadd.f32 %v3903, %v4249
  %v4434 = vadd.f32 %v3904, %v4252
  %v4435 = vadd.f32 %v3905, %v4257
  %v4436 = vadd.f32 %v3906, %v4260
  %v4437 = vadd.f32 %v3907, %v4265
  %v4438 = vadd.f32 %v3908, %v4268
  %v4439 = vadd.f32 %v3909, %v4273
  %v4440 = vadd.f32 %v3910, %v4276
  %v4441 = vadd.f32 %v3911, %v4281
  %v4442 = vadd.f32 %v3912, %v4284
  %v4443 = vadd.f32 %v3913, %v4289
  %v4444 = vadd.f32 %v3914, %v4292
  %v4445 = vadd.f32 %v3915, %v4297
  %v4446 = vadd.f32 %v3916, %v4300
  %v4447 = vadd.f32 %v3917, %v4305
  %v4448 = vadd.f32 %v3918, %v4308
  %v4449 = vadd.f32 %v3919, %v4313
  %v4450 = vadd.f32 %v3920, %v4316
  %v4451 = vadd.f32 %v3921, %v4321
  %v4452 = vadd.f32 %v3922, %v4324
  %v4453 = vadd.f32 %v3923, %v4329
  %v4454 = vadd.f32 %v3924, %v4332
  %v4455 = vadd.f32 %v3925, %v4337
  %v4456 = vadd.f32 %v3926, %v4340
  %v4457 = vadd.f32 %v3927, %v4345
  %v4458 = vadd.f32 %v3928, %v4348
  %v4459 = vadd.f32 %v3929, %v4353
  %v4460 = vadd.f32 %v3930, %v4356
  %v4461 = vadd.f32 %v3931, %v4361
  %v4462 = vadd.f32 %v3932, %v4364
  %v4463 = vadd.f32 %v3933, %v4369
  %v4464 = vadd.f32 %v3934, %v4372
  %v4465 = vadd.f32 %v3935, %v4377
  %v4466 = vadd.f32 %v3936, %v4380
  %v4467 = vadd.f32 %v3937, %v4385
  %v4468 = vadd.f32 %v3938, %v4388
  %v4469 = vadd.f32 %v3939, %v4393
  %v4470 = vadd.f32 %v3940, %v4396
  %v4471 = vadd.f32 %v3941, %v4401
  %v4472 = vadd.f32 %v3942, %v4404
  %v4473 = vadd.f32 %v3943, %v4409
  %v4474 = vadd.f32 %v3944, %v4412
  %v4475 = vadd.f32 %v3945, %v4417
  %v4476 = vadd.f32 %v3946, %v4420
  %v4477 = vadd.f32 %v3947, %v4425
  %v4478 = vadd.f32 %v3948, %v4428
  %4479 = vst.msk [vmem:[#allocation2] sm:$0xff] %vm211, %v4431
  %4480 = vst.msk [vmem:[#allocation2 + $0x8] sm:$0xff] %vm211, %v4432
  %4481 = vst.msk [vmem:[#allocation2 + $0x10] sm:$0xff] %vm211, %v4433
  %4482 = vst.msk [vmem:[#allocation2 + $0x18] sm:$0xff] %vm211, %v4434
  %4483 = vst.msk [vmem:[#allocation2 + $0x20] sm:$0xff] %vm211, %v4435
  %4484 = vst.msk [vmem:[#allocation2 + $0x28] sm:$0xff] %vm211, %v4436
  %4485 = vst.msk [vmem:[#allocation2 + $0x30] sm:$0xff] %vm211, %v4437
  %4486 = vst.msk [vmem:[#allocation2 + $0x38] sm:$0xff] %vm211, %v4438
  %4487 = vst.msk [vmem:[#allocation2 + $0x40] sm:$0xff] %vm211, %v4439
  %4488 = vst.msk [vmem:[#allocation2 + $0x48] sm:$0xff] %vm211, %v4440
  %4489 = vst.msk [vmem:[#allocation2 + $0x50] sm:$0xff] %vm211, %v4441
  %4490 = vst.msk [vmem:[#allocation2 + $0x58] sm:$0xff] %vm211, %v4442
  %4491 = vst.msk [vmem:[#allocation2 + $0x60] sm:$0xff] %vm211, %v4443
  %4492 = vst.msk [vmem:[#allocation2 + $0x68] sm:$0xff] %vm211, %v4444
  %4493 = vst.msk [vmem:[#allocation2 + $0x70] sm:$0xff] %vm211, %v4445
  %4494 = vst.msk [vmem:[#allocation2 + $0x78] sm:$0xff] %vm211, %v4446
  %4495 = vst.msk [vmem:[#allocation2 + $0x80] sm:$0xff] %vm211, %v4447
  %4496 = vst.msk [vmem:[#allocation2 + $0x88] sm:$0xff] %vm211, %v4448
  %4497 = vst.msk [vmem:[#allocation2 + $0x90] sm:$0xff] %vm211, %v4449
  %4498 = vst.msk [vmem:[#allocation2 + $0x98] sm:$0xff] %vm211, %v4450
  %4499 = vst.msk [vmem:[#allocation2 + $0xa0] sm:$0xff] %vm211, %v4451
  %4500 = vst.msk [vmem:[#allocation2 + $0xa8] sm:$0xff] %vm211, %v4452
  %4501 = vst.msk [vmem:[#allocation2 + $0xb0] sm:$0xff] %vm211, %v4453
  %4502 = vst.msk [vmem:[#allocation2 + $0xb8] sm:$0xff] %vm211, %v4454
  %4503 = vst.msk [vmem:[#allocation2 + $0xc0] sm:$0xff] %vm211, %v4455
  %4504 = vst.msk [vmem:[#allocation2 + $0xc8] sm:$0xff] %vm211, %v4456
  %4505 = vst.msk [vmem:[#allocation2 + $0xd0] sm:$0xff] %vm211, %v4457
  %4506 = vst.msk [vmem:[#allocation2 + $0xd8] sm:$0xff] %vm211, %v4458
  %4507 = vst.msk [vmem:[#allocation2 + $0xe0] sm:$0xff] %vm211, %v4459
  %4508 = vst.msk [vmem:[#allocation2 + $0xe8] sm:$0xff] %vm211, %v4460
  %4509 = vst.msk [vmem:[#allocation2 + $0xf0] sm:$0xff] %vm211, %v4461
  %4510 = vst.msk [vmem:[#allocation2 + $0xf8] sm:$0xff] %vm211, %v4462
  %4511 = vst.msk [vmem:[#allocation2 + $0x100] sm:$0xff] %vm211, %v4463
  %4512 = vst.msk [vmem:[#allocation2 + $0x108] sm:$0xff] %vm211, %v4464
  %4513 = vst.msk [vmem:[#allocation2 + $0x110] sm:$0xff] %vm211, %v4465
  %4514 = vst.msk [vmem:[#allocation2 + $0x118] sm:$0xff] %vm211, %v4466
  %4515 = vst.msk [vmem:[#allocation2 + $0x120] sm:$0xff] %vm211, %v4467
  %4516 = vst.msk [vmem:[#allocation2 + $0x128] sm:$0xff] %vm211, %v4468
  %4517 = vst.msk [vmem:[#allocation2 + $0x130] sm:$0xff] %vm211, %v4469
  %4518 = vst.msk [vmem:[#allocation2 + $0x138] sm:$0xff] %vm211, %v4470
  %4519 = vst.msk [vmem:[#allocation2 + $0x140] sm:$0xff] %vm211, %v4471
  %4520 = vst.msk [vmem:[#allocation2 + $0x148] sm:$0xff] %vm211, %v4472
  %4521 = vst.msk [vmem:[#allocation2 + $0x150] sm:$0xff] %vm211, %v4473
  %4522 = vst.msk [vmem:[#allocation2 + $0x158] sm:$0xff] %vm211, %v4474
  %4523 = vst.msk [vmem:[#allocation2 + $0x160] sm:$0xff] %vm211, %v4475
  %4524 = vst.msk [vmem:[#allocation2 + $0x168] sm:$0xff] %vm211, %v4476
  %4525 = vst.msk [vmem:[#allocation2 + $0x170] sm:$0xff] %vm211, %v4477
  %4526 = vst.msk [vmem:[#allocation2 + $0x178] sm:$0xff] %vm211, %v4478
  %v4527 = vld [vmem:[#allocation2] sm:$0xff]
  %v4528 = vld [vmem:[#allocation2 + $0x8] sm:$0xff]
  %v4529 = vld [vmem:[#allocation2 + $0x10] sm:$0xff]
  %v4530 = vld [vmem:[#allocation2 + $0x18] sm:$0xff]
  %v4531 = vld [vmem:[#allocation2 + $0x20] sm:$0xff]
  %v4532 = vld [vmem:[#allocation2 + $0x28] sm:$0xff]
  %v4533 = vld [vmem:[#allocation2 + $0x30] sm:$0xff]
  %v4534 = vld [vmem:[#allocation2 + $0x38] sm:$0xff]
  %v4535 = vld [vmem:[#allocation2 + $0x40] sm:$0xff]
  %v4536 = vld [vmem:[#allocation2 + $0x48] sm:$0xff]
  %v4537 = vld [vmem:[#allocation2 + $0x50] sm:$0xff]
  %v4538 = vld [vmem:[#allocation2 + $0x58] sm:$0xff]
  %v4539 = vld [vmem:[#allocation2 + $0x60] sm:$0xff]
  %v4540 = vld [vmem:[#allocation2 + $0x68] sm:$0xff]
  %v4541 = vld [vmem:[#allocation2 + $0x70] sm:$0xff]
  %v4542 = vld [vmem:[#allocation2 + $0x78] sm:$0xff]
  %v4543 = vld [vmem:[#allocation2 + $0x80] sm:$0xff]
  %v4544 = vld [vmem:[#allocation2 + $0x88] sm:$0xff]
  %v4545 = vld [vmem:[#allocation2 + $0x90] sm:$0xff]
  %v4546 = vld [vmem:[#allocation2 + $0x98] sm:$0xff]
  %v4547 = vld [vmem:[#allocation2 + $0xa0] sm:$0xff]
  %v4548 = vld [vmem:[#allocation2 + $0xa8] sm:$0xff]
  %v4549 = vld [vmem:[#allocation2 + $0xb0] sm:$0xff]
  %v4550 = vld [vmem:[#allocation2 + $0xb8] sm:$0xff]
  %v4551 = vld [vmem:[#allocation2 + $0xc0] sm:$0xff]
  %v4552 = vld [vmem:[#allocation2 + $0xc8] sm:$0xff]
  %v4553 = vld [vmem:[#allocation2 + $0xd0] sm:$0xff]
  %v4554 = vld [vmem:[#allocation2 + $0xd8] sm:$0xff]
  %v4555 = vld [vmem:[#allocation2 + $0xe0] sm:$0xff]
  %v4556 = vld [vmem:[#allocation2 + $0xe8] sm:$0xff]
  %v4557 = vld [vmem:[#allocation2 + $0xf0] sm:$0xff]
  %v4558 = vld [vmem:[#allocation2 + $0xf8] sm:$0xff]
  %v4559 = vld [vmem:[#allocation2 + $0x100] sm:$0xff]
  %v4560 = vld [vmem:[#allocation2 + $0x108] sm:$0xff]
  %v4561 = vld [vmem:[#allocation2 + $0x110] sm:$0xff]
  %v4562 = vld [vmem:[#allocation2 + $0x118] sm:$0xff]
  %v4563 = vld [vmem:[#allocation2 + $0x120] sm:$0xff]
  %v4564 = vld [vmem:[#allocation2 + $0x128] sm:$0xff]
  %v4565 = vld [vmem:[#allocation2 + $0x130] sm:$0xff]
  %v4566 = vld [vmem:[#allocation2 + $0x138] sm:$0xff]
  %v4567 = vld [vmem:[#allocation2 + $0x140] sm:$0xff]
  %v4568 = vld [vmem:[#allocation2 + $0x148] sm:$0xff]
  %v4569 = vld [vmem:[#allocation2 + $0x150] sm:$0xff]
  %v4570 = vld [vmem:[#allocation2 + $0x158] sm:$0xff]
  %v4571 = vld [vmem:[#allocation2 + $0x160] sm:$0xff]
  %v4572 = vld [vmem:[#allocation2 + $0x168] sm:$0xff]
  %v4573 = vld [vmem:[#allocation2 + $0x170] sm:$0xff]
  %v4574 = vld [vmem:[#allocation2 + $0x178] sm:$0xff]
  %v4575 = vld [vmem:[%s0 + $0x30] sm:$0xe]
  %v4576 = vld [vmem:[%s0 + $0x34] sm:$0xf]
  %v4577 = vld [vmem:[%s0 + $0x38] sm:$0xf]
  %v4578 = vld [vmem:[%s0 + $0x3c] sm:$0xf]
  %v4579 = vld [vmem:[%s0 + $0x40] sm:$0xf]
  %v4580 = vld [vmem:[%s0 + $0x44] sm:$0xf]
  %v4581 = vld [vmem:[%s0 + $0x48] sm:$0xf]
  %v4582 = vld [vmem:[%s0 + $0x4c] sm:$0xf]
  %v4583 = vld [vmem:[%s0 + $0x50] sm:$0xf]
  %v4584 = vld [vmem:[%s0 + $0x54] sm:$0xf]
  %v4585 = vld [vmem:[%s0 + $0x58] sm:$0xf]
  %v4586 = vld [vmem:[%s0 + $0x5c] sm:$0xf]
  %v4587 = vld [vmem:[%s0 + $0x60] sm:$0xf]
  %v4588 = vld [vmem:[%s0 + $0x64] sm:$0xf]
  %v4589 = vld [vmem:[%s0 + $0x68] sm:$0xf]
  %v4590 = vld [vmem:[%s0 + $0x6c] sm:$0xf]
  %v4591 = vld [vmem:[%s0 + $0x70] sm:$0xf]
  %v4592 = vld [vmem:[%s0 + $0x74] sm:$0xf]
  %v4593 = vld [vmem:[%s0 + $0x78] sm:$0xf]
  %v4594 = vld [vmem:[%s0 + $0x7c] sm:$0xf]
  %v4595 = vld [vmem:[%s0 + $0x80] sm:$0xf]
  %v4596 = vld [vmem:[%s0 + $0x84] sm:$0xf]
  %v4597 = vld [vmem:[%s0 + $0x88] sm:$0xf]
  %v4598 = vld [vmem:[%s0 + $0x8c] sm:$0xf]
  %v4599 = vld [vmem:[%s0 + $0x90] sm:$0xf]
  %v4600 = vld [vmem:[%s0 + $0x94] sm:$0xf]
  %v4601 = vld [vmem:[%s0 + $0x98] sm:$0xf]
  %v4602 = vld [vmem:[%s0 + $0x9c] sm:$0xf]
  %v4603 = vld [vmem:[%s0 + $0xa0] sm:$0xf]
  %v4604 = vld [vmem:[%s0 + $0xa4] sm:$0xf]
  %v4605 = vld [vmem:[%s0 + $0xa8] sm:$0xf]
  %v4606 = vld [vmem:[%s0 + $0xac] sm:$0xf]
  %v4607 = vld [vmem:[%s0 + $0xb0] sm:$0xf]
  %v4608 = vld [vmem:[%s0 + $0xb4] sm:$0xf]
  %v4609 = vld [vmem:[%s0 + $0xb8] sm:$0xf]
  %v4610 = vld [vmem:[%s0 + $0xbc] sm:$0xf]
  %v4611 = vld [vmem:[%s0 + $0xc0] sm:$0xf]
  %v4612 = vld [vmem:[%s0 + $0xc4] sm:$0xf]
  %v4613 = vld [vmem:[%s0 + $0xc8] sm:$0xf]
  %v4614 = vld [vmem:[%s0 + $0xcc] sm:$0xf]
  %v4615 = vld [vmem:[%s0 + $0xd0] sm:$0xf]
  %v4616 = vld [vmem:[%s0 + $0xd4] sm:$0xf]
  %v4617 = vld [vmem:[%s0 + $0xd8] sm:$0xf]
  %v4618 = vld [vmem:[%s0 + $0xdc] sm:$0xf]
  %v4619 = vld [vmem:[%s0 + $0xe0] sm:$0xf]
  %v4620 = vld [vmem:[%s0 + $0xe4] sm:$0xf]
  %v4621 = vld [vmem:[%s0 + $0xe8] sm:$0xf]
  %v4622 = vld [vmem:[%s0 + $0xec] sm:$0xf]
  %v4623 = vld [vmem:[%s0 + $0xf0] sm:$0x1]
  %s4624 = scalar_lea.vmem %s1, 112
  %v4625 = vld [vmem:[%s4624] sm:$0xf]
  %v4626 = vld [vmem:[%s4624 + $0x4] sm:$0xf]
  %v4627 = vld [vmem:[%s4624 + $0x8] sm:$0xf]
  %v4628 = vld [vmem:[%s4624 + $0xc] sm:$0xf]
  %v4678 = vunpack.c.l.b16 %v4575
  %v4679 = vunpack.c.l.b16 %v4576
  %v4680 = vunpack.c.l.b16 %v4577
  %v4681 = vunpack.c.l.b16 %v4578
  %v4682 = vunpack.c.l.b16 %v4579
  %v4683 = vunpack.c.l.b16 %v4580
  %v4684 = vunpack.c.l.b16 %v4581
  %v4685 = vunpack.c.l.b16 %v4582
  %v4686 = vunpack.c.l.b16 %v4583
  %v4687 = vunpack.c.l.b16 %v4584
  %v4688 = vunpack.c.l.b16 %v4585
  %v4689 = vunpack.c.l.b16 %v4586
  %v4690 = vunpack.c.l.b16 %v4587
  %v4691 = vunpack.c.l.b16 %v4588
  %v4692 = vunpack.c.l.b16 %v4589
  %v4693 = vunpack.c.l.b16 %v4590
  %v4694 = vunpack.c.l.b16 %v4591
  %v4695 = vunpack.c.l.b16 %v4592
  %v4696 = vunpack.c.l.b16 %v4593
  %v4697 = vunpack.c.l.b16 %v4594
  %v4698 = vunpack.c.l.b16 %v4595
  %v4699 = vunpack.c.l.b16 %v4596
  %v4700 = vunpack.c.l.b16 %v4597
  %v4701 = vunpack.c.l.b16 %v4598
  %v4702 = vunpack.c.l.b16 %v4599
  %v4703 = vunpack.c.l.b16 %v4600
  %v4704 = vunpack.c.l.b16 %v4601
  %v4705 = vunpack.c.l.b16 %v4602
  %v4706 = vunpack.c.l.b16 %v4603
  %v4707 = vunpack.c.l.b16 %v4604
  %v4708 = vunpack.c.l.b16 %v4605
  %v4709 = vunpack.c.l.b16 %v4606
  %v4710 = vunpack.c.l.b16 %v4607
  %v4711 = vunpack.c.l.b16 %v4608
  %v4712 = vunpack.c.l.b16 %v4609
  %v4713 = vunpack.c.l.b16 %v4610
  %v4714 = vunpack.c.l.b16 %v4611
  %v4715 = vunpack.c.l.b16 %v4612
  %v4716 = vunpack.c.l.b16 %v4613
  %v4717 = vunpack.c.l.b16 %v4614
  %v4718 = vunpack.c.l.b16 %v4615
  %v4719 = vunpack.c.l.b16 %v4616
  %v4720 = vunpack.c.l.b16 %v4617
  %v4721 = vunpack.c.l.b16 %v4618
  %v4722 = vunpack.c.l.b16 %v4619
  %v4723 = vunpack.c.l.b16 %v4620
  %v4724 = vunpack.c.l.b16 %v4621
  %v4725 = vunpack.c.l.b16 %v4622
  %v4726 = vunpack.c.l.b16 %v4623
  %v4727 = vpack.c.b16 %v4679, %v4678
  %v4728 = vpack.c.b16 %v4681, %v4680
  %v4729 = vpack.c.b16 %v4683, %v4682
  %v4730 = vpack.c.b16 %v4685, %v4684
  %v4731 = vpack.c.b16 %v4687, %v4686
  %v4732 = vpack.c.b16 %v4689, %v4688
  %v4733 = vpack.c.b16 %v4691, %v4690
  %v4734 = vpack.c.b16 %v4693, %v4692
  %v4735 = vpack.c.b16 %v4695, %v4694
  %v4736 = vpack.c.b16 %v4697, %v4696
  %v4737 = vpack.c.b16 %v4699, %v4698
  %v4738 = vpack.c.b16 %v4701, %v4700
  %v4739 = vpack.c.b16 %v4703, %v4702
  %v4740 = vpack.c.b16 %v4705, %v4704
  %v4741 = vpack.c.b16 %v4707, %v4706
  %v4742 = vpack.c.b16 %v4709, %v4708
  %v4743 = vpack.c.b16 %v4711, %v4710
  %v4744 = vpack.c.b16 %v4713, %v4712
  %v4745 = vpack.c.b16 %v4715, %v4714
  %v4746 = vpack.c.b16 %v4717, %v4716
  %v4747 = vpack.c.b16 %v4719, %v4718
  %v4748 = vpack.c.b16 %v4721, %v4720
  %v4749 = vpack.c.b16 %v4723, %v4722
  %v4750 = vpack.c.b16 %v4725, %v4724
  %v4751 = vpack.c.b16 %v4726, %v4726
  %v4752 = vrot.slane %v4727, 1
  %v4753 = vrot.slane %v4728, 1
  %v4754 = vsel %vm782, %v4752, %v4753
  %v4755 = vrot.slane %v4729, 1
  %v4756 = vsel %vm782, %v4753, %v4755
  %v4757 = vrot.slane %v4730, 1
  %v4758 = vsel %vm782, %v4755, %v4757
  %v4759 = vrot.slane %v4731, 1
  %v4760 = vsel %vm782, %v4757, %v4759
  %v4761 = vrot.slane %v4732, 1
  %v4762 = vsel %vm782, %v4759, %v4761
  %v4763 = vrot.slane %v4733, 1
  %v4764 = vsel %vm782, %v4761, %v4763
  %v4765 = vrot.slane %v4734, 1
  %v4766 = vsel %vm782, %v4763, %v4765
  %v4767 = vrot.slane %v4735, 1
  %v4768 = vsel %vm782, %v4765, %v4767
  %v4769 = vrot.slane %v4736, 1
  %v4770 = vsel %vm782, %v4767, %v4769
  %v4771 = vrot.slane %v4737, 1
  %v4772 = vsel %vm782, %v4769, %v4771
  %v4773 = vrot.slane %v4738, 1
  %v4774 = vsel %vm782, %v4771, %v4773
  %v4775 = vrot.slane %v4739, 1
  %v4776 = vsel %vm782, %v4773, %v4775
  %v4777 = vrot.slane %v4740, 1
  %v4778 = vsel %vm782, %v4775, %v4777
  %v4779 = vrot.slane %v4741, 1
  %v4780 = vsel %vm782, %v4777, %v4779
  %v4781 = vrot.slane %v4742, 1
  %v4782 = vsel %vm782, %v4779, %v4781
  %v4783 = vrot.slane %v4743, 1
  %v4784 = vsel %vm782, %v4781, %v4783
  %v4785 = vrot.slane %v4744, 1
  %v4786 = vsel %vm782, %v4783, %v4785
  %v4787 = vrot.slane %v4745, 1
  %v4788 = vsel %vm782, %v4785, %v4787
  %v4789 = vrot.slane %v4746, 1
  %v4790 = vsel %vm782, %v4787, %v4789
  %v4791 = vrot.slane %v4747, 1
  %v4792 = vsel %vm782, %v4789, %v4791
  %v4793 = vrot.slane %v4748, 1
  %v4794 = vsel %vm782, %v4791, %v4793
  %v4795 = vrot.slane %v4749, 1
  %v4796 = vsel %vm782, %v4793, %v4795
  %v4797 = vrot.slane %v4750, 1
  %v4798 = vsel %vm782, %v4795, %v4797
  %v4799 = vrot.slane %v4751, 1
  %v4800 = vsel %vm782, %v4797, %v4799
  %v4805 = vunpack.c.l.b16 %v4625
  %v4806 = vunpack.c.l.b16 %v4626
  %v4807 = vunpack.c.l.b16 %v4627
  %v4808 = vunpack.c.l.b16 %v4628
  %v4809 = vpack.c.b16 %v4806, %v4805
  %v4810 = vpack.c.b16 %v4808, %v4807
  %v4814 = vsel %vm211, %v4754, 0
  %v4817 = vsel %vm211, %v4756, 0
  %v4820 = vsel %vm211, %v4758, 0
  %v4823 = vsel %vm211, %v4760, 0
  %v4826 = vsel %vm211, %v4762, 0
  %v4829 = vsel %vm211, %v4764, 0
  %v4832 = vsel %vm211, %v4766, 0
  %v4835 = vsel %vm211, %v4768, 0
  %v4838 = vsel %vm211, %v4770, 0
  %v4841 = vsel %vm211, %v4772, 0
  %v4844 = vsel %vm211, %v4774, 0
  %v4847 = vsel %vm211, %v4776, 0
  %v4850 = vsel %vm211, %v4778, 0
  %v4853 = vsel %vm211, %v4780, 0
  %v4856 = vsel %vm211, %v4782, 0
  %v4859 = vsel %vm211, %v4784, 0
  %v4862 = vsel %vm211, %v4786, 0
  %v4865 = vsel %vm211, %v4788, 0
  %v4868 = vsel %vm211, %v4790, 0
  %v4871 = vsel %vm211, %v4792, 0
  %v4874 = vsel %vm211, %v4794, 0
  %v4877 = vsel %vm211, %v4796, 0
  %v4880 = vsel %vm211, %v4798, 0
  %v4883 = vsel %vm211, %v4800, 0
  %4885 = vmatprep.subr.bf16.mxu0 0
  %4886 = vmatpush1.bf16.msra.mxu0 0
  %4887 = vmatprep.subr.bf16.mxu0 0
  %4888 = vmatpush1.bf16.msra.mxu0 0
  %4889 = vmatprep.subr.bf16.mxu0 0
  %4890 = vmatpush1.bf16.msra.mxu0 0
  %4891 = vmatprep.subr.bf16.mxu0 0
  %4892 = vmatpush1.bf16.msra.mxu0 0
  %4893 = vmatprep.subr.bf16.mxu0 0
  %4894 = vmatpush1.bf16.msra.mxu0 0
  %4895 = vmatprep.subr.bf16.mxu0 0
  %4896 = vmatpush1.bf16.msra.mxu0 0
  %4897 = vmatprep.subr.bf16.mxu0 0
  %4898 = vmatpush1.bf16.msra.mxu0 %v4810
  %4899 = vmatprep.subr.bf16.mxu0 0
  %4900 = vmatpush1.bf16.msra.mxu0 %v4809
  %4901 = vmatprep.subr.bf16.mxu0 0
  %4902 = vmatpush2.bf16.msra.mxu0 0
  %4903 = vmatprep.subr.bf16.mxu0 0
  %4904 = vmatpush2.bf16.msra.mxu0 0
  %4905 = vmatprep.subr.bf16.mxu0 0
  %4906 = vmatpush2.bf16.msra.mxu0 0
  %4907 = vmatprep.subr.bf16.mxu0 0
  %4908 = vmatpush2.bf16.msra.mxu0 0
  %4909 = vmatprep.subr.bf16.mxu0 0
  %4910 = vmatpush2.bf16.msra.mxu0 0
  %4911 = vmatprep.subr.bf16.mxu0 0
  %4912 = vmatpush2.bf16.msra.mxu0 0
  %4913 = vmatprep.subr.bf16.mxu0 0
  %4914 = vmatpush2.bf16.msra.mxu0 0
  %4915 = vmatprep.subr.bf16.mxu0 0
  %4916 = vmatpush2.bf16.msra.mxu0 0
  %4917 = vmatprep.mubr.bf16.mxu0 0
  %4918 = vmatmul.mubr.bf16.gmra.mxu0 %v4814
  %v4919 = vpop.f32.mrf.mxu0
  %v4920 = vadd.f32 0.0, %v4919
  %v4921 = vpop.f32.mrf.mxu0
  %v4922 = vpop.f32.mrf.mxu0
  %v4923 = vadd.f32 0.0, %v4922
  %v4924 = vpop.f32.mrf.mxu0
  %4925 = vmatprep.mubr.bf16.mxu0 0
  %4926 = vmatmul.mubr.bf16.gmra.mxu0 %v4817
  %v4927 = vpop.f32.mrf.mxu0
  %v4928 = vadd.f32 0.0, %v4927
  %v4929 = vpop.f32.mrf.mxu0
  %v4930 = vpop.f32.mrf.mxu0
  %v4931 = vadd.f32 0.0, %v4930
  %v4932 = vpop.f32.mrf.mxu0
  %4933 = vmatprep.mubr.bf16.mxu0 0
  %4934 = vmatmul.mubr.bf16.gmra.mxu0 %v4820
  %v4935 = vpop.f32.mrf.mxu0
  %v4936 = vadd.f32 0.0, %v4935
  %v4937 = vpop.f32.mrf.mxu0
  %v4938 = vpop.f32.mrf.mxu0
  %v4939 = vadd.f32 0.0, %v4938
  %v4940 = vpop.f32.mrf.mxu0
  %4941 = vmatprep.mubr.bf16.mxu0 0
  %4942 = vmatmul.mubr.bf16.gmra.mxu0 %v4823
  %v4943 = vpop.f32.mrf.mxu0
  %v4944 = vadd.f32 0.0, %v4943
  %v4945 = vpop.f32.mrf.mxu0
  %v4946 = vpop.f32.mrf.mxu0
  %v4947 = vadd.f32 0.0, %v4946
  %v4948 = vpop.f32.mrf.mxu0
  %4949 = vmatprep.mubr.bf16.mxu0 0
  %4950 = vmatmul.mubr.bf16.gmra.mxu0 %v4826
  %v4951 = vpop.f32.mrf.mxu0
  %v4952 = vadd.f32 0.0, %v4951
  %v4953 = vpop.f32.mrf.mxu0
  %v4954 = vpop.f32.mrf.mxu0
  %v4955 = vadd.f32 0.0, %v4954
  %v4956 = vpop.f32.mrf.mxu0
  %4957 = vmatprep.mubr.bf16.mxu0 0
  %4958 = vmatmul.mubr.bf16.gmra.mxu0 %v4829
  %v4959 = vpop.f32.mrf.mxu0
  %v4960 = vadd.f32 0.0, %v4959
  %v4961 = vpop.f32.mrf.mxu0
  %v4962 = vpop.f32.mrf.mxu0
  %v4963 = vadd.f32 0.0, %v4962
  %v4964 = vpop.f32.mrf.mxu0
  %4965 = vmatprep.mubr.bf16.mxu0 0
  %4966 = vmatmul.mubr.bf16.gmra.mxu0 %v4832
  %v4967 = vpop.f32.mrf.mxu0
  %v4968 = vadd.f32 0.0, %v4967
  %v4969 = vpop.f32.mrf.mxu0
  %v4970 = vpop.f32.mrf.mxu0
  %v4971 = vadd.f32 0.0, %v4970
  %v4972 = vpop.f32.mrf.mxu0
  %4973 = vmatprep.mubr.bf16.mxu0 0
  %4974 = vmatmul.mubr.bf16.gmra.mxu0 %v4835
  %v4975 = vpop.f32.mrf.mxu0
  %v4976 = vadd.f32 0.0, %v4975
  %v4977 = vpop.f32.mrf.mxu0
  %v4978 = vpop.f32.mrf.mxu0
  %v4979 = vadd.f32 0.0, %v4978
  %v4980 = vpop.f32.mrf.mxu0
  %4981 = vmatprep.mubr.bf16.mxu0 0
  %4982 = vmatmul.mubr.bf16.gmra.mxu0 %v4838
  %v4983 = vpop.f32.mrf.mxu0
  %v4984 = vadd.f32 0.0, %v4983
  %v4985 = vpop.f32.mrf.mxu0
  %v4986 = vpop.f32.mrf.mxu0
  %v4987 = vadd.f32 0.0, %v4986
  %v4988 = vpop.f32.mrf.mxu0
  %4989 = vmatprep.mubr.bf16.mxu0 0
  %4990 = vmatmul.mubr.bf16.gmra.mxu0 %v4841
  %v4991 = vpop.f32.mrf.mxu0
  %v4992 = vadd.f32 0.0, %v4991
  %v4993 = vpop.f32.mrf.mxu0
  %v4994 = vpop.f32.mrf.mxu0
  %v4995 = vadd.f32 0.0, %v4994
  %v4996 = vpop.f32.mrf.mxu0
  %4997 = vmatprep.mubr.bf16.mxu0 0
  %4998 = vmatmul.mubr.bf16.gmra.mxu0 %v4844
  %v4999 = vpop.f32.mrf.mxu0
  %v5000 = vadd.f32 0.0, %v4999
  %v5001 = vpop.f32.mrf.mxu0
  %v5002 = vpop.f32.mrf.mxu0
  %v5003 = vadd.f32 0.0, %v5002
  %v5004 = vpop.f32.mrf.mxu0
  %5005 = vmatprep.mubr.bf16.mxu0 0
  %5006 = vmatmul.mubr.bf16.gmra.mxu0 %v4847
  %v5007 = vpop.f32.mrf.mxu0
  %v5008 = vadd.f32 0.0, %v5007
  %v5009 = vpop.f32.mrf.mxu0
  %v5010 = vpop.f32.mrf.mxu0
  %v5011 = vadd.f32 0.0, %v5010
  %v5012 = vpop.f32.mrf.mxu0
  %5013 = vmatprep.mubr.bf16.mxu0 0
  %5014 = vmatmul.mubr.bf16.gmra.mxu0 %v4850
  %v5015 = vpop.f32.mrf.mxu0
  %v5016 = vadd.f32 0.0, %v5015
  %v5017 = vpop.f32.mrf.mxu0
  %v5018 = vpop.f32.mrf.mxu0
  %v5019 = vadd.f32 0.0, %v5018
  %v5020 = vpop.f32.mrf.mxu0
  %5021 = vmatprep.mubr.bf16.mxu0 0
  %5022 = vmatmul.mubr.bf16.gmra.mxu0 %v4853
  %v5023 = vpop.f32.mrf.mxu0
  %v5024 = vadd.f32 0.0, %v5023
  %v5025 = vpop.f32.mrf.mxu0
  %v5026 = vpop.f32.mrf.mxu0
  %v5027 = vadd.f32 0.0, %v5026
  %v5028 = vpop.f32.mrf.mxu0
  %5029 = vmatprep.mubr.bf16.mxu0 0
  %5030 = vmatmul.mubr.bf16.gmra.mxu0 %v4856
  %v5031 = vpop.f32.mrf.mxu0
  %v5032 = vadd.f32 0.0, %v5031
  %v5033 = vpop.f32.mrf.mxu0
  %v5034 = vpop.f32.mrf.mxu0
  %v5035 = vadd.f32 0.0, %v5034
  %v5036 = vpop.f32.mrf.mxu0
  %5037 = vmatprep.mubr.bf16.mxu0 0
  %5038 = vmatmul.mubr.bf16.gmra.mxu0 %v4859
  %v5039 = vpop.f32.mrf.mxu0
  %v5040 = vadd.f32 0.0, %v5039
  %v5041 = vpop.f32.mrf.mxu0
  %v5042 = vpop.f32.mrf.mxu0
  %v5043 = vadd.f32 0.0, %v5042
  %v5044 = vpop.f32.mrf.mxu0
  %5045 = vmatprep.mubr.bf16.mxu0 0
  %5046 = vmatmul.mubr.bf16.gmra.mxu0 %v4862
  %v5047 = vpop.f32.mrf.mxu0
  %v5048 = vadd.f32 0.0, %v5047
  %v5049 = vpop.f32.mrf.mxu0
  %v5050 = vpop.f32.mrf.mxu0
  %v5051 = vadd.f32 0.0, %v5050
  %v5052 = vpop.f32.mrf.mxu0
  %5053 = vmatprep.mubr.bf16.mxu0 0
  %5054 = vmatmul.mubr.bf16.gmra.mxu0 %v4865
  %v5055 = vpop.f32.mrf.mxu0
  %v5056 = vadd.f32 0.0, %v5055
  %v5057 = vpop.f32.mrf.mxu0
  %v5058 = vpop.f32.mrf.mxu0
  %v5059 = vadd.f32 0.0, %v5058
  %v5060 = vpop.f32.mrf.mxu0
  %5061 = vmatprep.mubr.bf16.mxu0 0
  %5062 = vmatmul.mubr.bf16.gmra.mxu0 %v4868
  %v5063 = vpop.f32.mrf.mxu0
  %v5064 = vadd.f32 0.0, %v5063
  %v5065 = vpop.f32.mrf.mxu0
  %v5066 = vpop.f32.mrf.mxu0
  %v5067 = vadd.f32 0.0, %v5066
  %v5068 = vpop.f32.mrf.mxu0
  %5069 = vmatprep.mubr.bf16.mxu0 0
  %5070 = vmatmul.mubr.bf16.gmra.mxu0 %v4871
  %v5071 = vpop.f32.mrf.mxu0
  %v5072 = vadd.f32 0.0, %v5071
  %v5073 = vpop.f32.mrf.mxu0
  %v5074 = vpop.f32.mrf.mxu0
  %v5075 = vadd.f32 0.0, %v5074
  %v5076 = vpop.f32.mrf.mxu0
  %5077 = vmatprep.mubr.bf16.mxu0 0
  %5078 = vmatmul.mubr.bf16.gmra.mxu0 %v4874
  %v5079 = vpop.f32.mrf.mxu0
  %v5080 = vadd.f32 0.0, %v5079
  %v5081 = vpop.f32.mrf.mxu0
  %v5082 = vpop.f32.mrf.mxu0
  %v5083 = vadd.f32 0.0, %v5082
  %v5084 = vpop.f32.mrf.mxu0
  %5085 = vmatprep.mubr.bf16.mxu0 0
  %5086 = vmatmul.mubr.bf16.gmra.mxu0 %v4877
  %v5087 = vpop.f32.mrf.mxu0
  %v5088 = vadd.f32 0.0, %v5087
  %v5089 = vpop.f32.mrf.mxu0
  %v5090 = vpop.f32.mrf.mxu0
  %v5091 = vadd.f32 0.0, %v5090
  %v5092 = vpop.f32.mrf.mxu0
  %5093 = vmatprep.mubr.bf16.mxu0 0
  %5094 = vmatmul.mubr.bf16.gmra.mxu0 %v4880
  %v5095 = vpop.f32.mrf.mxu0
  %v5096 = vadd.f32 0.0, %v5095
  %v5097 = vpop.f32.mrf.mxu0
  %v5098 = vpop.f32.mrf.mxu0
  %v5099 = vadd.f32 0.0, %v5098
  %v5100 = vpop.f32.mrf.mxu0
  %5101 = vmatprep.mubr.bf16.mxu0 0
  %5102 = vmatmul.mubr.bf16.gmra.mxu0 %v4883
  %v5103 = vpop.f32.mrf.mxu0
  %v5104 = vadd.f32 0.0, %v5103
  %v5105 = vpop.f32.mrf.mxu0
  %v5106 = vpop.f32.mrf.mxu0
  %v5107 = vadd.f32 0.0, %v5106
  %v5108 = vpop.f32.mrf.mxu0
  %5109 = vdwg.mxu0
  %v5110 = vadd.f32 %v4527, %v4920
  %v5111 = vadd.f32 %v4528, %v4923
  %v5112 = vadd.f32 %v4529, %v4928
  %v5113 = vadd.f32 %v4530, %v4931
  %v5114 = vadd.f32 %v4531, %v4936
  %v5115 = vadd.f32 %v4532, %v4939
  %v5116 = vadd.f32 %v4533, %v4944
  %v5117 = vadd.f32 %v4534, %v4947
  %v5118 = vadd.f32 %v4535, %v4952
  %v5119 = vadd.f32 %v4536, %v4955
  %v5120 = vadd.f32 %v4537, %v4960
  %v5121 = vadd.f32 %v4538, %v4963
  %v5122 = vadd.f32 %v4539, %v4968
  %v5123 = vadd.f32 %v4540, %v4971
  %v5124 = vadd.f32 %v4541, %v4976
  %v5125 = vadd.f32 %v4542, %v4979
  %v5126 = vadd.f32 %v4543, %v4984
  %v5127 = vadd.f32 %v4544, %v4987
  %v5128 = vadd.f32 %v4545, %v4992
  %v5129 = vadd.f32 %v4546, %v4995
  %v5130 = vadd.f32 %v4547, %v5000
  %v5131 = vadd.f32 %v4548, %v5003
  %v5132 = vadd.f32 %v4549, %v5008
  %v5133 = vadd.f32 %v4550, %v5011
  %v5134 = vadd.f32 %v4551, %v5016
  %v5135 = vadd.f32 %v4552, %v5019
  %v5136 = vadd.f32 %v4553, %v5024
  %v5137 = vadd.f32 %v4554, %v5027
  %v5138 = vadd.f32 %v4555, %v5032
  %v5139 = vadd.f32 %v4556, %v5035
  %v5140 = vadd.f32 %v4557, %v5040
  %v5141 = vadd.f32 %v4558, %v5043
  %v5142 = vadd.f32 %v4559, %v5048
  %v5143 = vadd.f32 %v4560, %v5051
  %v5144 = vadd.f32 %v4561, %v5056
  %v5145 = vadd.f32 %v4562, %v5059
  %v5146 = vadd.f32 %v4563, %v5064
  %v5147 = vadd.f32 %v4564, %v5067
  %v5148 = vadd.f32 %v4565, %v5072
  %v5149 = vadd.f32 %v4566, %v5075
  %v5150 = vadd.f32 %v4567, %v5080
  %v5151 = vadd.f32 %v4568, %v5083
  %v5152 = vadd.f32 %v4569, %v5088
  %v5153 = vadd.f32 %v4570, %v5091
  %v5154 = vadd.f32 %v4571, %v5096
  %v5155 = vadd.f32 %v4572, %v5099
  %v5156 = vadd.f32 %v4573, %v5104
  %v5157 = vadd.f32 %v4574, %v5107
  %5158 = vst.msk [vmem:[#allocation2] sm:$0xff] %vm211, %v5110
  %5159 = vst.msk [vmem:[#allocation2 + $0x8] sm:$0xff] %vm211, %v5111
  %5160 = vst.msk [vmem:[#allocation2 + $0x10] sm:$0xff] %vm211, %v5112
  %5161 = vst.msk [vmem:[#allocation2 + $0x18] sm:$0xff] %vm211, %v5113
  %5162 = vst.msk [vmem:[#allocation2 + $0x20] sm:$0xff] %vm211, %v5114
  %5163 = vst.msk [vmem:[#allocation2 + $0x28] sm:$0xff] %vm211, %v5115
  %5164 = vst.msk [vmem:[#allocation2 + $0x30] sm:$0xff] %vm211, %v5116
  %5165 = vst.msk [vmem:[#allocation2 + $0x38] sm:$0xff] %vm211, %v5117
  %5166 = vst.msk [vmem:[#allocation2 + $0x40] sm:$0xff] %vm211, %v5118
  %5167 = vst.msk [vmem:[#allocation2 + $0x48] sm:$0xff] %vm211, %v5119
  %5168 = vst.msk [vmem:[#allocation2 + $0x50] sm:$0xff] %vm211, %v5120
  %5169 = vst.msk [vmem:[#allocation2 + $0x58] sm:$0xff] %vm211, %v5121
  %5170 = vst.msk [vmem:[#allocation2 + $0x60] sm:$0xff] %vm211, %v5122
  %5171 = vst.msk [vmem:[#allocation2 + $0x68] sm:$0xff] %vm211, %v5123
  %5172 = vst.msk [vmem:[#allocation2 + $0x70] sm:$0xff] %vm211, %v5124
  %5173 = vst.msk [vmem:[#allocation2 + $0x78] sm:$0xff] %vm211, %v5125
  %5174 = vst.msk [vmem:[#allocation2 + $0x80] sm:$0xff] %vm211, %v5126
  %5175 = vst.msk [vmem:[#allocation2 + $0x88] sm:$0xff] %vm211, %v5127
  %5176 = vst.msk [vmem:[#allocation2 + $0x90] sm:$0xff] %vm211, %v5128
  %5177 = vst.msk [vmem:[#allocation2 + $0x98] sm:$0xff] %vm211, %v5129
  %5178 = vst.msk [vmem:[#allocation2 + $0xa0] sm:$0xff] %vm211, %v5130
  %5179 = vst.msk [vmem:[#allocation2 + $0xa8] sm:$0xff] %vm211, %v5131
  %5180 = vst.msk [vmem:[#allocation2 + $0xb0] sm:$0xff] %vm211, %v5132
  %5181 = vst.msk [vmem:[#allocation2 + $0xb8] sm:$0xff] %vm211, %v5133
  %5182 = vst.msk [vmem:[#allocation2 + $0xc0] sm:$0xff] %vm211, %v5134
  %5183 = vst.msk [vmem:[#allocation2 + $0xc8] sm:$0xff] %vm211, %v5135
  %5184 = vst.msk [vmem:[#allocation2 + $0xd0] sm:$0xff] %vm211, %v5136
  %5185 = vst.msk [vmem:[#allocation2 + $0xd8] sm:$0xff] %vm211, %v5137
  %5186 = vst.msk [vmem:[#allocation2 + $0xe0] sm:$0xff] %vm211, %v5138
  %5187 = vst.msk [vmem:[#allocation2 + $0xe8] sm:$0xff] %vm211, %v5139
  %5188 = vst.msk [vmem:[#allocation2 + $0xf0] sm:$0xff] %vm211, %v5140
  %5189 = vst.msk [vmem:[#allocation2 + $0xf8] sm:$0xff] %vm211, %v5141
  %5190 = vst.msk [vmem:[#allocation2 + $0x100] sm:$0xff] %vm211, %v5142
  %5191 = vst.msk [vmem:[#allocation2 + $0x108] sm:$0xff] %vm211, %v5143
  %5192 = vst.msk [vmem:[#allocation2 + $0x110] sm:$0xff] %vm211, %v5144
  %5193 = vst.msk [vmem:[#allocation2 + $0x118] sm:$0xff] %vm211, %v5145
  %5194 = vst.msk [vmem:[#allocation2 + $0x120] sm:$0xff] %vm211, %v5146
  %5195 = vst.msk [vmem:[#allocation2 + $0x128] sm:$0xff] %vm211, %v5147
  %5196 = vst.msk [vmem:[#allocation2 + $0x130] sm:$0xff] %vm211, %v5148
  %5197 = vst.msk [vmem:[#allocation2 + $0x138] sm:$0xff] %vm211, %v5149
  %5198 = vst.msk [vmem:[#allocation2 + $0x140] sm:$0xff] %vm211, %v5150
  %5199 = vst.msk [vmem:[#allocation2 + $0x148] sm:$0xff] %vm211, %v5151
  %5200 = vst.msk [vmem:[#allocation2 + $0x150] sm:$0xff] %vm211, %v5152
  %5201 = vst.msk [vmem:[#allocation2 + $0x158] sm:$0xff] %vm211, %v5153
  %5202 = vst.msk [vmem:[#allocation2 + $0x160] sm:$0xff] %vm211, %v5154
  %5203 = vst.msk [vmem:[#allocation2 + $0x168] sm:$0xff] %vm211, %v5155
  %5204 = vst.msk [vmem:[#allocation2 + $0x170] sm:$0xff] %vm211, %v5156
  %5205 = vst.msk [vmem:[#allocation2 + $0x178] sm:$0xff] %vm211, %v5157
  %v5206 = vld [vmem:[#allocation2] sm:$0xff]
  %v5207 = vld [vmem:[#allocation2 + $0x8] sm:$0xff]
  %v5208 = vld [vmem:[#allocation2 + $0x10] sm:$0xff]
  %v5209 = vld [vmem:[#allocation2 + $0x18] sm:$0xff]
  %v5210 = vld [vmem:[#allocation2 + $0x20] sm:$0xff]
  %v5211 = vld [vmem:[#allocation2 + $0x28] sm:$0xff]
  %v5212 = vld [vmem:[#allocation2 + $0x30] sm:$0xff]
  %v5213 = vld [vmem:[#allocation2 + $0x38] sm:$0xff]
  %v5214 = vld [vmem:[#allocation2 + $0x40] sm:$0xff]
  %v5215 = vld [vmem:[#allocation2 + $0x48] sm:$0xff]
  %v5216 = vld [vmem:[#allocation2 + $0x50] sm:$0xff]
  %v5217 = vld [vmem:[#allocation2 + $0x58] sm:$0xff]
  %v5218 = vld [vmem:[#allocation2 + $0x60] sm:$0xff]
  %v5219 = vld [vmem:[#allocation2 + $0x68] sm:$0xff]
  %v5220 = vld [vmem:[#allocation2 + $0x70] sm:$0xff]
  %v5221 = vld [vmem:[#allocation2 + $0x78] sm:$0xff]
  %v5222 = vld [vmem:[#allocation2 + $0x80] sm:$0xff]
  %v5223 = vld [vmem:[#allocation2 + $0x88] sm:$0xff]
  %v5224 = vld [vmem:[#allocation2 + $0x90] sm:$0xff]
  %v5225 = vld [vmem:[#allocation2 + $0x98] sm:$0xff]
  %v5226 = vld [vmem:[#allocation2 + $0xa0] sm:$0xff]
  %v5227 = vld [vmem:[#allocation2 + $0xa8] sm:$0xff]
  %v5228 = vld [vmem:[#allocation2 + $0xb0] sm:$0xff]
  %v5229 = vld [vmem:[#allocation2 + $0xb8] sm:$0xff]
  %v5230 = vld [vmem:[#allocation2 + $0xc0] sm:$0xff]
  %v5231 = vld [vmem:[#allocation2 + $0xc8] sm:$0xff]
  %v5232 = vld [vmem:[#allocation2 + $0xd0] sm:$0xff]
  %v5233 = vld [vmem:[#allocation2 + $0xd8] sm:$0xff]
  %v5234 = vld [vmem:[#allocation2 + $0xe0] sm:$0xff]
  %v5235 = vld [vmem:[#allocation2 + $0xe8] sm:$0xff]
  %v5236 = vld [vmem:[#allocation2 + $0xf0] sm:$0xff]
  %v5237 = vld [vmem:[#allocation2 + $0xf8] sm:$0xff]
  %v5238 = vld [vmem:[#allocation2 + $0x100] sm:$0xff]
  %v5239 = vld [vmem:[#allocation2 + $0x108] sm:$0xff]
  %v5240 = vld [vmem:[#allocation2 + $0x110] sm:$0xff]
  %v5241 = vld [vmem:[#allocation2 + $0x118] sm:$0xff]
  %v5242 = vld [vmem:[#allocation2 + $0x120] sm:$0xff]
  %v5243 = vld [vmem:[#allocation2 + $0x128] sm:$0xff]
  %v5244 = vld [vmem:[#allocation2 + $0x130] sm:$0xff]
  %v5245 = vld [vmem:[#allocation2 + $0x138] sm:$0xff]
  %v5246 = vld [vmem:[#allocation2 + $0x140] sm:$0xff]
  %v5247 = vld [vmem:[#allocation2 + $0x148] sm:$0xff]
  %v5248 = vld [vmem:[#allocation2 + $0x150] sm:$0xff]
  %v5249 = vld [vmem:[#allocation2 + $0x158] sm:$0xff]
  %v5250 = vld [vmem:[#allocation2 + $0x160] sm:$0xff]
  %v5251 = vld [vmem:[#allocation2 + $0x168] sm:$0xff]
  %v5252 = vld [vmem:[#allocation2 + $0x170] sm:$0xff]
  %v5253 = vld [vmem:[#allocation2 + $0x178] sm:$0xff]
  %v5254 = vld [vmem:[%s0 + $0x30] sm:$0xc]
  %v5255 = vld [vmem:[%s0 + $0x34] sm:$0xf]
  %v5256 = vld [vmem:[%s0 + $0x38] sm:$0xf]
  %v5257 = vld [vmem:[%s0 + $0x3c] sm:$0xf]
  %v5258 = vld [vmem:[%s0 + $0x40] sm:$0xf]
  %v5259 = vld [vmem:[%s0 + $0x44] sm:$0xf]
  %v5260 = vld [vmem:[%s0 + $0x48] sm:$0xf]
  %v5261 = vld [vmem:[%s0 + $0x4c] sm:$0xf]
  %v5262 = vld [vmem:[%s0 + $0x50] sm:$0xf]
  %v5263 = vld [vmem:[%s0 + $0x54] sm:$0xf]
  %v5264 = vld [vmem:[%s0 + $0x58] sm:$0xf]
  %v5265 = vld [vmem:[%s0 + $0x5c] sm:$0xf]
  %v5266 = vld [vmem:[%s0 + $0x60] sm:$0xf]
  %v5267 = vld [vmem:[%s0 + $0x64] sm:$0xf]
  %v5268 = vld [vmem:[%s0 + $0x68] sm:$0xf]
  %v5269 = vld [vmem:[%s0 + $0x6c] sm:$0xf]
  %v5270 = vld [vmem:[%s0 + $0x70] sm:$0xf]
  %v5271 = vld [vmem:[%s0 + $0x74] sm:$0xf]
  %v5272 = vld [vmem:[%s0 + $0x78] sm:$0xf]
  %v5273 = vld [vmem:[%s0 + $0x7c] sm:$0xf]
  %v5274 = vld [vmem:[%s0 + $0x80] sm:$0xf]
  %v5275 = vld [vmem:[%s0 + $0x84] sm:$0xf]
  %v5276 = vld [vmem:[%s0 + $0x88] sm:$0xf]
  %v5277 = vld [vmem:[%s0 + $0x8c] sm:$0xf]
  %v5278 = vld [vmem:[%s0 + $0x90] sm:$0xf]
  %v5279 = vld [vmem:[%s0 + $0x94] sm:$0xf]
  %v5280 = vld [vmem:[%s0 + $0x98] sm:$0xf]
  %v5281 = vld [vmem:[%s0 + $0x9c] sm:$0xf]
  %v5282 = vld [vmem:[%s0 + $0xa0] sm:$0xf]
  %v5283 = vld [vmem:[%s0 + $0xa4] sm:$0xf]
  %v5284 = vld [vmem:[%s0 + $0xa8] sm:$0xf]
  %v5285 = vld [vmem:[%s0 + $0xac] sm:$0xf]
  %v5286 = vld [vmem:[%s0 + $0xb0] sm:$0xf]
  %v5287 = vld [vmem:[%s0 + $0xb4] sm:$0xf]
  %v5288 = vld [vmem:[%s0 + $0xb8] sm:$0xf]
  %v5289 = vld [vmem:[%s0 + $0xbc] sm:$0xf]
  %v5290 = vld [vmem:[%s0 + $0xc0] sm:$0xf]
  %v5291 = vld [vmem:[%s0 + $0xc4] sm:$0xf]
  %v5292 = vld [vmem:[%s0 + $0xc8] sm:$0xf]
  %v5293 = vld [vmem:[%s0 + $0xcc] sm:$0xf]
  %v5294 = vld [vmem:[%s0 + $0xd0] sm:$0xf]
  %v5295 = vld [vmem:[%s0 + $0xd4] sm:$0xf]
  %v5296 = vld [vmem:[%s0 + $0xd8] sm:$0xf]
  %v5297 = vld [vmem:[%s0 + $0xdc] sm:$0xf]
  %v5298 = vld [vmem:[%s0 + $0xe0] sm:$0xf]
  %v5299 = vld [vmem:[%s0 + $0xe4] sm:$0xf]
  %v5300 = vld [vmem:[%s0 + $0xe8] sm:$0xf]
  %v5301 = vld [vmem:[%s0 + $0xec] sm:$0xf]
  %v5302 = vld [vmem:[%s0 + $0xf0] sm:$0x3]
  %s5303 = scalar_lea.vmem %s1, 128
  %v5304 = vld [vmem:[%s5303] sm:$0xf]
  %v5305 = vld [vmem:[%s5303 + $0x4] sm:$0xf]
  %v5306 = vld [vmem:[%s5303 + $0x8] sm:$0xf]
  %v5307 = vld [vmem:[%s5303 + $0xc] sm:$0xf]
  %v5357 = vunpack.c.l.b16 %v5254
  %v5358 = vunpack.c.l.b16 %v5255
  %v5359 = vunpack.c.l.b16 %v5256
  %v5360 = vunpack.c.l.b16 %v5257
  %v5361 = vunpack.c.l.b16 %v5258
  %v5362 = vunpack.c.l.b16 %v5259
  %v5363 = vunpack.c.l.b16 %v5260
  %v5364 = vunpack.c.l.b16 %v5261
  %v5365 = vunpack.c.l.b16 %v5262
  %v5366 = vunpack.c.l.b16 %v5263
  %v5367 = vunpack.c.l.b16 %v5264
  %v5368 = vunpack.c.l.b16 %v5265
  %v5369 = vunpack.c.l.b16 %v5266
  %v5370 = vunpack.c.l.b16 %v5267
  %v5371 = vunpack.c.l.b16 %v5268
  %v5372 = vunpack.c.l.b16 %v5269
  %v5373 = vunpack.c.l.b16 %v5270
  %v5374 = vunpack.c.l.b16 %v5271
  %v5375 = vunpack.c.l.b16 %v5272
  %v5376 = vunpack.c.l.b16 %v5273
  %v5377 = vunpack.c.l.b16 %v5274
  %v5378 = vunpack.c.l.b16 %v5275
  %v5379 = vunpack.c.l.b16 %v5276
  %v5380 = vunpack.c.l.b16 %v5277
  %v5381 = vunpack.c.l.b16 %v5278
  %v5382 = vunpack.c.l.b16 %v5279
  %v5383 = vunpack.c.l.b16 %v5280
  %v5384 = vunpack.c.l.b16 %v5281
  %v5385 = vunpack.c.l.b16 %v5282
  %v5386 = vunpack.c.l.b16 %v5283
  %v5387 = vunpack.c.l.b16 %v5284
  %v5388 = vunpack.c.l.b16 %v5285
  %v5389 = vunpack.c.l.b16 %v5286
  %v5390 = vunpack.c.l.b16 %v5287
  %v5391 = vunpack.c.l.b16 %v5288
  %v5392 = vunpack.c.l.b16 %v5289
  %v5393 = vunpack.c.l.b16 %v5290
  %v5394 = vunpack.c.l.b16 %v5291
  %v5395 = vunpack.c.l.b16 %v5292
  %v5396 = vunpack.c.l.b16 %v5293
  %v5397 = vunpack.c.l.b16 %v5294
  %v5398 = vunpack.c.l.b16 %v5295
  %v5399 = vunpack.c.l.b16 %v5296
  %v5400 = vunpack.c.l.b16 %v5297
  %v5401 = vunpack.c.l.b16 %v5298
  %v5402 = vunpack.c.l.b16 %v5299
  %v5403 = vunpack.c.l.b16 %v5300
  %v5404 = vunpack.c.l.b16 %v5301
  %v5405 = vunpack.c.l.b16 %v5302
  %v5406 = vpack.c.b16 %v5358, %v5357
  %v5407 = vpack.c.b16 %v5360, %v5359
  %v5408 = vpack.c.b16 %v5362, %v5361
  %v5409 = vpack.c.b16 %v5364, %v5363
  %v5410 = vpack.c.b16 %v5366, %v5365
  %v5411 = vpack.c.b16 %v5368, %v5367
  %v5412 = vpack.c.b16 %v5370, %v5369
  %v5413 = vpack.c.b16 %v5372, %v5371
  %v5414 = vpack.c.b16 %v5374, %v5373
  %v5415 = vpack.c.b16 %v5376, %v5375
  %v5416 = vpack.c.b16 %v5378, %v5377
  %v5417 = vpack.c.b16 %v5380, %v5379
  %v5418 = vpack.c.b16 %v5382, %v5381
  %v5419 = vpack.c.b16 %v5384, %v5383
  %v5420 = vpack.c.b16 %v5386, %v5385
  %v5421 = vpack.c.b16 %v5388, %v5387
  %v5422 = vpack.c.b16 %v5390, %v5389
  %v5423 = vpack.c.b16 %v5392, %v5391
  %v5424 = vpack.c.b16 %v5394, %v5393
  %v5425 = vpack.c.b16 %v5396, %v5395
  %v5426 = vpack.c.b16 %v5398, %v5397
  %v5427 = vpack.c.b16 %v5400, %v5399
  %v5428 = vpack.c.b16 %v5402, %v5401
  %v5429 = vpack.c.b16 %v5404, %v5403
  %v5430 = vpack.c.b16 %v5405, %v5405
  %v5431 = vrot.slane %v5406, 2
  %v5432 = vrot.slane %v5407, 2
  %v5433 = vsel %vm1462, %v5431, %v5432
  %v5434 = vrot.slane %v5408, 2
  %v5435 = vsel %vm1462, %v5432, %v5434
  %v5436 = vrot.slane %v5409, 2
  %v5437 = vsel %vm1462, %v5434, %v5436
  %v5438 = vrot.slane %v5410, 2
  %v5439 = vsel %vm1462, %v5436, %v5438
  %v5440 = vrot.slane %v5411, 2
  %v5441 = vsel %vm1462, %v5438, %v5440
  %v5442 = vrot.slane %v5412, 2
  %v5443 = vsel %vm1462, %v5440, %v5442
  %v5444 = vrot.slane %v5413, 2
  %v5445 = vsel %vm1462, %v5442, %v5444
  %v5446 = vrot.slane %v5414, 2
  %v5447 = vsel %vm1462, %v5444, %v5446
  %v5448 = vrot.slane %v5415, 2
  %v5449 = vsel %vm1462, %v5446, %v5448
  %v5450 = vrot.slane %v5416, 2
  %v5451 = vsel %vm1462, %v5448, %v5450
  %v5452 = vrot.slane %v5417, 2
  %v5453 = vsel %vm1462, %v5450, %v5452
  %v5454 = vrot.slane %v5418, 2
  %v5455 = vsel %vm1462, %v5452, %v5454
  %v5456 = vrot.slane %v5419, 2
  %v5457 = vsel %vm1462, %v5454, %v5456
  %v5458 = vrot.slane %v5420, 2
  %v5459 = vsel %vm1462, %v5456, %v5458
  %v5460 = vrot.slane %v5421, 2
  %v5461 = vsel %vm1462, %v5458, %v5460
  %v5462 = vrot.slane %v5422, 2
  %v5463 = vsel %vm1462, %v5460, %v5462
  %v5464 = vrot.slane %v5423, 2
  %v5465 = vsel %vm1462, %v5462, %v5464
  %v5466 = vrot.slane %v5424, 2
  %v5467 = vsel %vm1462, %v5464, %v5466
  %v5468 = vrot.slane %v5425, 2
  %v5469 = vsel %vm1462, %v5466, %v5468
  %v5470 = vrot.slane %v5426, 2
  %v5471 = vsel %vm1462, %v5468, %v5470
  %v5472 = vrot.slane %v5427, 2
  %v5473 = vsel %vm1462, %v5470, %v5472
  %v5474 = vrot.slane %v5428, 2
  %v5475 = vsel %vm1462, %v5472, %v5474
  %v5476 = vrot.slane %v5429, 2
  %v5477 = vsel %vm1462, %v5474, %v5476
  %v5478 = vrot.slane %v5430, 2
  %v5479 = vsel %vm1462, %v5476, %v5478
  %v5484 = vunpack.c.l.b16 %v5304
  %v5485 = vunpack.c.l.b16 %v5305
  %v5486 = vunpack.c.l.b16 %v5306
  %v5487 = vunpack.c.l.b16 %v5307
  %v5488 = vpack.c.b16 %v5485, %v5484
  %v5489 = vpack.c.b16 %v5487, %v5486
  %v5493 = vsel %vm211, %v5433, 0
  %v5496 = vsel %vm211, %v5435, 0
  %v5499 = vsel %vm211, %v5437, 0
  %v5502 = vsel %vm211, %v5439, 0
  %v5505 = vsel %vm211, %v5441, 0
  %v5508 = vsel %vm211, %v5443, 0
  %v5511 = vsel %vm211, %v5445, 0
  %v5514 = vsel %vm211, %v5447, 0
  %v5517 = vsel %vm211, %v5449, 0
  %v5520 = vsel %vm211, %v5451, 0
  %v5523 = vsel %vm211, %v5453, 0
  %v5526 = vsel %vm211, %v5455, 0
  %v5529 = vsel %vm211, %v5457, 0
  %v5532 = vsel %vm211, %v5459, 0
  %v5535 = vsel %vm211, %v5461, 0
  %v5538 = vsel %vm211, %v5463, 0
  %v5541 = vsel %vm211, %v5465, 0
  %v5544 = vsel %vm211, %v5467, 0
  %v5547 = vsel %vm211, %v5469, 0
  %v5550 = vsel %vm211, %v5471, 0
  %v5553 = vsel %vm211, %v5473, 0
  %v5556 = vsel %vm211, %v5475, 0
  %v5559 = vsel %vm211, %v5477, 0
  %v5562 = vsel %vm211, %v5479, 0
  %5564 = vmatprep.subr.bf16.mxu0 0
  %5565 = vmatpush1.bf16.msra.mxu0 0
  %5566 = vmatprep.subr.bf16.mxu0 0
  %5567 = vmatpush1.bf16.msra.mxu0 0
  %5568 = vmatprep.subr.bf16.mxu0 0
  %5569 = vmatpush1.bf16.msra.mxu0 0
  %5570 = vmatprep.subr.bf16.mxu0 0
  %5571 = vmatpush1.bf16.msra.mxu0 0
  %5572 = vmatprep.subr.bf16.mxu0 0
  %5573 = vmatpush1.bf16.msra.mxu0 0
  %5574 = vmatprep.subr.bf16.mxu0 0
  %5575 = vmatpush1.bf16.msra.mxu0 0
  %5576 = vmatprep.subr.bf16.mxu0 0
  %5577 = vmatpush1.bf16.msra.mxu0 %v5489
  %5578 = vmatprep.subr.bf16.mxu0 0
  %5579 = vmatpush1.bf16.msra.mxu0 %v5488
  %5580 = vmatprep.subr.bf16.mxu0 0
  %5581 = vmatpush2.bf16.msra.mxu0 0
  %5582 = vmatprep.subr.bf16.mxu0 0
  %5583 = vmatpush2.bf16.msra.mxu0 0
  %5584 = vmatprep.subr.bf16.mxu0 0
  %5585 = vmatpush2.bf16.msra.mxu0 0
  %5586 = vmatprep.subr.bf16.mxu0 0
  %5587 = vmatpush2.bf16.msra.mxu0 0
  %5588 = vmatprep.subr.bf16.mxu0 0
  %5589 = vmatpush2.bf16.msra.mxu0 0
  %5590 = vmatprep.subr.bf16.mxu0 0
  %5591 = vmatpush2.bf16.msra.mxu0 0
  %5592 = vmatprep.subr.bf16.mxu0 0
  %5593 = vmatpush2.bf16.msra.mxu0 0
  %5594 = vmatprep.subr.bf16.mxu0 0
  %5595 = vmatpush2.bf16.msra.mxu0 0
  %5596 = vmatprep.mubr.bf16.mxu0 0
  %5597 = vmatmul.mubr.bf16.gmra.mxu0 %v5493
  %v5598 = vpop.f32.mrf.mxu0
  %v5599 = vadd.f32 0.0, %v5598
  %v5600 = vpop.f32.mrf.mxu0
  %v5601 = vpop.f32.mrf.mxu0
  %v5602 = vadd.f32 0.0, %v5601
  %v5603 = vpop.f32.mrf.mxu0
  %5604 = vmatprep.mubr.bf16.mxu0 0
  %5605 = vmatmul.mubr.bf16.gmra.mxu0 %v5496
  %v5606 = vpop.f32.mrf.mxu0
  %v5607 = vadd.f32 0.0, %v5606
  %v5608 = vpop.f32.mrf.mxu0
  %v5609 = vpop.f32.mrf.mxu0
  %v5610 = vadd.f32 0.0, %v5609
  %v5611 = vpop.f32.mrf.mxu0
  %5612 = vmatprep.mubr.bf16.mxu0 0
  %5613 = vmatmul.mubr.bf16.gmra.mxu0 %v5499
  %v5614 = vpop.f32.mrf.mxu0
  %v5615 = vadd.f32 0.0, %v5614
  %v5616 = vpop.f32.mrf.mxu0
  %v5617 = vpop.f32.mrf.mxu0
  %v5618 = vadd.f32 0.0, %v5617
  %v5619 = vpop.f32.mrf.mxu0
  %5620 = vmatprep.mubr.bf16.mxu0 0
  %5621 = vmatmul.mubr.bf16.gmra.mxu0 %v5502
  %v5622 = vpop.f32.mrf.mxu0
  %v5623 = vadd.f32 0.0, %v5622
  %v5624 = vpop.f32.mrf.mxu0
  %v5625 = vpop.f32.mrf.mxu0
  %v5626 = vadd.f32 0.0, %v5625
  %v5627 = vpop.f32.mrf.mxu0
  %5628 = vmatprep.mubr.bf16.mxu0 0
  %5629 = vmatmul.mubr.bf16.gmra.mxu0 %v5505
  %v5630 = vpop.f32.mrf.mxu0
  %v5631 = vadd.f32 0.0, %v5630
  %v5632 = vpop.f32.mrf.mxu0
  %v5633 = vpop.f32.mrf.mxu0
  %v5634 = vadd.f32 0.0, %v5633
  %v5635 = vpop.f32.mrf.mxu0
  %5636 = vmatprep.mubr.bf16.mxu0 0
  %5637 = vmatmul.mubr.bf16.gmra.mxu0 %v5508
  %v5638 = vpop.f32.mrf.mxu0
  %v5639 = vadd.f32 0.0, %v5638
  %v5640 = vpop.f32.mrf.mxu0
  %v5641 = vpop.f32.mrf.mxu0
  %v5642 = vadd.f32 0.0, %v5641
  %v5643 = vpop.f32.mrf.mxu0
  %5644 = vmatprep.mubr.bf16.mxu0 0
  %5645 = vmatmul.mubr.bf16.gmra.mxu0 %v5511
  %v5646 = vpop.f32.mrf.mxu0
  %v5647 = vadd.f32 0.0, %v5646
  %v5648 = vpop.f32.mrf.mxu0
  %v5649 = vpop.f32.mrf.mxu0
  %v5650 = vadd.f32 0.0, %v5649
  %v5651 = vpop.f32.mrf.mxu0
  %5652 = vmatprep.mubr.bf16.mxu0 0
  %5653 = vmatmul.mubr.bf16.gmra.mxu0 %v5514
  %v5654 = vpop.f32.mrf.mxu0
  %v5655 = vadd.f32 0.0, %v5654
  %v5656 = vpop.f32.mrf.mxu0
  %v5657 = vpop.f32.mrf.mxu0
  %v5658 = vadd.f32 0.0, %v5657
  %v5659 = vpop.f32.mrf.mxu0
  %5660 = vmatprep.mubr.bf16.mxu0 0
  %5661 = vmatmul.mubr.bf16.gmra.mxu0 %v5517
  %v5662 = vpop.f32.mrf.mxu0
  %v5663 = vadd.f32 0.0, %v5662
  %v5664 = vpop.f32.mrf.mxu0
  %v5665 = vpop.f32.mrf.mxu0
  %v5666 = vadd.f32 0.0, %v5665
  %v5667 = vpop.f32.mrf.mxu0
  %5668 = vmatprep.mubr.bf16.mxu0 0
  %5669 = vmatmul.mubr.bf16.gmra.mxu0 %v5520
  %v5670 = vpop.f32.mrf.mxu0
  %v5671 = vadd.f32 0.0, %v5670
  %v5672 = vpop.f32.mrf.mxu0
  %v5673 = vpop.f32.mrf.mxu0
  %v5674 = vadd.f32 0.0, %v5673
  %v5675 = vpop.f32.mrf.mxu0
  %5676 = vmatprep.mubr.bf16.mxu0 0
  %5677 = vmatmul.mubr.bf16.gmra.mxu0 %v5523
  %v5678 = vpop.f32.mrf.mxu0
  %v5679 = vadd.f32 0.0, %v5678
  %v5680 = vpop.f32.mrf.mxu0
  %v5681 = vpop.f32.mrf.mxu0
  %v5682 = vadd.f32 0.0, %v5681
  %v5683 = vpop.f32.mrf.mxu0
  %5684 = vmatprep.mubr.bf16.mxu0 0
  %5685 = vmatmul.mubr.bf16.gmra.mxu0 %v5526
  %v5686 = vpop.f32.mrf.mxu0
  %v5687 = vadd.f32 0.0, %v5686
  %v5688 = vpop.f32.mrf.mxu0
  %v5689 = vpop.f32.mrf.mxu0
  %v5690 = vadd.f32 0.0, %v5689
  %v5691 = vpop.f32.mrf.mxu0
  %5692 = vmatprep.mubr.bf16.mxu0 0
  %5693 = vmatmul.mubr.bf16.gmra.mxu0 %v5529
  %v5694 = vpop.f32.mrf.mxu0
  %v5695 = vadd.f32 0.0, %v5694
  %v5696 = vpop.f32.mrf.mxu0
  %v5697 = vpop.f32.mrf.mxu0
  %v5698 = vadd.f32 0.0, %v5697
  %v5699 = vpop.f32.mrf.mxu0
  %5700 = vmatprep.mubr.bf16.mxu0 0
  %5701 = vmatmul.mubr.bf16.gmra.mxu0 %v5532
  %v5702 = vpop.f32.mrf.mxu0
  %v5703 = vadd.f32 0.0, %v5702
  %v5704 = vpop.f32.mrf.mxu0
  %v5705 = vpop.f32.mrf.mxu0
  %v5706 = vadd.f32 0.0, %v5705
  %v5707 = vpop.f32.mrf.mxu0
  %5708 = vmatprep.mubr.bf16.mxu0 0
  %5709 = vmatmul.mubr.bf16.gmra.mxu0 %v5535
  %v5710 = vpop.f32.mrf.mxu0
  %v5711 = vadd.f32 0.0, %v5710
  %v5712 = vpop.f32.mrf.mxu0
  %v5713 = vpop.f32.mrf.mxu0
  %v5714 = vadd.f32 0.0, %v5713
  %v5715 = vpop.f32.mrf.mxu0
  %5716 = vmatprep.mubr.bf16.mxu0 0
  %5717 = vmatmul.mubr.bf16.gmra.mxu0 %v5538
  %v5718 = vpop.f32.mrf.mxu0
  %v5719 = vadd.f32 0.0, %v5718
  %v5720 = vpop.f32.mrf.mxu0
  %v5721 = vpop.f32.mrf.mxu0
  %v5722 = vadd.f32 0.0, %v5721
  %v5723 = vpop.f32.mrf.mxu0
  %5724 = vmatprep.mubr.bf16.mxu0 0
  %5725 = vmatmul.mubr.bf16.gmra.mxu0 %v5541
  %v5726 = vpop.f32.mrf.mxu0
  %v5727 = vadd.f32 0.0, %v5726
  %v5728 = vpop.f32.mrf.mxu0
  %v5729 = vpop.f32.mrf.mxu0
  %v5730 = vadd.f32 0.0, %v5729
  %v5731 = vpop.f32.mrf.mxu0
  %5732 = vmatprep.mubr.bf16.mxu0 0
  %5733 = vmatmul.mubr.bf16.gmra.mxu0 %v5544
  %v5734 = vpop.f32.mrf.mxu0
  %v5735 = vadd.f32 0.0, %v5734
  %v5736 = vpop.f32.mrf.mxu0
  %v5737 = vpop.f32.mrf.mxu0
  %v5738 = vadd.f32 0.0, %v5737
  %v5739 = vpop.f32.mrf.mxu0
  %5740 = vmatprep.mubr.bf16.mxu0 0
  %5741 = vmatmul.mubr.bf16.gmra.mxu0 %v5547
  %v5742 = vpop.f32.mrf.mxu0
  %v5743 = vadd.f32 0.0, %v5742
  %v5744 = vpop.f32.mrf.mxu0
  %v5745 = vpop.f32.mrf.mxu0
  %v5746 = vadd.f32 0.0, %v5745
  %v5747 = vpop.f32.mrf.mxu0
  %5748 = vmatprep.mubr.bf16.mxu0 0
  %5749 = vmatmul.mubr.bf16.gmra.mxu0 %v5550
  %v5750 = vpop.f32.mrf.mxu0
  %v5751 = vadd.f32 0.0, %v5750
  %v5752 = vpop.f32.mrf.mxu0
  %v5753 = vpop.f32.mrf.mxu0
  %v5754 = vadd.f32 0.0, %v5753
  %v5755 = vpop.f32.mrf.mxu0
  %5756 = vmatprep.mubr.bf16.mxu0 0
  %5757 = vmatmul.mubr.bf16.gmra.mxu0 %v5553
  %v5758 = vpop.f32.mrf.mxu0
  %v5759 = vadd.f32 0.0, %v5758
  %v5760 = vpop.f32.mrf.mxu0
  %v5761 = vpop.f32.mrf.mxu0
  %v5762 = vadd.f32 0.0, %v5761
  %v5763 = vpop.f32.mrf.mxu0
  %5764 = vmatprep.mubr.bf16.mxu0 0
  %5765 = vmatmul.mubr.bf16.gmra.mxu0 %v5556
  %v5766 = vpop.f32.mrf.mxu0
  %v5767 = vadd.f32 0.0, %v5766
  %v5768 = vpop.f32.mrf.mxu0
  %v5769 = vpop.f32.mrf.mxu0
  %v5770 = vadd.f32 0.0, %v5769
  %v5771 = vpop.f32.mrf.mxu0
  %5772 = vmatprep.mubr.bf16.mxu0 0
  %5773 = vmatmul.mubr.bf16.gmra.mxu0 %v5559
  %v5774 = vpop.f32.mrf.mxu0
  %v5775 = vadd.f32 0.0, %v5774
  %v5776 = vpop.f32.mrf.mxu0
  %v5777 = vpop.f32.mrf.mxu0
  %v5778 = vadd.f32 0.0, %v5777
  %v5779 = vpop.f32.mrf.mxu0
  %5780 = vmatprep.mubr.bf16.mxu0 0
  %5781 = vmatmul.mubr.bf16.gmra.mxu0 %v5562
  %v5782 = vpop.f32.mrf.mxu0
  %v5783 = vadd.f32 0.0, %v5782
  %v5784 = vpop.f32.mrf.mxu0
  %v5785 = vpop.f32.mrf.mxu0
  %v5786 = vadd.f32 0.0, %v5785
  %v5787 = vpop.f32.mrf.mxu0
  %5788 = vdwg.mxu0
  %v5789 = vadd.f32 %v5206, %v5599
  %v5790 = vadd.f32 %v5207, %v5602
  %v5791 = vadd.f32 %v5208, %v5607
  %v5792 = vadd.f32 %v5209, %v5610
  %v5793 = vadd.f32 %v5210, %v5615
  %v5794 = vadd.f32 %v5211, %v5618
  %v5795 = vadd.f32 %v5212, %v5623
  %v5796 = vadd.f32 %v5213, %v5626
  %v5797 = vadd.f32 %v5214, %v5631
  %v5798 = vadd.f32 %v5215, %v5634
  %v5799 = vadd.f32 %v5216, %v5639
  %v5800 = vadd.f32 %v5217, %v5642
  %v5801 = vadd.f32 %v5218, %v5647
  %v5802 = vadd.f32 %v5219, %v5650
  %v5803 = vadd.f32 %v5220, %v5655
  %v5804 = vadd.f32 %v5221, %v5658
  %v5805 = vadd.f32 %v5222, %v5663
  %v5806 = vadd.f32 %v5223, %v5666
  %v5807 = vadd.f32 %v5224, %v5671
  %v5808 = vadd.f32 %v5225, %v5674
  %v5809 = vadd.f32 %v5226, %v5679
  %v5810 = vadd.f32 %v5227, %v5682
  %v5811 = vadd.f32 %v5228, %v5687
  %v5812 = vadd.f32 %v5229, %v5690
  %v5813 = vadd.f32 %v5230, %v5695
  %v5814 = vadd.f32 %v5231, %v5698
  %v5815 = vadd.f32 %v5232, %v5703
  %v5816 = vadd.f32 %v5233, %v5706
  %v5817 = vadd.f32 %v5234, %v5711
  %v5818 = vadd.f32 %v5235, %v5714
  %v5819 = vadd.f32 %v5236, %v5719
  %v5820 = vadd.f32 %v5237, %v5722
  %v5821 = vadd.f32 %v5238, %v5727
  %v5822 = vadd.f32 %v5239, %v5730
  %v5823 = vadd.f32 %v5240, %v5735
  %v5824 = vadd.f32 %v5241, %v5738
  %v5825 = vadd.f32 %v5242, %v5743
  %v5826 = vadd.f32 %v5243, %v5746
  %v5827 = vadd.f32 %v5244, %v5751
  %v5828 = vadd.f32 %v5245, %v5754
  %v5829 = vadd.f32 %v5246, %v5759
  %v5830 = vadd.f32 %v5247, %v5762
  %v5831 = vadd.f32 %v5248, %v5767
  %v5832 = vadd.f32 %v5249, %v5770
  %v5833 = vadd.f32 %v5250, %v5775
  %v5834 = vadd.f32 %v5251, %v5778
  %v5835 = vadd.f32 %v5252, %v5783
  %v5836 = vadd.f32 %v5253, %v5786
  %5837 = vst.msk [vmem:[#allocation2] sm:$0xff] %vm211, %v5789
  %5838 = vst.msk [vmem:[#allocation2 + $0x8] sm:$0xff] %vm211, %v5790
  %5839 = vst.msk [vmem:[#allocation2 + $0x10] sm:$0xff] %vm211, %v5791
  %5840 = vst.msk [vmem:[#allocation2 + $0x18] sm:$0xff] %vm211, %v5792
  %5841 = vst.msk [vmem:[#allocation2 + $0x20] sm:$0xff] %vm211, %v5793
  %5842 = vst.msk [vmem:[#allocation2 + $0x28] sm:$0xff] %vm211, %v5794
  %5843 = vst.msk [vmem:[#allocation2 + $0x30] sm:$0xff] %vm211, %v5795
  %5844 = vst.msk [vmem:[#allocation2 + $0x38] sm:$0xff] %vm211, %v5796
  %5845 = vst.msk [vmem:[#allocation2 + $0x40] sm:$0xff] %vm211, %v5797
  %5846 = vst.msk [vmem:[#allocation2 + $0x48] sm:$0xff] %vm211, %v5798
  %5847 = vst.msk [vmem:[#allocation2 + $0x50] sm:$0xff] %vm211, %v5799
  %5848 = vst.msk [vmem:[#allocation2 + $0x58] sm:$0xff] %vm211, %v5800
  %5849 = vst.msk [vmem:[#allocation2 + $0x60] sm:$0xff] %vm211, %v5801
  %5850 = vst.msk [vmem:[#allocation2 + $0x68] sm:$0xff] %vm211, %v5802
  %5851 = vst.msk [vmem:[#allocation2 + $0x70] sm:$0xff] %vm211, %v5803
  %5852 = vst.msk [vmem:[#allocation2 + $0x78] sm:$0xff] %vm211, %v5804
  %5853 = vst.msk [vmem:[#allocation2 + $0x80] sm:$0xff] %vm211, %v5805
  %5854 = vst.msk [vmem:[#allocation2 + $0x88] sm:$0xff] %vm211, %v5806
  %5855 = vst.msk [vmem:[#allocation2 + $0x90] sm:$0xff] %vm211, %v5807
  %5856 = vst.msk [vmem:[#allocation2 + $0x98] sm:$0xff] %vm211, %v5808
  %5857 = vst.msk [vmem:[#allocation2 + $0xa0] sm:$0xff] %vm211, %v5809
  %5858 = vst.msk [vmem:[#allocation2 + $0xa8] sm:$0xff] %vm211, %v5810
  %5859 = vst.msk [vmem:[#allocation2 + $0xb0] sm:$0xff] %vm211, %v5811
  %5860 = vst.msk [vmem:[#allocation2 + $0xb8] sm:$0xff] %vm211, %v5812
  %5861 = vst.msk [vmem:[#allocation2 + $0xc0] sm:$0xff] %vm211, %v5813
  %5862 = vst.msk [vmem:[#allocation2 + $0xc8] sm:$0xff] %vm211, %v5814
  %5863 = vst.msk [vmem:[#allocation2 + $0xd0] sm:$0xff] %vm211, %v5815
  %5864 = vst.msk [vmem:[#allocation2 + $0xd8] sm:$0xff] %vm211, %v5816
  %5865 = vst.msk [vmem:[#allocation2 + $0xe0] sm:$0xff] %vm211, %v5817
  %5866 = vst.msk [vmem:[#allocation2 + $0xe8] sm:$0xff] %vm211, %v5818
  %5867 = vst.msk [vmem:[#allocation2 + $0xf0] sm:$0xff] %vm211, %v5819
  %5868 = vst.msk [vmem:[#allocation2 + $0xf8] sm:$0xff] %vm211, %v5820
  %5869 = vst.msk [vmem:[#allocation2 + $0x100] sm:$0xff] %vm211, %v5821
  %5870 = vst.msk [vmem:[#allocation2 + $0x108] sm:$0xff] %vm211, %v5822
  %5871 = vst.msk [vmem:[#allocation2 + $0x110] sm:$0xff] %vm211, %v5823
  %5872 = vst.msk [vmem:[#allocation2 + $0x118] sm:$0xff] %vm211, %v5824
  %5873 = vst.msk [vmem:[#allocation2 + $0x120] sm:$0xff] %vm211, %v5825
  %5874 = vst.msk [vmem:[#allocation2 + $0x128] sm:$0xff] %vm211, %v5826
  %5875 = vst.msk [vmem:[#allocation2 + $0x130] sm:$0xff] %vm211, %v5827
  %5876 = vst.msk [vmem:[#allocation2 + $0x138] sm:$0xff] %vm211, %v5828
  %5877 = vst.msk [vmem:[#allocation2 + $0x140] sm:$0xff] %vm211, %v5829
  %5878 = vst.msk [vmem:[#allocation2 + $0x148] sm:$0xff] %vm211, %v5830
  %5879 = vst.msk [vmem:[#allocation2 + $0x150] sm:$0xff] %vm211, %v5831
  %5880 = vst.msk [vmem:[#allocation2 + $0x158] sm:$0xff] %vm211, %v5832
  %5881 = vst.msk [vmem:[#allocation2 + $0x160] sm:$0xff] %vm211, %v5833
  %5882 = vst.msk [vmem:[#allocation2 + $0x168] sm:$0xff] %vm211, %v5834
  %5883 = vst.msk [vmem:[#allocation2 + $0x170] sm:$0xff] %vm211, %v5835
  %5884 = vst.msk [vmem:[#allocation2 + $0x178] sm:$0xff] %vm211, %v5836
  %v5885 = vld [vmem:[#allocation2] sm:$0xff]
  %v5886 = vld [vmem:[#allocation2 + $0x8] sm:$0xff]
  %v5887 = vld [vmem:[#allocation2 + $0x10] sm:$0xff]
  %v5888 = vld [vmem:[#allocation2 + $0x18] sm:$0xff]
  %v5889 = vld [vmem:[#allocation2 + $0x20] sm:$0xff]
  %v5890 = vld [vmem:[#allocation2 + $0x28] sm:$0xff]
  %v5891 = vld [vmem:[#allocation2 + $0x30] sm:$0xff]
  %v5892 = vld [vmem:[#allocation2 + $0x38] sm:$0xff]
  %v5893 = vld [vmem:[#allocation2 + $0x40] sm:$0xff]
  %v5894 = vld [vmem:[#allocation2 + $0x48] sm:$0xff]
  %v5895 = vld [vmem:[#allocation2 + $0x50] sm:$0xff]
  %v5896 = vld [vmem:[#allocation2 + $0x58] sm:$0xff]
  %v5897 = vld [vmem:[#allocation2 + $0x60] sm:$0xff]
  %v5898 = vld [vmem:[#allocation2 + $0x68] sm:$0xff]
  %v5899 = vld [vmem:[#allocation2 + $0x70] sm:$0xff]
  %v5900 = vld [vmem:[#allocation2 + $0x78] sm:$0xff]
  %v5901 = vld [vmem:[#allocation2 + $0x80] sm:$0xff]
  %v5902 = vld [vmem:[#allocation2 + $0x88] sm:$0xff]
  %v5903 = vld [vmem:[#allocation2 + $0x90] sm:$0xff]
  %v5904 = vld [vmem:[#allocation2 + $0x98] sm:$0xff]
  %v5905 = vld [vmem:[#allocation2 + $0xa0] sm:$0xff]
  %v5906 = vld [vmem:[#allocation2 + $0xa8] sm:$0xff]
  %v5907 = vld [vmem:[#allocation2 + $0xb0] sm:$0xff]
  %v5908 = vld [vmem:[#allocation2 + $0xb8] sm:$0xff]
  %v5909 = vld [vmem:[#allocation2 + $0xc0] sm:$0xff]
  %v5910 = vld [vmem:[#allocation2 + $0xc8] sm:$0xff]
  %v5911 = vld [vmem:[#allocation2 + $0xd0] sm:$0xff]
  %v5912 = vld [vmem:[#allocation2 + $0xd8] sm:$0xff]
  %v5913 = vld [vmem:[#allocation2 + $0xe0] sm:$0xff]
  %v5914 = vld [vmem:[#allocation2 + $0xe8] sm:$0xff]
  %v5915 = vld [vmem:[#allocation2 + $0xf0] sm:$0xff]
  %v5916 = vld [vmem:[#allocation2 + $0xf8] sm:$0xff]
  %v5917 = vld [vmem:[#allocation2 + $0x100] sm:$0xff]
  %v5918 = vld [vmem:[#allocation2 + $0x108] sm:$0xff]
  %v5919 = vld [vmem:[#allocation2 + $0x110] sm:$0xff]
  %v5920 = vld [vmem:[#allocation2 + $0x118] sm:$0xff]
  %v5921 = vld [vmem:[#allocation2 + $0x120] sm:$0xff]
  %v5922 = vld [vmem:[#allocation2 + $0x128] sm:$0xff]
  %v5923 = vld [vmem:[#allocation2 + $0x130] sm:$0xff]
  %v5924 = vld [vmem:[#allocation2 + $0x138] sm:$0xff]
  %v5925 = vld [vmem:[#allocation2 + $0x140] sm:$0xff]
  %v5926 = vld [vmem:[#allocation2 + $0x148] sm:$0xff]
  %v5927 = vld [vmem:[#allocation2 + $0x150] sm:$0xff]
  %v5928 = vld [vmem:[#allocation2 + $0x158] sm:$0xff]
  %v5929 = vld [vmem:[#allocation2 + $0x160] sm:$0xff]
  %v5930 = vld [vmem:[#allocation2 + $0x168] sm:$0xff]
  %v5931 = vld [vmem:[#allocation2 + $0x170] sm:$0xff]
  %v5932 = vld [vmem:[#allocation2 + $0x178] sm:$0xff]
  %v5933 = vld [vmem:[%s2] sm:$0x1]
  %v5935 = vlaneseq
  %v5936 = vshrl.u32 %v5935, 7
  %v5937 = vsub.s32 0, %v5936
  %v5938 = vrot.slane %v5933, %v5937
  %v5940 = vadd.f32 %v5885, %v5938
  %v5941 = vadd.f32 %v5886, %v5938
  %v5942 = vadd.f32 %v5887, %v5938
  %v5943 = vadd.f32 %v5888, %v5938
  %v5944 = vadd.f32 %v5889, %v5938
  %v5945 = vadd.f32 %v5890, %v5938
  %v5946 = vadd.f32 %v5891, %v5938
  %v5947 = vadd.f32 %v5892, %v5938
  %v5948 = vadd.f32 %v5893, %v5938
  %v5949 = vadd.f32 %v5894, %v5938
  %v5950 = vadd.f32 %v5895, %v5938
  %v5951 = vadd.f32 %v5896, %v5938
  %v5952 = vadd.f32 %v5897, %v5938
  %v5953 = vadd.f32 %v5898, %v5938
  %v5954 = vadd.f32 %v5899, %v5938
  %v5955 = vadd.f32 %v5900, %v5938
  %v5956 = vadd.f32 %v5901, %v5938
  %v5957 = vadd.f32 %v5902, %v5938
  %v5958 = vadd.f32 %v5903, %v5938
  %v5959 = vadd.f32 %v5904, %v5938
  %v5960 = vadd.f32 %v5905, %v5938
  %v5961 = vadd.f32 %v5906, %v5938
  %v5962 = vadd.f32 %v5907, %v5938
  %v5963 = vadd.f32 %v5908, %v5938
  %v5964 = vadd.f32 %v5909, %v5938
  %v5965 = vadd.f32 %v5910, %v5938
  %v5966 = vadd.f32 %v5911, %v5938
  %v5967 = vadd.f32 %v5912, %v5938
  %v5968 = vadd.f32 %v5913, %v5938
  %v5969 = vadd.f32 %v5914, %v5938
  %v5970 = vadd.f32 %v5915, %v5938
  %v5971 = vadd.f32 %v5916, %v5938
  %v5972 = vadd.f32 %v5917, %v5938
  %v5973 = vadd.f32 %v5918, %v5938
  %v5974 = vadd.f32 %v5919, %v5938
  %v5975 = vadd.f32 %v5920, %v5938
  %v5976 = vadd.f32 %v5921, %v5938
  %v5977 = vadd.f32 %v5922, %v5938
  %v5978 = vadd.f32 %v5923, %v5938
  %v5979 = vadd.f32 %v5924, %v5938
  %v5980 = vadd.f32 %v5925, %v5938
  %v5981 = vadd.f32 %v5926, %v5938
  %v5982 = vadd.f32 %v5927, %v5938
  %v5983 = vadd.f32 %v5928, %v5938
  %v5984 = vadd.f32 %v5929, %v5938
  %v5985 = vadd.f32 %v5930, %v5938
  %v5986 = vadd.f32 %v5931, %v5938
  %v5987 = vadd.f32 %v5932, %v5938
  %v5988 = vld [vmem:[%s3] sm:$0x1]
  %v5989 = vld [vmem:[%s4] sm:$0x1]
  %v5990 = vld [vmem:[%s5] sm:$0xff]
  %v5991 = vld [vmem:[%s5 + $0x8] sm:$0xff]
  %v5992 = vld [vmem:[%s5 + $0x10] sm:$0xff]
  %v5993 = vld [vmem:[%s5 + $0x18] sm:$0xff]
  %v5994 = vld [vmem:[%s6] sm:$0xff]
  %v5995 = vld [vmem:[%s6 + $0x8] sm:$0xff]
  %v5996 = vld [vmem:[%s6 + $0x10] sm:$0xff]
  %v5997 = vld [vmem:[%s6 + $0x18] sm:$0xff]
  %v5998 = vlaneseq
  %v5999 = vshrl.u32 %v5998, 7
  %v6000 = vadd.s32 %v5999, 8
  %v6001 = vadd.s32 %v5999, 16
  %v6002 = vadd.s32 %v5999, 24
  %v6003 = vadd.s32 %v5999, 32
  %v6004 = vadd.s32 %v5999, 40
  %v6005 = vadd.s32 %v5999, 48
  %v6006 = vadd.s32 %v5999, 56
  %v6007 = vadd.s32 %v5999, 64
  %v6008 = vadd.s32 %v5999, 72
  %v6009 = vadd.s32 %v5999, 80
  %v6010 = vadd.s32 %v5999, 88
  %v6011 = vadd.s32 %v5999, 96
  %v6012 = vadd.s32 %v5999, 104
  %v6013 = vadd.s32 %v5999, 112
  %v6014 = vadd.s32 %v5999, 120
  %v6015 = vadd.s32 %v5999, 128
  %v6016 = vadd.s32 %v5999, 136
  %v6017 = vadd.s32 %v5999, 144
  %v6018 = vadd.s32 %v5999, 152
  %v6019 = vadd.s32 %v5999, 160
  %v6020 = vadd.s32 %v5999, 168
  %v6021 = vadd.s32 %v5999, 176
  %v6022 = vadd.s32 %v5999, 184
  %v6023 = vadd.s32 %v5999, 192
  %v6024 = vadd.s32 %v5999, 200
  %v6025 = vadd.s32 %v5999, 208
  %v6026 = vadd.s32 %v5999, 216
  %v6027 = vadd.s32 %v5999, 224
  %v6028 = vadd.s32 %v5999, 232
  %v6029 = vadd.s32 %v5999, 240
  %v6030 = vadd.s32 %v5999, 248
  %v6031 = vadd.s32 %v5999, 256
  %v6032 = vadd.s32 %v5999, 264
  %v6033 = vadd.s32 %v5999, 272
  %v6034 = vadd.s32 %v5999, 280
  %v6035 = vadd.s32 %v5999, 288
  %v6036 = vadd.s32 %v5999, 296
  %v6037 = vadd.s32 %v5999, 304
  %v6038 = vadd.s32 %v5999, 312
  %v6039 = vadd.s32 %v5999, 320
  %v6040 = vadd.s32 %v5999, 328
  %v6041 = vadd.s32 %v5999, 336
  %v6042 = vadd.s32 %v5999, 344
  %v6043 = vadd.s32 %v5999, 352
  %v6044 = vadd.s32 %v5999, 360
  %v6045 = vadd.s32 %v5999, 368
  %v6046 = vadd.s32 %v5999, 376
  %vm6047 = vcmp.lt.s32.totalorder %v5999, 0
  %v6048 = vsub.s32 0, %v5999
  %v6049 = vsel %vm6047, %v6048, %v5999
  %v6050 = vmul.u32.u64.compose %v6049, 2863311531
  %v6051 = vextract.low.u32 %v6050
  %v6052 = vextract.high.u32 %v6050
  %v6053 = vshrl.u32 %v6052, 4
  %v6054 = vmul.u32 %v6053, 24
  %v6055 = vsub.s32 %v6049, %v6054
  %v6056 = vsub.s32 0, %v6055
  %v6057 = vsel %vm6047, %v6056, %v6055
  %vm6058 = vcmp.lt.s32.totalorder %v6000, 0
  %v6059 = vsub.s32 0, %v6000
  %v6060 = vsel %vm6058, %v6059, %v6000
  %v6061 = vmul.u32.u64.compose %v6060, 2863311531
  %v6062 = vextract.low.u32 %v6061
  %v6063 = vextract.high.u32 %v6061
  %v6064 = vshrl.u32 %v6063, 4
  %v6065 = vmul.u32 %v6064, 24
  %v6066 = vsub.s32 %v6060, %v6065
  %v6067 = vsub.s32 0, %v6066
  %v6068 = vsel %vm6058, %v6067, %v6066
  %vm6069 = vcmp.lt.s32.totalorder %v6001, 0
  %v6070 = vsub.s32 0, %v6001
  %v6071 = vsel %vm6069, %v6070, %v6001
  %v6072 = vmul.u32.u64.compose %v6071, 2863311531
  %v6073 = vextract.low.u32 %v6072
  %v6074 = vextract.high.u32 %v6072
  %v6075 = vshrl.u32 %v6074, 4
  %v6076 = vmul.u32 %v6075, 24
  %v6077 = vsub.s32 %v6071, %v6076
  %v6078 = vsub.s32 0, %v6077
  %v6079 = vsel %vm6069, %v6078, %v6077
  %vm6080 = vcmp.lt.s32.totalorder %v6002, 0
  %v6081 = vsub.s32 0, %v6002
  %v6082 = vsel %vm6080, %v6081, %v6002
  %v6083 = vmul.u32.u64.compose %v6082, 2863311531
  %v6084 = vextract.low.u32 %v6083
  %v6085 = vextract.high.u32 %v6083
  %v6086 = vshrl.u32 %v6085, 4
  %v6087 = vmul.u32 %v6086, 24
  %v6088 = vsub.s32 %v6082, %v6087
  %v6089 = vsub.s32 0, %v6088
  %v6090 = vsel %vm6080, %v6089, %v6088
  %vm6091 = vcmp.lt.s32.totalorder %v6003, 0
  %v6092 = vsub.s32 0, %v6003
  %v6093 = vsel %vm6091, %v6092, %v6003
  %v6094 = vmul.u32.u64.compose %v6093, 2863311531
  %v6095 = vextract.low.u32 %v6094
  %v6096 = vextract.high.u32 %v6094
  %v6097 = vshrl.u32 %v6096, 4
  %v6098 = vmul.u32 %v6097, 24
  %v6099 = vsub.s32 %v6093, %v6098
  %v6100 = vsub.s32 0, %v6099
  %v6101 = vsel %vm6091, %v6100, %v6099
  %vm6102 = vcmp.lt.s32.totalorder %v6004, 0
  %v6103 = vsub.s32 0, %v6004
  %v6104 = vsel %vm6102, %v6103, %v6004
  %v6105 = vmul.u32.u64.compose %v6104, 2863311531
  %v6106 = vextract.low.u32 %v6105
  %v6107 = vextract.high.u32 %v6105
  %v6108 = vshrl.u32 %v6107, 4
  %v6109 = vmul.u32 %v6108, 24
  %v6110 = vsub.s32 %v6104, %v6109
  %v6111 = vsub.s32 0, %v6110
  %v6112 = vsel %vm6102, %v6111, %v6110
  %vm6113 = vcmp.lt.s32.totalorder %v6005, 0
  %v6114 = vsub.s32 0, %v6005
  %v6115 = vsel %vm6113, %v6114, %v6005
  %v6116 = vmul.u32.u64.compose %v6115, 2863311531
  %v6117 = vextract.low.u32 %v6116
  %v6118 = vextract.high.u32 %v6116
  %v6119 = vshrl.u32 %v6118, 4
  %v6120 = vmul.u32 %v6119, 24
  %v6121 = vsub.s32 %v6115, %v6120
  %v6122 = vsub.s32 0, %v6121
  %v6123 = vsel %vm6113, %v6122, %v6121
  %vm6124 = vcmp.lt.s32.totalorder %v6006, 0
  %v6125 = vsub.s32 0, %v6006
  %v6126 = vsel %vm6124, %v6125, %v6006
  %v6127 = vmul.u32.u64.compose %v6126, 2863311531
  %v6128 = vextract.low.u32 %v6127
  %v6129 = vextract.high.u32 %v6127
  %v6130 = vshrl.u32 %v6129, 4
  %v6131 = vmul.u32 %v6130, 24
  %v6132 = vsub.s32 %v6126, %v6131
  %v6133 = vsub.s32 0, %v6132
  %v6134 = vsel %vm6124, %v6133, %v6132
  %vm6135 = vcmp.lt.s32.totalorder %v6007, 0
  %v6136 = vsub.s32 0, %v6007
  %v6137 = vsel %vm6135, %v6136, %v6007
  %v6138 = vmul.u32.u64.compose %v6137, 2863311531
  %v6139 = vextract.low.u32 %v6138
  %v6140 = vextract.high.u32 %v6138
  %v6141 = vshrl.u32 %v6140, 4
  %v6142 = vmul.u32 %v6141, 24
  %v6143 = vsub.s32 %v6137, %v6142
  %v6144 = vsub.s32 0, %v6143
  %v6145 = vsel %vm6135, %v6144, %v6143
  %vm6146 = vcmp.lt.s32.totalorder %v6008, 0
  %v6147 = vsub.s32 0, %v6008
  %v6148 = vsel %vm6146, %v6147, %v6008
  %v6149 = vmul.u32.u64.compose %v6148, 2863311531
  %v6150 = vextract.low.u32 %v6149
  %v6151 = vextract.high.u32 %v6149
  %v6152 = vshrl.u32 %v6151, 4
  %v6153 = vmul.u32 %v6152, 24
  %v6154 = vsub.s32 %v6148, %v6153
  %v6155 = vsub.s32 0, %v6154
  %v6156 = vsel %vm6146, %v6155, %v6154
  %vm6157 = vcmp.lt.s32.totalorder %v6009, 0
  %v6158 = vsub.s32 0, %v6009
  %v6159 = vsel %vm6157, %v6158, %v6009
  %v6160 = vmul.u32.u64.compose %v6159, 2863311531
  %v6161 = vextract.low.u32 %v6160
  %v6162 = vextract.high.u32 %v6160
  %v6163 = vshrl.u32 %v6162, 4
  %v6164 = vmul.u32 %v6163, 24
  %v6165 = vsub.s32 %v6159, %v6164
  %v6166 = vsub.s32 0, %v6165
  %v6167 = vsel %vm6157, %v6166, %v6165
  %vm6168 = vcmp.lt.s32.totalorder %v6010, 0
  %v6169 = vsub.s32 0, %v6010
  %v6170 = vsel %vm6168, %v6169, %v6010
  %v6171 = vmul.u32.u64.compose %v6170, 2863311531
  %v6172 = vextract.low.u32 %v6171
  %v6173 = vextract.high.u32 %v6171
  %v6174 = vshrl.u32 %v6173, 4
  %v6175 = vmul.u32 %v6174, 24
  %v6176 = vsub.s32 %v6170, %v6175
  %v6177 = vsub.s32 0, %v6176
  %v6178 = vsel %vm6168, %v6177, %v6176
  %vm6179 = vcmp.lt.s32.totalorder %v6011, 0
  %v6180 = vsub.s32 0, %v6011
  %v6181 = vsel %vm6179, %v6180, %v6011
  %v6182 = vmul.u32.u64.compose %v6181, 2863311531
  %v6183 = vextract.low.u32 %v6182
  %v6184 = vextract.high.u32 %v6182
  %v6185 = vshrl.u32 %v6184, 4
  %v6186 = vmul.u32 %v6185, 24
  %v6187 = vsub.s32 %v6181, %v6186
  %v6188 = vsub.s32 0, %v6187
  %v6189 = vsel %vm6179, %v6188, %v6187
  %vm6190 = vcmp.lt.s32.totalorder %v6012, 0
  %v6191 = vsub.s32 0, %v6012
  %v6192 = vsel %vm6190, %v6191, %v6012
  %v6193 = vmul.u32.u64.compose %v6192, 2863311531
  %v6194 = vextract.low.u32 %v6193
  %v6195 = vextract.high.u32 %v6193
  %v6196 = vshrl.u32 %v6195, 4
  %v6197 = vmul.u32 %v6196, 24
  %v6198 = vsub.s32 %v6192, %v6197
  %v6199 = vsub.s32 0, %v6198
  %v6200 = vsel %vm6190, %v6199, %v6198
  %vm6201 = vcmp.lt.s32.totalorder %v6013, 0
  %v6202 = vsub.s32 0, %v6013
  %v6203 = vsel %vm6201, %v6202, %v6013
  %v6204 = vmul.u32.u64.compose %v6203, 2863311531
  %v6205 = vextract.low.u32 %v6204
  %v6206 = vextract.high.u32 %v6204
  %v6207 = vshrl.u32 %v6206, 4
  %v6208 = vmul.u32 %v6207, 24
  %v6209 = vsub.s32 %v6203, %v6208
  %v6210 = vsub.s32 0, %v6209
  %v6211 = vsel %vm6201, %v6210, %v6209
  %vm6212 = vcmp.lt.s32.totalorder %v6014, 0
  %v6213 = vsub.s32 0, %v6014
  %v6214 = vsel %vm6212, %v6213, %v6014
  %v6215 = vmul.u32.u64.compose %v6214, 2863311531
  %v6216 = vextract.low.u32 %v6215
  %v6217 = vextract.high.u32 %v6215
  %v6218 = vshrl.u32 %v6217, 4
  %v6219 = vmul.u32 %v6218, 24
  %v6220 = vsub.s32 %v6214, %v6219
  %v6221 = vsub.s32 0, %v6220
  %v6222 = vsel %vm6212, %v6221, %v6220
  %vm6223 = vcmp.lt.s32.totalorder %v6015, 0
  %v6224 = vsub.s32 0, %v6015
  %v6225 = vsel %vm6223, %v6224, %v6015
  %v6226 = vmul.u32.u64.compose %v6225, 2863311531
  %v6227 = vextract.low.u32 %v6226
  %v6228 = vextract.high.u32 %v6226
  %v6229 = vshrl.u32 %v6228, 4
  %v6230 = vmul.u32 %v6229, 24
  %v6231 = vsub.s32 %v6225, %v6230
  %v6232 = vsub.s32 0, %v6231
  %v6233 = vsel %vm6223, %v6232, %v6231
  %vm6234 = vcmp.lt.s32.totalorder %v6016, 0
  %v6235 = vsub.s32 0, %v6016
  %v6236 = vsel %vm6234, %v6235, %v6016
  %v6237 = vmul.u32.u64.compose %v6236, 2863311531
  %v6238 = vextract.low.u32 %v6237
  %v6239 = vextract.high.u32 %v6237
  %v6240 = vshrl.u32 %v6239, 4
  %v6241 = vmul.u32 %v6240, 24
  %v6242 = vsub.s32 %v6236, %v6241
  %v6243 = vsub.s32 0, %v6242
  %v6244 = vsel %vm6234, %v6243, %v6242
  %vm6245 = vcmp.lt.s32.totalorder %v6017, 0
  %v6246 = vsub.s32 0, %v6017
  %v6247 = vsel %vm6245, %v6246, %v6017
  %v6248 = vmul.u32.u64.compose %v6247, 2863311531
  %v6249 = vextract.low.u32 %v6248
  %v6250 = vextract.high.u32 %v6248
  %v6251 = vshrl.u32 %v6250, 4
  %v6252 = vmul.u32 %v6251, 24
  %v6253 = vsub.s32 %v6247, %v6252
  %v6254 = vsub.s32 0, %v6253
  %v6255 = vsel %vm6245, %v6254, %v6253
  %vm6256 = vcmp.lt.s32.totalorder %v6018, 0
  %v6257 = vsub.s32 0, %v6018
  %v6258 = vsel %vm6256, %v6257, %v6018
  %v6259 = vmul.u32.u64.compose %v6258, 2863311531
  %v6260 = vextract.low.u32 %v6259
  %v6261 = vextract.high.u32 %v6259
  %v6262 = vshrl.u32 %v6261, 4
  %v6263 = vmul.u32 %v6262, 24
  %v6264 = vsub.s32 %v6258, %v6263
  %v6265 = vsub.s32 0, %v6264
  %v6266 = vsel %vm6256, %v6265, %v6264
  %vm6267 = vcmp.lt.s32.totalorder %v6019, 0
  %v6268 = vsub.s32 0, %v6019
  %v6269 = vsel %vm6267, %v6268, %v6019
  %v6270 = vmul.u32.u64.compose %v6269, 2863311531
  %v6271 = vextract.low.u32 %v6270
  %v6272 = vextract.high.u32 %v6270
  %v6273 = vshrl.u32 %v6272, 4
  %v6274 = vmul.u32 %v6273, 24
  %v6275 = vsub.s32 %v6269, %v6274
  %v6276 = vsub.s32 0, %v6275
  %v6277 = vsel %vm6267, %v6276, %v6275
  %vm6278 = vcmp.lt.s32.totalorder %v6020, 0
  %v6279 = vsub.s32 0, %v6020
  %v6280 = vsel %vm6278, %v6279, %v6020
  %v6281 = vmul.u32.u64.compose %v6280, 2863311531
  %v6282 = vextract.low.u32 %v6281
  %v6283 = vextract.high.u32 %v6281
  %v6284 = vshrl.u32 %v6283, 4
  %v6285 = vmul.u32 %v6284, 24
  %v6286 = vsub.s32 %v6280, %v6285
  %v6287 = vsub.s32 0, %v6286
  %v6288 = vsel %vm6278, %v6287, %v6286
  %vm6289 = vcmp.lt.s32.totalorder %v6021, 0
  %v6290 = vsub.s32 0, %v6021
  %v6291 = vsel %vm6289, %v6290, %v6021
  %v6292 = vmul.u32.u64.compose %v6291, 2863311531
  %v6293 = vextract.low.u32 %v6292
  %v6294 = vextract.high.u32 %v6292
  %v6295 = vshrl.u32 %v6294, 4
  %v6296 = vmul.u32 %v6295, 24
  %v6297 = vsub.s32 %v6291, %v6296
  %v6298 = vsub.s32 0, %v6297
  %v6299 = vsel %vm6289, %v6298, %v6297
  %vm6300 = vcmp.lt.s32.totalorder %v6022, 0
  %v6301 = vsub.s32 0, %v6022
  %v6302 = vsel %vm6300, %v6301, %v6022
  %v6303 = vmul.u32.u64.compose %v6302, 2863311531
  %v6304 = vextract.low.u32 %v6303
  %v6305 = vextract.high.u32 %v6303
  %v6306 = vshrl.u32 %v6305, 4
  %v6307 = vmul.u32 %v6306, 24
  %v6308 = vsub.s32 %v6302, %v6307
  %v6309 = vsub.s32 0, %v6308
  %v6310 = vsel %vm6300, %v6309, %v6308
  %vm6311 = vcmp.lt.s32.totalorder %v6023, 0
  %v6312 = vsub.s32 0, %v6023
  %v6313 = vsel %vm6311, %v6312, %v6023
  %v6314 = vmul.u32.u64.compose %v6313, 2863311531
  %v6315 = vextract.low.u32 %v6314
  %v6316 = vextract.high.u32 %v6314
  %v6317 = vshrl.u32 %v6316, 4
  %v6318 = vmul.u32 %v6317, 24
  %v6319 = vsub.s32 %v6313, %v6318
  %v6320 = vsub.s32 0, %v6319
  %v6321 = vsel %vm6311, %v6320, %v6319
  %vm6322 = vcmp.lt.s32.totalorder %v6024, 0
  %v6323 = vsub.s32 0, %v6024
  %v6324 = vsel %vm6322, %v6323, %v6024
  %v6325 = vmul.u32.u64.compose %v6324, 2863311531
  %v6326 = vextract.low.u32 %v6325
  %v6327 = vextract.high.u32 %v6325
  %v6328 = vshrl.u32 %v6327, 4
  %v6329 = vmul.u32 %v6328, 24
  %v6330 = vsub.s32 %v6324, %v6329
  %v6331 = vsub.s32 0, %v6330
  %v6332 = vsel %vm6322, %v6331, %v6330
  %vm6333 = vcmp.lt.s32.totalorder %v6025, 0
  %v6334 = vsub.s32 0, %v6025
  %v6335 = vsel %vm6333, %v6334, %v6025
  %v6336 = vmul.u32.u64.compose %v6335, 2863311531
  %v6337 = vextract.low.u32 %v6336
  %v6338 = vextract.high.u32 %v6336
  %v6339 = vshrl.u32 %v6338, 4
  %v6340 = vmul.u32 %v6339, 24
  %v6341 = vsub.s32 %v6335, %v6340
  %v6342 = vsub.s32 0, %v6341
  %v6343 = vsel %vm6333, %v6342, %v6341
  %vm6344 = vcmp.lt.s32.totalorder %v6026, 0
  %v6345 = vsub.s32 0, %v6026
  %v6346 = vsel %vm6344, %v6345, %v6026
  %v6347 = vmul.u32.u64.compose %v6346, 2863311531
  %v6348 = vextract.low.u32 %v6347
  %v6349 = vextract.high.u32 %v6347
  %v6350 = vshrl.u32 %v6349, 4
  %v6351 = vmul.u32 %v6350, 24
  %v6352 = vsub.s32 %v6346, %v6351
  %v6353 = vsub.s32 0, %v6352
  %v6354 = vsel %vm6344, %v6353, %v6352
  %vm6355 = vcmp.lt.s32.totalorder %v6027, 0
  %v6356 = vsub.s32 0, %v6027
  %v6357 = vsel %vm6355, %v6356, %v6027
  %v6358 = vmul.u32.u64.compose %v6357, 2863311531
  %v6359 = vextract.low.u32 %v6358
  %v6360 = vextract.high.u32 %v6358
  %v6361 = vshrl.u32 %v6360, 4
  %v6362 = vmul.u32 %v6361, 24
  %v6363 = vsub.s32 %v6357, %v6362
  %v6364 = vsub.s32 0, %v6363
  %v6365 = vsel %vm6355, %v6364, %v6363
  %vm6366 = vcmp.lt.s32.totalorder %v6028, 0
  %v6367 = vsub.s32 0, %v6028
  %v6368 = vsel %vm6366, %v6367, %v6028
  %v6369 = vmul.u32.u64.compose %v6368, 2863311531
  %v6370 = vextract.low.u32 %v6369
  %v6371 = vextract.high.u32 %v6369
  %v6372 = vshrl.u32 %v6371, 4
  %v6373 = vmul.u32 %v6372, 24
  %v6374 = vsub.s32 %v6368, %v6373
  %v6375 = vsub.s32 0, %v6374
  %v6376 = vsel %vm6366, %v6375, %v6374
  %vm6377 = vcmp.lt.s32.totalorder %v6029, 0
  %v6378 = vsub.s32 0, %v6029
  %v6379 = vsel %vm6377, %v6378, %v6029
  %v6380 = vmul.u32.u64.compose %v6379, 2863311531
  %v6381 = vextract.low.u32 %v6380
  %v6382 = vextract.high.u32 %v6380
  %v6383 = vshrl.u32 %v6382, 4
  %v6384 = vmul.u32 %v6383, 24
  %v6385 = vsub.s32 %v6379, %v6384
  %v6386 = vsub.s32 0, %v6385
  %v6387 = vsel %vm6377, %v6386, %v6385
  %vm6388 = vcmp.lt.s32.totalorder %v6030, 0
  %v6389 = vsub.s32 0, %v6030
  %v6390 = vsel %vm6388, %v6389, %v6030
  %v6391 = vmul.u32.u64.compose %v6390, 2863311531
  %v6392 = vextract.low.u32 %v6391
  %v6393 = vextract.high.u32 %v6391
  %v6394 = vshrl.u32 %v6393, 4
  %v6395 = vmul.u32 %v6394, 24
  %v6396 = vsub.s32 %v6390, %v6395
  %v6397 = vsub.s32 0, %v6396
  %v6398 = vsel %vm6388, %v6397, %v6396
  %vm6399 = vcmp.lt.s32.totalorder %v6031, 0
  %v6400 = vsub.s32 0, %v6031
  %v6401 = vsel %vm6399, %v6400, %v6031
  %v6402 = vmul.u32.u64.compose %v6401, 2863311531
  %v6403 = vextract.low.u32 %v6402
  %v6404 = vextract.high.u32 %v6402
  %v6405 = vshrl.u32 %v6404, 4
  %v6406 = vmul.u32 %v6405, 24
  %v6407 = vsub.s32 %v6401, %v6406
  %v6408 = vsub.s32 0, %v6407
  %v6409 = vsel %vm6399, %v6408, %v6407
  %vm6410 = vcmp.lt.s32.totalorder %v6032, 0
  %v6411 = vsub.s32 0, %v6032
  %v6412 = vsel %vm6410, %v6411, %v6032
  %v6413 = vmul.u32.u64.compose %v6412, 2863311531
  %v6414 = vextract.low.u32 %v6413
  %v6415 = vextract.high.u32 %v6413
  %v6416 = vshrl.u32 %v6415, 4
  %v6417 = vmul.u32 %v6416, 24
  %v6418 = vsub.s32 %v6412, %v6417
  %v6419 = vsub.s32 0, %v6418
  %v6420 = vsel %vm6410, %v6419, %v6418
  %vm6421 = vcmp.lt.s32.totalorder %v6033, 0
  %v6422 = vsub.s32 0, %v6033
  %v6423 = vsel %vm6421, %v6422, %v6033
  %v6424 = vmul.u32.u64.compose %v6423, 2863311531
  %v6425 = vextract.low.u32 %v6424
  %v6426 = vextract.high.u32 %v6424
  %v6427 = vshrl.u32 %v6426, 4
  %v6428 = vmul.u32 %v6427, 24
  %v6429 = vsub.s32 %v6423, %v6428
  %v6430 = vsub.s32 0, %v6429
  %v6431 = vsel %vm6421, %v6430, %v6429
  %vm6432 = vcmp.lt.s32.totalorder %v6034, 0
  %v6433 = vsub.s32 0, %v6034
  %v6434 = vsel %vm6432, %v6433, %v6034
  %v6435 = vmul.u32.u64.compose %v6434, 2863311531
  %v6436 = vextract.low.u32 %v6435
  %v6437 = vextract.high.u32 %v6435
  %v6438 = vshrl.u32 %v6437, 4
  %v6439 = vmul.u32 %v6438, 24
  %v6440 = vsub.s32 %v6434, %v6439
  %v6441 = vsub.s32 0, %v6440
  %v6442 = vsel %vm6432, %v6441, %v6440
  %vm6443 = vcmp.lt.s32.totalorder %v6035, 0
  %v6444 = vsub.s32 0, %v6035
  %v6445 = vsel %vm6443, %v6444, %v6035
  %v6446 = vmul.u32.u64.compose %v6445, 2863311531
  %v6447 = vextract.low.u32 %v6446
  %v6448 = vextract.high.u32 %v6446
  %v6449 = vshrl.u32 %v6448, 4
  %v6450 = vmul.u32 %v6449, 24
  %v6451 = vsub.s32 %v6445, %v6450
  %v6452 = vsub.s32 0, %v6451
  %v6453 = vsel %vm6443, %v6452, %v6451
  %vm6454 = vcmp.lt.s32.totalorder %v6036, 0
  %v6455 = vsub.s32 0, %v6036
  %v6456 = vsel %vm6454, %v6455, %v6036
  %v6457 = vmul.u32.u64.compose %v6456, 2863311531
  %v6458 = vextract.low.u32 %v6457
  %v6459 = vextract.high.u32 %v6457
  %v6460 = vshrl.u32 %v6459, 4
  %v6461 = vmul.u32 %v6460, 24
  %v6462 = vsub.s32 %v6456, %v6461
  %v6463 = vsub.s32 0, %v6462
  %v6464 = vsel %vm6454, %v6463, %v6462
  %vm6465 = vcmp.lt.s32.totalorder %v6037, 0
  %v6466 = vsub.s32 0, %v6037
  %v6467 = vsel %vm6465, %v6466, %v6037
  %v6468 = vmul.u32.u64.compose %v6467, 2863311531
  %v6469 = vextract.low.u32 %v6468
  %v6470 = vextract.high.u32 %v6468
  %v6471 = vshrl.u32 %v6470, 4
  %v6472 = vmul.u32 %v6471, 24
  %v6473 = vsub.s32 %v6467, %v6472
  %v6474 = vsub.s32 0, %v6473
  %v6475 = vsel %vm6465, %v6474, %v6473
  %vm6476 = vcmp.lt.s32.totalorder %v6038, 0
  %v6477 = vsub.s32 0, %v6038
  %v6478 = vsel %vm6476, %v6477, %v6038
  %v6479 = vmul.u32.u64.compose %v6478, 2863311531
  %v6480 = vextract.low.u32 %v6479
  %v6481 = vextract.high.u32 %v6479
  %v6482 = vshrl.u32 %v6481, 4
  %v6483 = vmul.u32 %v6482, 24
  %v6484 = vsub.s32 %v6478, %v6483
  %v6485 = vsub.s32 0, %v6484
  %v6486 = vsel %vm6476, %v6485, %v6484
  %vm6487 = vcmp.lt.s32.totalorder %v6039, 0
  %v6488 = vsub.s32 0, %v6039
  %v6489 = vsel %vm6487, %v6488, %v6039
  %v6490 = vmul.u32.u64.compose %v6489, 2863311531
  %v6491 = vextract.low.u32 %v6490
  %v6492 = vextract.high.u32 %v6490
  %v6493 = vshrl.u32 %v6492, 4
  %v6494 = vmul.u32 %v6493, 24
  %v6495 = vsub.s32 %v6489, %v6494
  %v6496 = vsub.s32 0, %v6495
  %v6497 = vsel %vm6487, %v6496, %v6495
  %vm6498 = vcmp.lt.s32.totalorder %v6040, 0
  %v6499 = vsub.s32 0, %v6040
  %v6500 = vsel %vm6498, %v6499, %v6040
  %v6501 = vmul.u32.u64.compose %v6500, 2863311531
  %v6502 = vextract.low.u32 %v6501
  %v6503 = vextract.high.u32 %v6501
  %v6504 = vshrl.u32 %v6503, 4
  %v6505 = vmul.u32 %v6504, 24
  %v6506 = vsub.s32 %v6500, %v6505
  %v6507 = vsub.s32 0, %v6506
  %v6508 = vsel %vm6498, %v6507, %v6506
  %vm6509 = vcmp.lt.s32.totalorder %v6041, 0
  %v6510 = vsub.s32 0, %v6041
  %v6511 = vsel %vm6509, %v6510, %v6041
  %v6512 = vmul.u32.u64.compose %v6511, 2863311531
  %v6513 = vextract.low.u32 %v6512
  %v6514 = vextract.high.u32 %v6512
  %v6515 = vshrl.u32 %v6514, 4
  %v6516 = vmul.u32 %v6515, 24
  %v6517 = vsub.s32 %v6511, %v6516
  %v6518 = vsub.s32 0, %v6517
  %v6519 = vsel %vm6509, %v6518, %v6517
  %vm6520 = vcmp.lt.s32.totalorder %v6042, 0
  %v6521 = vsub.s32 0, %v6042
  %v6522 = vsel %vm6520, %v6521, %v6042
  %v6523 = vmul.u32.u64.compose %v6522, 2863311531
  %v6524 = vextract.low.u32 %v6523
  %v6525 = vextract.high.u32 %v6523
  %v6526 = vshrl.u32 %v6525, 4
  %v6527 = vmul.u32 %v6526, 24
  %v6528 = vsub.s32 %v6522, %v6527
  %v6529 = vsub.s32 0, %v6528
  %v6530 = vsel %vm6520, %v6529, %v6528
  %vm6531 = vcmp.lt.s32.totalorder %v6043, 0
  %v6532 = vsub.s32 0, %v6043
  %v6533 = vsel %vm6531, %v6532, %v6043
  %v6534 = vmul.u32.u64.compose %v6533, 2863311531
  %v6535 = vextract.low.u32 %v6534
  %v6536 = vextract.high.u32 %v6534
  %v6537 = vshrl.u32 %v6536, 4
  %v6538 = vmul.u32 %v6537, 24
  %v6539 = vsub.s32 %v6533, %v6538
  %v6540 = vsub.s32 0, %v6539
  %v6541 = vsel %vm6531, %v6540, %v6539
  %vm6542 = vcmp.lt.s32.totalorder %v6044, 0
  %v6543 = vsub.s32 0, %v6044
  %v6544 = vsel %vm6542, %v6543, %v6044
  %v6545 = vmul.u32.u64.compose %v6544, 2863311531
  %v6546 = vextract.low.u32 %v6545
  %v6547 = vextract.high.u32 %v6545
  %v6548 = vshrl.u32 %v6547, 4
  %v6549 = vmul.u32 %v6548, 24
  %v6550 = vsub.s32 %v6544, %v6549
  %v6551 = vsub.s32 0, %v6550
  %v6552 = vsel %vm6542, %v6551, %v6550
  %vm6553 = vcmp.lt.s32.totalorder %v6045, 0
  %v6554 = vsub.s32 0, %v6045
  %v6555 = vsel %vm6553, %v6554, %v6045
  %v6556 = vmul.u32.u64.compose %v6555, 2863311531
  %v6557 = vextract.low.u32 %v6556
  %v6558 = vextract.high.u32 %v6556
  %v6559 = vshrl.u32 %v6558, 4
  %v6560 = vmul.u32 %v6559, 24
  %v6561 = vsub.s32 %v6555, %v6560
  %v6562 = vsub.s32 0, %v6561
  %v6563 = vsel %vm6553, %v6562, %v6561
  %vm6564 = vcmp.lt.s32.totalorder %v6046, 0
  %v6565 = vsub.s32 0, %v6046
  %v6566 = vsel %vm6564, %v6565, %v6046
  %v6567 = vmul.u32.u64.compose %v6566, 2863311531
  %v6568 = vextract.low.u32 %v6567
  %v6569 = vextract.high.u32 %v6567
  %v6570 = vshrl.u32 %v6569, 4
  %v6571 = vmul.u32 %v6570, 24
  %v6572 = vsub.s32 %v6566, %v6571
  %v6573 = vsub.s32 0, %v6572
  %v6574 = vsel %vm6564, %v6573, %v6572
  %vm6575 = vcmp.ne.s32.totalorder %v6057, 0
  %vm6576 = vcmp.ne.s32.totalorder %v6068, 0
  %vm6577 = vcmp.ne.s32.totalorder %v6079, 0
  %vm6578 = vcmp.ne.s32.totalorder %v6090, 0
  %vm6579 = vcmp.ne.s32.totalorder %v6101, 0
  %vm6580 = vcmp.ne.s32.totalorder %v6112, 0
  %vm6581 = vcmp.ne.s32.totalorder %v6123, 0
  %vm6582 = vcmp.ne.s32.totalorder %v6134, 0
  %vm6583 = vcmp.ne.s32.totalorder %v6145, 0
  %vm6584 = vcmp.ne.s32.totalorder %v6156, 0
  %vm6585 = vcmp.ne.s32.totalorder %v6167, 0
  %vm6586 = vcmp.ne.s32.totalorder %v6178, 0
  %vm6587 = vcmp.ne.s32.totalorder %v6189, 0
  %vm6588 = vcmp.ne.s32.totalorder %v6200, 0
  %vm6589 = vcmp.ne.s32.totalorder %v6211, 0
  %vm6590 = vcmp.ne.s32.totalorder %v6222, 0
  %vm6591 = vcmp.ne.s32.totalorder %v6233, 0
  %vm6592 = vcmp.ne.s32.totalorder %v6244, 0
  %vm6593 = vcmp.ne.s32.totalorder %v6255, 0
  %vm6594 = vcmp.ne.s32.totalorder %v6266, 0
  %vm6595 = vcmp.ne.s32.totalorder %v6277, 0
  %vm6596 = vcmp.ne.s32.totalorder %v6288, 0
  %vm6597 = vcmp.ne.s32.totalorder %v6299, 0
  %vm6598 = vcmp.ne.s32.totalorder %v6310, 0
  %vm6599 = vcmp.ne.s32.totalorder %v6321, 0
  %vm6600 = vcmp.ne.s32.totalorder %v6332, 0
  %vm6601 = vcmp.ne.s32.totalorder %v6343, 0
  %vm6602 = vcmp.ne.s32.totalorder %v6354, 0
  %vm6603 = vcmp.ne.s32.totalorder %v6365, 0
  %vm6604 = vcmp.ne.s32.totalorder %v6376, 0
  %vm6605 = vcmp.ne.s32.totalorder %v6387, 0
  %vm6606 = vcmp.ne.s32.totalorder %v6398, 0
  %vm6607 = vcmp.ne.s32.totalorder %v6409, 0
  %vm6608 = vcmp.ne.s32.totalorder %v6420, 0
  %vm6609 = vcmp.ne.s32.totalorder %v6431, 0
  %vm6610 = vcmp.ne.s32.totalorder %v6442, 0
  %vm6611 = vcmp.ne.s32.totalorder %v6453, 0
  %vm6612 = vcmp.ne.s32.totalorder %v6464, 0
  %vm6613 = vcmp.ne.s32.totalorder %v6475, 0
  %vm6614 = vcmp.ne.s32.totalorder %v6486, 0
  %vm6615 = vcmp.ne.s32.totalorder %v6497, 0
  %vm6616 = vcmp.ne.s32.totalorder %v6508, 0
  %vm6617 = vcmp.ne.s32.totalorder %v6519, 0
  %vm6618 = vcmp.ne.s32.totalorder %v6530, 0
  %vm6619 = vcmp.ne.s32.totalorder %v6541, 0
  %vm6620 = vcmp.ne.s32.totalorder %v6552, 0
  %vm6621 = vcmp.ne.s32.totalorder %v6563, 0
  %vm6622 = vcmp.ne.s32.totalorder %v6574, 0
  %vm6623 = vcmp.lt.s32.totalorder %v6057, 0
  %vm6624 = vcmp.lt.s32.totalorder %v6068, 0
  %vm6625 = vcmp.lt.s32.totalorder %v6079, 0
  %vm6626 = vcmp.lt.s32.totalorder %v6090, 0
  %vm6627 = vcmp.lt.s32.totalorder %v6101, 0
  %vm6628 = vcmp.lt.s32.totalorder %v6112, 0
  %vm6629 = vcmp.lt.s32.totalorder %v6123, 0
  %vm6630 = vcmp.lt.s32.totalorder %v6134, 0
  %vm6631 = vcmp.lt.s32.totalorder %v6145, 0
  %vm6632 = vcmp.lt.s32.totalorder %v6156, 0
  %vm6633 = vcmp.lt.s32.totalorder %v6167, 0
  %vm6634 = vcmp.lt.s32.totalorder %v6178, 0
  %vm6635 = vcmp.lt.s32.totalorder %v6189, 0
  %vm6636 = vcmp.lt.s32.totalorder %v6200, 0
  %vm6637 = vcmp.lt.s32.totalorder %v6211, 0
  %vm6638 = vcmp.lt.s32.totalorder %v6222, 0
  %vm6639 = vcmp.lt.s32.totalorder %v6233, 0
  %vm6640 = vcmp.lt.s32.totalorder %v6244, 0
  %vm6641 = vcmp.lt.s32.totalorder %v6255, 0
  %vm6642 = vcmp.lt.s32.totalorder %v6266, 0
  %vm6643 = vcmp.lt.s32.totalorder %v6277, 0
  %vm6644 = vcmp.lt.s32.totalorder %v6288, 0
  %vm6645 = vcmp.lt.s32.totalorder %v6299, 0
  %vm6646 = vcmp.lt.s32.totalorder %v6310, 0
  %vm6647 = vcmp.lt.s32.totalorder %v6321, 0
  %vm6648 = vcmp.lt.s32.totalorder %v6332, 0
  %vm6649 = vcmp.lt.s32.totalorder %v6343, 0
  %vm6650 = vcmp.lt.s32.totalorder %v6354, 0
  %vm6651 = vcmp.lt.s32.totalorder %v6365, 0
  %vm6652 = vcmp.lt.s32.totalorder %v6376, 0
  %vm6653 = vcmp.lt.s32.totalorder %v6387, 0
  %vm6654 = vcmp.lt.s32.totalorder %v6398, 0
  %vm6655 = vcmp.lt.s32.totalorder %v6409, 0
  %vm6656 = vcmp.lt.s32.totalorder %v6420, 0
  %vm6657 = vcmp.lt.s32.totalorder %v6431, 0
  %vm6658 = vcmp.lt.s32.totalorder %v6442, 0
  %vm6659 = vcmp.lt.s32.totalorder %v6453, 0
  %vm6660 = vcmp.lt.s32.totalorder %v6464, 0
  %vm6661 = vcmp.lt.s32.totalorder %v6475, 0
  %vm6662 = vcmp.lt.s32.totalorder %v6486, 0
  %vm6663 = vcmp.lt.s32.totalorder %v6497, 0
  %vm6664 = vcmp.lt.s32.totalorder %v6508, 0
  %vm6665 = vcmp.lt.s32.totalorder %v6519, 0
  %vm6666 = vcmp.lt.s32.totalorder %v6530, 0
  %vm6667 = vcmp.lt.s32.totalorder %v6541, 0
  %vm6668 = vcmp.lt.s32.totalorder %v6552, 0
  %vm6669 = vcmp.lt.s32.totalorder %v6563, 0
  %vm6670 = vcmp.lt.s32.totalorder %v6574, 0
  %vm6671 = vmand %vm6623, %vm6575
  %vm6672 = vmand %vm6624, %vm6576
  %vm6673 = vmand %vm6625, %vm6577
  %vm6674 = vmand %vm6626, %vm6578
  %vm6675 = vmand %vm6627, %vm6579
  %vm6676 = vmand %vm6628, %vm6580
  %vm6677 = vmand %vm6629, %vm6581
  %vm6678 = vmand %vm6630, %vm6582
  %vm6679 = vmand %vm6631, %vm6583
  %vm6680 = vmand %vm6632, %vm6584
  %vm6681 = vmand %vm6633, %vm6585
  %vm6682 = vmand %vm6634, %vm6586
  %vm6683 = vmand %vm6635, %vm6587
  %vm6684 = vmand %vm6636, %vm6588
  %vm6685 = vmand %vm6637, %vm6589
  %vm6686 = vmand %vm6638, %vm6590
  %vm6687 = vmand %vm6639, %vm6591
  %vm6688 = vmand %vm6640, %vm6592
  %vm6689 = vmand %vm6641, %vm6593
  %vm6690 = vmand %vm6642, %vm6594
  %vm6691 = vmand %vm6643, %vm6595
  %vm6692 = vmand %vm6644, %vm6596
  %vm6693 = vmand %vm6645, %vm6597
  %vm6694 = vmand %vm6646, %vm6598
  %vm6695 = vmand %vm6647, %vm6599
  %vm6696 = vmand %vm6648, %vm6600
  %vm6697 = vmand %vm6649, %vm6601
  %vm6698 = vmand %vm6650, %vm6602
  %vm6699 = vmand %vm6651, %vm6603
  %vm6700 = vmand %vm6652, %vm6604
  %vm6701 = vmand %vm6653, %vm6605
  %vm6702 = vmand %vm6654, %vm6606
  %vm6703 = vmand %vm6655, %vm6607
  %vm6704 = vmand %vm6656, %vm6608
  %vm6705 = vmand %vm6657, %vm6609
  %vm6706 = vmand %vm6658, %vm6610
  %vm6707 = vmand %vm6659, %vm6611
  %vm6708 = vmand %vm6660, %vm6612
  %vm6709 = vmand %vm6661, %vm6613
  %vm6710 = vmand %vm6662, %vm6614
  %vm6711 = vmand %vm6663, %vm6615
  %vm6712 = vmand %vm6664, %vm6616
  %vm6713 = vmand %vm6665, %vm6617
  %vm6714 = vmand %vm6666, %vm6618
  %vm6715 = vmand %vm6667, %vm6619
  %vm6716 = vmand %vm6668, %vm6620
  %vm6717 = vmand %vm6669, %vm6621
  %vm6718 = vmand %vm6670, %vm6622
  %v6719 = vadd.s32 %v6057, 24
  %v6720 = vadd.s32 %v6068, 24
  %v6721 = vadd.s32 %v6079, 24
  %v6722 = vadd.s32 %v6090, 24
  %v6723 = vadd.s32 %v6101, 24
  %v6724 = vadd.s32 %v6112, 24
  %v6725 = vadd.s32 %v6123, 24
  %v6726 = vadd.s32 %v6134, 24
  %v6727 = vadd.s32 %v6145, 24
  %v6728 = vadd.s32 %v6156, 24
  %v6729 = vadd.s32 %v6167, 24
  %v6730 = vadd.s32 %v6178, 24
  %v6731 = vadd.s32 %v6189, 24
  %v6732 = vadd.s32 %v6200, 24
  %v6733 = vadd.s32 %v6211, 24
  %v6734 = vadd.s32 %v6222, 24
  %v6735 = vadd.s32 %v6233, 24
  %v6736 = vadd.s32 %v6244, 24
  %v6737 = vadd.s32 %v6255, 24
  %v6738 = vadd.s32 %v6266, 24
  %v6739 = vadd.s32 %v6277, 24
  %v6740 = vadd.s32 %v6288, 24
  %v6741 = vadd.s32 %v6299, 24
  %v6742 = vadd.s32 %v6310, 24
  %v6743 = vadd.s32 %v6321, 24
  %v6744 = vadd.s32 %v6332, 24
  %v6745 = vadd.s32 %v6343, 24
  %v6746 = vadd.s32 %v6354, 24
  %v6747 = vadd.s32 %v6365, 24
  %v6748 = vadd.s32 %v6376, 24
  %v6749 = vadd.s32 %v6387, 24
  %v6750 = vadd.s32 %v6398, 24
  %v6751 = vadd.s32 %v6409, 24
  %v6752 = vadd.s32 %v6420, 24
  %v6753 = vadd.s32 %v6431, 24
  %v6754 = vadd.s32 %v6442, 24
  %v6755 = vadd.s32 %v6453, 24
  %v6756 = vadd.s32 %v6464, 24
  %v6757 = vadd.s32 %v6475, 24
  %v6758 = vadd.s32 %v6486, 24
  %v6759 = vadd.s32 %v6497, 24
  %v6760 = vadd.s32 %v6508, 24
  %v6761 = vadd.s32 %v6519, 24
  %v6762 = vadd.s32 %v6530, 24
  %v6763 = vadd.s32 %v6541, 24
  %v6764 = vadd.s32 %v6552, 24
  %v6765 = vadd.s32 %v6563, 24
  %v6766 = vadd.s32 %v6574, 24
  %v6767 = vsel %vm6671, %v6719, %v6057
  %v6768 = vsel %vm6672, %v6720, %v6068
  %v6769 = vsel %vm6673, %v6721, %v6079
  %v6770 = vsel %vm6674, %v6722, %v6090
  %v6771 = vsel %vm6675, %v6723, %v6101
  %v6772 = vsel %vm6676, %v6724, %v6112
  %v6773 = vsel %vm6677, %v6725, %v6123
  %v6774 = vsel %vm6678, %v6726, %v6134
  %v6775 = vsel %vm6679, %v6727, %v6145
  %v6776 = vsel %vm6680, %v6728, %v6156
  %v6777 = vsel %vm6681, %v6729, %v6167
  %v6778 = vsel %vm6682, %v6730, %v6178
  %v6779 = vsel %vm6683, %v6731, %v6189
  %v6780 = vsel %vm6684, %v6732, %v6200
  %v6781 = vsel %vm6685, %v6733, %v6211
  %v6782 = vsel %vm6686, %v6734, %v6222
  %v6783 = vsel %vm6687, %v6735, %v6233
  %v6784 = vsel %vm6688, %v6736, %v6244
  %v6785 = vsel %vm6689, %v6737, %v6255
  %v6786 = vsel %vm6690, %v6738, %v6266
  %v6787 = vsel %vm6691, %v6739, %v6277
  %v6788 = vsel %vm6692, %v6740, %v6288
  %v6789 = vsel %vm6693, %v6741, %v6299
  %v6790 = vsel %vm6694, %v6742, %v6310
  %v6791 = vsel %vm6695, %v6743, %v6321
  %v6792 = vsel %vm6696, %v6744, %v6332
  %v6793 = vsel %vm6697, %v6745, %v6343
  %v6794 = vsel %vm6698, %v6746, %v6354
  %v6795 = vsel %vm6699, %v6747, %v6365
  %v6796 = vsel %vm6700, %v6748, %v6376
  %v6797 = vsel %vm6701, %v6749, %v6387
  %v6798 = vsel %vm6702, %v6750, %v6398
  %v6799 = vsel %vm6703, %v6751, %v6409
  %v6800 = vsel %vm6704, %v6752, %v6420
  %v6801 = vsel %vm6705, %v6753, %v6431
  %v6802 = vsel %vm6706, %v6754, %v6442
  %v6803 = vsel %vm6707, %v6755, %v6453
  %v6804 = vsel %vm6708, %v6756, %v6464
  %v6805 = vsel %vm6709, %v6757, %v6475
  %v6806 = vsel %vm6710, %v6758, %v6486
  %v6807 = vsel %vm6711, %v6759, %v6497
  %v6808 = vsel %vm6712, %v6760, %v6508
  %v6809 = vsel %vm6713, %v6761, %v6519
  %v6810 = vsel %vm6714, %v6762, %v6530
  %v6811 = vsel %vm6715, %v6763, %v6541
  %v6812 = vsel %vm6716, %v6764, %v6552
  %v6813 = vsel %vm6717, %v6765, %v6563
  %v6814 = vsel %vm6718, %v6766, %v6574
  %vm6815 = vcmp.lt.s32.totalorder %v6767, 16
  %vm6816 = vcmp.lt.s32.totalorder %v6768, 16
  %vm6817 = vcmp.lt.s32.totalorder %v6769, 16
  %vm6818 = vcmp.lt.s32.totalorder %v6770, 16
  %vm6819 = vcmp.lt.s32.totalorder %v6771, 16
  %vm6820 = vcmp.lt.s32.totalorder %v6772, 16
  %vm6821 = vcmp.lt.s32.totalorder %v6773, 16
  %vm6822 = vcmp.lt.s32.totalorder %v6774, 16
  %vm6823 = vcmp.lt.s32.totalorder %v6775, 16
  %vm6824 = vcmp.lt.s32.totalorder %v6776, 16
  %vm6825 = vcmp.lt.s32.totalorder %v6777, 16
  %vm6826 = vcmp.lt.s32.totalorder %v6778, 16
  %vm6827 = vcmp.lt.s32.totalorder %v6779, 16
  %vm6828 = vcmp.lt.s32.totalorder %v6780, 16
  %vm6829 = vcmp.lt.s32.totalorder %v6781, 16
  %vm6830 = vcmp.lt.s32.totalorder %v6782, 16
  %vm6831 = vcmp.lt.s32.totalorder %v6783, 16
  %vm6832 = vcmp.lt.s32.totalorder %v6784, 16
  %vm6833 = vcmp.lt.s32.totalorder %v6785, 16
  %vm6834 = vcmp.lt.s32.totalorder %v6786, 16
  %vm6835 = vcmp.lt.s32.totalorder %v6787, 16
  %vm6836 = vcmp.lt.s32.totalorder %v6788, 16
  %vm6837 = vcmp.lt.s32.totalorder %v6789, 16
  %vm6838 = vcmp.lt.s32.totalorder %v6790, 16
  %vm6839 = vcmp.lt.s32.totalorder %v6791, 16
  %vm6840 = vcmp.lt.s32.totalorder %v6792, 16
  %vm6841 = vcmp.lt.s32.totalorder %v6793, 16
  %vm6842 = vcmp.lt.s32.totalorder %v6794, 16
  %vm6843 = vcmp.lt.s32.totalorder %v6795, 16
  %vm6844 = vcmp.lt.s32.totalorder %v6796, 16
  %vm6845 = vcmp.lt.s32.totalorder %v6797, 16
  %vm6846 = vcmp.lt.s32.totalorder %v6798, 16
  %vm6847 = vcmp.lt.s32.totalorder %v6799, 16
  %vm6848 = vcmp.lt.s32.totalorder %v6800, 16
  %vm6849 = vcmp.lt.s32.totalorder %v6801, 16
  %vm6850 = vcmp.lt.s32.totalorder %v6802, 16
  %vm6851 = vcmp.lt.s32.totalorder %v6803, 16
  %vm6852 = vcmp.lt.s32.totalorder %v6804, 16
  %vm6853 = vcmp.lt.s32.totalorder %v6805, 16
  %vm6854 = vcmp.lt.s32.totalorder %v6806, 16
  %vm6855 = vcmp.lt.s32.totalorder %v6807, 16
  %vm6856 = vcmp.lt.s32.totalorder %v6808, 16
  %vm6857 = vcmp.lt.s32.totalorder %v6809, 16
  %vm6858 = vcmp.lt.s32.totalorder %v6810, 16
  %vm6859 = vcmp.lt.s32.totalorder %v6811, 16
  %vm6860 = vcmp.lt.s32.totalorder %v6812, 16
  %vm6861 = vcmp.lt.s32.totalorder %v6813, 16
  %vm6862 = vcmp.lt.s32.totalorder %v6814, 16
  %v6863 = vsel %vm6815, 1, 0
  %v6864 = vsel %vm6816, 1, 0
  %v6865 = vsel %vm6817, 1, 0
  %v6866 = vsel %vm6818, 1, 0
  %v6867 = vsel %vm6819, 1, 0
  %v6868 = vsel %vm6820, 1, 0
  %v6869 = vsel %vm6821, 1, 0
  %v6870 = vsel %vm6822, 1, 0
  %v6871 = vsel %vm6823, 1, 0
  %v6872 = vsel %vm6824, 1, 0
  %v6873 = vsel %vm6825, 1, 0
  %v6874 = vsel %vm6826, 1, 0
  %v6875 = vsel %vm6827, 1, 0
  %v6876 = vsel %vm6828, 1, 0
  %v6877 = vsel %vm6829, 1, 0
  %v6878 = vsel %vm6830, 1, 0
  %v6879 = vsel %vm6831, 1, 0
  %v6880 = vsel %vm6832, 1, 0
  %v6881 = vsel %vm6833, 1, 0
  %v6882 = vsel %vm6834, 1, 0
  %v6883 = vsel %vm6835, 1, 0
  %v6884 = vsel %vm6836, 1, 0
  %v6885 = vsel %vm6837, 1, 0
  %v6886 = vsel %vm6838, 1, 0
  %v6887 = vsel %vm6839, 1, 0
  %v6888 = vsel %vm6840, 1, 0
  %v6889 = vsel %vm6841, 1, 0
  %v6890 = vsel %vm6842, 1, 0
  %v6891 = vsel %vm6843, 1, 0
  %v6892 = vsel %vm6844, 1, 0
  %v6893 = vsel %vm6845, 1, 0
  %v6894 = vsel %vm6846, 1, 0
  %v6895 = vsel %vm6847, 1, 0
  %v6896 = vsel %vm6848, 1, 0
  %v6897 = vsel %vm6849, 1, 0
  %v6898 = vsel %vm6850, 1, 0
  %v6899 = vsel %vm6851, 1, 0
  %v6900 = vsel %vm6852, 1, 0
  %v6901 = vsel %vm6853, 1, 0
  %v6902 = vsel %vm6854, 1, 0
  %v6903 = vsel %vm6855, 1, 0
  %v6904 = vsel %vm6856, 1, 0
  %v6905 = vsel %vm6857, 1, 0
  %v6906 = vsel %vm6858, 1, 0
  %v6907 = vsel %vm6859, 1, 0
  %v6908 = vsel %vm6860, 1, 0
  %v6909 = vsel %vm6861, 1, 0
  %v6910 = vsel %vm6862, 1, 0
  %v6911 = vcvt.s32.f32 %v6863
  %v6912 = vcvt.s32.f32 %v6864
  %v6913 = vcvt.s32.f32 %v6865
  %v6914 = vcvt.s32.f32 %v6866
  %v6915 = vcvt.s32.f32 %v6867
  %v6916 = vcvt.s32.f32 %v6868
  %v6917 = vcvt.s32.f32 %v6869
  %v6918 = vcvt.s32.f32 %v6870
  %v6919 = vcvt.s32.f32 %v6871
  %v6920 = vcvt.s32.f32 %v6872
  %v6921 = vcvt.s32.f32 %v6873
  %v6922 = vcvt.s32.f32 %v6874
  %v6923 = vcvt.s32.f32 %v6875
  %v6924 = vcvt.s32.f32 %v6876
  %v6925 = vcvt.s32.f32 %v6877
  %v6926 = vcvt.s32.f32 %v6878
  %v6927 = vcvt.s32.f32 %v6879
  %v6928 = vcvt.s32.f32 %v6880
  %v6929 = vcvt.s32.f32 %v6881
  %v6930 = vcvt.s32.f32 %v6882
  %v6931 = vcvt.s32.f32 %v6883
  %v6932 = vcvt.s32.f32 %v6884
  %v6933 = vcvt.s32.f32 %v6885
  %v6934 = vcvt.s32.f32 %v6886
  %v6935 = vcvt.s32.f32 %v6887
  %v6936 = vcvt.s32.f32 %v6888
  %v6937 = vcvt.s32.f32 %v6889
  %v6938 = vcvt.s32.f32 %v6890
  %v6939 = vcvt.s32.f32 %v6891
  %v6940 = vcvt.s32.f32 %v6892
  %v6941 = vcvt.s32.f32 %v6893
  %v6942 = vcvt.s32.f32 %v6894
  %v6943 = vcvt.s32.f32 %v6895
  %v6944 = vcvt.s32.f32 %v6896
  %v6945 = vcvt.s32.f32 %v6897
  %v6946 = vcvt.s32.f32 %v6898
  %v6947 = vcvt.s32.f32 %v6899
  %v6948 = vcvt.s32.f32 %v6900
  %v6949 = vcvt.s32.f32 %v6901
  %v6950 = vcvt.s32.f32 %v6902
  %v6951 = vcvt.s32.f32 %v6903
  %v6952 = vcvt.s32.f32 %v6904
  %v6953 = vcvt.s32.f32 %v6905
  %v6954 = vcvt.s32.f32 %v6906
  %v6955 = vcvt.s32.f32 %v6907
  %v6956 = vcvt.s32.f32 %v6908
  %v6957 = vcvt.s32.f32 %v6909
  %v6958 = vcvt.s32.f32 %v6910
  %v6959 = vmul.f32 %v5940, %v6911
  %v6960 = vmul.f32 %v5941, %v6912
  %v6961 = vmul.f32 %v5942, %v6913
  %v6962 = vmul.f32 %v5943, %v6914
  %v6963 = vmul.f32 %v5944, %v6915
  %v6964 = vmul.f32 %v5945, %v6916
  %v6965 = vmul.f32 %v5946, %v6917
  %v6966 = vmul.f32 %v5947, %v6918
  %v6967 = vmul.f32 %v5948, %v6919
  %v6968 = vmul.f32 %v5949, %v6920
  %v6969 = vmul.f32 %v5950, %v6921
  %v6970 = vmul.f32 %v5951, %v6922
  %v6971 = vmul.f32 %v5952, %v6923
  %v6972 = vmul.f32 %v5953, %v6924
  %v6973 = vmul.f32 %v5954, %v6925
  %v6974 = vmul.f32 %v5955, %v6926
  %v6975 = vmul.f32 %v5956, %v6927
  %v6976 = vmul.f32 %v5957, %v6928
  %v6977 = vmul.f32 %v5958, %v6929
  %v6978 = vmul.f32 %v5959, %v6930
  %v6979 = vmul.f32 %v5960, %v6931
  %v6980 = vmul.f32 %v5961, %v6932
  %v6981 = vmul.f32 %v5962, %v6933
  %v6982 = vmul.f32 %v5963, %v6934
  %v6983 = vmul.f32 %v5964, %v6935
  %v6984 = vmul.f32 %v5965, %v6936
  %v6985 = vmul.f32 %v5966, %v6937
  %v6986 = vmul.f32 %v5967, %v6938
  %v6987 = vmul.f32 %v5968, %v6939
  %v6988 = vmul.f32 %v5969, %v6940
  %v6989 = vmul.f32 %v5970, %v6941
  %v6990 = vmul.f32 %v5971, %v6942
  %v6991 = vmul.f32 %v5972, %v6943
  %v6992 = vmul.f32 %v5973, %v6944
  %v6993 = vmul.f32 %v5974, %v6945
  %v6994 = vmul.f32 %v5975, %v6946
  %v6995 = vmul.f32 %v5976, %v6947
  %v6996 = vmul.f32 %v5977, %v6948
  %v6997 = vmul.f32 %v5978, %v6949
  %v6998 = vmul.f32 %v5979, %v6950
  %v6999 = vmul.f32 %v5980, %v6951
  %v7000 = vmul.f32 %v5981, %v6952
  %v7001 = vmul.f32 %v5982, %v6953
  %v7002 = vmul.f32 %v5983, %v6954
  %v7003 = vmul.f32 %v5984, %v6955
  %v7004 = vmul.f32 %v5985, %v6956
  %v7005 = vmul.f32 %v5986, %v6957
  %v7006 = vmul.f32 %v5987, %v6958
  %v7007 = vsel %vm211, %v6959, 0.0
  %v7008 = vsel %vm211, %v6960, 0.0
  %v7009 = vadd.f32 %v7007, %v7008
  %v7010 = vsel %vm211, %v6961, 0.0
  %v7011 = vadd.f32 %v7009, %v7010
  %v7012 = vsel %vm211, %v6962, 0.0
  %v7013 = vadd.f32 %v7011, %v7012
  %v7014 = vsel %vm211, %v6963, 0.0
  %v7015 = vadd.f32 %v7013, %v7014
  %v7016 = vsel %vm211, %v6964, 0.0
  %v7017 = vadd.f32 %v7015, %v7016
  %v7018 = vsel %vm211, %v6965, 0.0
  %v7019 = vadd.f32 %v7017, %v7018
  %v7020 = vsel %vm211, %v6966, 0.0
  %v7021 = vadd.f32 %v7019, %v7020
  %v7022 = vsel %vm211, %v6967, 0.0
  %v7023 = vadd.f32 %v7021, %v7022
  %v7024 = vsel %vm211, %v6968, 0.0
  %v7025 = vadd.f32 %v7023, %v7024
  %v7026 = vsel %vm211, %v6969, 0.0
  %v7027 = vadd.f32 %v7025, %v7026
  %v7028 = vsel %vm211, %v6970, 0.0
  %v7029 = vadd.f32 %v7027, %v7028
  %v7030 = vsel %vm211, %v6971, 0.0
  %v7031 = vadd.f32 %v7029, %v7030
  %v7032 = vsel %vm211, %v6972, 0.0
  %v7033 = vadd.f32 %v7031, %v7032
  %v7034 = vsel %vm211, %v6973, 0.0
  %v7035 = vadd.f32 %v7033, %v7034
  %v7036 = vsel %vm211, %v6974, 0.0
  %v7037 = vadd.f32 %v7035, %v7036
  %v7038 = vsel %vm211, %v6975, 0.0
  %v7039 = vadd.f32 %v7037, %v7038
  %v7040 = vsel %vm211, %v6976, 0.0
  %v7041 = vadd.f32 %v7039, %v7040
  %v7042 = vsel %vm211, %v6977, 0.0
  %v7043 = vadd.f32 %v7041, %v7042
  %v7044 = vsel %vm211, %v6978, 0.0
  %v7045 = vadd.f32 %v7043, %v7044
  %v7046 = vsel %vm211, %v6979, 0.0
  %v7047 = vadd.f32 %v7045, %v7046
  %v7048 = vsel %vm211, %v6980, 0.0
  %v7049 = vadd.f32 %v7047, %v7048
  %v7050 = vsel %vm211, %v6981, 0.0
  %v7051 = vadd.f32 %v7049, %v7050
  %v7052 = vsel %vm211, %v6982, 0.0
  %v7053 = vadd.f32 %v7051, %v7052
  %v7054 = vsel %vm211, %v6983, 0.0
  %v7055 = vadd.f32 %v7053, %v7054
  %v7056 = vsel %vm211, %v6984, 0.0
  %v7057 = vadd.f32 %v7055, %v7056
  %v7058 = vsel %vm211, %v6985, 0.0
  %v7059 = vadd.f32 %v7057, %v7058
  %v7060 = vsel %vm211, %v6986, 0.0
  %v7061 = vadd.f32 %v7059, %v7060
  %v7062 = vsel %vm211, %v6987, 0.0
  %v7063 = vadd.f32 %v7061, %v7062
  %v7064 = vsel %vm211, %v6988, 0.0
  %v7065 = vadd.f32 %v7063, %v7064
  %v7066 = vsel %vm211, %v6989, 0.0
  %v7067 = vadd.f32 %v7065, %v7066
  %v7068 = vsel %vm211, %v6990, 0.0
  %v7069 = vadd.f32 %v7067, %v7068
  %v7070 = vsel %vm211, %v6991, 0.0
  %v7071 = vadd.f32 %v7069, %v7070
  %v7072 = vsel %vm211, %v6992, 0.0
  %v7073 = vadd.f32 %v7071, %v7072
  %v7074 = vsel %vm211, %v6993, 0.0
  %v7075 = vadd.f32 %v7073, %v7074
  %v7076 = vsel %vm211, %v6994, 0.0
  %v7077 = vadd.f32 %v7075, %v7076
  %v7078 = vsel %vm211, %v6995, 0.0
  %v7079 = vadd.f32 %v7077, %v7078
  %v7080 = vsel %vm211, %v6996, 0.0
  %v7081 = vadd.f32 %v7079, %v7080
  %v7082 = vsel %vm211, %v6997, 0.0
  %v7083 = vadd.f32 %v7081, %v7082
  %v7084 = vsel %vm211, %v6998, 0.0
  %v7085 = vadd.f32 %v7083, %v7084
  %v7086 = vsel %vm211, %v6999, 0.0
  %v7087 = vadd.f32 %v7085, %v7086
  %v7088 = vsel %vm211, %v7000, 0.0
  %v7089 = vadd.f32 %v7087, %v7088
  %v7090 = vsel %vm211, %v7001, 0.0
  %v7091 = vadd.f32 %v7089, %v7090
  %v7092 = vsel %vm211, %v7002, 0.0
  %v7093 = vadd.f32 %v7091, %v7092
  %v7094 = vsel %vm211, %v7003, 0.0
  %v7095 = vadd.f32 %v7093, %v7094
  %v7096 = vsel %vm211, %v7004, 0.0
  %v7097 = vadd.f32 %v7095, %v7096
  %v7098 = vsel %vm211, %v7005, 0.0
  %v7099 = vadd.f32 %v7097, %v7098
  %v7100 = vsel %vm211, %v7006, 0.0
  %v7101 = vadd.f32 %v7099, %v7100
  %v7102 = vrot.slane %v7101, 4
  %v7103 = vadd.f32 %v7101, %v7102
  %v7104 = vrot.slane %v7103, 2
  %v7105 = vadd.f32 %v7103, %v7104
  %v7106 = vrot.slane %v7105, 1
  %v7107 = vadd.f32 %v7105, %v7106
  %v7109 = vsel %vm211, %v7107, 0
  %7111 = vmatprep.subr.mxu0 0.0
  %7112 = vmatpush1.msra.mxu0 0.0
  %7113 = vmatprep.subr.mxu0 0.0
  %7114 = vmatpush1.msra.mxu0 0.0
  %7115 = vmatprep.subr.mxu0 0.0
  %7116 = vmatpush1.msra.mxu0 0.0
  %7117 = vmatprep.subr.mxu0 0.0
  %7118 = vmatpush1.msra.mxu0 0.0
  %7119 = vmatprep.subr.mxu0 0.0
  %7120 = vmatpush1.msra.mxu0 0.0
  %7121 = vmatprep.subr.mxu0 0.0
  %7122 = vmatpush1.msra.mxu0 0.0
  %7123 = vmatprep.subr.mxu0 0.0
  %7124 = vmatpush1.msra.mxu0 0.0
  %7125 = vmatprep.subr.mxu0 0.0
  %7126 = vmatpush1.msra.mxu0 0.0
  %7127 = vmatprep.subr.mxu0 0.0
  %7128 = vmatpush1.msra.mxu0 0.0
  %7129 = vmatprep.subr.mxu0 0.0
  %7130 = vmatpush1.msra.mxu0 0.0
  %7131 = vmatprep.subr.mxu0 0.0
  %7132 = vmatpush1.msra.mxu0 0.0
  %7133 = vmatprep.subr.mxu0 0.0
  %7134 = vmatpush1.msra.mxu0 0.0
  %7135 = vmatprep.subr.mxu0 0.0
  %7136 = vmatpush1.msra.mxu0 %v5993
  %7137 = vmatprep.subr.mxu0 0.0
  %7138 = vmatpush1.msra.mxu0 %v5992
  %7139 = vmatprep.subr.mxu0 0.0
  %7140 = vmatpush1.msra.mxu0 %v5991
  %7141 = vmatprep.subr.mxu0 0.0
  %7142 = vmatpush1.msra.mxu0 %v5990
  %7143 = vmatprep.subr.mxu0 0.0
  %7144 = vmatpush2.msra.mxu0 0.0
  %7145 = vmatprep.subr.mxu0 0.0
  %7146 = vmatpush2.msra.mxu0 0.0
  %7147 = vmatprep.subr.mxu0 0.0
  %7148 = vmatpush2.msra.mxu0 0.0
  %7149 = vmatprep.subr.mxu0 0.0
  %7150 = vmatpush2.msra.mxu0 0.0
  %7151 = vmatprep.subr.mxu0 0.0
  %7152 = vmatpush2.msra.mxu0 0.0
  %7153 = vmatprep.subr.mxu0 0.0
  %7154 = vmatpush2.msra.mxu0 0.0
  %7155 = vmatprep.subr.mxu0 0.0
  %7156 = vmatpush2.msra.mxu0 0.0
  %7157 = vmatprep.subr.mxu0 0.0
  %7158 = vmatpush2.msra.mxu0 0.0
  %7159 = vmatprep.subr.mxu0 0.0
  %7160 = vmatpush2.msra.mxu0 0.0
  %7161 = vmatprep.subr.mxu0 0.0
  %7162 = vmatpush2.msra.mxu0 0.0
  %7163 = vmatprep.subr.mxu0 0.0
  %7164 = vmatpush2.msra.mxu0 0.0
  %7165 = vmatprep.subr.mxu0 0.0
  %7166 = vmatpush2.msra.mxu0 0.0
  %7167 = vmatprep.subr.mxu0 0.0
  %7168 = vmatpush2.msra.mxu0 0.0
  %7169 = vmatprep.subr.mxu0 0.0
  %7170 = vmatpush2.msra.mxu0 0.0
  %7171 = vmatprep.subr.mxu0 0.0
  %7172 = vmatpush2.msra.mxu0 0.0
  %7173 = vmatprep.subr.mxu0 0.0
  %7174 = vmatpush2.msra.mxu0 0.0
  %7175 = vmatprep.mubr.f32.mxu0 0.0
  %7176 = vmatmul.mubr.f32.gmra.mxu0 %v7109
  %v7177 = vpop.f32.mrf.mxu0
  %v7178 = vadd.f32 0.0, %v7177
  %v7179 = vpop.f32.mrf.mxu0
  %7180 = vdwg.mxu0
  %v7181 = vmul.f32 %v7178, 0.00390625
  %v7183 = vsel %vm211, %v7181, 0
  %7185 = vmatprep.subr.mxu0 0.0
  %7186 = vmatpush1.msra.mxu0 0.0
  %7187 = vmatprep.subr.mxu0 0.0
  %7188 = vmatpush1.msra.mxu0 0.0
  %7189 = vmatprep.subr.mxu0 0.0
  %7190 = vmatpush1.msra.mxu0 0.0
  %7191 = vmatprep.subr.mxu0 0.0
  %7192 = vmatpush1.msra.mxu0 0.0
  %7193 = vmatprep.subr.mxu0 0.0
  %7194 = vmatpush1.msra.mxu0 0.0
  %7195 = vmatprep.subr.mxu0 0.0
  %7196 = vmatpush1.msra.mxu0 0.0
  %7197 = vmatprep.subr.mxu0 0.0
  %7198 = vmatpush1.msra.mxu0 0.0
  %7199 = vmatprep.subr.mxu0 0.0
  %7200 = vmatpush1.msra.mxu0 0.0
  %7201 = vmatprep.subr.mxu0 0.0
  %7202 = vmatpush1.msra.mxu0 0.0
  %7203 = vmatprep.subr.mxu0 0.0
  %7204 = vmatpush1.msra.mxu0 0.0
  %7205 = vmatprep.subr.mxu0 0.0
  %7206 = vmatpush1.msra.mxu0 0.0
  %7207 = vmatprep.subr.mxu0 0.0
  %7208 = vmatpush1.msra.mxu0 0.0
  %7209 = vmatprep.subr.mxu0 0.0
  %7210 = vmatpush1.msra.mxu0 %v5997
  %7211 = vmatprep.subr.mxu0 0.0
  %7212 = vmatpush1.msra.mxu0 %v5996
  %7213 = vmatprep.subr.mxu0 0.0
  %7214 = vmatpush1.msra.mxu0 %v5995
  %7215 = vmatprep.subr.mxu0 0.0
  %7216 = vmatpush1.msra.mxu0 %v5994
  %7217 = vmatprep.subr.mxu0 0.0
  %7218 = vmatpush2.msra.mxu0 0.0
  %7219 = vmatprep.subr.mxu0 0.0
  %7220 = vmatpush2.msra.mxu0 0.0
  %7221 = vmatprep.subr.mxu0 0.0
  %7222 = vmatpush2.msra.mxu0 0.0
  %7223 = vmatprep.subr.mxu0 0.0
  %7224 = vmatpush2.msra.mxu0 0.0
  %7225 = vmatprep.subr.mxu0 0.0
  %7226 = vmatpush2.msra.mxu0 0.0
  %7227 = vmatprep.subr.mxu0 0.0
  %7228 = vmatpush2.msra.mxu0 0.0
  %7229 = vmatprep.subr.mxu0 0.0
  %7230 = vmatpush2.msra.mxu0 0.0
  %7231 = vmatprep.subr.mxu0 0.0
  %7232 = vmatpush2.msra.mxu0 0.0
  %7233 = vmatprep.subr.mxu0 0.0
  %7234 = vmatpush2.msra.mxu0 0.0
  %7235 = vmatprep.subr.mxu0 0.0
  %7236 = vmatpush2.msra.mxu0 0.0
  %7237 = vmatprep.subr.mxu0 0.0
  %7238 = vmatpush2.msra.mxu0 0.0
  %7239 = vmatprep.subr.mxu0 0.0
  %7240 = vmatpush2.msra.mxu0 0.0
  %7241 = vmatprep.subr.mxu0 0.0
  %7242 = vmatpush2.msra.mxu0 0.0
  %7243 = vmatprep.subr.mxu0 0.0
  %7244 = vmatpush2.msra.mxu0 0.0
  %7245 = vmatprep.subr.mxu0 0.0
  %7246 = vmatpush2.msra.mxu0 0.0
  %7247 = vmatprep.subr.mxu0 0.0
  %7248 = vmatpush2.msra.mxu0 0.0
  %7249 = vmatprep.mubr.f32.mxu0 0.0
  %7250 = vmatmul.mubr.f32.gmra.mxu0 %v7183
  %v7251 = vpop.f32.mrf.mxu0
  %v7252 = vadd.f32 0.0, %v7251
  %v7253 = vpop.f32.mrf.mxu0
  %7254 = vdwg.mxu0
  %v7255 = vlaneseq
  %v7256 = vshrl.u32 %v7255, 7
  %v7257 = vsub.s32 0, %v7256
  %v7258 = vrot.slane %v7252, %v7257
  %v7259 = vsub.f32 %v5940, %v7258
  %v7260 = vsub.f32 %v5941, %v7258
  %v7261 = vsub.f32 %v5942, %v7258
  %v7262 = vsub.f32 %v5943, %v7258
  %v7263 = vsub.f32 %v5944, %v7258
  %v7264 = vsub.f32 %v5945, %v7258
  %v7265 = vsub.f32 %v5946, %v7258
  %v7266 = vsub.f32 %v5947, %v7258
  %v7267 = vsub.f32 %v5948, %v7258
  %v7268 = vsub.f32 %v5949, %v7258
  %v7269 = vsub.f32 %v5950, %v7258
  %v7270 = vsub.f32 %v5951, %v7258
  %v7271 = vsub.f32 %v5952, %v7258
  %v7272 = vsub.f32 %v5953, %v7258
  %v7273 = vsub.f32 %v5954, %v7258
  %v7274 = vsub.f32 %v5955, %v7258
  %v7275 = vsub.f32 %v5956, %v7258
  %v7276 = vsub.f32 %v5957, %v7258
  %v7277 = vsub.f32 %v5958, %v7258
  %v7278 = vsub.f32 %v5959, %v7258
  %v7279 = vsub.f32 %v5960, %v7258
  %v7280 = vsub.f32 %v5961, %v7258
  %v7281 = vsub.f32 %v5962, %v7258
  %v7282 = vsub.f32 %v5963, %v7258
  %v7283 = vsub.f32 %v5964, %v7258
  %v7284 = vsub.f32 %v5965, %v7258
  %v7285 = vsub.f32 %v5966, %v7258
  %v7286 = vsub.f32 %v5967, %v7258
  %v7287 = vsub.f32 %v5968, %v7258
  %v7288 = vsub.f32 %v5969, %v7258
  %v7289 = vsub.f32 %v5970, %v7258
  %v7290 = vsub.f32 %v5971, %v7258
  %v7291 = vsub.f32 %v5972, %v7258
  %v7292 = vsub.f32 %v5973, %v7258
  %v7293 = vsub.f32 %v5974, %v7258
  %v7294 = vsub.f32 %v5975, %v7258
  %v7295 = vsub.f32 %v5976, %v7258
  %v7296 = vsub.f32 %v5977, %v7258
  %v7297 = vsub.f32 %v5978, %v7258
  %v7298 = vsub.f32 %v5979, %v7258
  %v7299 = vsub.f32 %v5980, %v7258
  %v7300 = vsub.f32 %v5981, %v7258
  %v7301 = vsub.f32 %v5982, %v7258
  %v7302 = vsub.f32 %v5983, %v7258
  %v7303 = vsub.f32 %v5984, %v7258
  %v7304 = vsub.f32 %v5985, %v7258
  %v7305 = vsub.f32 %v5986, %v7258
  %v7306 = vsub.f32 %v5987, %v7258
  %v7307 = vmul.f32 %v7259, %v7259
  %v7308 = vmul.f32 %v7260, %v7260
  %v7309 = vmul.f32 %v7261, %v7261
  %v7310 = vmul.f32 %v7262, %v7262
  %v7311 = vmul.f32 %v7263, %v7263
  %v7312 = vmul.f32 %v7264, %v7264
  %v7313 = vmul.f32 %v7265, %v7265
  %v7314 = vmul.f32 %v7266, %v7266
  %v7315 = vmul.f32 %v7267, %v7267
  %v7316 = vmul.f32 %v7268, %v7268
  %v7317 = vmul.f32 %v7269, %v7269
  %v7318 = vmul.f32 %v7270, %v7270
  %v7319 = vmul.f32 %v7271, %v7271
  %v7320 = vmul.f32 %v7272, %v7272
  %v7321 = vmul.f32 %v7273, %v7273
  %v7322 = vmul.f32 %v7274, %v7274
  %v7323 = vmul.f32 %v7275, %v7275
  %v7324 = vmul.f32 %v7276, %v7276
  %v7325 = vmul.f32 %v7277, %v7277
  %v7326 = vmul.f32 %v7278, %v7278
  %v7327 = vmul.f32 %v7279, %v7279
  %v7328 = vmul.f32 %v7280, %v7280
  %v7329 = vmul.f32 %v7281, %v7281
  %v7330 = vmul.f32 %v7282, %v7282
  %v7331 = vmul.f32 %v7283, %v7283
  %v7332 = vmul.f32 %v7284, %v7284
  %v7333 = vmul.f32 %v7285, %v7285
  %v7334 = vmul.f32 %v7286, %v7286
  %v7335 = vmul.f32 %v7287, %v7287
  %v7336 = vmul.f32 %v7288, %v7288
  %v7337 = vmul.f32 %v7289, %v7289
  %v7338 = vmul.f32 %v7290, %v7290
  %v7339 = vmul.f32 %v7291, %v7291
  %v7340 = vmul.f32 %v7292, %v7292
  %v7341 = vmul.f32 %v7293, %v7293
  %v7342 = vmul.f32 %v7294, %v7294
  %v7343 = vmul.f32 %v7295, %v7295
  %v7344 = vmul.f32 %v7296, %v7296
  %v7345 = vmul.f32 %v7297, %v7297
  %v7346 = vmul.f32 %v7298, %v7298
  %v7347 = vmul.f32 %v7299, %v7299
  %v7348 = vmul.f32 %v7300, %v7300
  %v7349 = vmul.f32 %v7301, %v7301
  %v7350 = vmul.f32 %v7302, %v7302
  %v7351 = vmul.f32 %v7303, %v7303
  %v7352 = vmul.f32 %v7304, %v7304
  %v7353 = vmul.f32 %v7305, %v7305
  %v7354 = vmul.f32 %v7306, %v7306
  %v7355 = vmul.f32 %v7307, %v6911
  %v7356 = vmul.f32 %v7308, %v6912
  %v7357 = vmul.f32 %v7309, %v6913
  %v7358 = vmul.f32 %v7310, %v6914
  %v7359 = vmul.f32 %v7311, %v6915
  %v7360 = vmul.f32 %v7312, %v6916
  %v7361 = vmul.f32 %v7313, %v6917
  %v7362 = vmul.f32 %v7314, %v6918
  %v7363 = vmul.f32 %v7315, %v6919
  %v7364 = vmul.f32 %v7316, %v6920
  %v7365 = vmul.f32 %v7317, %v6921
  %v7366 = vmul.f32 %v7318, %v6922
  %v7367 = vmul.f32 %v7319, %v6923
  %v7368 = vmul.f32 %v7320, %v6924
  %v7369 = vmul.f32 %v7321, %v6925
  %v7370 = vmul.f32 %v7322, %v6926
  %v7371 = vmul.f32 %v7323, %v6927
  %v7372 = vmul.f32 %v7324, %v6928
  %v7373 = vmul.f32 %v7325, %v6929
  %v7374 = vmul.f32 %v7326, %v6930
  %v7375 = vmul.f32 %v7327, %v6931
  %v7376 = vmul.f32 %v7328, %v6932
  %v7377 = vmul.f32 %v7329, %v6933
  %v7378 = vmul.f32 %v7330, %v6934
  %v7379 = vmul.f32 %v7331, %v6935
  %v7380 = vmul.f32 %v7332, %v6936
  %v7381 = vmul.f32 %v7333, %v6937
  %v7382 = vmul.f32 %v7334, %v6938
  %v7383 = vmul.f32 %v7335, %v6939
  %v7384 = vmul.f32 %v7336, %v6940
  %v7385 = vmul.f32 %v7337, %v6941
  %v7386 = vmul.f32 %v7338, %v6942
  %v7387 = vmul.f32 %v7339, %v6943
  %v7388 = vmul.f32 %v7340, %v6944
  %v7389 = vmul.f32 %v7341, %v6945
  %v7390 = vmul.f32 %v7342, %v6946
  %v7391 = vmul.f32 %v7343, %v6947
  %v7392 = vmul.f32 %v7344, %v6948
  %v7393 = vmul.f32 %v7345, %v6949
  %v7394 = vmul.f32 %v7346, %v6950
  %v7395 = vmul.f32 %v7347, %v6951
  %v7396 = vmul.f32 %v7348, %v6952
  %v7397 = vmul.f32 %v7349, %v6953
  %v7398 = vmul.f32 %v7350, %v6954
  %v7399 = vmul.f32 %v7351, %v6955
  %v7400 = vmul.f32 %v7352, %v6956
  %v7401 = vmul.f32 %v7353, %v6957
  %v7402 = vmul.f32 %v7354, %v6958
  %v7403 = vsel %vm211, %v7355, 0.0
  %v7404 = vsel %vm211, %v7356, 0.0
  %v7405 = vadd.f32 %v7403, %v7404
  %v7406 = vsel %vm211, %v7357, 0.0
  %v7407 = vadd.f32 %v7405, %v7406
  %v7408 = vsel %vm211, %v7358, 0.0
  %v7409 = vadd.f32 %v7407, %v7408
  %v7410 = vsel %vm211, %v7359, 0.0
  %v7411 = vadd.f32 %v7409, %v7410
  %v7412 = vsel %vm211, %v7360, 0.0
  %v7413 = vadd.f32 %v7411, %v7412
  %v7414 = vsel %vm211, %v7361, 0.0
  %v7415 = vadd.f32 %v7413, %v7414
  %v7416 = vsel %vm211, %v7362, 0.0
  %v7417 = vadd.f32 %v7415, %v7416
  %v7418 = vsel %vm211, %v7363, 0.0
  %v7419 = vadd.f32 %v7417, %v7418
  %v7420 = vsel %vm211, %v7364, 0.0
  %v7421 = vadd.f32 %v7419, %v7420
  %v7422 = vsel %vm211, %v7365, 0.0
  %v7423 = vadd.f32 %v7421, %v7422
  %v7424 = vsel %vm211, %v7366, 0.0
  %v7425 = vadd.f32 %v7423, %v7424
  %v7426 = vsel %vm211, %v7367, 0.0
  %v7427 = vadd.f32 %v7425, %v7426
  %v7428 = vsel %vm211, %v7368, 0.0
  %v7429 = vadd.f32 %v7427, %v7428
  %v7430 = vsel %vm211, %v7369, 0.0
  %v7431 = vadd.f32 %v7429, %v7430
  %v7432 = vsel %vm211, %v7370, 0.0
  %v7433 = vadd.f32 %v7431, %v7432
  %v7434 = vsel %vm211, %v7371, 0.0
  %v7435 = vadd.f32 %v7433, %v7434
  %v7436 = vsel %vm211, %v7372, 0.0
  %v7437 = vadd.f32 %v7435, %v7436
  %v7438 = vsel %vm211, %v7373, 0.0
  %v7439 = vadd.f32 %v7437, %v7438
  %v7440 = vsel %vm211, %v7374, 0.0
  %v7441 = vadd.f32 %v7439, %v7440
  %v7442 = vsel %vm211, %v7375, 0.0
  %v7443 = vadd.f32 %v7441, %v7442
  %v7444 = vsel %vm211, %v7376, 0.0
  %v7445 = vadd.f32 %v7443, %v7444
  %v7446 = vsel %vm211, %v7377, 0.0
  %v7447 = vadd.f32 %v7445, %v7446
  %v7448 = vsel %vm211, %v7378, 0.0
  %v7449 = vadd.f32 %v7447, %v7448
  %v7450 = vsel %vm211, %v7379, 0.0
  %v7451 = vadd.f32 %v7449, %v7450
  %v7452 = vsel %vm211, %v7380, 0.0
  %v7453 = vadd.f32 %v7451, %v7452
  %v7454 = vsel %vm211, %v7381, 0.0
  %v7455 = vadd.f32 %v7453, %v7454
  %v7456 = vsel %vm211, %v7382, 0.0
  %v7457 = vadd.f32 %v7455, %v7456
  %v7458 = vsel %vm211, %v7383, 0.0
  %v7459 = vadd.f32 %v7457, %v7458
  %v7460 = vsel %vm211, %v7384, 0.0
  %v7461 = vadd.f32 %v7459, %v7460
  %v7462 = vsel %vm211, %v7385, 0.0
  %v7463 = vadd.f32 %v7461, %v7462
  %v7464 = vsel %vm211, %v7386, 0.0
  %v7465 = vadd.f32 %v7463, %v7464
  %v7466 = vsel %vm211, %v7387, 0.0
  %v7467 = vadd.f32 %v7465, %v7466
  %v7468 = vsel %vm211, %v7388, 0.0
  %v7469 = vadd.f32 %v7467, %v7468
  %v7470 = vsel %vm211, %v7389, 0.0
  %v7471 = vadd.f32 %v7469, %v7470
  %v7472 = vsel %vm211, %v7390, 0.0
  %v7473 = vadd.f32 %v7471, %v7472
  %v7474 = vsel %vm211, %v7391, 0.0
  %v7475 = vadd.f32 %v7473, %v7474
  %v7476 = vsel %vm211, %v7392, 0.0
  %v7477 = vadd.f32 %v7475, %v7476
  %v7478 = vsel %vm211, %v7393, 0.0
  %v7479 = vadd.f32 %v7477, %v7478
  %v7480 = vsel %vm211, %v7394, 0.0
  %v7481 = vadd.f32 %v7479, %v7480
  %v7482 = vsel %vm211, %v7395, 0.0
  %v7483 = vadd.f32 %v7481, %v7482
  %v7484 = vsel %vm211, %v7396, 0.0
  %v7485 = vadd.f32 %v7483, %v7484
  %v7486 = vsel %vm211, %v7397, 0.0
  %v7487 = vadd.f32 %v7485, %v7486
  %v7488 = vsel %vm211, %v7398, 0.0
  %v7489 = vadd.f32 %v7487, %v7488
  %v7490 = vsel %vm211, %v7399, 0.0
  %v7491 = vadd.f32 %v7489, %v7490
  %v7492 = vsel %vm211, %v7400, 0.0
  %v7493 = vadd.f32 %v7491, %v7492
  %v7494 = vsel %vm211, %v7401, 0.0
  %v7495 = vadd.f32 %v7493, %v7494
  %v7496 = vsel %vm211, %v7402, 0.0
  %v7497 = vadd.f32 %v7495, %v7496
  %v7498 = vrot.slane %v7497, 4
  %v7499 = vadd.f32 %v7497, %v7498
  %v7500 = vrot.slane %v7499, 2
  %v7501 = vadd.f32 %v7499, %v7500
  %v7502 = vrot.slane %v7501, 1
  %v7503 = vadd.f32 %v7501, %v7502
  %v7505 = vsel %vm211, %v7503, 0
  %7507 = vmatprep.subr.mxu0 0.0
  %7508 = vmatpush1.msra.mxu0 0.0
  %7509 = vmatprep.subr.mxu0 0.0
  %7510 = vmatpush1.msra.mxu0 0.0
  %7511 = vmatprep.subr.mxu0 0.0
  %7512 = vmatpush1.msra.mxu0 0.0
  %7513 = vmatprep.subr.mxu0 0.0
  %7514 = vmatpush1.msra.mxu0 0.0
  %7515 = vmatprep.subr.mxu0 0.0
  %7516 = vmatpush1.msra.mxu0 0.0
  %7517 = vmatprep.subr.mxu0 0.0
  %7518 = vmatpush1.msra.mxu0 0.0
  %7519 = vmatprep.subr.mxu0 0.0
  %7520 = vmatpush1.msra.mxu0 0.0
  %7521 = vmatprep.subr.mxu0 0.0
  %7522 = vmatpush1.msra.mxu0 0.0
  %7523 = vmatprep.subr.mxu0 0.0
  %7524 = vmatpush1.msra.mxu0 0.0
  %7525 = vmatprep.subr.mxu0 0.0
  %7526 = vmatpush1.msra.mxu0 0.0
  %7527 = vmatprep.subr.mxu0 0.0
  %7528 = vmatpush1.msra.mxu0 0.0
  %7529 = vmatprep.subr.mxu0 0.0
  %7530 = vmatpush1.msra.mxu0 0.0
  %7531 = vmatprep.subr.mxu0 0.0
  %7532 = vmatpush1.msra.mxu0 %v5993
  %7533 = vmatprep.subr.mxu0 0.0
  %7534 = vmatpush1.msra.mxu0 %v5992
  %7535 = vmatprep.subr.mxu0 0.0
  %7536 = vmatpush1.msra.mxu0 %v5991
  %7537 = vmatprep.subr.mxu0 0.0
  %7538 = vmatpush1.msra.mxu0 %v5990
  %7539 = vmatprep.subr.mxu0 0.0
  %7540 = vmatpush2.msra.mxu0 0.0
  %7541 = vmatprep.subr.mxu0 0.0
  %7542 = vmatpush2.msra.mxu0 0.0
  %7543 = vmatprep.subr.mxu0 0.0
  %7544 = vmatpush2.msra.mxu0 0.0
  %7545 = vmatprep.subr.mxu0 0.0
  %7546 = vmatpush2.msra.mxu0 0.0
  %7547 = vmatprep.subr.mxu0 0.0
  %7548 = vmatpush2.msra.mxu0 0.0
  %7549 = vmatprep.subr.mxu0 0.0
  %7550 = vmatpush2.msra.mxu0 0.0
  %7551 = vmatprep.subr.mxu0 0.0
  %7552 = vmatpush2.msra.mxu0 0.0
  %7553 = vmatprep.subr.mxu0 0.0
  %7554 = vmatpush2.msra.mxu0 0.0
  %7555 = vmatprep.subr.mxu0 0.0
  %7556 = vmatpush2.msra.mxu0 0.0
  %7557 = vmatprep.subr.mxu0 0.0
  %7558 = vmatpush2.msra.mxu0 0.0
  %7559 = vmatprep.subr.mxu0 0.0
  %7560 = vmatpush2.msra.mxu0 0.0
  %7561 = vmatprep.subr.mxu0 0.0
  %7562 = vmatpush2.msra.mxu0 0.0
  %7563 = vmatprep.subr.mxu0 0.0
  %7564 = vmatpush2.msra.mxu0 0.0
  %7565 = vmatprep.subr.mxu0 0.0
  %7566 = vmatpush2.msra.mxu0 0.0
  %7567 = vmatprep.subr.mxu0 0.0
  %7568 = vmatpush2.msra.mxu0 0.0
  %7569 = vmatprep.subr.mxu0 0.0
  %7570 = vmatpush2.msra.mxu0 0.0
  %7571 = vmatprep.mubr.f32.mxu0 0.0
  %7572 = vmatmul.mubr.f32.gmra.mxu0 %v7505
  %v7573 = vpop.f32.mrf.mxu0
  %v7574 = vadd.f32 0.0, %v7573
  %v7575 = vpop.f32.mrf.mxu0
  %7576 = vdwg.mxu0
  %v7577 = vmul.f32 %v7574, 0.00390625
  %v7578 = vadd.f32 %v7577, 1e-05
  %v7579 = vrsqrt.pop %v7578
  %v7581 = vsel %vm211, %v7579, 0
  %7583 = vmatprep.subr.mxu0 0.0
  %7584 = vmatpush1.msra.mxu0 0.0
  %7585 = vmatprep.subr.mxu0 0.0
  %7586 = vmatpush1.msra.mxu0 0.0
  %7587 = vmatprep.subr.mxu0 0.0
  %7588 = vmatpush1.msra.mxu0 0.0
  %7589 = vmatprep.subr.mxu0 0.0
  %7590 = vmatpush1.msra.mxu0 0.0
  %7591 = vmatprep.subr.mxu0 0.0
  %7592 = vmatpush1.msra.mxu0 0.0
  %7593 = vmatprep.subr.mxu0 0.0
  %7594 = vmatpush1.msra.mxu0 0.0
  %7595 = vmatprep.subr.mxu0 0.0
  %7596 = vmatpush1.msra.mxu0 0.0
  %7597 = vmatprep.subr.mxu0 0.0
  %7598 = vmatpush1.msra.mxu0 0.0
  %7599 = vmatprep.subr.mxu0 0.0
  %7600 = vmatpush1.msra.mxu0 0.0
  %7601 = vmatprep.subr.mxu0 0.0
  %7602 = vmatpush1.msra.mxu0 0.0
  %7603 = vmatprep.subr.mxu0 0.0
  %7604 = vmatpush1.msra.mxu0 0.0
  %7605 = vmatprep.subr.mxu0 0.0
  %7606 = vmatpush1.msra.mxu0 0.0
  %7607 = vmatprep.subr.mxu0 0.0
  %7608 = vmatpush1.msra.mxu0 %v5997
  %7609 = vmatprep.subr.mxu0 0.0
  %7610 = vmatpush1.msra.mxu0 %v5996
  %7611 = vmatprep.subr.mxu0 0.0
  %7612 = vmatpush1.msra.mxu0 %v5995
  %7613 = vmatprep.subr.mxu0 0.0
  %7614 = vmatpush1.msra.mxu0 %v5994
  %7615 = vmatprep.subr.mxu0 0.0
  %7616 = vmatpush2.msra.mxu0 0.0
  %7617 = vmatprep.subr.mxu0 0.0
  %7618 = vmatpush2.msra.mxu0 0.0
  %7619 = vmatprep.subr.mxu0 0.0
  %7620 = vmatpush2.msra.mxu0 0.0
  %7621 = vmatprep.subr.mxu0 0.0
  %7622 = vmatpush2.msra.mxu0 0.0
  %7623 = vmatprep.subr.mxu0 0.0
  %7624 = vmatpush2.msra.mxu0 0.0
  %7625 = vmatprep.subr.mxu0 0.0
  %7626 = vmatpush2.msra.mxu0 0.0
  %7627 = vmatprep.subr.mxu0 0.0
  %7628 = vmatpush2.msra.mxu0 0.0
  %7629 = vmatprep.subr.mxu0 0.0
  %7630 = vmatpush2.msra.mxu0 0.0
  %7631 = vmatprep.subr.mxu0 0.0
  %7632 = vmatpush2.msra.mxu0 0.0
  %7633 = vmatprep.subr.mxu0 0.0
  %7634 = vmatpush2.msra.mxu0 0.0
  %7635 = vmatprep.subr.mxu0 0.0
  %7636 = vmatpush2.msra.mxu0 0.0
  %7637 = vmatprep.subr.mxu0 0.0
  %7638 = vmatpush2.msra.mxu0 0.0
  %7639 = vmatprep.subr.mxu0 0.0
  %7640 = vmatpush2.msra.mxu0 0.0
  %7641 = vmatprep.subr.mxu0 0.0
  %7642 = vmatpush2.msra.mxu0 0.0
  %7643 = vmatprep.subr.mxu0 0.0
  %7644 = vmatpush2.msra.mxu0 0.0
  %7645 = vmatprep.subr.mxu0 0.0
  %7646 = vmatpush2.msra.mxu0 0.0
  %7647 = vmatprep.mubr.f32.mxu0 0.0
  %7648 = vmatmul.mubr.f32.gmra.mxu0 %v7581
  %v7649 = vpop.f32.mrf.mxu0
  %v7650 = vadd.f32 0.0, %v7649
  %v7651 = vpop.f32.mrf.mxu0
  %7652 = vdwg.mxu0
  %v7653 = vlaneseq
  %v7654 = vshrl.u32 %v7653, 7
  %v7655 = vsub.s32 0, %v7654
  %v7656 = vrot.slane %v7650, %v7655
  %v7657 = vmul.f32 %v7259, %v7656
  %v7658 = vmul.f32 %v7260, %v7656
  %v7659 = vmul.f32 %v7261, %v7656
  %v7660 = vmul.f32 %v7262, %v7656
  %v7661 = vmul.f32 %v7263, %v7656
  %v7662 = vmul.f32 %v7264, %v7656
  %v7663 = vmul.f32 %v7265, %v7656
  %v7664 = vmul.f32 %v7266, %v7656
  %v7665 = vmul.f32 %v7267, %v7656
  %v7666 = vmul.f32 %v7268, %v7656
  %v7667 = vmul.f32 %v7269, %v7656
  %v7668 = vmul.f32 %v7270, %v7656
  %v7669 = vmul.f32 %v7271, %v7656
  %v7670 = vmul.f32 %v7272, %v7656
  %v7671 = vmul.f32 %v7273, %v7656
  %v7672 = vmul.f32 %v7274, %v7656
  %v7673 = vmul.f32 %v7275, %v7656
  %v7674 = vmul.f32 %v7276, %v7656
  %v7675 = vmul.f32 %v7277, %v7656
  %v7676 = vmul.f32 %v7278, %v7656
  %v7677 = vmul.f32 %v7279, %v7656
  %v7678 = vmul.f32 %v7280, %v7656
  %v7679 = vmul.f32 %v7281, %v7656
  %v7680 = vmul.f32 %v7282, %v7656
  %v7681 = vmul.f32 %v7283, %v7656
  %v7682 = vmul.f32 %v7284, %v7656
  %v7683 = vmul.f32 %v7285, %v7656
  %v7684 = vmul.f32 %v7286, %v7656
  %v7685 = vmul.f32 %v7287, %v7656
  %v7686 = vmul.f32 %v7288, %v7656
  %v7687 = vmul.f32 %v7289, %v7656
  %v7688 = vmul.f32 %v7290, %v7656
  %v7689 = vmul.f32 %v7291, %v7656
  %v7690 = vmul.f32 %v7292, %v7656
  %v7691 = vmul.f32 %v7293, %v7656
  %v7692 = vmul.f32 %v7294, %v7656
  %v7693 = vmul.f32 %v7295, %v7656
  %v7694 = vmul.f32 %v7296, %v7656
  %v7695 = vmul.f32 %v7297, %v7656
  %v7696 = vmul.f32 %v7298, %v7656
  %v7697 = vmul.f32 %v7299, %v7656
  %v7698 = vmul.f32 %v7300, %v7656
  %v7699 = vmul.f32 %v7301, %v7656
  %v7700 = vmul.f32 %v7302, %v7656
  %v7701 = vmul.f32 %v7303, %v7656
  %v7702 = vmul.f32 %v7304, %v7656
  %v7703 = vmul.f32 %v7305, %v7656
  %v7704 = vmul.f32 %v7306, %v7656
  %v7706 = vlaneseq
  %v7707 = vshrl.u32 %v7706, 7
  %v7708 = vsub.s32 0, %v7707
  %v7709 = vrot.slane %v5988, %v7708
  %v7711 = vmul.f32 %v7657, %v7709
  %v7712 = vmul.f32 %v7658, %v7709
  %v7713 = vmul.f32 %v7659, %v7709
  %v7714 = vmul.f32 %v7660, %v7709
  %v7715 = vmul.f32 %v7661, %v7709
  %v7716 = vmul.f32 %v7662, %v7709
  %v7717 = vmul.f32 %v7663, %v7709
  %v7718 = vmul.f32 %v7664, %v7709
  %v7719 = vmul.f32 %v7665, %v7709
  %v7720 = vmul.f32 %v7666, %v7709
  %v7721 = vmul.f32 %v7667, %v7709
  %v7722 = vmul.f32 %v7668, %v7709
  %v7723 = vmul.f32 %v7669, %v7709
  %v7724 = vmul.f32 %v7670, %v7709
  %v7725 = vmul.f32 %v7671, %v7709
  %v7726 = vmul.f32 %v7672, %v7709
  %v7727 = vmul.f32 %v7673, %v7709
  %v7728 = vmul.f32 %v7674, %v7709
  %v7729 = vmul.f32 %v7675, %v7709
  %v7730 = vmul.f32 %v7676, %v7709
  %v7731 = vmul.f32 %v7677, %v7709
  %v7732 = vmul.f32 %v7678, %v7709
  %v7733 = vmul.f32 %v7679, %v7709
  %v7734 = vmul.f32 %v7680, %v7709
  %v7735 = vmul.f32 %v7681, %v7709
  %v7736 = vmul.f32 %v7682, %v7709
  %v7737 = vmul.f32 %v7683, %v7709
  %v7738 = vmul.f32 %v7684, %v7709
  %v7739 = vmul.f32 %v7685, %v7709
  %v7740 = vmul.f32 %v7686, %v7709
  %v7741 = vmul.f32 %v7687, %v7709
  %v7742 = vmul.f32 %v7688, %v7709
  %v7743 = vmul.f32 %v7689, %v7709
  %v7744 = vmul.f32 %v7690, %v7709
  %v7745 = vmul.f32 %v7691, %v7709
  %v7746 = vmul.f32 %v7692, %v7709
  %v7747 = vmul.f32 %v7693, %v7709
  %v7748 = vmul.f32 %v7694, %v7709
  %v7749 = vmul.f32 %v7695, %v7709
  %v7750 = vmul.f32 %v7696, %v7709
  %v7751 = vmul.f32 %v7697, %v7709
  %v7752 = vmul.f32 %v7698, %v7709
  %v7753 = vmul.f32 %v7699, %v7709
  %v7754 = vmul.f32 %v7700, %v7709
  %v7755 = vmul.f32 %v7701, %v7709
  %v7756 = vmul.f32 %v7702, %v7709
  %v7757 = vmul.f32 %v7703, %v7709
  %v7758 = vmul.f32 %v7704, %v7709
  %v7760 = vlaneseq
  %v7761 = vshrl.u32 %v7760, 7
  %v7762 = vsub.s32 0, %v7761
  %v7763 = vrot.slane %v5989, %v7762
  %v7765 = vadd.f32 %v7711, %v7763
  %v7766 = vadd.f32 %v7712, %v7763
  %v7767 = vadd.f32 %v7713, %v7763
  %v7768 = vadd.f32 %v7714, %v7763
  %v7769 = vadd.f32 %v7715, %v7763
  %v7770 = vadd.f32 %v7716, %v7763
  %v7771 = vadd.f32 %v7717, %v7763
  %v7772 = vadd.f32 %v7718, %v7763
  %v7773 = vadd.f32 %v7719, %v7763
  %v7774 = vadd.f32 %v7720, %v7763
  %v7775 = vadd.f32 %v7721, %v7763
  %v7776 = vadd.f32 %v7722, %v7763
  %v7777 = vadd.f32 %v7723, %v7763
  %v7778 = vadd.f32 %v7724, %v7763
  %v7779 = vadd.f32 %v7725, %v7763
  %v7780 = vadd.f32 %v7726, %v7763
  %v7781 = vadd.f32 %v7727, %v7763
  %v7782 = vadd.f32 %v7728, %v7763
  %v7783 = vadd.f32 %v7729, %v7763
  %v7784 = vadd.f32 %v7730, %v7763
  %v7785 = vadd.f32 %v7731, %v7763
  %v7786 = vadd.f32 %v7732, %v7763
  %v7787 = vadd.f32 %v7733, %v7763
  %v7788 = vadd.f32 %v7734, %v7763
  %v7789 = vadd.f32 %v7735, %v7763
  %v7790 = vadd.f32 %v7736, %v7763
  %v7791 = vadd.f32 %v7737, %v7763
  %v7792 = vadd.f32 %v7738, %v7763
  %v7793 = vadd.f32 %v7739, %v7763
  %v7794 = vadd.f32 %v7740, %v7763
  %v7795 = vadd.f32 %v7741, %v7763
  %v7796 = vadd.f32 %v7742, %v7763
  %v7797 = vadd.f32 %v7743, %v7763
  %v7798 = vadd.f32 %v7744, %v7763
  %v7799 = vadd.f32 %v7745, %v7763
  %v7800 = vadd.f32 %v7746, %v7763
  %v7801 = vadd.f32 %v7747, %v7763
  %v7802 = vadd.f32 %v7748, %v7763
  %v7803 = vadd.f32 %v7749, %v7763
  %v7804 = vadd.f32 %v7750, %v7763
  %v7805 = vadd.f32 %v7751, %v7763
  %v7806 = vadd.f32 %v7752, %v7763
  %v7807 = vadd.f32 %v7753, %v7763
  %v7808 = vadd.f32 %v7754, %v7763
  %v7809 = vadd.f32 %v7755, %v7763
  %v7810 = vadd.f32 %v7756, %v7763
  %v7811 = vadd.f32 %v7757, %v7763
  %v7812 = vadd.f32 %v7758, %v7763
  %v7813 = vmax.f32 %v7765, 0.0
  %v7814 = vmax.f32 %v7766, 0.0
  %v7815 = vmax.f32 %v7767, 0.0
  %v7816 = vmax.f32 %v7768, 0.0
  %v7817 = vmax.f32 %v7769, 0.0
  %v7818 = vmax.f32 %v7770, 0.0
  %v7819 = vmax.f32 %v7771, 0.0
  %v7820 = vmax.f32 %v7772, 0.0
  %v7821 = vmax.f32 %v7773, 0.0
  %v7822 = vmax.f32 %v7774, 0.0
  %v7823 = vmax.f32 %v7775, 0.0
  %v7824 = vmax.f32 %v7776, 0.0
  %v7825 = vmax.f32 %v7777, 0.0
  %v7826 = vmax.f32 %v7778, 0.0
  %v7827 = vmax.f32 %v7779, 0.0
  %v7828 = vmax.f32 %v7780, 0.0
  %v7829 = vmax.f32 %v7781, 0.0
  %v7830 = vmax.f32 %v7782, 0.0
  %v7831 = vmax.f32 %v7783, 0.0
  %v7832 = vmax.f32 %v7784, 0.0
  %v7833 = vmax.f32 %v7785, 0.0
  %v7834 = vmax.f32 %v7786, 0.0
  %v7835 = vmax.f32 %v7787, 0.0
  %v7836 = vmax.f32 %v7788, 0.0
  %v7837 = vmax.f32 %v7789, 0.0
  %v7838 = vmax.f32 %v7790, 0.0
  %v7839 = vmax.f32 %v7791, 0.0
  %v7840 = vmax.f32 %v7792, 0.0
  %v7841 = vmax.f32 %v7793, 0.0
  %v7842 = vmax.f32 %v7794, 0.0
  %v7843 = vmax.f32 %v7795, 0.0
  %v7844 = vmax.f32 %v7796, 0.0
  %v7845 = vmax.f32 %v7797, 0.0
  %v7846 = vmax.f32 %v7798, 0.0
  %v7847 = vmax.f32 %v7799, 0.0
  %v7848 = vmax.f32 %v7800, 0.0
  %v7849 = vmax.f32 %v7801, 0.0
  %v7850 = vmax.f32 %v7802, 0.0
  %v7851 = vmax.f32 %v7803, 0.0
  %v7852 = vmax.f32 %v7804, 0.0
  %v7853 = vmax.f32 %v7805, 0.0
  %v7854 = vmax.f32 %v7806, 0.0
  %v7855 = vmax.f32 %v7807, 0.0
  %v7856 = vmax.f32 %v7808, 0.0
  %v7857 = vmax.f32 %v7809, 0.0
  %v7858 = vmax.f32 %v7810, 0.0
  %v7859 = vmax.f32 %v7811, 0.0
  %v7860 = vmax.f32 %v7812, 0.0
  %v7861 = vpack.c.bf16 %v7814, %v7813
  %v7862 = vpack.c.bf16 %v7816, %v7815
  %v7863 = vpack.c.bf16 %v7818, %v7817
  %v7864 = vpack.c.bf16 %v7820, %v7819
  %v7865 = vpack.c.bf16 %v7822, %v7821
  %v7866 = vpack.c.bf16 %v7824, %v7823
  %v7867 = vpack.c.bf16 %v7826, %v7825
  %v7868 = vpack.c.bf16 %v7828, %v7827
  %v7869 = vpack.c.bf16 %v7830, %v7829
  %v7870 = vpack.c.bf16 %v7832, %v7831
  %v7871 = vpack.c.bf16 %v7834, %v7833
  %v7872 = vpack.c.bf16 %v7836, %v7835
  %v7873 = vpack.c.bf16 %v7838, %v7837
  %v7874 = vpack.c.bf16 %v7840, %v7839
  %v7875 = vpack.c.bf16 %v7842, %v7841
  %v7876 = vpack.c.bf16 %v7844, %v7843
  %v7877 = vpack.c.bf16 %v7846, %v7845
  %v7878 = vpack.c.bf16 %v7848, %v7847
  %v7879 = vpack.c.bf16 %v7850, %v7849
  %v7880 = vpack.c.bf16 %v7852, %v7851
  %v7881 = vpack.c.bf16 %v7854, %v7853
  %v7882 = vpack.c.bf16 %v7856, %v7855
  %v7883 = vpack.c.bf16 %v7858, %v7857
  %v7884 = vpack.c.bf16 %v7860, %v7859
  %v7909 = vunpack.c.l.b16 %v7861
  %v7910 = vunpack.c.h.b16 %v7861
  %v7911 = vunpack.c.l.b16 %v7862
  %v7912 = vunpack.c.h.b16 %v7862
  %v7913 = vunpack.c.l.b16 %v7863
  %v7914 = vunpack.c.h.b16 %v7863
  %v7915 = vunpack.c.l.b16 %v7864
  %v7916 = vunpack.c.h.b16 %v7864
  %v7917 = vunpack.c.l.b16 %v7865
  %v7918 = vunpack.c.h.b16 %v7865
  %v7919 = vunpack.c.l.b16 %v7866
  %v7920 = vunpack.c.h.b16 %v7866
  %v7921 = vunpack.c.l.b16 %v7867
  %v7922 = vunpack.c.h.b16 %v7867
  %v7923 = vunpack.c.l.b16 %v7868
  %v7924 = vunpack.c.h.b16 %v7868
  %v7925 = vunpack.c.l.b16 %v7869
  %v7926 = vunpack.c.h.b16 %v7869
  %v7927 = vunpack.c.l.b16 %v7870
  %v7928 = vunpack.c.h.b16 %v7870
  %v7929 = vunpack.c.l.b16 %v7871
  %v7930 = vunpack.c.h.b16 %v7871
  %v7931 = vunpack.c.l.b16 %v7872
  %v7932 = vunpack.c.h.b16 %v7872
  %v7933 = vunpack.c.l.b16 %v7873
  %v7934 = vunpack.c.h.b16 %v7873
  %v7935 = vunpack.c.l.b16 %v7874
  %v7936 = vunpack.c.h.b16 %v7874
  %v7937 = vunpack.c.l.b16 %v7875
  %v7938 = vunpack.c.h.b16 %v7875
  %v7939 = vunpack.c.l.b16 %v7876
  %v7940 = vunpack.c.h.b16 %v7876
  %v7941 = vunpack.c.l.b16 %v7877
  %v7942 = vunpack.c.h.b16 %v7877
  %v7943 = vunpack.c.l.b16 %v7878
  %v7944 = vunpack.c.h.b16 %v7878
  %v7945 = vunpack.c.l.b16 %v7879
  %v7946 = vunpack.c.h.b16 %v7879
  %v7947 = vunpack.c.l.b16 %v7880
  %v7948 = vunpack.c.h.b16 %v7880
  %v7949 = vunpack.c.l.b16 %v7881
  %v7950 = vunpack.c.h.b16 %v7881
  %v7951 = vunpack.c.l.b16 %v7882
  %v7952 = vunpack.c.h.b16 %v7882
  %v7953 = vunpack.c.l.b16 %v7883
  %v7954 = vunpack.c.h.b16 %v7883
  %v7955 = vunpack.c.l.b16 %v7884
  %v7956 = vunpack.c.h.b16 %v7884
  %v7957 = vpack.c.b16 %v7909, %v7909
  %v7958 = vpack.c.b16 %v7910, %v7910
  %v7959 = vpack.c.b16 %v7911, %v7911
  %v7960 = vpack.c.b16 %v7912, %v7912
  %v7961 = vpack.c.b16 %v7913, %v7913
  %v7962 = vpack.c.b16 %v7914, %v7914
  %v7963 = vpack.c.b16 %v7915, %v7915
  %v7964 = vpack.c.b16 %v7916, %v7916
  %v7965 = vpack.c.b16 %v7917, %v7917
  %v7966 = vpack.c.b16 %v7918, %v7918
  %v7967 = vpack.c.b16 %v7919, %v7919
  %v7968 = vpack.c.b16 %v7920, %v7920
  %v7969 = vpack.c.b16 %v7921, %v7921
  %v7970 = vpack.c.b16 %v7922, %v7922
  %v7971 = vpack.c.b16 %v7923, %v7923
  %v7972 = vpack.c.b16 %v7924, %v7924
  %v7973 = vpack.c.b16 %v7925, %v7925
  %v7974 = vpack.c.b16 %v7926, %v7926
  %v7975 = vpack.c.b16 %v7927, %v7927
  %v7976 = vpack.c.b16 %v7928, %v7928
  %v7977 = vpack.c.b16 %v7929, %v7929
  %v7978 = vpack.c.b16 %v7930, %v7930
  %v7979 = vpack.c.b16 %v7931, %v7931
  %v7980 = vpack.c.b16 %v7932, %v7932
  %v7981 = vpack.c.b16 %v7933, %v7933
  %v7982 = vpack.c.b16 %v7934, %v7934
  %v7983 = vpack.c.b16 %v7935, %v7935
  %v7984 = vpack.c.b16 %v7936, %v7936
  %v7985 = vpack.c.b16 %v7937, %v7937
  %v7986 = vpack.c.b16 %v7938, %v7938
  %v7987 = vpack.c.b16 %v7939, %v7939
  %v7988 = vpack.c.b16 %v7940, %v7940
  %v7989 = vpack.c.b16 %v7941, %v7941
  %v7990 = vpack.c.b16 %v7942, %v7942
  %v7991 = vpack.c.b16 %v7943, %v7943
  %v7992 = vpack.c.b16 %v7944, %v7944
  %v7993 = vpack.c.b16 %v7945, %v7945
  %v7994 = vpack.c.b16 %v7946, %v7946
  %v7995 = vpack.c.b16 %v7947, %v7947
  %v7996 = vpack.c.b16 %v7948, %v7948
  %v7997 = vpack.c.b16 %v7949, %v7949
  %v7998 = vpack.c.b16 %v7950, %v7950
  %v7999 = vpack.c.b16 %v7951, %v7951
  %v8000 = vpack.c.b16 %v7952, %v7952
  %v8001 = vpack.c.b16 %v7953, %v7953
  %v8002 = vpack.c.b16 %v7954, %v7954
  %v8003 = vpack.c.b16 %v7955, %v7955
  %v8004 = vpack.c.b16 %v7956, %v7956
  %vm8053 = vcmask 257024
  %8054 = vst.msk [vmem:[%s7] sm:$0xf] %vm8053, %v7957
  %8055 = vst.msk [vmem:[%s7 + $0x4] sm:$0xf] %vm8053, %v7958
  %8056 = vst.msk [vmem:[%s7 + $0x8] sm:$0xf] %vm8053, %v7959
  %8057 = vst.msk [vmem:[%s7 + $0xc] sm:$0xf] %vm8053, %v7960
  %8058 = vst.msk [vmem:[%s7 + $0x10] sm:$0xf] %vm8053, %v7961
  %8059 = vst.msk [vmem:[%s7 + $0x14] sm:$0xf] %vm8053, %v7962
  %8060 = vst.msk [vmem:[%s7 + $0x18] sm:$0xf] %vm8053, %v7963
  %8061 = vst.msk [vmem:[%s7 + $0x1c] sm:$0xf] %vm8053, %v7964
  %8062 = vst.msk [vmem:[%s7 + $0x20] sm:$0xf] %vm8053, %v7965
  %8063 = vst.msk [vmem:[%s7 + $0x24] sm:$0xf] %vm8053, %v7966
  %8064 = vst.msk [vmem:[%s7 + $0x28] sm:$0xf] %vm8053, %v7967
  %8065 = vst.msk [vmem:[%s7 + $0x2c] sm:$0xf] %vm8053, %v7968
  %8066 = vst.msk [vmem:[%s7 + $0x30] sm:$0xf] %vm8053, %v7969
  %8067 = vst.msk [vmem:[%s7 + $0x34] sm:$0xf] %vm8053, %v7970
  %8068 = vst.msk [vmem:[%s7 + $0x38] sm:$0xf] %vm8053, %v7971
  %8069 = vst.msk [vmem:[%s7 + $0x3c] sm:$0xf] %vm8053, %v7972
  %8070 = vst.msk [vmem:[%s7 + $0x40] sm:$0xf] %vm8053, %v7973
  %8071 = vst.msk [vmem:[%s7 + $0x44] sm:$0xf] %vm8053, %v7974
  %8072 = vst.msk [vmem:[%s7 + $0x48] sm:$0xf] %vm8053, %v7975
  %8073 = vst.msk [vmem:[%s7 + $0x4c] sm:$0xf] %vm8053, %v7976
  %8074 = vst.msk [vmem:[%s7 + $0x50] sm:$0xf] %vm8053, %v7977
  %8075 = vst.msk [vmem:[%s7 + $0x54] sm:$0xf] %vm8053, %v7978
  %8076 = vst.msk [vmem:[%s7 + $0x58] sm:$0xf] %vm8053, %v7979
  %8077 = vst.msk [vmem:[%s7 + $0x5c] sm:$0xf] %vm8053, %v7980
  %8078 = vst.msk [vmem:[%s7 + $0x60] sm:$0xf] %vm8053, %v7981
  %8079 = vst.msk [vmem:[%s7 + $0x64] sm:$0xf] %vm8053, %v7982
  %8080 = vst.msk [vmem:[%s7 + $0x68] sm:$0xf] %vm8053, %v7983
  %8081 = vst.msk [vmem:[%s7 + $0x6c] sm:$0xf] %vm8053, %v7984
  %8082 = vst.msk [vmem:[%s7 + $0x70] sm:$0xf] %vm8053, %v7985
  %8083 = vst.msk [vmem:[%s7 + $0x74] sm:$0xf] %vm8053, %v7986
  %8084 = vst.msk [vmem:[%s7 + $0x78] sm:$0xf] %vm8053, %v7987
  %8085 = vst.msk [vmem:[%s7 + $0x7c] sm:$0xf] %vm8053, %v7988
  %8086 = vst.msk [vmem:[%s7 + $0x80] sm:$0xf] %vm8053, %v7989
  %8087 = vst.msk [vmem:[%s7 + $0x84] sm:$0xf] %vm8053, %v7990
  %8088 = vst.msk [vmem:[%s7 + $0x88] sm:$0xf] %vm8053, %v7991
  %8089 = vst.msk [vmem:[%s7 + $0x8c] sm:$0xf] %vm8053, %v7992
  %8090 = vst.msk [vmem:[%s7 + $0x90] sm:$0xf] %vm8053, %v7993
  %8091 = vst.msk [vmem:[%s7 + $0x94] sm:$0xf] %vm8053, %v7994
  %8092 = vst.msk [vmem:[%s7 + $0x98] sm:$0xf] %vm8053, %v7995
  %8093 = vst.msk [vmem:[%s7 + $0x9c] sm:$0xf] %vm8053, %v7996
  %8094 = vst.msk [vmem:[%s7 + $0xa0] sm:$0xf] %vm8053, %v7997
  %8095 = vst.msk [vmem:[%s7 + $0xa4] sm:$0xf] %vm8053, %v7998
  %8096 = vst.msk [vmem:[%s7 + $0xa8] sm:$0xf] %vm8053, %v7999
  %8097 = vst.msk [vmem:[%s7 + $0xac] sm:$0xf] %vm8053, %v8000
  %8098 = vst.msk [vmem:[%s7 + $0xb0] sm:$0xf] %vm8053, %v8001
  %8099 = vst.msk [vmem:[%s7 + $0xb4] sm:$0xf] %vm8053, %v8002
  %8100 = vst.msk [vmem:[%s7 + $0xb8] sm:$0xf] %vm8053, %v8003
  %8101 = vst.msk [vmem:[%s7 + $0xbc] sm:$0xf] %vm8053, %v8004
  // Predicated region
  $region30: #{conv3x3_gn.1} parent=0 // pred_check
    _
  $region31: #{conv3x3_gn.1} parent=0 // pred_check_branch
    %8103 = sbr.rel (0) target = $region33
  $region32: #{conv3x3_gn.1} parent=0 // pred_region
    _
  $region33: #{conv3x3_gn.1} parent=0 // pred_fallthru
    _
  // Predicated region
  $region34: #{conv3x3_gn.1} parent=0 // pred_check
    _
  $region35: #{conv3x3_gn.1} parent=0 // pred_check_branch
    %8105 = sbr.rel (0) target = $region37
  $region36: #{conv3x3_gn.1} parent=0 // pred_region
    _
  $region37: #{conv3x3_gn.1} parent=0 // pred_fallthru
    _

</llo_original>
